<compile_context>
chip_gen: v7x
topology: tpu7x:2x2x1
jax: 0.10.0
libtpu: 0.0.40
codegen_flags: <defaults>
</compile_context>

<pallas_src>
import functools

import jax
import jax.numpy as jnp
from jax.experimental import pallas as pl
from jax.experimental.pallas import tpu as pltpu

EPS = 1e-5
LANE = 128


def _round_up(x, m):
    return (x + m - 1) // m * m


@functools.lru_cache(maxsize=None)
def _vmem_limit_bytes():
    cap = 128 * 1024 * 1024
    try:
        cap = int(pltpu.get_tpu_info().vmem_capacity_bytes)
    except Exception:
        pass
    return int(min(max(int(cap * 0.7), 32 * 1024 * 1024), 100 * 1024 * 1024))


# ---------------------------------------------------------------------------
# Kernel 1: 3x3x3 conv (padding=1, stride=1), 2 output depth planes per step.
# Builds the im2col patch in VMEM and runs 3 wide-K MXU matmuls; emits bf16
# conv output + f32 per-tile BN partial sums (reduced outside the kernel).
# ---------------------------------------------------------------------------
def _conv_kernel(x0_ref, x1_ref, w_ref, o_ref, st_ref, *, H, W):
    Coutp = o_ref.shape[-1]
    HW = H * W
    # Four consecutive padded depth planes covering output planes [2d, 2d+2).
    planes = (x0_ref[0], x0_ref[1], x1_ref[0], x1_ref[1])   # (H+2, W+2, Cin)

    rows = []
    for p in range(4):
        # Unpack once to f32 so the 9 shifted sub-window slices stay on plain
        # layouts; single re-pack to bf16 per plane (was 9 casts per plane).
        xs = planes[p].astype(jnp.float32)
        taps = [xs[kh:kh + H, kw:kw + W, :].reshape(HW, -1)
                for kh in range(3) for kw in range(3)]
        rows.append(jnp.concatenate(taps, axis=-1).astype(jnp.bfloat16))

    # out[t] = sum_kd rows[t+kd] @ w[kd]  ->  stack t=0,1 on the M axis.
    acc = jnp.zeros((2 * HW, Coutp), jnp.float32)
    for kd in range(3):
        lhs = jnp.concatenate([rows[kd], rows[kd + 1]], axis=0)   # (2*HW, 9*Cin)
        acc = acc + jnp.dot(lhs, w_ref[kd], preferred_element_type=jnp.float32)

    o_ref[...] = acc.reshape(2, H, W, Coutp).astype(o_ref.dtype)
    # Per-grid-tile partial sums (f32, pre-bf16-rounding) -> grid stays parallel.
    st_ref[0:1, :] = jnp.sum(acc, axis=0, keepdims=True)
    st_ref[1:2, :] = jnp.sum(acc * acc, axis=0, keepdims=True)


def conv3x3x3(xp, w_taps):
    """xp:     (N, D+2, H+2, W+2, Cin) bf16, spatially padded NDHWC.
       w_taps: (3, 9*Cin, Coutp)       bf16, zero-padded to lane-dense Coutp.
       returns conv_out (N, D, H, W, Coutp) bf16, stats (N, D//2, 2, Coutp) f32."""
    N, Dp2, Hp2, Wp2, Cin = xp.shape
    D, H, W = Dp2 - 2, Hp2 - 2, Wp2 - 2
    assert D % 2 == 0
    KR, Coutp = w_taps.shape[1], w_taps.shape[2]
    assert KR == 9 * Cin

    kernel = functools.partial(_conv_kernel, H=H, W=W)
    conv_out, stats = pl.pallas_call(
        kernel,
        out_shape=(jax.ShapeDtypeStruct((N, D, H, W, Coutp), jnp.bfloat16),
                   jax.ShapeDtypeStruct((N, D // 2, 2, Coutp), jnp.float32)),
        grid=(N, D // 2),
        in_specs=[
            # Two depth-shifted views of the same array: planes [2d, 2d+2) and
            # [2d+2, 2d+4) -> exactly the 4 planes needed, 2x (not 3x) reads.
            pl.BlockSpec((None, 2, Hp2, Wp2, Cin), lambda n, d: (n, d, 0, 0, 0)),
            pl.BlockSpec((None, 2, Hp2, Wp2, Cin), lambda n, d: (n, d + 1, 0, 0, 0)),
            pl.BlockSpec((3, KR, Coutp), lambda n, d: (0, 0, 0)),
        ],
        out_specs=(
            pl.BlockSpec((None, 2, H, W, Coutp), lambda n, d: (n, d, 0, 0, 0)),
            pl.BlockSpec((None, None, 2, Coutp), lambda n, d: (n, d, 0, 0)),
        ),
        compiler_params=pltpu.CompilerParams(
            dimension_semantics=("parallel", "parallel"),
            vmem_limit_bytes=_vmem_limit_bytes()),
    )(xp, xp, w_taps)
    return conv_out, stats


# ---------------------------------------------------------------------------
# Kernel 2: stage-1 epilogue.  BN + ReLU, written directly into the interior
# of the (D+2, H+2, W+2) zero-padded buffer that conv2 consumes (no jnp.pad).
# ---------------------------------------------------------------------------
def _bn_relu_pad_kernel(x_ref, sc_ref, sh_ref, o_ref, *, D):
    d = pl.program_id(1)
    H, W, C = x_ref.shape
    interior = jnp.logical_and(d >= 1, d <= D)

    @pl.when(interior)
    def _():
        y = jnp.maximum(x_ref[...].astype(jnp.float32) * sc_ref[...] + sh_ref[...],
                        0.0)                                    # (H, W, C)
        zw = jnp.zeros((H, 1, C), jnp.float32)
        y = jnp.concatenate([zw, y, zw], axis=1)                # (H, W+2, C)
        zh = jnp.zeros((1, W + 2, C), jnp.float32)
        y = jnp.concatenate([zh, y, zh], axis=0)                # (H+2, W+2, C)
        o_ref[...] = y.astype(o_ref.dtype)

    @pl.when(jnp.logical_not(interior))
    def _():
        o_ref[...] = jnp.zeros_like(o_ref)


def bn_relu_pad(conv_out, scale, shift):
    N, D, H, W, C = conv_out.shape
    kernel = functools.partial(_bn_relu_pad_kernel, D=D)
    return pl.pallas_call(
        kernel,
        out_shape=jax.ShapeDtypeStruct((N, D + 2, H + 2, W + 2, C), jnp.bfloat16),
        grid=(N, D + 2),
        in_specs=[
            pl.BlockSpec(
                (None, None, H, W, C),
                lambda n, d: (n, jnp.maximum(jnp.minimum(d - 1, D - 1), 0), 0, 0, 0)),
            pl.BlockSpec((1, C), lambda n, d: (0, 0)),
            pl.BlockSpec((1, C), lambda n, d: (0, 0)),
        ],
        out_specs=pl.BlockSpec((None, None, H + 2, W + 2, C),
                               lambda n, d: (n, d, 0, 0, 0)),
        compiler_params=pltpu.CompilerParams(
            dimension_semantics=("parallel", "parallel"),
            vmem_limit_bytes=_vmem_limit_bytes()),
    )(conv_out, scale, shift)


# ---------------------------------------------------------------------------
# Kernel 3: fused BN + ReLU + 2x2x2 maxpool.  Reads a (2, H, W, C) bf16 block
# once, writes both the un-pooled `res` slab and the pooled `out` slab (f32).
# ---------------------------------------------------------------------------
def _bn_relu_pool_kernel(x_ref, sc_ref, sh_ref, res_ref, out_ref, hw_ref):
    _, H, W, C = x_ref.shape
    y = jnp.maximum(x_ref[...].astype(jnp.float32) * sc_ref[...] + sh_ref[...],
                    0.0)                                        # (2, H, W, C)
    res_ref[...] = y
    m = jnp.maximum(y[0], y[1])                       # depth pool   (H, W, C)
    m = m.reshape(H // 2, 2, W, C)                    # leading-dim split only
    m = jnp.maximum(m[:, 0], m[:, 1])                 # height pool  (H//2, W, C)
    hw_ref[...] = m
    out_ref[...] = jnp.maximum(hw_ref[:, pl.ds(0, W // 2, stride=2), :],
                               hw_ref[:, pl.ds(1, W // 2, stride=2), :])


def bn_relu_maxpool(conv5d, scale, shift):
    N, D, H, W, C = conv5d.shape
    res, out = pl.pallas_call(
        _bn_relu_pool_kernel,
        out_shape=(jax.ShapeDtypeStruct((N, D, H, W, C), jnp.float32),
                   jax.ShapeDtypeStruct((N, D // 2, H // 2, W // 2, C),
                                        jnp.float32)),
        grid=(N, D // 2),
        in_specs=[pl.BlockSpec((None, 2, H, W, C), lambda n, d: (n, d, 0, 0, 0)),
                  pl.BlockSpec((1, C), lambda n, d: (0, 0)),
                  pl.BlockSpec((1, C), lambda n, d: (0, 0))],
        out_specs=(pl.BlockSpec((None, 2, H, W, C), lambda n, d: (n, d, 0, 0, 0)),
                   pl.BlockSpec((None, None, H // 2, W // 2, C),
                                lambda n, d: (n, d, 0, 0, 0))),
        scratch_shapes=[pltpu.VMEM((H // 2, W, C), jnp.float32)],
        compiler_params=pltpu.CompilerParams(
            dimension_semantics=("parallel", "parallel"),
            vmem_limit_bytes=_vmem_limit_bytes()),
    )(conv5d, scale, shift)
    return res, out


# ---------------------------------------------------------------------------
# Kernel 4: plain BN + ReLU per depth plane (bottleneck path only).
# ---------------------------------------------------------------------------
def _bn_relu_kernel(x_ref, sc_ref, sh_ref, o_ref):
    o_ref[...] = jnp.maximum(
        x_ref[...].astype(jnp.float32) * sc_ref[...] + sh_ref[...],
        0.0).astype(o_ref.dtype)


def bn_relu_planes(conv5d, scale, shift):
    N, D, H, W, C = conv5d.shape
    return pl.pallas_call(
        _bn_relu_kernel,
        out_shape=jax.ShapeDtypeStruct((N, D, H, W, C), jnp.float32),
        grid=(N, D),
        in_specs=[pl.BlockSpec((None, None, H, W, C), lambda n, d: (n, d, 0, 0, 0)),
                  pl.BlockSpec((1, C), lambda n, d: (0, 0)),
                  pl.BlockSpec((1, C), lambda n, d: (0, 0))],
        out_specs=pl.BlockSpec((None, None, H, W, C), lambda n, d: (n, d, 0, 0, 0)),
        compiler_params=pltpu.CompilerParams(
            dimension_semantics=("parallel", "parallel"),
            vmem_limit_bytes=_vmem_limit_bytes()),
    )(conv5d, scale, shift)


# ---------------------------------------------------------------------------
# Glue (weight prep, BN stat reduction, NCDHW <-> NDHWC plumbing).
# ---------------------------------------------------------------------------
def _prep_weight(w, coutp, cinp):
    # w: (Cout, Cin, 3, 3, 3) PyTorch Conv3d layout -> (3, 9*cinp, coutp) bf16
    # flattened so row index = (kh*3 + kw)*cinp + cin, matching the in-kernel
    # tap concatenation order.
    Cout, Cin = w.shape[0], w.shape[1]
    wt = jnp.transpose(w, (2, 3, 4, 1, 0))                       # (kd,kh,kw,Cin,Cout)
    wt = jnp.pad(wt, ((0, 0), (0, 0), (0, 0),
                      (0, cinp - Cin), (0, coutp - Cout)))
    return wt.reshape(3, 9 * cinp, coutp).astype(jnp.bfloat16)


def _bn_scale_shift(stats, count, gamma_p, beta_p):
    s = jnp.sum(stats, axis=(0, 1))                              # (2, Coutp)
    mean = s[0] / count
    # E[x^2] - E[x]^2 in f32 (clamped at 0); matches PyTorch training-mode
    # biased batch variance at these magnitudes.
    var = jnp.maximum(s[1] / count - mean * mean, 0.0)
    scale = gamma_p * jax.lax.rsqrt(var + EPS)
    shift = beta_p - mean * scale
    return scale.reshape(1, -1), shift.reshape(1, -1)


def conv3d_block_forward(x_ncdhw, params, bottleneck=False):
    N, Cin, D, H, W = x_ncdhw.shape
    assert D % 2 == 0 and H % 2 == 0 and W % 2 == 0
    C1 = params["w1"].shape[0]
    C2 = params["w2"].shape[0]
    C1p = _round_up(C1, LANE)
    C2p = _round_up(C2, LANE)
    count = float(N * D * H * W)

    # Conv biases (b1/b2) are absorbed exactly by training-mode BatchNorm's
    # mean subtraction, so they are not applied (zero effect on the outputs).

    # ---- stage 1: conv1 -> BN1 -> ReLU -> padded bf16 activation buffer ----
    x = jnp.transpose(x_ncdhw, (0, 2, 3, 4, 1))                  # NCDHW -> NDHWC
    xp = jnp.pad(x, ((0, 0), (1, 1), (1, 1), (1, 1), (0, 0))).astype(jnp.bfloat16)
    w1 = _prep_weight(params["w1"], C1p, Cin)
    co1, st1 = conv3x3x3(xp, w1)                                 # (N,D,H,W,C1p) bf16
    g1 = jnp.pad(params["g1"], (0, C1p - C1), constant_values=1.0)
    be1 = jnp.pad(params["be1"], (0, C1p - C1))
    sc1, sh1 = _bn_scale_shift(st1, count, g1, be1)
    a1p = bn_relu_pad(co1, sc1, sh1)                 # (N,D+2,H+2,W+2,C1p) bf16

    # ---- stage 2: conv2 -> BN2 -> ReLU (+ fused 2x2x2 maxpool) -------------
    w2 = _prep_weight(params["w2"], C2p, C1p)
    co2, st2 = conv3x3x3(a1p, w2)                                # (N,D,H,W,C2p) bf16
    g2 = jnp.pad(params["g2"], (0, C2p - C2), constant_values=1.0)
    be2 = jnp.pad(params["be2"], (0, C2p - C2))
    sc2, sh2 = _bn_scale_shift(st2, count, g2, be2)

    if bottleneck:
        res_p = bn_relu_planes(co2, sc2, sh2)
        res = jnp.transpose(res_p[..., :C2], (0, 4, 1, 2, 3))    # NDHWC -> NCDHW
        return res, res

    res_p, out_p = bn_relu_maxpool(co2, sc2, sh2)
    res = jnp.transpose(res_p[..., :C2], (0, 4, 1, 2, 3))
    out = jnp.transpose(out_p[..., :C2], (0, 4, 1, 2, 3))
    return out, res


def init_params(key, in_channels, out_channels):
    c1 = out_channels // 2
    c2 = out_channels
    k1, k2, k3, k4 = jax.random.split(key, 4)
    return {
        "w1": 0.1 * jax.random.normal(k1, (c1, in_channels, 3, 3, 3), jnp.float32),
        "b1": 0.1 * jax.random.normal(k2, (c1,), jnp.float32),   # absorbed by BN
        "g1": jnp.ones((c1,), jnp.float32),
        "be1": jnp.zeros((c1,), jnp.float32),
        "w2": 0.1 * jax.random.normal(k3, (c2, c1, 3, 3, 3), jnp.float32),
        "b2": 0.1 * jax.random.normal(k4, (c2,), jnp.float32),   # absorbed by BN
        "g2": jnp.ones((c2,), jnp.float32),
        "be2": jnp.zeros((c2,), jnp.float32),
    }


# Pure-JAX reference (f32, includes the conv biases) for a tolerance check.
def _ref_forward(x, params, bottleneck=False):
    dn = ("NCDHW", "OIDHW", "NCDHW")

    def conv(v, w, b):
        y = jax.lax.conv_general_dilated(
            v, w, window_strides=(1, 1, 1),
            padding=((1, 1), (1, 1), (1, 1)),
            dimension_numbers=dn, precision=jax.lax.Precision.HIGHEST)
        return y + b.reshape(1, -1, 1, 1, 1)

    def bn_relu(y, g, be):
        mean = jnp.mean(y, axis=(0, 2, 3, 4), keepdims=True)
        var = jnp.mean(jnp.square(y - mean), axis=(0, 2, 3, 4), keepdims=True)
        yn = (y - mean) * jax.lax.rsqrt(var + EPS)
        return jnp.maximum(yn * g.reshape(1, -1, 1, 1, 1)
                           + be.reshape(1, -1, 1, 1, 1), 0.0)

    r = bn_relu(conv(x, params["w1"], params["b1"]), params["g1"], params["be1"])
    r = bn_relu(conv(r, params["w2"], params["b2"]), params["g2"], params["be2"])
    if bottleneck:
        return r, r
    o = jax.lax.reduce_window(r, -jnp.inf, jax.lax.max,
                              (1, 1, 2, 2, 2), (1, 1, 2, 2, 2), "VALID")
    return o, r


if __name__ == "__main__":
    key = jax.random.PRNGKey(0)
    kx, kp = jax.random.split(key)

    N, Cin, Cout, S = 2, 4, 8, 8                    # batch, in_ch, out_ch, spatial
    x = jax.random.normal(kx, (N, Cin, S, S, S), jnp.float32)    # NCDHW
    params = init_params(kp, Cin, Cout)

    fwd = jax.jit(conv3d_block_forward, static_argnames=("bottleneck",))
    out, res = fwd(x, params, bottleneck=False)
    out, res = jax.block_until_ready((out, res))

    assert out.shape == (N, Cout, S // 2, S // 2, S // 2)
    assert res.shape == (N, Cout, S, S, S)
    assert bool(jnp.all(jnp.isfinite(out))) and bool(jnp.all(jnp.isfinite(res)))

    out_ref, res_ref = _ref_forward(x, params, bottleneck=False)
    err_out = float(jnp.max(jnp.abs(out - out_ref)))
    err_res = float(jnp.max(jnp.abs(res - res_ref)))
    assert err_out < 0.25 and err_res < 0.25, (err_out, err_res)

    print("KERNEL_OK")
</pallas_src>

<mosaic_0001>
module attributes {stable_mosaic.version = 11 : i64} {
  func.func @_conv_kernel(%arg0: i32, %arg1: i32, %arg2: memref<1x2x10x10x4xbf16, #tpu.memory_space<vmem>>, %arg3: memref<1x2x10x10x4xbf16, #tpu.memory_space<vmem>>, %arg4: memref<3x36x128xbf16, #tpu.memory_space<vmem>>, %arg5: memref<1x2x8x8x128xbf16, #tpu.memory_space<vmem>>, %arg6: memref<1x1x2x128xf32, #tpu.memory_space<vmem>>) attributes {dimension_semantics = [#tpu.dimension_semantics<parallel>, #tpu.dimension_semantics<parallel>], iteration_bounds = array<i64: 2, 4>, scalar_prefetch = 0 : i64, scratch_operands = 0 : i64, tpu.core_type = #tpu.core_type<tc>, window_params = [{transform_indices = @transform_0, window_bounds = array<i64: 1, 2, 10, 10, 4>}, {transform_indices = @transform_1, window_bounds = array<i64: 1, 2, 10, 10, 4>}, {pipeline_mode = #tpu.pipeline_mode<synchronous>, transform_indices = @transform_2, window_bounds = array<i64: 3, 36, 128>}, {transform_indices = @transform_3, window_bounds = array<i64: 1, 2, 8, 8, 128>}, {transform_indices = @transform_4, window_bounds = array<i64: 1, 1, 2, 128>}]} {
    %c0 = arith.constant 0 : index
    %c0_0 = arith.constant 0 : index
    %c0_1 = arith.constant 0 : index
    %c0_2 = arith.constant 0 : index
    %c0_3 = arith.constant 0 : index
    %0 = vector.load %arg2[%c0, %c0_0, %c0_1, %c0_2, %c0_3] : memref<1x2x10x10x4xbf16, #tpu.memory_space<vmem>>, vector<1x1x10x10x4xbf16>
    %1 = vector.shape_cast %0 : vector<1x1x10x10x4xbf16> to vector<10x10x4xbf16>
    %c0_4 = arith.constant 0 : index
    %c1 = arith.constant 1 : index
    %c0_5 = arith.constant 0 : index
    %c0_6 = arith.constant 0 : index
    %c0_7 = arith.constant 0 : index
    %2 = vector.load %arg2[%c0_4, %c1, %c0_5, %c0_6, %c0_7] : memref<1x2x10x10x4xbf16, #tpu.memory_space<vmem>>, vector<1x1x10x10x4xbf16>
    %3 = vector.shape_cast %2 : vector<1x1x10x10x4xbf16> to vector<10x10x4xbf16>
    %c0_8 = arith.constant 0 : index
    %c0_9 = arith.constant 0 : index
    %c0_10 = arith.constant 0 : index
    %c0_11 = arith.constant 0 : index
    %c0_12 = arith.constant 0 : index
    %4 = vector.load %arg3[%c0_8, %c0_9, %c0_10, %c0_11, %c0_12] : memref<1x2x10x10x4xbf16, #tpu.memory_space<vmem>>, vector<1x1x10x10x4xbf16>
    %5 = vector.shape_cast %4 : vector<1x1x10x10x4xbf16> to vector<10x10x4xbf16>
    %c0_13 = arith.constant 0 : index
    %c1_14 = arith.constant 1 : index
    %c0_15 = arith.constant 0 : index
    %c0_16 = arith.constant 0 : index
    %c0_17 = arith.constant 0 : index
    %6 = vector.load %arg3[%c0_13, %c1_14, %c0_15, %c0_16, %c0_17] : memref<1x2x10x10x4xbf16, #tpu.memory_space<vmem>>, vector<1x1x10x10x4xbf16>
    %7 = vector.shape_cast %6 : vector<1x1x10x10x4xbf16> to vector<10x10x4xbf16>
    %8 = arith.extf %1 : vector<10x10x4xbf16> to vector<10x10x4xf32>
    %9 = vector.extract_strided_slice %8 {offsets = [0, 0, 0], sizes = [8, 8, 4], strides = [1, 1, 1]} : vector<10x10x4xf32> to vector<8x8x4xf32>
    %10 = vector.shape_cast %9 : vector<8x8x4xf32> to vector<64x4xf32>
    %11 = vector.extract_strided_slice %8 {offsets = [0, 1, 0], sizes = [8, 8, 4], strides = [1, 1, 1]} : vector<10x10x4xf32> to vector<8x8x4xf32>
    %12 = vector.shape_cast %11 : vector<8x8x4xf32> to vector<64x4xf32>
    %13 = vector.extract_strided_slice %8 {offsets = [0, 2, 0], sizes = [8, 8, 4], strides = [1, 1, 1]} : vector<10x10x4xf32> to vector<8x8x4xf32>
    %14 = vector.shape_cast %13 : vector<8x8x4xf32> to vector<64x4xf32>
    %15 = vector.extract_strided_slice %8 {offsets = [1, 0, 0], sizes = [8, 8, 4], strides = [1, 1, 1]} : vector<10x10x4xf32> to vector<8x8x4xf32>
    %16 = vector.shape_cast %15 : vector<8x8x4xf32> to vector<64x4xf32>
    %17 = vector.extract_strided_slice %8 {offsets = [1, 1, 0], sizes = [8, 8, 4], strides = [1, 1, 1]} : vector<10x10x4xf32> to vector<8x8x4xf32>
    %18 = vector.shape_cast %17 : vector<8x8x4xf32> to vector<64x4xf32>
    %19 = vector.extract_strided_slice %8 {offsets = [1, 2, 0], sizes = [8, 8, 4], strides = [1, 1, 1]} : vector<10x10x4xf32> to vector<8x8x4xf32>
    %20 = vector.shape_cast %19 : vector<8x8x4xf32> to vector<64x4xf32>
    %21 = vector.extract_strided_slice %8 {offsets = [2, 0, 0], sizes = [8, 8, 4], strides = [1, 1, 1]} : vector<10x10x4xf32> to vector<8x8x4xf32>
    %22 = vector.shape_cast %21 : vector<8x8x4xf32> to vector<64x4xf32>
    %23 = vector.extract_strided_slice %8 {offsets = [2, 1, 0], sizes = [8, 8, 4], strides = [1, 1, 1]} : vector<10x10x4xf32> to vector<8x8x4xf32>
    %24 = vector.shape_cast %23 : vector<8x8x4xf32> to vector<64x4xf32>
    %25 = vector.extract_strided_slice %8 {offsets = [2, 2, 0], sizes = [8, 8, 4], strides = [1, 1, 1]} : vector<10x10x4xf32> to vector<8x8x4xf32>
    %26 = vector.shape_cast %25 : vector<8x8x4xf32> to vector<64x4xf32>
    %27 = tpu.concatenate %10, %12, %14, %16, %18, %20, %22, %24, %26 in 1 : vector<64x4xf32>, vector<64x4xf32>, vector<64x4xf32>, vector<64x4xf32>, vector<64x4xf32>, vector<64x4xf32>, vector<64x4xf32>, vector<64x4xf32>, vector<64x4xf32> -> vector<64x36xf32>
    %28 = arith.truncf %27 : vector<64x36xf32> to vector<64x36xbf16>
    %29 = arith.extf %3 : vector<10x10x4xbf16> to vector<10x10x4xf32>
    %30 = vector.extract_strided_slice %29 {offsets = [0, 0, 0], sizes = [8, 8, 4], strides = [1, 1, 1]} : vector<10x10x4xf32> to vector<8x8x4xf32>
    %31 = vector.shape_cast %30 : vector<8x8x4xf32> to vector<64x4xf32>
    %32 = vector.extract_strided_slice %29 {offsets = [0, 1, 0], sizes = [8, 8, 4], strides = [1, 1, 1]} : vector<10x10x4xf32> to vector<8x8x4xf32>
    %33 = vector.shape_cast %32 : vector<8x8x4xf32> to vector<64x4xf32>
    %34 = vector.extract_strided_slice %29 {offsets = [0, 2, 0], sizes = [8, 8, 4], strides = [1, 1, 1]} : vector<10x10x4xf32> to vector<8x8x4xf32>
    %35 = vector.shape_cast %34 : vector<8x8x4xf32> to vector<64x4xf32>
    %36 = vector.extract_strided_slice %29 {offsets = [1, 0, 0], sizes = [8, 8, 4], strides = [1, 1, 1]} : vector<10x10x4xf32> to vector<8x8x4xf32>
    %37 = vector.shape_cast %36 : vector<8x8x4xf32> to vector<64x4xf32>
    %38 = vector.extract_strided_slice %29 {offsets = [1, 1, 0], sizes = [8, 8, 4], strides = [1, 1, 1]} : vector<10x10x4xf32> to vector<8x8x4xf32>
    %39 = vector.shape_cast %38 : vector<8x8x4xf32> to vector<64x4xf32>
    %40 = vector.extract_strided_slice %29 {offsets = [1, 2, 0], sizes = [8, 8, 4], strides = [1, 1, 1]} : vector<10x10x4xf32> to vector<8x8x4xf32>
    %41 = vector.shape_cast %40 : vector<8x8x4xf32> to vector<64x4xf32>
    %42 = vector.extract_strided_slice %29 {offsets = [2, 0, 0], sizes = [8, 8, 4], strides = [1, 1, 1]} : vector<10x10x4xf32> to vector<8x8x4xf32>
    %43 = vector.shape_cast %42 : vector<8x8x4xf32> to vector<64x4xf32>
    %44 = vector.extract_strided_slice %29 {offsets = [2, 1, 0], sizes = [8, 8, 4], strides = [1, 1, 1]} : vector<10x10x4xf32> to vector<8x8x4xf32>
    %45 = vector.shape_cast %44 : vector<8x8x4xf32> to vector<64x4xf32>
    %46 = vector.extract_strided_slice %29 {offsets = [2, 2, 0], sizes = [8, 8, 4], strides = [1, 1, 1]} : vector<10x10x4xf32> to vector<8x8x4xf32>
    %47 = vector.shape_cast %46 : vector<8x8x4xf32> to vector<64x4xf32>
    %48 = tpu.concatenate %31, %33, %35, %37, %39, %41, %43, %45, %47 in 1 : vector<64x4xf32>, vector<64x4xf32>, vector<64x4xf32>, vector<64x4xf32>, vector<64x4xf32>, vector<64x4xf32>, vector<64x4xf32>, vector<64x4xf32>, vector<64x4xf32> -> vector<64x36xf32>
    %49 = arith.truncf %48 : vector<64x36xf32> to vector<64x36xbf16>
    %50 = arith.extf %5 : vector<10x10x4xbf16> to vector<10x10x4xf32>
    %51 = vector.extract_strided_slice %50 {offsets = [0, 0, 0], sizes = [8, 8, 4], strides = [1, 1, 1]} : vector<10x10x4xf32> to vector<8x8x4xf32>
    %52 = vector.shape_cast %51 : vector<8x8x4xf32> to vector<64x4xf32>
    %53 = vector.extract_strided_slice %50 {offsets = [0, 1, 0], sizes = [8, 8, 4], strides = [1, 1, 1]} : vector<10x10x4xf32> to vector<8x8x4xf32>
    %54 = vector.shape_cast %53 : vector<8x8x4xf32> to vector<64x4xf32>
    %55 = vector.extract_strided_slice %50 {offsets = [0, 2, 0], sizes = [8, 8, 4], strides = [1, 1, 1]} : vector<10x10x4xf32> to vector<8x8x4xf32>
    %56 = vector.shape_cast %55 : vector<8x8x4xf32> to vector<64x4xf32>
    %57 = vector.extract_strided_slice %50 {offsets = [1, 0, 0], sizes = [8, 8, 4], strides = [1, 1, 1]} : vector<10x10x4xf32> to vector<8x8x4xf32>
    %58 = vector.shape_cast %57 : vector<8x8x4xf32> to vector<64x4xf32>
    %59 = vector.extract_strided_slice %50 {offsets = [1, 1, 0], sizes = [8, 8, 4], strides = [1, 1, 1]} : vector<10x10x4xf32> to vector<8x8x4xf32>
    %60 = vector.shape_cast %59 : vector<8x8x4xf32> to vector<64x4xf32>
    %61 = vector.extract_strided_slice %50 {offsets = [1, 2, 0], sizes = [8, 8, 4], strides = [1, 1, 1]} : vector<10x10x4xf32> to vector<8x8x4xf32>
    %62 = vector.shape_cast %61 : vector<8x8x4xf32> to vector<64x4xf32>
    %63 = vector.extract_strided_slice %50 {offsets = [2, 0, 0], sizes = [8, 8, 4], strides = [1, 1, 1]} : vector<10x10x4xf32> to vector<8x8x4xf32>
    %64 = vector.shape_cast %63 : vector<8x8x4xf32> to vector<64x4xf32>
    %65 = vector.extract_strided_slice %50 {offsets = [2, 1, 0], sizes = [8, 8, 4], strides = [1, 1, 1]} : vector<10x10x4xf32> to vector<8x8x4xf32>
    %66 = vector.shape_cast %65 : vector<8x8x4xf32> to vector<64x4xf32>
    %67 = vector.extract_strided_slice %50 {offsets = [2, 2, 0], sizes = [8, 8, 4], strides = [1, 1, 1]} : vector<10x10x4xf32> to vector<8x8x4xf32>
    %68 = vector.shape_cast %67 : vector<8x8x4xf32> to vector<64x4xf32>
    %69 = tpu.concatenate %52, %54, %56, %58, %60, %62, %64, %66, %68 in 1 : vector<64x4xf32>, vector<64x4xf32>, vector<64x4xf32>, vector<64x4xf32>, vector<64x4xf32>, vector<64x4xf32>, vector<64x4xf32>, vector<64x4xf32>, vector<64x4xf32> -> vector<64x36xf32>
    %70 = arith.truncf %69 : vector<64x36xf32> to vector<64x36xbf16>
    %71 = arith.extf %7 : vector<10x10x4xbf16> to vector<10x10x4xf32>
    %72 = vector.extract_strided_slice %71 {offsets = [0, 0, 0], sizes = [8, 8, 4], strides = [1, 1, 1]} : vector<10x10x4xf32> to vector<8x8x4xf32>
    %73 = vector.shape_cast %72 : vector<8x8x4xf32> to vector<64x4xf32>
    %74 = vector.extract_strided_slice %71 {offsets = [0, 1, 0], sizes = [8, 8, 4], strides = [1, 1, 1]} : vector<10x10x4xf32> to vector<8x8x4xf32>
    %75 = vector.shape_cast %74 : vector<8x8x4xf32> to vector<64x4xf32>
    %76 = vector.extract_strided_slice %71 {offsets = [0, 2, 0], sizes = [8, 8, 4], strides = [1, 1, 1]} : vector<10x10x4xf32> to vector<8x8x4xf32>
    %77 = vector.shape_cast %76 : vector<8x8x4xf32> to vector<64x4xf32>
    %78 = vector.extract_strided_slice %71 {offsets = [1, 0, 0], sizes = [8, 8, 4], strides = [1, 1, 1]} : vector<10x10x4xf32> to vector<8x8x4xf32>
    %79 = vector.shape_cast %78 : vector<8x8x4xf32> to vector<64x4xf32>
    %80 = vector.extract_strided_slice %71 {offsets = [1, 1, 0], sizes = [8, 8, 4], strides = [1, 1, 1]} : vector<10x10x4xf32> to vector<8x8x4xf32>
    %81 = vector.shape_cast %80 : vector<8x8x4xf32> to vector<64x4xf32>
    %82 = vector.extract_strided_slice %71 {offsets = [1, 2, 0], sizes = [8, 8, 4], strides = [1, 1, 1]} : vector<10x10x4xf32> to vector<8x8x4xf32>
    %83 = vector.shape_cast %82 : vector<8x8x4xf32> to vector<64x4xf32>
    %84 = vector.extract_strided_slice %71 {offsets = [2, 0, 0], sizes = [8, 8, 4], strides = [1, 1, 1]} : vector<10x10x4xf32> to vector<8x8x4xf32>
    %85 = vector.shape_cast %84 : vector<8x8x4xf32> to vector<64x4xf32>
    %86 = vector.extract_strided_slice %71 {offsets = [2, 1, 0], sizes = [8, 8, 4], strides = [1, 1, 1]} : vector<10x10x4xf32> to vector<8x8x4xf32>
    %87 = vector.shape_cast %86 : vector<8x8x4xf32> to vector<64x4xf32>
    %88 = vector.extract_strided_slice %71 {offsets = [2, 2, 0], sizes = [8, 8, 4], strides = [1, 1, 1]} : vector<10x10x4xf32> to vector<8x8x4xf32>
    %89 = vector.shape_cast %88 : vector<8x8x4xf32> to vector<64x4xf32>
    %90 = tpu.concatenate %73, %75, %77, %79, %81, %83, %85, %87, %89 in 1 : vector<64x4xf32>, vector<64x4xf32>, vector<64x4xf32>, vector<64x4xf32>, vector<64x4xf32>, vector<64x4xf32>, vector<64x4xf32>, vector<64x4xf32>, vector<64x4xf32> -> vector<64x36xf32>
    %91 = arith.truncf %90 : vector<64x36xf32> to vector<64x36xbf16>
    %cst = arith.constant 0.000000e+00 : f32
    %92 = vector.broadcast %cst : f32 to vector<128x128xf32>
    %93 = tpu.concatenate %28, %49 in 0 : vector<64x36xbf16>, vector<64x36xbf16> -> vector<128x36xbf16>
    %c0_18 = arith.constant 0 : index
    %c0_19 = arith.constant 0 : index
    %c0_20 = arith.constant 0 : index
    %94 = vector.load %arg4[%c0_18, %c0_19, %c0_20] : memref<3x36x128xbf16, #tpu.memory_space<vmem>>, vector<1x36x128xbf16>
    %95 = vector.shape_cast %94 : vector<1x36x128xbf16> to vector<36x128xbf16>
    %cst_21 = arith.constant dense<0.000000e+00> : vector<128x128xf32>
    %96 = tpu.matmul %93, %95, %cst_21 {dimension_numbers = #tpu.dot_dimension_numbers<[1], [0], [0], [1], [0, 0, 1, 1], [], []>} : vector<128x36xbf16>, vector<36x128xbf16>, vector<128x128xf32> -> vector<128x128xf32>
    %97 = arith.addf %92, %96 : vector<128x128xf32>
    %98 = tpu.concatenate %49, %70 in 0 : vector<64x36xbf16>, vector<64x36xbf16> -> vector<128x36xbf16>
    %c1_22 = arith.constant 1 : index
    %c0_23 = arith.constant 0 : index
    %c0_24 = arith.constant 0 : index
    %99 = vector.load %arg4[%c1_22, %c0_23, %c0_24] : memref<3x36x128xbf16, #tpu.memory_space<vmem>>, vector<1x36x128xbf16>
    %100 = vector.shape_cast %99 : vector<1x36x128xbf16> to vector<36x128xbf16>
    %cst_25 = arith.constant dense<0.000000e+00> : vector<128x128xf32>
    %101 = tpu.matmul %98, %100, %cst_25 {dimension_numbers = #tpu.dot_dimension_numbers<[1], [0], [0], [1], [0, 0, 1, 1], [], []>} : vector<128x36xbf16>, vector<36x128xbf16>, vector<128x128xf32> -> vector<128x128xf32>
    %102 = arith.addf %97, %101 : vector<128x128xf32>
    %103 = tpu.concatenate %70, %91 in 0 : vector<64x36xbf16>, vector<64x36xbf16> -> vector<128x36xbf16>
    %c2 = arith.constant 2 : index
    %c0_26 = arith.constant 0 : index
    %c0_27 = arith.constant 0 : index
    %104 = vector.load %arg4[%c2, %c0_26, %c0_27] : memref<3x36x128xbf16, #tpu.memory_space<vmem>>, vector<1x36x128xbf16>
    %105 = vector.shape_cast %104 : vector<1x36x128xbf16> to vector<36x128xbf16>
    %cst_28 = arith.constant dense<0.000000e+00> : vector<128x128xf32>
    %106 = tpu.matmul %103, %105, %cst_28 {dimension_numbers = #tpu.dot_dimension_numbers<[1], [0], [0], [1], [0, 0, 1, 1], [], []>} : vector<128x36xbf16>, vector<36x128xbf16>, vector<128x128xf32> -> vector<128x128xf32>
    %107 = arith.addf %102, %106 : vector<128x128xf32>
    %108 = vector.shape_cast %107 : vector<128x128xf32> to vector<2x8x8x128xf32>
    %109 = arith.truncf %108 : vector<2x8x8x128xf32> to vector<2x8x8x128xbf16>
    %c0_29 = arith.constant 0 : index
    %c0_30 = arith.constant 0 : index
    %c0_31 = arith.constant 0 : index
    %c0_32 = arith.constant 0 : index
    %c0_33 = arith.constant 0 : index
    %110 = vector.load %arg5[%c0_29, %c0_30, %c0_31, %c0_32, %c0_33] : memref<1x2x8x8x128xbf16, #tpu.memory_space<vmem>>, vector<1x2x8x8x128xbf16>
    %111 = vector.shape_cast %110 : vector<1x2x8x8x128xbf16> to vector<2x8x8x128xbf16>
    %112 = vector.shape_cast %109 : vector<2x8x8x128xbf16> to vector<1x2x8x8x128xbf16>
    tpu.vector_store %arg5[%c0_29, %c0_30, %c0_31, %c0_32, %c0_33], %112 {strides = array<i32>} : memref<1x2x8x8x128xbf16, #tpu.memory_space<vmem>>, vector<1x2x8x8x128xbf16>,
    %cst_34 = arith.constant dense<0.000000e+00> : vector<128xf32>
    %113 = vector.multi_reduction <add>, %107, %cst_34 [0] : vector<128x128xf32> to vector<128xf32>
    %114 = vector.shape_cast %113 : vector<128xf32> to vector<1x128xf32>
    %c0_35 = arith.constant 0 : index
    %c0_36 = arith.constant 0 : index
    %c0_37 = arith.constant 0 : index
    %c0_38 = arith.constant 0 : index
    %115 = vector.load %arg6[%c0_35, %c0_36, %c0_37, %c0_38] : memref<1x1x2x128xf32, #tpu.memory_space<vmem>>, vector<1x1x1x128xf32>
    %116 = vector.shape_cast %115 : vector<1x1x1x128xf32> to vector<1x128xf32>
    %117 = vector.shape_cast %114 : vector<1x128xf32> to vector<1x1x1x128xf32>
    tpu.vector_store %arg6[%c0_35, %c0_36, %c0_37, %c0_38], %117 {strides = array<i32>} : memref<1x1x2x128xf32, #tpu.memory_space<vmem>>, vector<1x1x1x128xf32>,
    %118 = arith.mulf %107, %107 : vector<128x128xf32>
    %cst_39 = arith.constant dense<0.000000e+00> : vector<128xf32>
    %119 = vector.multi_reduction <add>, %118, %cst_39 [0] : vector<128x128xf32> to vector<128xf32>
    %120 = vector.shape_cast %119 : vector<128xf32> to vector<1x128xf32>
    %c0_40 = arith.constant 0 : index
    %c0_41 = arith.constant 0 : index
    %c1_42 = arith.constant 1 : index
    %c0_43 = arith.constant 0 : index
    %121 = vector.load %arg6[%c0_40, %c0_41, %c1_42, %c0_43] : memref<1x1x2x128xf32, #tpu.memory_space<vmem>>, vector<1x1x1x128xf32>
    %122 = vector.shape_cast %121 : vector<1x1x1x128xf32> to vector<1x128xf32>
    %123 = vector.shape_cast %120 : vector<1x128xf32> to vector<1x1x1x128xf32>
    tpu.vector_store %arg6[%c0_40, %c0_41, %c1_42, %c0_43], %123 {strides = array<i32>} : memref<1x1x2x128xf32, #tpu.memory_space<vmem>>, vector<1x1x1x128xf32>,
    return
  }
  func.func @transform_0(%arg0: i32, %arg1: i32) -> (i32, i32, i32, i32, i32) {
    %c0_i32 = arith.constant 0 : i32
    %c0_i32_0 = arith.constant 0 : i32
    %c0_i32_1 = arith.constant 0 : i32
    %c0_i32_2 = arith.constant 0 : i32
    return %arg0, %arg1, %c0_i32, %c0_i32_0, %c0_i32_1 : i32, i32, i32, i32, i32
  }
  func.func @transform_1(%arg0: i32, %arg1: i32) -> (i32, i32, i32, i32, i32) {
    %c1_i32 = arith.constant 1 : i32
    %0 = arith.addi %arg1, %c1_i32 : i32
    %c0_i32 = arith.constant 0 : i32
    %c0_i32_0 = arith.constant 0 : i32
    %c0_i32_1 = arith.constant 0 : i32
    %c0_i32_2 = arith.constant 0 : i32
    return %arg0, %0, %c0_i32, %c0_i32_0, %c0_i32_1 : i32, i32, i32, i32, i32
  }
  func.func @transform_2(%arg0: i32, %arg1: i32) -> (i32, i32, i32) {
    %c0_i32 = arith.constant 0 : i32
    %c0_i32_0 = arith.constant 0 : i32
    %c0_i32_1 = arith.constant 0 : i32
    %c0_i32_2 = arith.constant 0 : i32
    return %c0_i32, %c0_i32_0, %c0_i32_1 : i32, i32, i32
  }
  func.func @transform_3(%arg0: i32, %arg1: i32) -> (i32, i32, i32, i32, i32) {
    %c0_i32 = arith.constant 0 : i32
    %c0_i32_0 = arith.constant 0 : i32
    %c0_i32_1 = arith.constant 0 : i32
    %c0_i32_2 = arith.constant 0 : i32
    return %arg0, %arg1, %c0_i32, %c0_i32_0, %c0_i32_1 : i32, i32, i32, i32, i32
  }
  func.func @transform_4(%arg0: i32, %arg1: i32) -> (i32, i32, i32, i32) {
    %c0_i32 = arith.constant 0 : i32
    %c0_i32_0 = arith.constant 0 : i32
    %c0_i32_1 = arith.constant 0 : i32
    return %arg0, %arg1, %c0_i32, %c0_i32_0 : i32, i32, i32, i32
  }
}

module attributes {stable_mosaic.version = 11 : i64} {
  func.func @_bn_relu_pad_kernel(%arg0: i32, %arg1: i32, %arg2: memref<1x1x8x8x128xbf16, #tpu.memory_space<vmem>>, %arg3: memref<1x128xf32, #tpu.memory_space<vmem>>, %arg4: memref<1x128xf32, #tpu.memory_space<vmem>>, %arg5: memref<1x1x10x10x128xbf16, #tpu.memory_space<vmem>>) attributes {dimension_semantics = [#tpu.dimension_semantics<parallel>, #tpu.dimension_semantics<parallel>], iteration_bounds = array<i64: 2, 10>, scalar_prefetch = 0 : i64, scratch_operands = 0 : i64, tpu.core_type = #tpu.core_type<tc>, window_params = [{transform_indices = @transform_0, window_bounds = array<i64: 1, 1, 8, 8, 128>}, {pipeline_mode = #tpu.pipeline_mode<synchronous>, transform_indices = @transform_1, window_bounds = array<i64: 1, 128>}, {pipeline_mode = #tpu.pipeline_mode<synchronous>, transform_indices = @transform_2, window_bounds = array<i64: 1, 128>}, {transform_indices = @transform_3, window_bounds = array<i64: 1, 1, 10, 10, 128>}]} {
    %c1_i32 = arith.constant 1 : i32
    %0 = arith.cmpi sge, %arg1, %c1_i32 : i32
    %c8_i32 = arith.constant 8 : i32
    %1 = arith.cmpi sle, %arg1, %c8_i32 : i32
    %2 = arith.andi %0, %1 : i1
    %3 = arith.extui %2 : i1 to i32
    %c0_i32 = arith.constant 0 : i32
    %4 = arith.cmpi ne, %3, %c0_i32 : i32
    scf.if %4 {
      %c0 = arith.constant 0 : index
      %c0_1 = arith.constant 0 : index
      %c0_2 = arith.constant 0 : index
      %c0_3 = arith.constant 0 : index
      %c0_4 = arith.constant 0 : index
      %8 = vector.load %arg2[%c0, %c0_1, %c0_2, %c0_3, %c0_4] : memref<1x1x8x8x128xbf16, #tpu.memory_space<vmem>>, vector<1x1x8x8x128xbf16>
      %9 = vector.shape_cast %8 : vector<1x1x8x8x128xbf16> to vector<8x8x128xbf16>
      %10 = arith.extf %9 : vector<8x8x128xbf16> to vector<8x8x128xf32>
      %c0_5 = arith.constant 0 : index
      %c0_6 = arith.constant 0 : index
      %11 = vector.load %arg3[%c0_5, %c0_6] : memref<1x128xf32, #tpu.memory_space<vmem>>, vector<1x128xf32>
      %12 = vector.shape_cast %11 : vector<1x128xf32> to vector<1x1x128xf32>
      %13 = vector.broadcast %12 : vector<1x1x128xf32> to vector<8x8x128xf32>
      %14 = arith.mulf %10, %13 : vector<8x8x128xf32>
      %c0_7 = arith.constant 0 : index
      %c0_8 = arith.constant 0 : index
      %15 = vector.load %arg4[%c0_7, %c0_8] : memref<1x128xf32, #tpu.memory_space<vmem>>, vector<1x128xf32>
      %16 = vector.shape_cast %15 : vector<1x128xf32> to vector<1x1x128xf32>
      %17 = vector.broadcast %16 : vector<1x1x128xf32> to vector<8x8x128xf32>
      %18 = arith.addf %14, %17 : vector<8x8x128xf32>
      %cst = arith.constant 0.000000e+00 : f32
      %19 = vector.broadcast %cst : f32 to vector<8x8x128xf32>
      %20 = arith.maximumf %18, %19 : vector<8x8x128xf32>
      %cst_9 = arith.constant 0.000000e+00 : f32
      %21 = vector.broadcast %cst_9 : f32 to vector<8x1x128xf32>
      %22 = tpu.concatenate %21, %20, %21 in 1 : vector<8x1x128xf32>, vector<8x8x128xf32>, vector<8x1x128xf32> -> vector<8x10x128xf32>
      %cst_10 = arith.constant 0.000000e+00 : f32
      %23 = vector.broadcast %cst_10 : f32 to vector<1x10x128xf32>
      %24 = tpu.concatenate %23, %22, %23 in 0 : vector<1x10x128xf32>, vector<8x10x128xf32>, vector<1x10x128xf32> -> vector<10x10x128xf32>
      %25 = arith.truncf %24 : vector<10x10x128xf32> to vector<10x10x128xbf16>
      %c0_11 = arith.constant 0 : index
      %c0_12 = arith.constant 0 : index
      %c0_13 = arith.constant 0 : index
      %c0_14 = arith.constant 0 : index
      %c0_15 = arith.constant 0 : index
      %26 = vector.load %arg5[%c0_11, %c0_12, %c0_13, %c0_14, %c0_15] : memref<1x1x10x10x128xbf16, #tpu.memory_space<vmem>>, vector<1x1x10x10x128xbf16>
      %27 = vector.shape_cast %26 : vector<1x1x10x10x128xbf16> to vector<10x10x128xbf16>
      %28 = vector.shape_cast %25 : vector<10x10x128xbf16> to vector<1x1x10x10x128xbf16>
      tpu.vector_store %arg5[%c0_11, %c0_12, %c0_13, %c0_14, %c0_15], %28 {strides = array<i32>} : memref<1x1x10x10x128xbf16, #tpu.memory_space<vmem>>, vector<1x1x10x10x128xbf16>,
    } else {
    }
    %true = arith.constant true
    %5 = arith.xori %2, %true : i1
    %6 = arith.extui %5 : i1 to i32
    %c0_i32_0 = arith.constant 0 : i32
    %7 = arith.cmpi ne, %6, %c0_i32_0 : i32
    scf.if %7 {
      %cst = arith.constant 0.000000e+00 : bf16
      %8 = vector.broadcast %cst : bf16 to vector<10x10x128xbf16>
      %c0 = arith.constant 0 : index
      %c0_1 = arith.constant 0 : index
      %c0_2 = arith.constant 0 : index
      %c0_3 = arith.constant 0 : index
      %c0_4 = arith.constant 0 : index
      %9 = vector.load %arg5[%c0, %c0_1, %c0_2, %c0_3, %c0_4] : memref<1x1x10x10x128xbf16, #tpu.memory_space<vmem>>, vector<1x1x10x10x128xbf16>
      %10 = vector.shape_cast %9 : vector<1x1x10x10x128xbf16> to vector<10x10x128xbf16>
      %11 = vector.shape_cast %8 : vector<10x10x128xbf16> to vector<1x1x10x10x128xbf16>
      tpu.vector_store %arg5[%c0, %c0_1, %c0_2, %c0_3, %c0_4], %11 {strides = array<i32>} : memref<1x1x10x10x128xbf16, #tpu.memory_space<vmem>>, vector<1x1x10x10x128xbf16>,
    } else {
    }
    return
  }
  func.func @transform_0(%arg0: i32, %arg1: i32) -> (i32, i32, i32, i32, i32) {
    %c1_i32 = arith.constant 1 : i32
    %0 = arith.subi %arg1, %c1_i32 : i32
    %c7_i32 = arith.constant 7 : i32
    %1 = arith.minsi %0, %c7_i32 : i32
    %c0_i32 = arith.constant 0 : i32
    %2 = arith.maxsi %1, %c0_i32 : i32
    %c0_i32_0 = arith.constant 0 : i32
    %c0_i32_1 = arith.constant 0 : i32
    %c0_i32_2 = arith.constant 0 : i32
    %c0_i32_3 = arith.constant 0 : i32
    return %arg0, %2, %c0_i32_0, %c0_i32_1, %c0_i32_2 : i32, i32, i32, i32, i32
  }
  func.func @transform_1(%arg0: i32, %arg1: i32) -> (i32, i32) {
    %c0_i32 = arith.constant 0 : i32
    %c0_i32_0 = arith.constant 0 : i32
    %c0_i32_1 = arith.constant 0 : i32
    return %c0_i32, %c0_i32_0 : i32, i32
  }
  func.func @transform_2(%arg0: i32, %arg1: i32) -> (i32, i32) {
    %c0_i32 = arith.constant 0 : i32
    %c0_i32_0 = arith.constant 0 : i32
    %c0_i32_1 = arith.constant 0 : i32
    return %c0_i32, %c0_i32_0 : i32, i32
  }
  func.func @transform_3(%arg0: i32, %arg1: i32) -> (i32, i32, i32, i32, i32) {
    %c0_i32 = arith.constant 0 : i32
    %c0_i32_0 = arith.constant 0 : i32
    %c0_i32_1 = arith.constant 0 : i32
    %c0_i32_2 = arith.constant 0 : i32
    return %arg0, %arg1, %c0_i32, %c0_i32_0, %c0_i32_1 : i32, i32, i32, i32, i32
  }
}

module attributes {stable_mosaic.version = 11 : i64} {
  func.func @_conv_kernel(%arg0: i32, %arg1: i32, %arg2: memref<1x2x10x10x128xbf16, #tpu.memory_space<vmem>>, %arg3: memref<1x2x10x10x128xbf16, #tpu.memory_space<vmem>>, %arg4: memref<3x1152x128xbf16, #tpu.memory_space<vmem>>, %arg5: memref<1x2x8x8x128xbf16, #tpu.memory_space<vmem>>, %arg6: memref<1x1x2x128xf32, #tpu.memory_space<vmem>>) attributes {dimension_semantics = [#tpu.dimension_semantics<parallel>, #tpu.dimension_semantics<parallel>], iteration_bounds = array<i64: 2, 4>, scalar_prefetch = 0 : i64, scratch_operands = 0 : i64, tpu.core_type = #tpu.core_type<tc>, window_params = [{transform_indices = @transform_0, window_bounds = array<i64: 1, 2, 10, 10, 128>}, {transform_indices = @transform_1, window_bounds = array<i64: 1, 2, 10, 10, 128>}, {pipeline_mode = #tpu.pipeline_mode<synchronous>, transform_indices = @transform_2, window_bounds = array<i64: 3, 1152, 128>}, {transform_indices = @transform_3, window_bounds = array<i64: 1, 2, 8, 8, 128>}, {transform_indices = @transform_4, window_bounds = array<i64: 1, 1, 2, 128>}]} {
    %c0 = arith.constant 0 : index
    %c0_0 = arith.constant 0 : index
    %c0_1 = arith.constant 0 : index
    %c0_2 = arith.constant 0 : index
    %c0_3 = arith.constant 0 : index
    %0 = vector.load %arg2[%c0, %c0_0, %c0_1, %c0_2, %c0_3] : memref<1x2x10x10x128xbf16, #tpu.memory_space<vmem>>, vector<1x1x10x10x128xbf16>
    %1 = vector.shape_cast %0 : vector<1x1x10x10x128xbf16> to vector<10x10x128xbf16>
    %c0_4 = arith.constant 0 : index
    %c1 = arith.constant 1 : index
    %c0_5 = arith.constant 0 : index
    %c0_6 = arith.constant 0 : index
    %c0_7 = arith.constant 0 : index
    %2 = vector.load %arg2[%c0_4, %c1, %c0_5, %c0_6, %c0_7] : memref<1x2x10x10x128xbf16, #tpu.memory_space<vmem>>, vector<1x1x10x10x128xbf16>
    %3 = vector.shape_cast %2 : vector<1x1x10x10x128xbf16> to vector<10x10x128xbf16>
    %c0_8 = arith.constant 0 : index
    %c0_9 = arith.constant 0 : index
    %c0_10 = arith.constant 0 : index
    %c0_11 = arith.constant 0 : index
    %c0_12 = arith.constant 0 : index
    %4 = vector.load %arg3[%c0_8, %c0_9, %c0_10, %c0_11, %c0_12] : memref<1x2x10x10x128xbf16, #tpu.memory_space<vmem>>, vector<1x1x10x10x128xbf16>
    %5 = vector.shape_cast %4 : vector<1x1x10x10x128xbf16> to vector<10x10x128xbf16>
    %c0_13 = arith.constant 0 : index
    %c1_14 = arith.constant 1 : index
    %c0_15 = arith.constant 0 : index
    %c0_16 = arith.constant 0 : index
    %c0_17 = arith.constant 0 : index
    %6 = vector.load %arg3[%c0_13, %c1_14, %c0_15, %c0_16, %c0_17] : memref<1x2x10x10x128xbf16, #tpu.memory_space<vmem>>, vector<1x1x10x10x128xbf16>
    %7 = vector.shape_cast %6 : vector<1x1x10x10x128xbf16> to vector<10x10x128xbf16>
    %8 = arith.extf %1 : vector<10x10x128xbf16> to vector<10x10x128xf32>
    %9 = vector.extract_strided_slice %8 {offsets = [0, 0, 0], sizes = [8, 8, 128], strides = [1, 1, 1]} : vector<10x10x128xf32> to vector<8x8x128xf32>
    %10 = vector.shape_cast %9 : vector<8x8x128xf32> to vector<64x128xf32>
    %11 = vector.extract_strided_slice %8 {offsets = [0, 1, 0], sizes = [8, 8, 128], strides = [1, 1, 1]} : vector<10x10x128xf32> to vector<8x8x128xf32>
    %12 = vector.shape_cast %11 : vector<8x8x128xf32> to vector<64x128xf32>
    %13 = vector.extract_strided_slice %8 {offsets = [0, 2, 0], sizes = [8, 8, 128], strides = [1, 1, 1]} : vector<10x10x128xf32> to vector<8x8x128xf32>
    %14 = vector.shape_cast %13 : vector<8x8x128xf32> to vector<64x128xf32>
    %15 = vector.extract_strided_slice %8 {offsets = [1, 0, 0], sizes = [8, 8, 128], strides = [1, 1, 1]} : vector<10x10x128xf32> to vector<8x8x128xf32>
    %16 = vector.shape_cast %15 : vector<8x8x128xf32> to vector<64x128xf32>
    %17 = vector.extract_strided_slice %8 {offsets = [1, 1, 0], sizes = [8, 8, 128], strides = [1, 1, 1]} : vector<10x10x128xf32> to vector<8x8x128xf32>
    %18 = vector.shape_cast %17 : vector<8x8x128xf32> to vector<64x128xf32>
    %19 = vector.extract_strided_slice %8 {offsets = [1, 2, 0], sizes = [8, 8, 128], strides = [1, 1, 1]} : vector<10x10x128xf32> to vector<8x8x128xf32>
    %20 = vector.shape_cast %19 : vector<8x8x128xf32> to vector<64x128xf32>
    %21 = vector.extract_strided_slice %8 {offsets = [2, 0, 0], sizes = [8, 8, 128], strides = [1, 1, 1]} : vector<10x10x128xf32> to vector<8x8x128xf32>
    %22 = vector.shape_cast %21 : vector<8x8x128xf32> to vector<64x128xf32>
    %23 = vector.extract_strided_slice %8 {offsets = [2, 1, 0], sizes = [8, 8, 128], strides = [1, 1, 1]} : vector<10x10x128xf32> to vector<8x8x128xf32>
    %24 = vector.shape_cast %23 : vector<8x8x128xf32> to vector<64x128xf32>
    %25 = vector.extract_strided_slice %8 {offsets = [2, 2, 0], sizes = [8, 8, 128], strides = [1, 1, 1]} : vector<10x10x128xf32> to vector<8x8x128xf32>
    %26 = vector.shape_cast %25 : vector<8x8x128xf32> to vector<64x128xf32>
    %27 = tpu.concatenate %10, %12, %14, %16, %18, %20, %22, %24, %26 in 1 : vector<64x128xf32>, vector<64x128xf32>, vector<64x128xf32>, vector<64x128xf32>, vector<64x128xf32>, vector<64x128xf32>, vector<64x128xf32>, vector<64x128xf32>, vector<64x128xf32> -> vector<64x1152xf32>
    %28 = arith.truncf %27 : vector<64x1152xf32> to vector<64x1152xbf16>
    %29 = arith.extf %3 : vector<10x10x128xbf16> to vector<10x10x128xf32>
    %30 = vector.extract_strided_slice %29 {offsets = [0, 0, 0], sizes = [8, 8, 128], strides = [1, 1, 1]} : vector<10x10x128xf32> to vector<8x8x128xf32>
    %31 = vector.shape_cast %30 : vector<8x8x128xf32> to vector<64x128xf32>
    %32 = vector.extract_strided_slice %29 {offsets = [0, 1, 0], sizes = [8, 8, 128], strides = [1, 1, 1]} : vector<10x10x128xf32> to vector<8x8x128xf32>
    %33 = vector.shape_cast %32 : vector<8x8x128xf32> to vector<64x128xf32>
    %34 = vector.extract_strided_slice %29 {offsets = [0, 2, 0], sizes = [8, 8, 128], strides = [1, 1, 1]} : vector<10x10x128xf32> to vector<8x8x128xf32>
    %35 = vector.shape_cast %34 : vector<8x8x128xf32> to vector<64x128xf32>
    %36 = vector.extract_strided_slice %29 {offsets = [1, 0, 0], sizes = [8, 8, 128], strides = [1, 1, 1]} : vector<10x10x128xf32> to vector<8x8x128xf32>
    %37 = vector.shape_cast %36 : vector<8x8x128xf32> to vector<64x128xf32>
    %38 = vector.extract_strided_slice %29 {offsets = [1, 1, 0], sizes = [8, 8, 128], strides = [1, 1, 1]} : vector<10x10x128xf32> to vector<8x8x128xf32>
    %39 = vector.shape_cast %38 : vector<8x8x128xf32> to vector<64x128xf32>
    %40 = vector.extract_strided_slice %29 {offsets = [1, 2, 0], sizes = [8, 8, 128], strides = [1, 1, 1]} : vector<10x10x128xf32> to vector<8x8x128xf32>
    %41 = vector.shape_cast %40 : vector<8x8x128xf32> to vector<64x128xf32>
    %42 = vector.extract_strided_slice %29 {offsets = [2, 0, 0], sizes = [8, 8, 128], strides = [1, 1, 1]} : vector<10x10x128xf32> to vector<8x8x128xf32>
    %43 = vector.shape_cast %42 : vector<8x8x128xf32> to vector<64x128xf32>
    %44 = vector.extract_strided_slice %29 {offsets = [2, 1, 0], sizes = [8, 8, 128], strides = [1, 1, 1]} : vector<10x10x128xf32> to vector<8x8x128xf32>
    %45 = vector.shape_cast %44 : vector<8x8x128xf32> to vector<64x128xf32>
    %46 = vector.extract_strided_slice %29 {offsets = [2, 2, 0], sizes = [8, 8, 128], strides = [1, 1, 1]} : vector<10x10x128xf32> to vector<8x8x128xf32>
    %47 = vector.shape_cast %46 : vector<8x8x128xf32> to vector<64x128xf32>
    %48 = tpu.concatenate %31, %33, %35, %37, %39, %41, %43, %45, %47 in 1 : vector<64x128xf32>, vector<64x128xf32>, vector<64x128xf32>, vector<64x128xf32>, vector<64x128xf32>, vector<64x128xf32>, vector<64x128xf32>, vector<64x128xf32>, vector<64x128xf32> -> vector<64x1152xf32>
    %49 = arith.truncf %48 : vector<64x1152xf32> to vector<64x1152xbf16>
    %50 = arith.extf %5 : vector<10x10x128xbf16> to vector<10x10x128xf32>
    %51 = vector.extract_strided_slice %50 {offsets = [0, 0, 0], sizes = [8, 8, 128], strides = [1, 1, 1]} : vector<10x10x128xf32> to vector<8x8x128xf32>
    %52 = vector.shape_cast %51 : vector<8x8x128xf32> to vector<64x128xf32>
    %53 = vector.extract_strided_slice %50 {offsets = [0, 1, 0], sizes = [8, 8, 128], strides = [1, 1, 1]} : vector<10x10x128xf32> to vector<8x8x128xf32>
    %54 = vector.shape_cast %53 : vector<8x8x128xf32> to vector<64x128xf32>
    %55 = vector.extract_strided_slice %50 {offsets = [0, 2, 0], sizes = [8, 8, 128], strides = [1, 1, 1]} : vector<10x10x128xf32> to vector<8x8x128xf32>
    %56 = vector.shape_cast %55 : vector<8x8x128xf32> to vector<64x128xf32>
    %57 = vector.extract_strided_slice %50 {offsets = [1, 0, 0], sizes = [8, 8, 128], strides = [1, 1, 1]} : vector<10x10x128xf32> to vector<8x8x128xf32>
    %58 = vector.shape_cast %57 : vector<8x8x128xf32> to vector<64x128xf32>
    %59 = vector.extract_strided_slice %50 {offsets = [1, 1, 0], sizes = [8, 8, 128], strides = [1, 1, 1]} : vector<10x10x128xf32> to vector<8x8x128xf32>
    %60 = vector.shape_cast %59 : vector<8x8x128xf32> to vector<64x128xf32>
    %61 = vector.extract_strided_slice %50 {offsets = [1, 2, 0], sizes = [8, 8, 128], strides = [1, 1, 1]} : vector<10x10x128xf32> to vector<8x8x128xf32>
    %62 = vector.shape_cast %61 : vector<8x8x128xf32> to vector<64x128xf32>
    %63 = vector.extract_strided_slice %50 {offsets = [2, 0, 0], sizes = [8, 8, 128], strides = [1, 1, 1]} : vector<10x10x128xf32> to vector<8x8x128xf32>
    %64 = vector.shape_cast %63 : vector<8x8x128xf32> to vector<64x128xf32>
    %65 = vector.extract_strided_slice %50 {offsets = [2, 1, 0], sizes = [8, 8, 128], strides = [1, 1, 1]} : vector<10x10x128xf32> to vector<8x8x128xf32>
    %66 = vector.shape_cast %65 : vector<8x8x128xf32> to vector<64x128xf32>
    %67 = vector.extract_strided_slice %50 {offsets = [2, 2, 0], sizes = [8, 8, 128], strides = [1, 1, 1]} : vector<10x10x128xf32> to vector<8x8x128xf32>
    %68 = vector.shape_cast %67 : vector<8x8x128xf32> to vector<64x128xf32>
    %69 = tpu.concatenate %52, %54, %56, %58, %60, %62, %64, %66, %68 in 1 : vector<64x128xf32>, vector<64x128xf32>, vector<64x128xf32>, vector<64x128xf32>, vector<64x128xf32>, vector<64x128xf32>, vector<64x128xf32>, vector<64x128xf32>, vector<64x128xf32> -> vector<64x1152xf32>
    %70 = arith.truncf %69 : vector<64x1152xf32> to vector<64x1152xbf16>
    %71 = arith.extf %7 : vector<10x10x128xbf16> to vector<10x10x128xf32>
    %72 = vector.extract_strided_slice %71 {offsets = [0, 0, 0], sizes = [8, 8, 128], strides = [1, 1, 1]} : vector<10x10x128xf32> to vector<8x8x128xf32>
    %73 = vector.shape_cast %72 : vector<8x8x128xf32> to vector<64x128xf32>
    %74 = vector.extract_strided_slice %71 {offsets = [0, 1, 0], sizes = [8, 8, 128], strides = [1, 1, 1]} : vector<10x10x128xf32> to vector<8x8x128xf32>
    %75 = vector.shape_cast %74 : vector<8x8x128xf32> to vector<64x128xf32>
    %76 = vector.extract_strided_slice %71 {offsets = [0, 2, 0], sizes = [8, 8, 128], strides = [1, 1, 1]} : vector<10x10x128xf32> to vector<8x8x128xf32>
    %77 = vector.shape_cast %76 : vector<8x8x128xf32> to vector<64x128xf32>
    %78 = vector.extract_strided_slice %71 {offsets = [1, 0, 0], sizes = [8, 8, 128], strides = [1, 1, 1]} : vector<10x10x128xf32> to vector<8x8x128xf32>
    %79 = vector.shape_cast %78 : vector<8x8x128xf32> to vector<64x128xf32>
    %80 = vector.extract_strided_slice %71 {offsets = [1, 1, 0], sizes = [8, 8, 128], strides = [1, 1, 1]} : vector<10x10x128xf32> to vector<8x8x128xf32>
    %81 = vector.shape_cast %80 : vector<8x8x128xf32> to vector<64x128xf32>
    %82 = vector.extract_strided_slice %71 {offsets = [1, 2, 0], sizes = [8, 8, 128], strides = [1, 1, 1]} : vector<10x10x128xf32> to vector<8x8x128xf32>
    %83 = vector.shape_cast %82 : vector<8x8x128xf32> to vector<64x128xf32>
    %84 = vector.extract_strided_slice %71 {offsets = [2, 0, 0], sizes = [8, 8, 128], strides = [1, 1, 1]} : vector<10x10x128xf32> to vector<8x8x128xf32>
    %85 = vector.shape_cast %84 : vector<8x8x128xf32> to vector<64x128xf32>
    %86 = vector.extract_strided_slice %71 {offsets = [2, 1, 0], sizes = [8, 8, 128], strides = [1, 1, 1]} : vector<10x10x128xf32> to vector<8x8x128xf32>
    %87 = vector.shape_cast %86 : vector<8x8x128xf32> to vector<64x128xf32>
    %88 = vector.extract_strided_slice %71 {offsets = [2, 2, 0], sizes = [8, 8, 128], strides = [1, 1, 1]} : vector<10x10x128xf32> to vector<8x8x128xf32>
    %89 = vector.shape_cast %88 : vector<8x8x128xf32> to vector<64x128xf32>
    %90 = tpu.concatenate %73, %75, %77, %79, %81, %83, %85, %87, %89 in 1 : vector<64x128xf32>, vector<64x128xf32>, vector<64x128xf32>, vector<64x128xf32>, vector<64x128xf32>, vector<64x128xf32>, vector<64x128xf32>, vector<64x128xf32>, vector<64x128xf32> -> vector<64x1152xf32>
    %91 = arith.truncf %90 : vector<64x1152xf32> to vector<64x1152xbf16>
    %cst = arith.constant 0.000000e+00 : f32
    %92 = vector.broadcast %cst : f32 to vector<128x128xf32>
    %93 = tpu.concatenate %28, %49 in 0 : vector<64x1152xbf16>, vector<64x1152xbf16> -> vector<128x1152xbf16>
    %c0_18 = arith.constant 0 : index
    %c0_19 = arith.constant 0 : index
    %c0_20 = arith.constant 0 : index
    %94 = vector.load %arg4[%c0_18, %c0_19, %c0_20] : memref<3x1152x128xbf16, #tpu.memory_space<vmem>>, vector<1x1152x128xbf16>
    %95 = vector.shape_cast %94 : vector<1x1152x128xbf16> to vector<1152x128xbf16>
    %cst_21 = arith.constant dense<0.000000e+00> : vector<128x128xf32>
    %96 = tpu.matmul %93, %95, %cst_21 {dimension_numbers = #tpu.dot_dimension_numbers<[1], [0], [0], [1], [0, 0, 1, 1], [], []>} : vector<128x1152xbf16>, vector<1152x128xbf16>, vector<128x128xf32> -> vector<128x128xf32>
    %97 = arith.addf %92, %96 : vector<128x128xf32>
    %98 = tpu.concatenate %49, %70 in 0 : vector<64x1152xbf16>, vector<64x1152xbf16> -> vector<128x1152xbf16>
    %c1_22 = arith.constant 1 : index
    %c0_23 = arith.constant 0 : index
    %c0_24 = arith.constant 0 : index
    %99 = vector.load %arg4[%c1_22, %c0_23, %c0_24] : memref<3x1152x128xbf16, #tpu.memory_space<vmem>>, vector<1x1152x128xbf16>
    %100 = vector.shape_cast %99 : vector<1x1152x128xbf16> to vector<1152x128xbf16>
    %cst_25 = arith.constant dense<0.000000e+00> : vector<128x128xf32>
    %101 = tpu.matmul %98, %100, %cst_25 {dimension_numbers = #tpu.dot_dimension_numbers<[1], [0], [0], [1], [0, 0, 1, 1], [], []>} : vector<128x1152xbf16>, vector<1152x128xbf16>, vector<128x128xf32> -> vector<128x128xf32>
    %102 = arith.addf %97, %101 : vector<128x128xf32>
    %103 = tpu.concatenate %70, %91 in 0 : vector<64x1152xbf16>, vector<64x1152xbf16> -> vector<128x1152xbf16>
    %c2 = arith.constant 2 : index
    %c0_26 = arith.constant 0 : index
    %c0_27 = arith.constant 0 : index
    %104 = vector.load %arg4[%c2, %c0_26, %c0_27] : memref<3x1152x128xbf16, #tpu.memory_space<vmem>>, vector<1x1152x128xbf16>
    %105 = vector.shape_cast %104 : vector<1x1152x128xbf16> to vector<1152x128xbf16>
    %cst_28 = arith.constant dense<0.000000e+00> : vector<128x128xf32>
    %106 = tpu.matmul %103, %105, %cst_28 {dimension_numbers = #tpu.dot_dimension_numbers<[1], [0], [0], [1], [0, 0, 1, 1], [], []>} : vector<128x1152xbf16>, vector<1152x128xbf16>, vector<128x128xf32> -> vector<128x128xf32>
    %107 = arith.addf %102, %106 : vector<128x128xf32>
    %108 = vector.shape_cast %107 : vector<128x128xf32> to vector<2x8x8x128xf32>
    %109 = arith.truncf %108 : vector<2x8x8x128xf32> to vector<2x8x8x128xbf16>
    %c0_29 = arith.constant 0 : index
    %c0_30 = arith.constant 0 : index
    %c0_31 = arith.constant 0 : index
    %c0_32 = arith.constant 0 : index
    %c0_33 = arith.constant 0 : index
    %110 = vector.load %arg5[%c0_29, %c0_30, %c0_31, %c0_32, %c0_33] : memref<1x2x8x8x128xbf16, #tpu.memory_space<vmem>>, vector<1x2x8x8x128xbf16>
    %111 = vector.shape_cast %110 : vector<1x2x8x8x128xbf16> to vector<2x8x8x128xbf16>
    %112 = vector.shape_cast %109 : vector<2x8x8x128xbf16> to vector<1x2x8x8x128xbf16>
    tpu.vector_store %arg5[%c0_29, %c0_30, %c0_31, %c0_32, %c0_33], %112 {strides = array<i32>} : memref<1x2x8x8x128xbf16, #tpu.memory_space<vmem>>, vector<1x2x8x8x128xbf16>,
    %cst_34 = arith.constant dense<0.000000e+00> : vector<128xf32>
    %113 = vector.multi_reduction <add>, %107, %cst_34 [0] : vector<128x128xf32> to vector<128xf32>
    %114 = vector.shape_cast %113 : vector<128xf32> to vector<1x128xf32>
    %c0_35 = arith.constant 0 : index
    %c0_36 = arith.constant 0 : index
    %c0_37 = arith.constant 0 : index
    %c0_38 = arith.constant 0 : index
    %115 = vector.load %arg6[%c0_35, %c0_36, %c0_37, %c0_38] : memref<1x1x2x128xf32, #tpu.memory_space<vmem>>, vector<1x1x1x128xf32>
    %116 = vector.shape_cast %115 : vector<1x1x1x128xf32> to vector<1x128xf32>
    %117 = vector.shape_cast %114 : vector<1x128xf32> to vector<1x1x1x128xf32>
    tpu.vector_store %arg6[%c0_35, %c0_36, %c0_37, %c0_38], %117 {strides = array<i32>} : memref<1x1x2x128xf32, #tpu.memory_space<vmem>>, vector<1x1x1x128xf32>,
    %118 = arith.mulf %107, %107 : vector<128x128xf32>
    %cst_39 = arith.constant dense<0.000000e+00> : vector<128xf32>
    %119 = vector.multi_reduction <add>, %118, %cst_39 [0] : vector<128x128xf32> to vector<128xf32>
    %120 = vector.shape_cast %119 : vector<128xf32> to vector<1x128xf32>
    %c0_40 = arith.constant 0 : index
    %c0_41 = arith.constant 0 : index
    %c1_42 = arith.constant 1 : index
    %c0_43 = arith.constant 0 : index
    %121 = vector.load %arg6[%c0_40, %c0_41, %c1_42, %c0_43] : memref<1x1x2x128xf32, #tpu.memory_space<vmem>>, vector<1x1x1x128xf32>
    %122 = vector.shape_cast %121 : vector<1x1x1x128xf32> to vector<1x128xf32>
    %123 = vector.shape_cast %120 : vector<1x128xf32> to vector<1x1x1x128xf32>
    tpu.vector_store %arg6[%c0_40, %c0_41, %c1_42, %c0_43], %123 {strides = array<i32>} : memref<1x1x2x128xf32, #tpu.memory_space<vmem>>, vector<1x1x1x128xf32>,
    return
  }
  func.func @transform_0(%arg0: i32, %arg1: i32) -> (i32, i32, i32, i32, i32) {
    %c0_i32 = arith.constant 0 : i32
    %c0_i32_0 = arith.constant 0 : i32
    %c0_i32_1 = arith.constant 0 : i32
    %c0_i32_2 = arith.constant 0 : i32
    return %arg0, %arg1, %c0_i32, %c0_i32_0, %c0_i32_1 : i32, i32, i32, i32, i32
  }
  func.func @transform_1(%arg0: i32, %arg1: i32) -> (i32, i32, i32, i32, i32) {
    %c1_i32 = arith.constant 1 : i32
    %0 = arith.addi %arg1, %c1_i32 : i32
    %c0_i32 = arith.constant 0 : i32
    %c0_i32_0 = arith.constant 0 : i32
    %c0_i32_1 = arith.constant 0 : i32
    %c0_i32_2 = arith.constant 0 : i32
    return %arg0, %0, %c0_i32, %c0_i32_0, %c0_i32_1 : i32, i32, i32, i32, i32
  }
  func.func @transform_2(%arg0: i32, %arg1: i32) -> (i32, i32, i32) {
    %c0_i32 = arith.constant 0 : i32
    %c0_i32_0 = arith.constant 0 : i32
    %c0_i32_1 = arith.constant 0 : i32
    %c0_i32_2 = arith.constant 0 : i32
    return %c0_i32, %c0_i32_0, %c0_i32_1 : i32, i32, i32
  }
  func.func @transform_3(%arg0: i32, %arg1: i32) -> (i32, i32, i32, i32, i32) {
    %c0_i32 = arith.constant 0 : i32
    %c0_i32_0 = arith.constant 0 : i32
    %c0_i32_1 = arith.constant 0 : i32
    %c0_i32_2 = arith.constant 0 : i32
    return %arg0, %arg1, %c0_i32, %c0_i32_0, %c0_i32_1 : i32, i32, i32, i32, i32
  }
  func.func @transform_4(%arg0: i32, %arg1: i32) -> (i32, i32, i32, i32) {
    %c0_i32 = arith.constant 0 : i32
    %c0_i32_0 = arith.constant 0 : i32
    %c0_i32_1 = arith.constant 0 : i32
    return %arg0, %arg1, %c0_i32, %c0_i32_0 : i32, i32, i32, i32
  }
}

module attributes {stable_mosaic.version = 11 : i64} {
  func.func @_bn_relu_pool_kernel(%arg0: i32, %arg1: i32, %arg2: memref<1x2x8x8x128xbf16, #tpu.memory_space<vmem>>, %arg3: memref<1x128xf32, #tpu.memory_space<vmem>>, %arg4: memref<1x128xf32, #tpu.memory_space<vmem>>, %arg5: memref<1x2x8x8x128xf32, #tpu.memory_space<vmem>>, %arg6: memref<1x1x4x4x128xf32, #tpu.memory_space<vmem>>, %arg7: memref<4x8x128xf32, #tpu.memory_space<vmem>>) attributes {dimension_semantics = [#tpu.dimension_semantics<parallel>, #tpu.dimension_semantics<parallel>], iteration_bounds = array<i64: 2, 4>, scalar_prefetch = 0 : i64, scratch_operands = 1 : i64, tpu.core_type = #tpu.core_type<tc>, window_params = [{transform_indices = @transform_0, window_bounds = array<i64: 1, 2, 8, 8, 128>}, {pipeline_mode = #tpu.pipeline_mode<synchronous>, transform_indices = @transform_1, window_bounds = array<i64: 1, 128>}, {pipeline_mode = #tpu.pipeline_mode<synchronous>, transform_indices = @transform_2, window_bounds = array<i64: 1, 128>}, {transform_indices = @transform_3, window_bounds = array<i64: 1, 2, 8, 8, 128>}, {transform_indices = @transform_4, window_bounds = array<i64: 1, 1, 4, 4, 128>}]} {
    %c0 = arith.constant 0 : index
    %c0_0 = arith.constant 0 : index
    %c0_1 = arith.constant 0 : index
    %c0_2 = arith.constant 0 : index
    %c0_3 = arith.constant 0 : index
    %0 = vector.load %arg2[%c0, %c0_0, %c0_1, %c0_2, %c0_3] : memref<1x2x8x8x128xbf16, #tpu.memory_space<vmem>>, vector<1x2x8x8x128xbf16>
    %1 = vector.shape_cast %0 : vector<1x2x8x8x128xbf16> to vector<2x8x8x128xbf16>
    %2 = arith.extf %1 : vector<2x8x8x128xbf16> to vector<2x8x8x128xf32>
    %c0_4 = arith.constant 0 : index
    %c0_5 = arith.constant 0 : index
    %3 = vector.load %arg3[%c0_4, %c0_5] : memref<1x128xf32, #tpu.memory_space<vmem>>, vector<1x128xf32>
    %4 = vector.shape_cast %3 : vector<1x128xf32> to vector<1x1x1x128xf32>
    %5 = vector.broadcast %4 : vector<1x1x1x128xf32> to vector<2x8x8x128xf32>
    %6 = arith.mulf %2, %5 : vector<2x8x8x128xf32>
    %c0_6 = arith.constant 0 : index
    %c0_7 = arith.constant 0 : index
    %7 = vector.load %arg4[%c0_6, %c0_7] : memref<1x128xf32, #tpu.memory_space<vmem>>, vector<1x128xf32>
    %8 = vector.shape_cast %7 : vector<1x128xf32> to vector<1x1x1x128xf32>
    %9 = vector.broadcast %8 : vector<1x1x1x128xf32> to vector<2x8x8x128xf32>
    %10 = arith.addf %6, %9 : vector<2x8x8x128xf32>
    %cst = arith.constant 0.000000e+00 : f32
    %11 = vector.broadcast %cst : f32 to vector<2x8x8x128xf32>
    %12 = arith.maximumf %10, %11 : vector<2x8x8x128xf32>
    %c0_8 = arith.constant 0 : index
    %c0_9 = arith.constant 0 : index
    %c0_10 = arith.constant 0 : index
    %c0_11 = arith.constant 0 : index
    %c0_12 = arith.constant 0 : index
    %13 = vector.load %arg5[%c0_8, %c0_9, %c0_10, %c0_11, %c0_12] : memref<1x2x8x8x128xf32, #tpu.memory_space<vmem>>, vector<1x2x8x8x128xf32>
    %14 = vector.shape_cast %13 : vector<1x2x8x8x128xf32> to vector<2x8x8x128xf32>
    %15 = vector.shape_cast %12 : vector<2x8x8x128xf32> to vector<1x2x8x8x128xf32>
    tpu.vector_store %arg5[%c0_8, %c0_9, %c0_10, %c0_11, %c0_12], %15 {strides = array<i32>} : memref<1x2x8x8x128xf32, #tpu.memory_space<vmem>>, vector<1x2x8x8x128xf32>,
    %16 = vector.extract_strided_slice %12 {offsets = [0, 0, 0, 0], sizes = [1, 8, 8, 128], strides = [1, 1, 1, 1]} : vector<2x8x8x128xf32> to vector<1x8x8x128xf32>
    %17 = vector.shape_cast %16 : vector<1x8x8x128xf32> to vector<8x8x128xf32>
    %18 = vector.extract_strided_slice %12 {offsets = [1, 0, 0, 0], sizes = [1, 8, 8, 128], strides = [1, 1, 1, 1]} : vector<2x8x8x128xf32> to vector<1x8x8x128xf32>
    %19 = vector.shape_cast %18 : vector<1x8x8x128xf32> to vector<8x8x128xf32>
    %20 = arith.maximumf %17, %19 : vector<8x8x128xf32>
    %21 = vector.shape_cast %20 : vector<8x8x128xf32> to vector<4x2x8x128xf32>
    %22 = vector.extract_strided_slice %21 {offsets = [0, 0, 0, 0], sizes = [4, 1, 8, 128], strides = [1, 1, 1, 1]} : vector<4x2x8x128xf32> to vector<4x1x8x128xf32>
    %23 = vector.shape_cast %22 : vector<4x1x8x128xf32> to vector<4x8x128xf32>
    %24 = vector.extract_strided_slice %21 {offsets = [0, 1, 0, 0], sizes = [4, 1, 8, 128], strides = [1, 1, 1, 1]} : vector<4x2x8x128xf32> to vector<4x1x8x128xf32>
    %25 = vector.shape_cast %24 : vector<4x1x8x128xf32> to vector<4x8x128xf32>
    %26 = arith.maximumf %23, %25 : vector<4x8x128xf32>
    %c0_13 = arith.constant 0 : index
    %c0_14 = arith.constant 0 : index
    %c0_15 = arith.constant 0 : index
    %27 = vector.load %arg7[%c0_13, %c0_14, %c0_15] : memref<4x8x128xf32, #tpu.memory_space<vmem>>, vector<4x8x128xf32>
    tpu.vector_store %arg7[%c0_13, %c0_14, %c0_15], %26 {strides = array<i32>} : memref<4x8x128xf32, #tpu.memory_space<vmem>>, vector<4x8x128xf32>,
    %c0_16 = arith.constant 0 : index
    %c0_17 = arith.constant 0 : index
    %c0_18 = arith.constant 0 : index
    %28 = tpu.strided_load %arg7[%c0_16, %c0_17, %c0_18] {strides = array<i32: 1, 2, 1>} : memref<4x8x128xf32, #tpu.memory_space<vmem>>, vector<4x4x128xf32>
    %c0_19 = arith.constant 0 : index
    %c1 = arith.constant 1 : index
    %c0_20 = arith.constant 0 : index
    %29 = tpu.strided_load %arg7[%c0_19, %c1, %c0_20] {strides = array<i32: 1, 2, 1>} : memref<4x8x128xf32, #tpu.memory_space<vmem>>, vector<4x4x128xf32>
    %30 = arith.maximumf %28, %29 : vector<4x4x128xf32>
    %c0_21 = arith.constant 0 : index
    %c0_22 = arith.constant 0 : index
    %c0_23 = arith.constant 0 : index
    %c0_24 = arith.constant 0 : index
    %c0_25 = arith.constant 0 : index
    %31 = vector.load %arg6[%c0_21, %c0_22, %c0_23, %c0_24, %c0_25] : memref<1x1x4x4x128xf32, #tpu.memory_space<vmem>>, vector<1x1x4x4x128xf32>
    %32 = vector.shape_cast %31 : vector<1x1x4x4x128xf32> to vector<4x4x128xf32>
    %33 = vector.shape_cast %30 : vector<4x4x128xf32> to vector<1x1x4x4x128xf32>
    tpu.vector_store %arg6[%c0_21, %c0_22, %c0_23, %c0_24, %c0_25], %33 {strides = array<i32>} : memref<1x1x4x4x128xf32, #tpu.memory_space<vmem>>, vector<1x1x4x4x128xf32>,
    return
  }
  func.func @transform_0(%arg0: i32, %arg1: i32) -> (i32, i32, i32, i32, i32) {
    %c0_i32 = arith.constant 0 : i32
    %c0_i32_0 = arith.constant 0 : i32
    %c0_i32_1 = arith.constant 0 : i32
    %c0_i32_2 = arith.constant 0 : i32
    return %arg0, %arg1, %c0_i32, %c0_i32_0, %c0_i32_1 : i32, i32, i32, i32, i32
  }
  func.func @transform_1(%arg0: i32, %arg1: i32) -> (i32, i32) {
    %c0_i32 = arith.constant 0 : i32
    %c0_i32_0 = arith.constant 0 : i32
    %c0_i32_1 = arith.constant 0 : i32
    return %c0_i32, %c0_i32_0 : i32, i32
  }
  func.func @transform_2(%arg0: i32, %arg1: i32) -> (i32, i32) {
    %c0_i32 = arith.constant 0 : i32
    %c0_i32_0 = arith.constant 0 : i32
    %c0_i32_1 = arith.constant 0 : i32
    return %c0_i32, %c0_i32_0 : i32, i32
  }
  func.func @transform_3(%arg0: i32, %arg1: i32) -> (i32, i32, i32, i32, i32) {
    %c0_i32 = arith.constant 0 : i32
    %c0_i32_0 = arith.constant 0 : i32
    %c0_i32_1 = arith.constant 0 : i32
    %c0_i32_2 = arith.constant 0 : i32
    return %arg0, %arg1, %c0_i32, %c0_i32_0, %c0_i32_1 : i32, i32, i32, i32, i32
  }
  func.func @transform_4(%arg0: i32, %arg1: i32) -> (i32, i32, i32, i32, i32) {
    %c0_i32 = arith.constant 0 : i32
    %c0_i32_0 = arith.constant 0 : i32
    %c0_i32_1 = arith.constant 0 : i32
    %c0_i32_2 = arith.constant 0 : i32
    return %arg0, %arg1, %c0_i32, %c0_i32_0, %c0_i32_1 : i32, i32, i32, i32, i32
  }
}

</mosaic_0001>

<llo_original>
// kernel: conv3d_block_forward.5
$region0: #{conv3d_block_forward.5}
  #allocation0 [shape = 'u32[]', space=smem, size = 0x4, offset = 0x4, fixed_abs, tag = 'smem constant byte address 0x4 - core index']
  #allocation1 [shape = 'u32[144,128]{1,0:T(1,128)}', space=vmem, size = 0x12000, scoped, tag = 'internal scratch']
  %s0 = inlined_call_operand.hbm [shape: bf16[2,8,8,8,128], index: 0, kind: input, shape index: {}]
  %s1 = inlined_call_operand.hbm [shape: f32[1,128], index: 1, kind: input, shape index: {}]
  %s2 = inlined_call_operand.hbm [shape: f32[1,128], index: 2, kind: input, shape index: {}]
  %s3 = inlined_call_operand.hbm [shape: bf16[2,10,10,10,128], index: 3, kind: output, shape index: {}]
  %s4 = sld [smem:[#allocation0]]
  $region65: #{conv3d_block_forward.5} parent=0
    _
  %s6 = ssub.s32 1, %s4
  %s7 = scalar_select 0, %s6, %s4
  $region1: #{conv3d_block_forward.5} parent=0
    #allocation2 [shape = 'u8[32768]{0}', space=vmem, size = 0x8000, scoped, tag = 'input window, operand 0']
    #allocation3 [shape = 's32[2]{0}', space=sflag, size = 0x8, scoped, tag = 'scoped memory for conv3d_block_forward.5']
    #allocation4 [shape = 's32[2]{0}', space=sflag, size = 0x8, scoped, tag = 'scoped memory for conv3d_block_forward.5']
    #allocation5 [shape = 'u8[512]{0}', space=vmem, size = 0x400, scoped, tag = 'input window, operand 1, single buffered']
    #allocation6 [shape = 's32[1]{0}', space=sflag, size = 0x4, scoped, tag = 'scoped memory for conv3d_block_forward.5']
    #allocation7 [shape = 'u8[512]{0}', space=vmem, size = 0x400, scoped, tag = 'input window, operand 2, single buffered']
    #allocation8 [shape = 'u8[81920]{0}', space=vmem, size = 0x14000, scoped, tag = 'output window, operand 0']
    %8 = vsyncpa [#allocation3], 0
    %s9 = scalar_lea.sflag [#allocation3], 1
    %10 = vsyncpa %s9, 0
    %11 = vsyncpa [#allocation6], 0
    %12 = vsyncpa [#allocation4], 0
    %s13 = scalar_lea.sflag [#allocation4], 1
    %14 = vsyncpa %s13, 0
    loop: start=0, step=1, limit=22
    $region2: #{conv3d_block_forward.5} parent=1 // loop_pre_header
      _
    $region3: #{conv3d_block_forward.5} parent=1 // loop_header
      %s16 = sphi 0, %s20
      %p17 = scmp.ge.s32.totalorder %s16, 22
      %s23 = sphi 0, %s35
      %s24 = sphi 0, %s31
      %s25 = sphi 0, %s23
      %s26 = sphi 0, %s24
      %s27 = sphi 0, %s25
      %s28 = sphi 0, %s26
      %s50 = sphi 0, %s52
      %s53 = sphi 0, %s50
      %s54 = sphi 0, %s53
      %s70 = sphi 0, %s54
      %s74 = sphi 0, %s74
      %s76 = sphi 0, %s74
      %s77 = sphi 0, %s76
      %s91 = sphi 0, %s77
      %s95 = sphi 0, %s95
      %s97 = sphi 0, %s95
      %s98 = sphi 0, %s97
      %s112 = sphi 0, %s98
      %s120 = sphi 0, %s122
      %s123 = sphi 0, %s120
      %s124 = sphi 0, %s123
      %s140 = sphi 0, %s124
    $region4: #{conv3d_block_forward.5} parent=1 // loop_header_branch
      %19 = sbr.rel (%p17) target = $region8
    $region5: #{conv3d_block_forward.5} parent=1 // loop_body
      %s21 = ssub.s32 %s16, 1
      %s22 = ssub.s32 %s16, 2
      %s29 = sadd.s32 1, %s24
      %p30 = scmp.ge.s32.totalorder %s29, 10
      %s31 = scalar_select %p30, 0, %s29
      %s32 = sadd.s32 1, %s23
      %s33 = scalar_select %p30, %s32, %s23
      %p34 = scmp.ge.s32.totalorder %s33, 2
      %s35 = scalar_select %p34, 0, %s33
      %s36 = ssub.s32 %s24, 1
      %p37 = scmp.lt.s32.totalorder %s36, 7
      %s38 = scalar_select %p37, %s36, 7
      %p39 = scmp.gt.s32.totalorder %s38, 0
      %s40 = scalar_select %p39, %s38, 0
      %s41 = ssub.s32 %s31, 1
      %p42 = scmp.lt.s32.totalorder %s41, 7
      %s43 = scalar_select %p42, %s41, 7
      %p44 = scmp.gt.s32.totalorder %s43, 0
      %s45 = scalar_select %p44, %s43, 0
      %s46 = ssub.s32 %s23, %s35
      %s47 = ssub.s32 %s40, %s45
      %s48 = sor.u32 %s46, %s47
      %p49 = scmp.eq.s32.totalorder %s48, 0
      %s51 = sadd.s32 %s50, 1
      %s52 = scalar_select %p49, %s50, %s51
      %p55 = pneg %p49
      %p56 = scmp.eq.s32.totalorder %s16, 19
      %p57 = por %p55, %p56
      %p58 = scmp.ne.s32.totalorder %s50, %s53
      %p59 = scmp.eq.s32.totalorder %s16, 0
      %p60 = por %p58, %p59
      %p61 = scmp.ne.s32.totalorder %s50, %s53
      %p62 = scmp.eq.s32.totalorder %s21, 19
      %p63 = por %p61, %p62
      %p64 = scmp.ne.s32.totalorder %s53, %s54
      %p65 = scmp.eq.s32.totalorder %s21, 0
      %p66 = por %p64, %p65
      %p67 = scmp.ne.s32.totalorder %s53, %s54
      %p68 = scmp.eq.s32.totalorder %s22, 19
      %p69 = por %p67, %p68
      %p71 = scmp.ne.s32.totalorder %s54, %s70
      %p72 = scmp.eq.s32.totalorder %s22, 0
      %p73 = por %p71, %p72
      %s75 = sadd.s32 %s74, 1
      %p78 = scmp.eq.s32.totalorder %s16, 19
      %p79 = scmp.ne.s32.totalorder %s74, %s76
      %p80 = scmp.eq.s32.totalorder %s16, 0
      %p81 = por %p79, %p80
      %p82 = scmp.ne.s32.totalorder %s74, %s76
      %p83 = scmp.eq.s32.totalorder %s21, 19
      %p84 = por %p82, %p83
      %p85 = scmp.ne.s32.totalorder %s76, %s77
      %p86 = scmp.eq.s32.totalorder %s21, 0
      %p87 = por %p85, %p86
      %p88 = scmp.ne.s32.totalorder %s76, %s77
      %p89 = scmp.eq.s32.totalorder %s22, 19
      %p90 = por %p88, %p89
      %p92 = scmp.ne.s32.totalorder %s77, %s91
      %p93 = scmp.eq.s32.totalorder %s22, 0
      %p94 = por %p92, %p93
      %s96 = sadd.s32 %s95, 1
      %p99 = scmp.eq.s32.totalorder %s16, 19
      %p100 = scmp.ne.s32.totalorder %s95, %s97
      %p101 = scmp.eq.s32.totalorder %s16, 0
      %p102 = por %p100, %p101
      %p103 = scmp.ne.s32.totalorder %s95, %s97
      %p104 = scmp.eq.s32.totalorder %s21, 19
      %p105 = por %p103, %p104
      %p106 = scmp.ne.s32.totalorder %s97, %s98
      %p107 = scmp.eq.s32.totalorder %s21, 0
      %p108 = por %p106, %p107
      %p109 = scmp.ne.s32.totalorder %s97, %s98
      %p110 = scmp.eq.s32.totalorder %s22, 19
      %p111 = por %p109, %p110
      %p113 = scmp.ne.s32.totalorder %s98, %s112
      %p114 = scmp.eq.s32.totalorder %s22, 0
      %p115 = por %p113, %p114
      %s116 = ssub.s32 %s23, %s35
      %s117 = ssub.s32 %s24, %s31
      %s118 = sor.u32 %s116, %s117
      %p119 = scmp.eq.s32.totalorder %s118, 0
      %s121 = sadd.s32 %s120, 1
      %s122 = scalar_select %p119, %s120, %s121
      %p125 = pneg %p119
      %p126 = scmp.eq.s32.totalorder %s16, 19
      %p127 = por %p125, %p126
      %p128 = scmp.ne.s32.totalorder %s120, %s123
      %p129 = scmp.eq.s32.totalorder %s16, 0
      %p130 = por %p128, %p129
      %p131 = scmp.ne.s32.totalorder %s120, %s123
      %p132 = scmp.eq.s32.totalorder %s21, 19
      %p133 = por %p131, %p132
      %p134 = scmp.ne.s32.totalorder %s123, %s124
      %p135 = scmp.eq.s32.totalorder %s21, 0
      %p136 = por %p134, %p135
      %p137 = scmp.ne.s32.totalorder %s123, %s124
      %p138 = scmp.eq.s32.totalorder %s22, 19
      %p139 = por %p137, %p138
      %p141 = scmp.ne.s32.totalorder %s124, %s140
      %p142 = scmp.eq.s32.totalorder %s22, 0
      %p143 = por %p141, %p142
      %p144 = scmp.le.s32.totalorder 1, %s16
      %p145 = scmp.lt.s32.totalorder %s16, 21
      %p146 = pnand %p144, %p145
      %p147 = pneg %p146
      // Predicated region
      $region9: #{conv3d_block_forward.5} parent=5 // pred_check
        _
      $region10: #{conv3d_block_forward.5} parent=5 // pred_check_branch
        %149 = sbr.rel (%p146) target = $region12
      $region11: #{conv3d_block_forward.5} parent=5 // pred_region
        %s150 = ssub.s32 %s16, 1
        // Predicated region
        $region13: #{conv3d_block_forward.5} parent=11 // pred_check
          %p151 = pneg %p87
        $region14: #{conv3d_block_forward.5} parent=11 // pred_check_branch
          %153 = sbr.rel (%p151) target = $region16
        $region15: #{conv3d_block_forward.5} parent=11 // pred_region
          %s155 = ssub.s32 16, 16
          %156 = vsyncadd [#allocation6], %s155
          %s158 = sshll.u32 [#allocation5], 4
          %s159 = int_to_ptr.vmem [resolvable:$true] %s158
          %161 = dma.hbm_to_vmem [thread:$0]  %s1, 16, %s159, [#allocation6]
        $region16: #{conv3d_block_forward.5} parent=11 // pred_fallthru
          _
        // Predicated region
        $region17: #{conv3d_block_forward.5} parent=11 // pred_check
          %p162 = pneg %p108
        $region18: #{conv3d_block_forward.5} parent=11 // pred_check_branch
          %164 = sbr.rel (%p162) target = $region20
        $region19: #{conv3d_block_forward.5} parent=11 // pred_region
          %s166 = ssub.s32 16, 16
          %167 = vsyncadd [#allocation6], %s166
          %s169 = sshll.u32 [#allocation7], 4
          %s170 = int_to_ptr.vmem [resolvable:$true] %s169
          %172 = dma.hbm_to_vmem [thread:$0]  %s2, 16, %s170, [#allocation6]
        $region20: #{conv3d_block_forward.5} parent=11 // pred_fallthru
          _
      $region12: #{conv3d_block_forward.5} parent=5 // pred_fallthru
        _
      %p173 = scmp.lt.s32.totalorder %s16, 20
      // Predicated region
      $region21: #{conv3d_block_forward.5} parent=5 // pred_check
        %p174 = pneg %p173
      $region22: #{conv3d_block_forward.5} parent=5 // pred_check_branch
        %176 = sbr.rel (%p174) target = $region24
      $region23: #{conv3d_block_forward.5} parent=5 // pred_region
        // Predicated region
        $region25: #{conv3d_block_forward.5} parent=23 // pred_check
          %p177 = pneg %p60
        $region26: #{conv3d_block_forward.5} parent=23 // pred_check_branch
          %179 = sbr.rel (%p177) target = $region28
        $region27: #{conv3d_block_forward.5} parent=23 // pred_region
          %s180 = sand.u32 %s50, 1
          %s181 = scalar_lea.sflag [#allocation3], %s180
          %s182 = sand.u32 %s50, 1
          %s183 = smul.addr %s182, 32
          %s184 = scalar_lea.vmem [#allocation2], %s183
          %s185 = ssub.s32 %s24, 1
          %p186 = scmp.lt.s32.totalorder %s185, 7
          %s187 = scalar_select %p186, %s185, 7
          %p188 = scmp.gt.s32.totalorder %s187, 0
          %s189 = scalar_select %p188, %s187, 0
          %s191 = ssub.s32 512, 512
          %192 = vsyncadd %s181, %s191
          %s193 = smul.addr %s189, 8
          %s194 = smul.addr %s23, 64
          %s195 = sadd.s32 %s193, %s194
          %s196 = smul.addr %s195, 64
          %s197 = scalar_lea.hbm %s0, %s196
          %s198 = sshll.u32 %s184, 4
          %s199 = int_to_ptr.vmem [resolvable:$true] %s198
          %204 = dma.hbm_to_vmem [thread:$0]  %s197, 512, %s199, %s181, 64, 64, 4
        $region28: #{conv3d_block_forward.5} parent=23 // pred_fallthru
          _
      $region24: #{conv3d_block_forward.5} parent=5 // pred_fallthru
        _
      %p205 = scmp.le.s32.totalorder 1, %s16
      %p206 = scmp.lt.s32.totalorder %s16, 21
      %p207 = pnand %p205, %p206
      %p208 = pneg %p207
      // Predicated region
      $region29: #{conv3d_block_forward.5} parent=5 // pred_check
        _
      $region30: #{conv3d_block_forward.5} parent=5 // pred_check_branch
        %210 = sbr.rel (%p207) target = $region32
      $region31: #{conv3d_block_forward.5} parent=5 // pred_region
        %s211 = ssub.s32 %s16, 1
        %s212 = sand.u32 %s53, 1
        %s213 = scalar_lea.sflag [#allocation3], %s212
        %s214 = sand.u32 %s53, 1
        %s215 = smul.addr %s214, 32
        %s216 = scalar_lea.vmem [#allocation2], %s215
        // Predicated region
        $region33: #{conv3d_block_forward.5} parent=31 // pred_check
          %p217 = pneg %p66
        $region34: #{conv3d_block_forward.5} parent=31 // pred_check_branch
          %219 = sbr.rel (%p217) target = $region36
        $region35: #{conv3d_block_forward.5} parent=31 // pred_region
          %220 = dma.done %s213, 512
        $region36: #{conv3d_block_forward.5} parent=31 // pred_fallthru
          _
        // Predicated region
        $region37: #{conv3d_block_forward.5} parent=31 // pred_check
          %p221 = pneg %p87
        $region38: #{conv3d_block_forward.5} parent=31 // pred_check_branch
          %223 = sbr.rel (%p221) target = $region40
        $region39: #{conv3d_block_forward.5} parent=31 // pred_region
          %224 = dma.done [#allocation6], 16
        $region40: #{conv3d_block_forward.5} parent=31 // pred_fallthru
          _
        // Predicated region
        $region41: #{conv3d_block_forward.5} parent=31 // pred_check
          %p225 = pneg %p108
        $region42: #{conv3d_block_forward.5} parent=31 // pred_check_branch
          %227 = sbr.rel (%p225) target = $region44
        $region43: #{conv3d_block_forward.5} parent=31 // pred_region
          %228 = dma.done [#allocation6], 16
        $region44: #{conv3d_block_forward.5} parent=31 // pred_fallthru
          _
        %s229 = sand.u32 %s53, 1
        %s230 = scalar_lea.sflag [#allocation3], %s229
        %s231 = sand.u32 %s53, 1
        %s232 = smul.addr %s231, 32
        %s233 = scalar_lea.vmem [#allocation2], %s232
        %p234 = pneg %p66
        %p235 = pneg %p63
        %p236 = pneg %p87
        %p237 = pneg %p84
        %p238 = pneg %p108
        %p239 = pneg %p105
        %p240 = pneg %p136
        %p241 = pneg %p133
        %s242 = sand.u32 %s123, 1
        %s243 = scalar_lea.sflag [#allocation4], %s242
        %s244 = sand.u32 %s123, 1
        %s245 = smul.addr %s244, 80
        %s246 = scalar_lea.vmem [#allocation8], %s245
        %s247 = ssub.s32 %s26, 1
        %p248 = scmp.lt.s32.totalorder %s247, 7
        %s249 = scalar_select %p248, %s247, 7
        %p250 = scmp.gt.s32.totalorder %s249, 0
        %s251 = scalar_select %p250, %s249, 0
        %p253 = scmp.ge.s32.totalorder %s26, 1
        %p254 = scmp.le.s32.totalorder %s26, 8
        %p255 = pnand %p253, %p254
        %p256 = pneg %p255
        // Predicated region
        $region45: #{conv3d_block_forward.5} parent=31 // pred_check
          _
        $region46: #{conv3d_block_forward.5} parent=31 // pred_check_branch
          %258 = sbr.rel (%p255) target = $region48
        $region47: #{conv3d_block_forward.5} parent=31 // pred_region
          %v259 = vld [vmem:[%s216] sm:$0xf]
          %v260 = vld [vmem:[%s216 + $0x4] sm:$0xf]
          %v261 = vld [vmem:[%s216 + $0x8] sm:$0xf]
          %v262 = vld [vmem:[%s216 + $0xc] sm:$0xf]
          %v263 = vld [vmem:[%s216 + $0x10] sm:$0xf]
          %v264 = vld [vmem:[%s216 + $0x14] sm:$0xf]
          %v265 = vld [vmem:[%s216 + $0x18] sm:$0xf]
          %v266 = vld [vmem:[%s216 + $0x1c] sm:$0xf]
          %v267 = vunpack.c.l.bf16 %v259
          %v268 = vunpack.c.l.bf16 %v260
          %v269 = vunpack.c.l.bf16 %v261
          %v270 = vunpack.c.l.bf16 %v262
          %v271 = vunpack.c.l.bf16 %v263
          %v272 = vunpack.c.l.bf16 %v264
          %v273 = vunpack.c.l.bf16 %v265
          %v274 = vunpack.c.l.bf16 %v266
          %v275 = vld [vmem:[#allocation5] sm:$0x1]
          %v277 = vlaneseq
          %v278 = vshrl.u32 %v277, 7
          %v279 = vsub.s32 0, %v278
          %v280 = vrot.slane %v275, %v279
          %v282 = vmul.f32 %v267, %v280
          %v283 = vmul.f32 %v268, %v280
          %v284 = vmul.f32 %v269, %v280
          %v285 = vmul.f32 %v270, %v280
          %v286 = vmul.f32 %v271, %v280
          %v287 = vmul.f32 %v272, %v280
          %v288 = vmul.f32 %v273, %v280
          %v289 = vmul.f32 %v274, %v280
          %v290 = vld [vmem:[#allocation7] sm:$0x1]
          %v292 = vlaneseq
          %v293 = vshrl.u32 %v292, 7
          %v294 = vsub.s32 0, %v293
          %v295 = vrot.slane %v290, %v294
          %v297 = vadd.f32 %v282, %v295
          %v298 = vadd.f32 %v283, %v295
          %v299 = vadd.f32 %v284, %v295
          %v300 = vadd.f32 %v285, %v295
          %v301 = vadd.f32 %v286, %v295
          %v302 = vadd.f32 %v287, %v295
          %v303 = vadd.f32 %v288, %v295
          %v304 = vadd.f32 %v289, %v295
          %v305 = vmax.f32 %v297, 0.0
          %v306 = vmax.f32 %v298, 0.0
          %v307 = vmax.f32 %v299, 0.0
          %v308 = vmax.f32 %v300, 0.0
          %v309 = vmax.f32 %v301, 0.0
          %v310 = vmax.f32 %v302, 0.0
          %v311 = vmax.f32 %v303, 0.0
          %v312 = vmax.f32 %v304, 0.0
          %v321 = vrot.slane %v305, 7
          %v322 = vrot.slane %v306, 7
          %v323 = vrot.slane %v307, 7
          %v324 = vrot.slane %v308, 7
          %v325 = vrot.slane %v309, 7
          %v326 = vrot.slane %v310, 7
          %v327 = vrot.slane %v311, 7
          %v328 = vrot.slane %v312, 7
          %vm337 = vcmask 1040384
          %v338 = vsel %vm337, 0.0, %v321
          %v339 = vsel %vm337, 0.0, %v322
          %v340 = vsel %vm337, 0.0, %v323
          %v341 = vsel %vm337, 0.0, %v324
          %v342 = vsel %vm337, 0.0, %v325
          %v343 = vsel %vm337, 0.0, %v326
          %v344 = vsel %vm337, 0.0, %v327
          %v345 = vsel %vm337, 0.0, %v328
          %v346 = vsel %vm337, %v321, 0.0
          %v347 = vsel %vm337, %v322, 0.0
          %v348 = vsel %vm337, %v323, 0.0
          %v349 = vsel %vm337, %v324, 0.0
          %v350 = vsel %vm337, %v325, 0.0
          %v351 = vsel %vm337, %v326, 0.0
          %v352 = vsel %vm337, %v327, 0.0
          %v353 = vsel %vm337, %v328, 0.0
          %v354 = vpack.c.bf16 0.0, 0.0
          %v355 = vpack.c.bf16 %v346, %v338
          %v356 = vpack.c.bf16 %v347, %v339
          %v357 = vpack.c.bf16 %v348, %v340
          %v358 = vpack.c.bf16 %v349, %v341
          %v359 = vpack.c.bf16 %v350, %v342
          %v360 = vpack.c.bf16 %v351, %v343
          %v361 = vpack.c.bf16 %v352, %v344
          %v362 = vpack.c.bf16 %v353, %v345
          %v372 = vunpack.c.l.b16 %v354
          %v373 = vunpack.c.h.b16 %v354
          %v374 = vunpack.c.l.b16 %v355
          %v375 = vunpack.c.h.b16 %v355
          %v376 = vunpack.c.l.b16 %v356
          %v377 = vunpack.c.h.b16 %v356
          %v378 = vunpack.c.l.b16 %v357
          %v379 = vunpack.c.h.b16 %v357
          %v380 = vunpack.c.l.b16 %v358
          %v381 = vunpack.c.h.b16 %v358
          %v382 = vunpack.c.l.b16 %v359
          %v383 = vunpack.c.h.b16 %v359
          %v384 = vunpack.c.l.b16 %v360
          %v385 = vunpack.c.h.b16 %v360
          %v386 = vunpack.c.l.b16 %v361
          %v387 = vunpack.c.h.b16 %v361
          %v388 = vunpack.c.l.b16 %v362
          %v389 = vunpack.c.h.b16 %v362
          %v390 = vpack.c.b16 %v372, %v372
          %v391 = vpack.c.b16 %v373, %v373
          %v392 = vpack.c.b16 %v374, %v374
          %v393 = vpack.c.b16 %v375, %v375
          %v394 = vpack.c.b16 %v376, %v376
          %v395 = vpack.c.b16 %v377, %v377
          %v396 = vpack.c.b16 %v378, %v378
          %v397 = vpack.c.b16 %v379, %v379
          %v398 = vpack.c.b16 %v380, %v380
          %v399 = vpack.c.b16 %v381, %v381
          %v400 = vpack.c.b16 %v382, %v382
          %v401 = vpack.c.b16 %v383, %v383
          %v402 = vpack.c.b16 %v384, %v384
          %v403 = vpack.c.b16 %v385, %v385
          %v404 = vpack.c.b16 %v386, %v386
          %v405 = vpack.c.b16 %v387, %v387
          %v406 = vpack.c.b16 %v388, %v388
          %v407 = vpack.c.b16 %v389, %v389
          %426 = vst [vmem:[%s246] sm:$0xf] %v390
          %427 = vst [vmem:[%s246 + $0x4] sm:$0x1] %v391
          %428 = vst [vmem:[%s246 + $0x8] sm:$0xf] %v392
          %429 = vst [vmem:[%s246 + $0xc] sm:$0x1] %v393
          %430 = vst [vmem:[%s246 + $0x10] sm:$0xf] %v394
          %431 = vst [vmem:[%s246 + $0x14] sm:$0x1] %v395
          %432 = vst [vmem:[%s246 + $0x18] sm:$0xf] %v396
          %433 = vst [vmem:[%s246 + $0x1c] sm:$0x1] %v397
          %434 = vst [vmem:[%s246 + $0x20] sm:$0xf] %v398
          %435 = vst [vmem:[%s246 + $0x24] sm:$0x1] %v399
          %436 = vst [vmem:[%s246 + $0x28] sm:$0xf] %v400
          %437 = vst [vmem:[%s246 + $0x2c] sm:$0x1] %v401
          %438 = vst [vmem:[%s246 + $0x30] sm:$0xf] %v402
          %439 = vst [vmem:[%s246 + $0x34] sm:$0x1] %v403
          %440 = vst [vmem:[%s246 + $0x38] sm:$0xf] %v404
          %441 = vst [vmem:[%s246 + $0x3c] sm:$0x1] %v405
          %442 = vst [vmem:[%s246 + $0x40] sm:$0xf] %v406
          %443 = vst [vmem:[%s246 + $0x44] sm:$0x1] %v407
          %444 = vst [vmem:[%s246 + $0x48] sm:$0xf] %v390
          %445 = vst [vmem:[%s246 + $0x4c] sm:$0x1] %v391
        $region48: #{conv3d_block_forward.5} parent=31 // pred_fallthru
          _
        %p446 = pneg %p256
        // Predicated region
        $region49: #{conv3d_block_forward.5} parent=31 // pred_check
          _
        $region50: #{conv3d_block_forward.5} parent=31 // pred_check_branch
          %448 = sbr.rel (%p256) target = $region52
        $region51: #{conv3d_block_forward.5} parent=31 // pred_region
          %449 = vst [vmem:[%s246] sm:$0xf] 0
          %450 = vst [vmem:[%s246 + $0x4] sm:$0x1] 0
          %451 = vst [vmem:[%s246 + $0x8] sm:$0xf] 0
          %452 = vst [vmem:[%s246 + $0xc] sm:$0x1] 0
          %453 = vst [vmem:[%s246 + $0x10] sm:$0xf] 0
          %454 = vst [vmem:[%s246 + $0x14] sm:$0x1] 0
          %455 = vst [vmem:[%s246 + $0x18] sm:$0xf] 0
          %456 = vst [vmem:[%s246 + $0x1c] sm:$0x1] 0
          %457 = vst [vmem:[%s246 + $0x20] sm:$0xf] 0
          %458 = vst [vmem:[%s246 + $0x24] sm:$0x1] 0
          %459 = vst [vmem:[%s246 + $0x28] sm:$0xf] 0
          %460 = vst [vmem:[%s246 + $0x2c] sm:$0x1] 0
          %461 = vst [vmem:[%s246 + $0x30] sm:$0xf] 0
          %462 = vst [vmem:[%s246 + $0x34] sm:$0x1] 0
          %463 = vst [vmem:[%s246 + $0x38] sm:$0xf] 0
          %464 = vst [vmem:[%s246 + $0x3c] sm:$0x1] 0
          %465 = vst [vmem:[%s246 + $0x40] sm:$0xf] 0
          %466 = vst [vmem:[%s246 + $0x44] sm:$0x1] 0
          %467 = vst [vmem:[%s246 + $0x48] sm:$0xf] 0
          %468 = vst [vmem:[%s246 + $0x4c] sm:$0x1] 0
        $region52: #{conv3d_block_forward.5} parent=31 // pred_fallthru
          _
        %s469 = sand.u32 %s123, 1
        %s470 = scalar_lea.sflag [#allocation4], %s469
        %s471 = sand.u32 %s123, 1
        %s472 = smul.addr %s471, 80
        %s473 = scalar_lea.vmem [#allocation8], %s472
        // Predicated region
        $region53: #{conv3d_block_forward.5} parent=31 // pred_check
          %p474 = pneg %p133
        $region54: #{conv3d_block_forward.5} parent=31 // pred_check_branch
          %476 = sbr.rel (%p474) target = $region56
        $region55: #{conv3d_block_forward.5} parent=31 // pred_region
          %s478 = ssub.s32 1280, 1280
          %479 = vsyncadd %s470, %s478
          %s480 = smul.addr %s26, 20
          %s481 = smul.addr %s25, 200
          %s482 = sadd.s32 %s480, %s481
          %s483 = smul.addr %s482, 64
          %s484 = scalar_lea.hbm %s3, %s483
          %s485 = sshll.u32 %s473, 4
          %s486 = int_to_ptr.vmem [resolvable:$true] %s485
          %491 = dma.vmem_to_hbm [thread:$0]  %s486, 1280, %s484, %s470, 64, 64, 4
        $region56: #{conv3d_block_forward.5} parent=31 // pred_fallthru
          _
      $region32: #{conv3d_block_forward.5} parent=5 // pred_fallthru
        _
      %p492 = scmp.le.s32.totalorder 2, %s16
      // Predicated region
      $region57: #{conv3d_block_forward.5} parent=5 // pred_check
        %p493 = pneg %p492
      $region58: #{conv3d_block_forward.5} parent=5 // pred_check_branch
        %495 = sbr.rel (%p493) target = $region60
      $region59: #{conv3d_block_forward.5} parent=5 // pred_region
        %s496 = ssub.s32 %s16, 2
        // Predicated region
        $region61: #{conv3d_block_forward.5} parent=59 // pred_check
          %p497 = pneg %p139
        $region62: #{conv3d_block_forward.5} parent=59 // pred_check_branch
          %499 = sbr.rel (%p497) target = $region64
        $region63: #{conv3d_block_forward.5} parent=59 // pred_region
          %s500 = sand.u32 %s124, 1
          %s501 = scalar_lea.sflag [#allocation4], %s500
          %s502 = sand.u32 %s124, 1
          %s503 = smul.addr %s502, 80
          %s504 = scalar_lea.vmem [#allocation8], %s503
          %505 = dma.done %s501, 1280
        $region64: #{conv3d_block_forward.5} parent=59 // pred_fallthru
          _
      $region60: #{conv3d_block_forward.5} parent=5 // pred_fallthru
        _
    $region6: #{conv3d_block_forward.5} parent=1 // loop_footer
      %s20 = sadd.s32 1, %s16
    $region7: #{conv3d_block_forward.5} parent=1 // loop_footer_branch
      %15 = sbr.rel target = $region3
    $region8: #{conv3d_block_forward.5} parent=1 // loop_exit
      _
    %506 = vsyncpa [#allocation3], 1
    %s507 = scalar_lea.sflag [#allocation3], 1
    %508 = vsyncpa %s507, 1
    %509 = vsyncpa [#allocation6], 1
    %510 = vsyncpa [#allocation4], 1
    %s511 = scalar_lea.sflag [#allocation4], 1
    %512 = vsyncpa %s511, 1

// kernel: conv3d_block_forward.4
$region0: #{conv3d_block_forward.4}
  #allocation0 [shape = 'u32[]', space=smem, size = 0x4, offset = 0x4, fixed_abs, tag = 'smem constant byte address 0x4 - core index']
  #allocation1 [shape = 'u32[144,128]{1,0:T(1,128)}', space=vmem, size = 0x12000, scoped, tag = 'internal scratch']
  %s0 = inlined_call_operand.hbm [shape: bf16[2,10,10,10,4], index: 0, kind: input, shape index: {}, may-alias: {0,1}]
  %s1 = inlined_call_operand.hbm [shape: bf16[2,10,10,10,4], index: 1, kind: input, shape index: {}, may-alias: {0,1}]
  %s2 = inlined_call_operand.hbm [shape: bf16[3,36,128], index: 2, kind: input, shape index: {}]
  %s3 = inlined_call_operand.hbm [shape: bf16[2,8,8,8,128], index: 3, kind: output, shape index: {0}]
  %s4 = inlined_call_operand.hbm [shape: f32[2,4,2,128], index: 4, kind: output, shape index: {1}]
  %5 = xla_tuple %s3, %s4
  %s6 = sld [smem:[#allocation0]]
  $region65: #{conv3d_block_forward.4} parent=0
    _
  %s8 = ssub.s32 1, %s6
  %s9 = scalar_select 0, %s8, %s6
  $region1: #{conv3d_block_forward.4} parent=0
    #allocation2 [shape = 'u8[163840]{0}', space=vmem, size = 0x28000, scoped, tag = 'input window, operand 0']
    #allocation3 [shape = 's32[2]{0}', space=sflag, size = 0x8, scoped, tag = 'scoped memory for conv3d_block_forward.4']
    #allocation4 [shape = 's32[2]{0}', space=sflag, size = 0x8, scoped, tag = 'scoped memory for conv3d_block_forward.4']
    #allocation5 [shape = 'u8[163840]{0}', space=vmem, size = 0x28000, scoped, tag = 'input window, operand 1']
    #allocation6 [shape = 's32[2]{0}', space=sflag, size = 0x8, scoped, tag = 'scoped memory for conv3d_block_forward.4']
    #allocation7 [shape = 'u8[30720]{0}', space=vmem, size = 0x7800, scoped, tag = 'input window, operand 2, single buffered']
    #allocation8 [shape = 'u8[65536]{0}', space=vmem, size = 0x10000, scoped, tag = 'output window, operand 0']
    #allocation9 [shape = 'u8[2048]{0}', space=vmem, size = 0x800, scoped, tag = 'output window, operand 1']
    #allocation10 [shape = 's32[2]{0}', space=sflag, size = 0x8, scoped, tag = 'scoped memory for conv3d_block_forward.4']
    %10 = vsyncpa [#allocation3], 0
    %s11 = scalar_lea.sflag [#allocation3], 1
    %12 = vsyncpa %s11, 0
    %13 = vsyncpa [#allocation6], 0
    %s14 = scalar_lea.sflag [#allocation6], 1
    %15 = vsyncpa %s14, 0
    %16 = vsyncpa [#allocation4], 0
    %s17 = scalar_lea.sflag [#allocation4], 1
    %18 = vsyncpa %s17, 0
    %19 = vsyncpa [#allocation10], 0
    %s20 = scalar_lea.sflag [#allocation10], 1
    %21 = vsyncpa %s20, 0
    loop: start=0, step=1, limit=10
    $region2: #{conv3d_block_forward.4} parent=1 // loop_pre_header
      _
    $region3: #{conv3d_block_forward.4} parent=1 // loop_header
      %s23 = sphi 0, %s27
      %p24 = scmp.ge.s32.totalorder %s23, 10
      %s30 = sphi 0, %s42
      %s31 = sphi 0, %s38
      %s32 = sphi 0, %s30
      %s33 = sphi 0, %s31
      %s34 = sphi 0, %s32
      %s35 = sphi 0, %s33
      %s47 = sphi 0, %s49
      %s50 = sphi 0, %s47
      %s51 = sphi 0, %s50
      %s67 = sphi 0, %s51
      %s77 = sphi 0, %s79
      %s80 = sphi 0, %s77
      %s81 = sphi 0, %s80
      %s97 = sphi 0, %s81
      %s101 = sphi 0, %s101
      %s103 = sphi 0, %s101
      %s104 = sphi 0, %s103
      %s118 = sphi 0, %s104
      %s126 = sphi 0, %s128
      %s129 = sphi 0, %s126
      %s130 = sphi 0, %s129
      %s146 = sphi 0, %s130
      %s154 = sphi 0, %s156
      %s157 = sphi 0, %s154
      %s158 = sphi 0, %s157
      %s174 = sphi 0, %s158
    $region4: #{conv3d_block_forward.4} parent=1 // loop_header_branch
      %26 = sbr.rel (%p24) target = $region8
    $region5: #{conv3d_block_forward.4} parent=1 // loop_body
      %s28 = ssub.s32 %s23, 1
      %s29 = ssub.s32 %s23, 2
      %s36 = sadd.s32 1, %s31
      %p37 = scmp.ge.s32.totalorder %s36, 4
      %s38 = scalar_select %p37, 0, %s36
      %s39 = sadd.s32 1, %s30
      %s40 = scalar_select %p37, %s39, %s30
      %p41 = scmp.ge.s32.totalorder %s40, 2
      %s42 = scalar_select %p41, 0, %s40
      %s43 = ssub.s32 %s30, %s42
      %s44 = ssub.s32 %s31, %s38
      %s45 = sor.u32 %s43, %s44
      %p46 = scmp.eq.s32.totalorder %s45, 0
      %s48 = sadd.s32 %s47, 1
      %s49 = scalar_select %p46, %s47, %s48
      %p52 = pneg %p46
      %p53 = scmp.eq.s32.totalorder %s23, 7
      %p54 = por %p52, %p53
      %p55 = scmp.ne.s32.totalorder %s47, %s50
      %p56 = scmp.eq.s32.totalorder %s23, 0
      %p57 = por %p55, %p56
      %p58 = scmp.ne.s32.totalorder %s47, %s50
      %p59 = scmp.eq.s32.totalorder %s28, 7
      %p60 = por %p58, %p59
      %p61 = scmp.ne.s32.totalorder %s50, %s51
      %p62 = scmp.eq.s32.totalorder %s28, 0
      %p63 = por %p61, %p62
      %p64 = scmp.ne.s32.totalorder %s50, %s51
      %p65 = scmp.eq.s32.totalorder %s29, 7
      %p66 = por %p64, %p65
      %p68 = scmp.ne.s32.totalorder %s51, %s67
      %p69 = scmp.eq.s32.totalorder %s29, 0
      %p70 = por %p68, %p69
      %s71 = sadd.s32 %s31, 1
      %s72 = sadd.s32 %s38, 1
      %s73 = ssub.s32 %s30, %s42
      %s74 = ssub.s32 %s71, %s72
      %s75 = sor.u32 %s73, %s74
      %p76 = scmp.eq.s32.totalorder %s75, 0
      %s78 = sadd.s32 %s77, 1
      %s79 = scalar_select %p76, %s77, %s78
      %p82 = pneg %p76
      %p83 = scmp.eq.s32.totalorder %s23, 7
      %p84 = por %p82, %p83
      %p85 = scmp.ne.s32.totalorder %s77, %s80
      %p86 = scmp.eq.s32.totalorder %s23, 0
      %p87 = por %p85, %p86
      %p88 = scmp.ne.s32.totalorder %s77, %s80
      %p89 = scmp.eq.s32.totalorder %s28, 7
      %p90 = por %p88, %p89
      %p91 = scmp.ne.s32.totalorder %s80, %s81
      %p92 = scmp.eq.s32.totalorder %s28, 0
      %p93 = por %p91, %p92
      %p94 = scmp.ne.s32.totalorder %s80, %s81
      %p95 = scmp.eq.s32.totalorder %s29, 7
      %p96 = por %p94, %p95
      %p98 = scmp.ne.s32.totalorder %s81, %s97
      %p99 = scmp.eq.s32.totalorder %s29, 0
      %p100 = por %p98, %p99
      %s102 = sadd.s32 %s101, 1
      %p105 = scmp.eq.s32.totalorder %s23, 7
      %p106 = scmp.ne.s32.totalorder %s101, %s103
      %p107 = scmp.eq.s32.totalorder %s23, 0
      %p108 = por %p106, %p107
      %p109 = scmp.ne.s32.totalorder %s101, %s103
      %p110 = scmp.eq.s32.totalorder %s28, 7
      %p111 = por %p109, %p110
      %p112 = scmp.ne.s32.totalorder %s103, %s104
      %p113 = scmp.eq.s32.totalorder %s28, 0
      %p114 = por %p112, %p113
      %p115 = scmp.ne.s32.totalorder %s103, %s104
      %p116 = scmp.eq.s32.totalorder %s29, 7
      %p117 = por %p115, %p116
      %p119 = scmp.ne.s32.totalorder %s104, %s118
      %p120 = scmp.eq.s32.totalorder %s29, 0
      %p121 = por %p119, %p120
      %s122 = ssub.s32 %s30, %s42
      %s123 = ssub.s32 %s31, %s38
      %s124 = sor.u32 %s122, %s123
      %p125 = scmp.eq.s32.totalorder %s124, 0
      %s127 = sadd.s32 %s126, 1
      %s128 = scalar_select %p125, %s126, %s127
      %p131 = pneg %p125
      %p132 = scmp.eq.s32.totalorder %s23, 7
      %p133 = por %p131, %p132
      %p134 = scmp.ne.s32.totalorder %s126, %s129
      %p135 = scmp.eq.s32.totalorder %s23, 0
      %p136 = por %p134, %p135
      %p137 = scmp.ne.s32.totalorder %s126, %s129
      %p138 = scmp.eq.s32.totalorder %s28, 7
      %p139 = por %p137, %p138
      %p140 = scmp.ne.s32.totalorder %s129, %s130
      %p141 = scmp.eq.s32.totalorder %s28, 0
      %p142 = por %p140, %p141
      %p143 = scmp.ne.s32.totalorder %s129, %s130
      %p144 = scmp.eq.s32.totalorder %s29, 7
      %p145 = por %p143, %p144
      %p147 = scmp.ne.s32.totalorder %s130, %s146
      %p148 = scmp.eq.s32.totalorder %s29, 0
      %p149 = por %p147, %p148
      %s150 = ssub.s32 %s30, %s42
      %s151 = ssub.s32 %s31, %s38
      %s152 = sor.u32 %s150, %s151
      %p153 = scmp.eq.s32.totalorder %s152, 0
      %s155 = sadd.s32 %s154, 1
      %s156 = scalar_select %p153, %s154, %s155
      %p159 = pneg %p153
      %p160 = scmp.eq.s32.totalorder %s23, 7
      %p161 = por %p159, %p160
      %p162 = scmp.ne.s32.totalorder %s154, %s157
      %p163 = scmp.eq.s32.totalorder %s23, 0
      %p164 = por %p162, %p163
      %p165 = scmp.ne.s32.totalorder %s154, %s157
      %p166 = scmp.eq.s32.totalorder %s28, 7
      %p167 = por %p165, %p166
      %p168 = scmp.ne.s32.totalorder %s157, %s158
      %p169 = scmp.eq.s32.totalorder %s28, 0
      %p170 = por %p168, %p169
      %p171 = scmp.ne.s32.totalorder %s157, %s158
      %p172 = scmp.eq.s32.totalorder %s29, 7
      %p173 = por %p171, %p172
      %p175 = scmp.ne.s32.totalorder %s158, %s174
      %p176 = scmp.eq.s32.totalorder %s29, 0
      %p177 = por %p175, %p176
      %p178 = scmp.le.s32.totalorder 1, %s23
      %p179 = scmp.lt.s32.totalorder %s23, 9
      %p180 = pnand %p178, %p179
      %p181 = pneg %p180
      // Predicated region
      $region9: #{conv3d_block_forward.4} parent=5 // pred_check
        _
      $region10: #{conv3d_block_forward.4} parent=5 // pred_check_branch
        %183 = sbr.rel (%p180) target = $region12
      $region11: #{conv3d_block_forward.4} parent=5 // pred_region
        %s184 = ssub.s32 %s23, 1
        // Predicated region
        $region13: #{conv3d_block_forward.4} parent=11 // pred_check
          %p185 = pneg %p114
        $region14: #{conv3d_block_forward.4} parent=11 // pred_check_branch
          %187 = sbr.rel (%p185) target = $region16
        $region15: #{conv3d_block_forward.4} parent=11 // pred_region
          %s189 = ssub.s32 960, 960
          %190 = vsyncadd [#allocation6], %s189
          %s191 = sshll.u32 [#allocation7], 4
          %s192 = int_to_ptr.vmem [resolvable:$true] %s191
          %197 = dma.hbm_to_vmem [thread:$0]  %s2, 960, %s192, [#allocation6], 64, 64, 4
        $region16: #{conv3d_block_forward.4} parent=11 // pred_fallthru
          _
      $region12: #{conv3d_block_forward.4} parent=5 // pred_fallthru
        _
      %p198 = scmp.lt.s32.totalorder %s23, 8
      // Predicated region
      $region17: #{conv3d_block_forward.4} parent=5 // pred_check
        %p199 = pneg %p198
      $region18: #{conv3d_block_forward.4} parent=5 // pred_check_branch
        %201 = sbr.rel (%p199) target = $region20
      $region19: #{conv3d_block_forward.4} parent=5 // pred_region
        // Predicated region
        $region21: #{conv3d_block_forward.4} parent=19 // pred_check
          %p202 = pneg %p57
        $region22: #{conv3d_block_forward.4} parent=19 // pred_check_branch
          %204 = sbr.rel (%p202) target = $region24
        $region23: #{conv3d_block_forward.4} parent=19 // pred_region
          %s205 = sand.u32 %s47, 1
          %s206 = scalar_lea.sflag [#allocation3], %s205
          %s207 = sand.u32 %s47, 1
          %s208 = smul.addr %s207, 160
          %s209 = scalar_lea.vmem [#allocation2], %s208
          %s210 = smul.u32 2, %s31
          %s212 = ssub.s32 2560, 2560
          %213 = vsyncadd %s206, %s212
          %s214 = smul.addr %s210, 20
          %s215 = smul.addr %s30, 200
          %s216 = sadd.s32 %s214, %s215
          %s217 = smul.addr %s216, 64
          %s218 = scalar_lea.hbm %s0, %s217
          %s219 = sshll.u32 %s209, 4
          %s220 = int_to_ptr.vmem [resolvable:$true] %s219
          %225 = dma.hbm_to_vmem [thread:$0]  %s218, 2560, %s220, %s206, 64, 64, 4
        $region24: #{conv3d_block_forward.4} parent=19 // pred_fallthru
          _
        // Predicated region
        $region25: #{conv3d_block_forward.4} parent=19 // pred_check
          %p226 = pneg %p87
        $region26: #{conv3d_block_forward.4} parent=19 // pred_check_branch
          %228 = sbr.rel (%p226) target = $region28
        $region27: #{conv3d_block_forward.4} parent=19 // pred_region
          %s229 = sand.u32 %s23, 1
          %s230 = scalar_lea.sflag [#allocation6], %s229
          %s231 = sand.u32 %s77, 1
          %s232 = smul.addr %s231, 160
          %s233 = scalar_lea.vmem [#allocation5], %s232
          %s234 = sadd.s32 %s31, 1
          %s235 = smul.u32 2, %s234
          %s237 = ssub.s32 2560, 2560
          %238 = vsyncadd %s230, %s237
          %s239 = smul.addr %s235, 20
          %s240 = smul.addr %s30, 200
          %s241 = sadd.s32 %s239, %s240
          %s242 = smul.addr %s241, 64
          %s243 = scalar_lea.hbm %s1, %s242
          %s244 = sshll.u32 %s233, 4
          %s245 = int_to_ptr.vmem [resolvable:$true] %s244
          %250 = dma.hbm_to_vmem [thread:$0]  %s243, 2560, %s245, %s230, 64, 64, 4
        $region28: #{conv3d_block_forward.4} parent=19 // pred_fallthru
          _
      $region20: #{conv3d_block_forward.4} parent=5 // pred_fallthru
        _
      %p251 = scmp.le.s32.totalorder 1, %s23
      %p252 = scmp.lt.s32.totalorder %s23, 9
      %p253 = pnand %p251, %p252
      %p254 = pneg %p253
      // Predicated region
      $region29: #{conv3d_block_forward.4} parent=5 // pred_check
        _
      $region30: #{conv3d_block_forward.4} parent=5 // pred_check_branch
        %256 = sbr.rel (%p253) target = $region32
      $region31: #{conv3d_block_forward.4} parent=5 // pred_region
        %s257 = ssub.s32 %s23, 1
        %s258 = sand.u32 %s50, 1
        %s259 = scalar_lea.sflag [#allocation3], %s258
        %s260 = sand.u32 %s50, 1
        %s261 = smul.addr %s260, 160
        %s262 = scalar_lea.vmem [#allocation2], %s261
        // Predicated region
        $region33: #{conv3d_block_forward.4} parent=31 // pred_check
          %p263 = pneg %p63
        $region34: #{conv3d_block_forward.4} parent=31 // pred_check_branch
          %265 = sbr.rel (%p263) target = $region36
        $region35: #{conv3d_block_forward.4} parent=31 // pred_region
          %266 = dma.done %s259, 2560
        $region36: #{conv3d_block_forward.4} parent=31 // pred_fallthru
          _
        %s267 = sand.u32 %s28, 1
        %s268 = scalar_lea.sflag [#allocation6], %s267
        %s269 = sand.u32 %s80, 1
        %s270 = smul.addr %s269, 160
        %s271 = scalar_lea.vmem [#allocation5], %s270
        // Predicated region
        $region37: #{conv3d_block_forward.4} parent=31 // pred_check
          %p272 = pneg %p93
        $region38: #{conv3d_block_forward.4} parent=31 // pred_check_branch
          %274 = sbr.rel (%p272) target = $region40
        $region39: #{conv3d_block_forward.4} parent=31 // pred_region
          %275 = dma.done %s268, 2560
        $region40: #{conv3d_block_forward.4} parent=31 // pred_fallthru
          _
        // Predicated region
        $region41: #{conv3d_block_forward.4} parent=31 // pred_check
          %p276 = pneg %p114
        $region42: #{conv3d_block_forward.4} parent=31 // pred_check_branch
          %278 = sbr.rel (%p276) target = $region44
        $region43: #{conv3d_block_forward.4} parent=31 // pred_region
          %279 = dma.done [#allocation6], 960
        $region44: #{conv3d_block_forward.4} parent=31 // pred_fallthru
          _
        %s280 = sand.u32 %s50, 1
        %s281 = scalar_lea.sflag [#allocation3], %s280
        %s282 = sand.u32 %s50, 1
        %s283 = smul.addr %s282, 160
        %s284 = scalar_lea.vmem [#allocation2], %s283
        %p285 = pneg %p63
        %p286 = pneg %p60
        %s287 = sand.u32 %s28, 1
        %s288 = scalar_lea.sflag [#allocation6], %s287
        %s289 = sand.u32 %s80, 1
        %s290 = smul.addr %s289, 160
        %s291 = scalar_lea.vmem [#allocation5], %s290
        %p292 = pneg %p93
        %p293 = pneg %p90
        %p294 = pneg %p114
        %p295 = pneg %p111
        %p296 = pneg %p142
        %p297 = pneg %p139
        %s298 = sand.u32 %s129, 1
        %s299 = scalar_lea.sflag [#allocation4], %s298
        %s300 = sand.u32 %s129, 1
        %s301 = smul.addr %s300, 64
        %s302 = scalar_lea.vmem [#allocation8], %s301
        %p303 = pneg %p170
        %p304 = pneg %p167
        %s305 = sand.u32 %s157, 1
        %s306 = scalar_lea.sflag [#allocation10], %s305
        %s307 = sand.u32 %s157, 1
        %s308 = smul.addr %s307, 2
        %s309 = scalar_lea.vmem [#allocation9], %s308
        %s310 = smul.u32 2, %s33
        %s311 = sadd.s32 %s33, 1
        %s312 = smul.u32 2, %s311
        %s313 = smul.u32 2, %s33
        %v315 = vld [vmem:[%s262] sm:$0xf]
        %v316 = vld [vmem:[%s262 + $0x4] sm:$0x1]
        %v317 = vld [vmem:[%s262 + $0x8] sm:$0xf]
        %v318 = vld [vmem:[%s262 + $0xc] sm:$0x1]
        %v319 = vld [vmem:[%s262 + $0x10] sm:$0xf]
        %v320 = vld [vmem:[%s262 + $0x14] sm:$0x1]
        %v321 = vld [vmem:[%s262 + $0x18] sm:$0xf]
        %v322 = vld [vmem:[%s262 + $0x1c] sm:$0x1]
        %v323 = vld [vmem:[%s262 + $0x20] sm:$0xf]
        %v324 = vld [vmem:[%s262 + $0x24] sm:$0x1]
        %v325 = vld [vmem:[%s262 + $0x28] sm:$0xf]
        %v326 = vld [vmem:[%s262 + $0x2c] sm:$0x1]
        %v327 = vld [vmem:[%s262 + $0x30] sm:$0xf]
        %v328 = vld [vmem:[%s262 + $0x34] sm:$0x1]
        %v329 = vld [vmem:[%s262 + $0x38] sm:$0xf]
        %v330 = vld [vmem:[%s262 + $0x3c] sm:$0x1]
        %v331 = vld [vmem:[%s262 + $0x40] sm:$0xf]
        %v332 = vld [vmem:[%s262 + $0x44] sm:$0x1]
        %v333 = vld [vmem:[%s262 + $0x48] sm:$0xf]
        %v334 = vld [vmem:[%s262 + $0x4c] sm:$0x1]
        %s335 = scalar_lea.vmem %s262, 80 [#allocation2]
        %v336 = vld [vmem:[%s335] sm:$0xf]
        %v337 = vld [vmem:[%s335 + $0x4] sm:$0x1]
        %v338 = vld [vmem:[%s335 + $0x8] sm:$0xf]
        %v339 = vld [vmem:[%s335 + $0xc] sm:$0x1]
        %v340 = vld [vmem:[%s335 + $0x10] sm:$0xf]
        %v341 = vld [vmem:[%s335 + $0x14] sm:$0x1]
        %v342 = vld [vmem:[%s335 + $0x18] sm:$0xf]
        %v343 = vld [vmem:[%s335 + $0x1c] sm:$0x1]
        %v344 = vld [vmem:[%s335 + $0x20] sm:$0xf]
        %v345 = vld [vmem:[%s335 + $0x24] sm:$0x1]
        %v346 = vld [vmem:[%s335 + $0x28] sm:$0xf]
        %v347 = vld [vmem:[%s335 + $0x2c] sm:$0x1]
        %v348 = vld [vmem:[%s335 + $0x30] sm:$0xf]
        %v349 = vld [vmem:[%s335 + $0x34] sm:$0x1]
        %v350 = vld [vmem:[%s335 + $0x38] sm:$0xf]
        %v351 = vld [vmem:[%s335 + $0x3c] sm:$0x1]
        %v352 = vld [vmem:[%s335 + $0x40] sm:$0xf]
        %v353 = vld [vmem:[%s335 + $0x44] sm:$0x1]
        %v354 = vld [vmem:[%s335 + $0x48] sm:$0xf]
        %v355 = vld [vmem:[%s335 + $0x4c] sm:$0x1]
        %v356 = vld [vmem:[%s271] sm:$0xf]
        %v357 = vld [vmem:[%s271 + $0x4] sm:$0x1]
        %v358 = vld [vmem:[%s271 + $0x8] sm:$0xf]
        %v359 = vld [vmem:[%s271 + $0xc] sm:$0x1]
        %v360 = vld [vmem:[%s271 + $0x10] sm:$0xf]
        %v361 = vld [vmem:[%s271 + $0x14] sm:$0x1]
        %v362 = vld [vmem:[%s271 + $0x18] sm:$0xf]
        %v363 = vld [vmem:[%s271 + $0x1c] sm:$0x1]
        %v364 = vld [vmem:[%s271 + $0x20] sm:$0xf]
        %v365 = vld [vmem:[%s271 + $0x24] sm:$0x1]
        %v366 = vld [vmem:[%s271 + $0x28] sm:$0xf]
        %v367 = vld [vmem:[%s271 + $0x2c] sm:$0x1]
        %v368 = vld [vmem:[%s271 + $0x30] sm:$0xf]
        %v369 = vld [vmem:[%s271 + $0x34] sm:$0x1]
        %v370 = vld [vmem:[%s271 + $0x38] sm:$0xf]
        %v371 = vld [vmem:[%s271 + $0x3c] sm:$0x1]
        %v372 = vld [vmem:[%s271 + $0x40] sm:$0xf]
        %v373 = vld [vmem:[%s271 + $0x44] sm:$0x1]
        %v374 = vld [vmem:[%s271 + $0x48] sm:$0xf]
        %v375 = vld [vmem:[%s271 + $0x4c] sm:$0x1]
        %s376 = scalar_lea.vmem %s271, 80 [#allocation5]
        %v377 = vld [vmem:[%s376] sm:$0xf]
        %v378 = vld [vmem:[%s376 + $0x4] sm:$0x1]
        %v379 = vld [vmem:[%s376 + $0x8] sm:$0xf]
        %v380 = vld [vmem:[%s376 + $0xc] sm:$0x1]
        %v381 = vld [vmem:[%s376 + $0x10] sm:$0xf]
        %v382 = vld [vmem:[%s376 + $0x14] sm:$0x1]
        %v383 = vld [vmem:[%s376 + $0x18] sm:$0xf]
        %v384 = vld [vmem:[%s376 + $0x1c] sm:$0x1]
        %v385 = vld [vmem:[%s376 + $0x20] sm:$0xf]
        %v386 = vld [vmem:[%s376 + $0x24] sm:$0x1]
        %v387 = vld [vmem:[%s376 + $0x28] sm:$0xf]
        %v388 = vld [vmem:[%s376 + $0x2c] sm:$0x1]
        %v389 = vld [vmem:[%s376 + $0x30] sm:$0xf]
        %v390 = vld [vmem:[%s376 + $0x34] sm:$0x1]
        %v391 = vld [vmem:[%s376 + $0x38] sm:$0xf]
        %v392 = vld [vmem:[%s376 + $0x3c] sm:$0x1]
        %v393 = vld [vmem:[%s376 + $0x40] sm:$0xf]
        %v394 = vld [vmem:[%s376 + $0x44] sm:$0x1]
        %v395 = vld [vmem:[%s376 + $0x48] sm:$0xf]
        %v396 = vld [vmem:[%s376 + $0x4c] sm:$0x1]
        %v397 = vunpack.c.l.bf16 %v315
        %v398 = vunpack.c.l.bf16 %v316
        %v399 = vunpack.c.l.bf16 %v317
        %v400 = vunpack.c.l.bf16 %v318
        %v401 = vunpack.c.l.bf16 %v319
        %v402 = vunpack.c.l.bf16 %v320
        %v403 = vunpack.c.l.bf16 %v321
        %v404 = vunpack.c.l.bf16 %v322
        %v405 = vunpack.c.l.bf16 %v323
        %v406 = vunpack.c.l.bf16 %v324
        %v407 = vunpack.c.l.bf16 %v325
        %v408 = vunpack.c.l.bf16 %v326
        %v409 = vunpack.c.l.bf16 %v327
        %v410 = vunpack.c.l.bf16 %v328
        %v411 = vunpack.c.l.bf16 %v329
        %v412 = vunpack.c.l.bf16 %v330
        %v413 = vunpack.c.l.bf16 %v331
        %v414 = vunpack.c.l.bf16 %v332
        %v415 = vunpack.c.l.bf16 %v333
        %v416 = vunpack.c.l.bf16 %v334
        %vm433 = vcmask 1046528
        %v434 = vrot.slane %v397, 1
        %v435 = vrot.slane %v398, 1
        %v436 = vsel %vm433, %v434, %v435
        %v437 = vrot.slane %v399, 1
        %v438 = vrot.slane %v400, 1
        %v439 = vsel %vm433, %v437, %v438
        %v440 = vrot.slane %v401, 1
        %v441 = vrot.slane %v402, 1
        %v442 = vsel %vm433, %v440, %v441
        %v443 = vrot.slane %v403, 1
        %v444 = vrot.slane %v404, 1
        %v445 = vsel %vm433, %v443, %v444
        %v446 = vrot.slane %v405, 1
        %v447 = vrot.slane %v406, 1
        %v448 = vsel %vm433, %v446, %v447
        %v449 = vrot.slane %v407, 1
        %v450 = vrot.slane %v408, 1
        %v451 = vsel %vm433, %v449, %v450
        %v452 = vrot.slane %v409, 1
        %v453 = vrot.slane %v410, 1
        %v454 = vsel %vm433, %v452, %v453
        %v455 = vrot.slane %v411, 1
        %v456 = vrot.slane %v412, 1
        %v457 = vsel %vm433, %v455, %v456
        %vm458 = vcmask 1045504
        %v459 = vrot.slane %v397, 2
        %v460 = vrot.slane %v398, 2
        %v461 = vsel %vm458, %v459, %v460
        %v462 = vrot.slane %v399, 2
        %v463 = vrot.slane %v400, 2
        %v464 = vsel %vm458, %v462, %v463
        %v465 = vrot.slane %v401, 2
        %v466 = vrot.slane %v402, 2
        %v467 = vsel %vm458, %v465, %v466
        %v468 = vrot.slane %v403, 2
        %v469 = vrot.slane %v404, 2
        %v470 = vsel %vm458, %v468, %v469
        %v471 = vrot.slane %v405, 2
        %v472 = vrot.slane %v406, 2
        %v473 = vsel %vm458, %v471, %v472
        %v474 = vrot.slane %v407, 2
        %v475 = vrot.slane %v408, 2
        %v476 = vsel %vm458, %v474, %v475
        %v477 = vrot.slane %v409, 2
        %v478 = vrot.slane %v410, 2
        %v479 = vsel %vm458, %v477, %v478
        %v480 = vrot.slane %v411, 2
        %v481 = vrot.slane %v412, 2
        %v482 = vsel %vm458, %v480, %v481
        %v485 = vrot.slane %v413, 1
        %v486 = vrot.slane %v414, 1
        %v487 = vsel %vm433, %v485, %v486
        %v488 = vrot.slane %v413, 2
        %v489 = vrot.slane %v414, 2
        %v490 = vsel %vm458, %v488, %v489
        %v493 = vrot.slane %v415, 1
        %v494 = vrot.slane %v416, 1
        %v495 = vsel %vm433, %v493, %v494
        %v496 = vrot.slane %v415, 2
        %v497 = vrot.slane %v416, 2
        %v498 = vsel %vm458, %v496, %v497
        %499 = vrot.lane.b32.xlu0 %v436, 4
        %v500 = vpop.permute.xlu0 %499
        %501 = vrot.lane.b32.xlu0 %v439, 4
        %v502 = vpop.permute.xlu0 %501
        %503 = vrot.lane.b32.xlu0 %v442, 4
        %v504 = vpop.permute.xlu0 %503
        %505 = vrot.lane.b32.xlu0 %v445, 4
        %v506 = vpop.permute.xlu0 %505
        %507 = vrot.lane.b32.xlu0 %v448, 4
        %v508 = vpop.permute.xlu0 %507
        %509 = vrot.lane.b32.xlu0 %v451, 4
        %v510 = vpop.permute.xlu0 %509
        %511 = vrot.lane.b32.xlu0 %v454, 4
        %v512 = vpop.permute.xlu0 %511
        %513 = vrot.lane.b32.xlu0 %v457, 4
        %v514 = vpop.permute.xlu0 %513
        %523 = vrot.lane.b32.xlu0 %v461, 8
        %v524 = vpop.permute.xlu0 %523
        %525 = vrot.lane.b32.xlu0 %v464, 8
        %v526 = vpop.permute.xlu0 %525
        %527 = vrot.lane.b32.xlu0 %v467, 8
        %v528 = vpop.permute.xlu0 %527
        %529 = vrot.lane.b32.xlu0 %v470, 8
        %v530 = vpop.permute.xlu0 %529
        %531 = vrot.lane.b32.xlu0 %v473, 8
        %v532 = vpop.permute.xlu0 %531
        %533 = vrot.lane.b32.xlu0 %v476, 8
        %v534 = vpop.permute.xlu0 %533
        %535 = vrot.lane.b32.xlu0 %v479, 8
        %v536 = vpop.permute.xlu0 %535
        %537 = vrot.lane.b32.xlu0 %v482, 8
        %v538 = vpop.permute.xlu0 %537
        %547 = vrot.lane.b32.xlu0 %v399, 12
        %v548 = vpop.permute.xlu0 %547
        %549 = vrot.lane.b32.xlu0 %v401, 12
        %v550 = vpop.permute.xlu0 %549
        %551 = vrot.lane.b32.xlu0 %v403, 12
        %v552 = vpop.permute.xlu0 %551
        %553 = vrot.lane.b32.xlu0 %v405, 12
        %v554 = vpop.permute.xlu0 %553
        %555 = vrot.lane.b32.xlu0 %v407, 12
        %v556 = vpop.permute.xlu0 %555
        %557 = vrot.lane.b32.xlu0 %v409, 12
        %v558 = vpop.permute.xlu0 %557
        %559 = vrot.lane.b32.xlu0 %v411, 12
        %v560 = vpop.permute.xlu0 %559
        %561 = vrot.lane.b32.xlu0 %v413, 12
        %v562 = vpop.permute.xlu0 %561
        %571 = vrot.lane.b32.xlu0 %v439, 16
        %v572 = vpop.permute.xlu0 %571
        %573 = vrot.lane.b32.xlu0 %v442, 16
        %v574 = vpop.permute.xlu0 %573
        %575 = vrot.lane.b32.xlu0 %v445, 16
        %v576 = vpop.permute.xlu0 %575
        %577 = vrot.lane.b32.xlu0 %v448, 16
        %v578 = vpop.permute.xlu0 %577
        %579 = vrot.lane.b32.xlu0 %v451, 16
        %v580 = vpop.permute.xlu0 %579
        %581 = vrot.lane.b32.xlu0 %v454, 16
        %v582 = vpop.permute.xlu0 %581
        %583 = vrot.lane.b32.xlu0 %v457, 16
        %v584 = vpop.permute.xlu0 %583
        %585 = vrot.lane.b32.xlu0 %v487, 16
        %v586 = vpop.permute.xlu0 %585
        %595 = vrot.lane.b32.xlu0 %v464, 20
        %v596 = vpop.permute.xlu0 %595
        %597 = vrot.lane.b32.xlu0 %v467, 20
        %v598 = vpop.permute.xlu0 %597
        %599 = vrot.lane.b32.xlu0 %v470, 20
        %v600 = vpop.permute.xlu0 %599
        %601 = vrot.lane.b32.xlu0 %v473, 20
        %v602 = vpop.permute.xlu0 %601
        %603 = vrot.lane.b32.xlu0 %v476, 20
        %v604 = vpop.permute.xlu0 %603
        %605 = vrot.lane.b32.xlu0 %v479, 20
        %v606 = vpop.permute.xlu0 %605
        %607 = vrot.lane.b32.xlu0 %v482, 20
        %v608 = vpop.permute.xlu0 %607
        %609 = vrot.lane.b32.xlu0 %v490, 20
        %v610 = vpop.permute.xlu0 %609
        %619 = vrot.lane.b32.xlu0 %v401, 24
        %v620 = vpop.permute.xlu0 %619
        %621 = vrot.lane.b32.xlu0 %v403, 24
        %v622 = vpop.permute.xlu0 %621
        %623 = vrot.lane.b32.xlu0 %v405, 24
        %v624 = vpop.permute.xlu0 %623
        %625 = vrot.lane.b32.xlu0 %v407, 24
        %v626 = vpop.permute.xlu0 %625
        %627 = vrot.lane.b32.xlu0 %v409, 24
        %v628 = vpop.permute.xlu0 %627
        %629 = vrot.lane.b32.xlu0 %v411, 24
        %v630 = vpop.permute.xlu0 %629
        %631 = vrot.lane.b32.xlu0 %v413, 24
        %v632 = vpop.permute.xlu0 %631
        %633 = vrot.lane.b32.xlu0 %v415, 24
        %v634 = vpop.permute.xlu0 %633
        %643 = vrot.lane.b32.xlu0 %v442, 28
        %v644 = vpop.permute.xlu0 %643
        %645 = vrot.lane.b32.xlu0 %v445, 28
        %v646 = vpop.permute.xlu0 %645
        %647 = vrot.lane.b32.xlu0 %v448, 28
        %v648 = vpop.permute.xlu0 %647
        %649 = vrot.lane.b32.xlu0 %v451, 28
        %v650 = vpop.permute.xlu0 %649
        %651 = vrot.lane.b32.xlu0 %v454, 28
        %v652 = vpop.permute.xlu0 %651
        %653 = vrot.lane.b32.xlu0 %v457, 28
        %v654 = vpop.permute.xlu0 %653
        %655 = vrot.lane.b32.xlu0 %v487, 28
        %v656 = vpop.permute.xlu0 %655
        %657 = vrot.lane.b32.xlu0 %v495, 28
        %v658 = vpop.permute.xlu0 %657
        %667 = vrot.lane.b32.xlu0 %v467, 32
        %v668 = vpop.permute.xlu0 %667
        %669 = vrot.lane.b32.xlu0 %v470, 32
        %v670 = vpop.permute.xlu0 %669
        %671 = vrot.lane.b32.xlu0 %v473, 32
        %v672 = vpop.permute.xlu0 %671
        %673 = vrot.lane.b32.xlu0 %v476, 32
        %v674 = vpop.permute.xlu0 %673
        %675 = vrot.lane.b32.xlu0 %v479, 32
        %v676 = vpop.permute.xlu0 %675
        %677 = vrot.lane.b32.xlu0 %v482, 32
        %v678 = vpop.permute.xlu0 %677
        %679 = vrot.lane.b32.xlu0 %v490, 32
        %v680 = vpop.permute.xlu0 %679
        %681 = vrot.lane.b32.xlu0 %v498, 32
        %v682 = vpop.permute.xlu0 %681
        %vm691 = vcmask 31744
        %v692 = vsel %vm691, %v397, %v500
        %v693 = vsel %vm691, %v399, %v502
        %v694 = vsel %vm691, %v401, %v504
        %v695 = vsel %vm691, %v403, %v506
        %v696 = vsel %vm691, %v405, %v508
        %v697 = vsel %vm691, %v407, %v510
        %v698 = vsel %vm691, %v409, %v512
        %v699 = vsel %vm691, %v411, %v514
        %vm700 = vcmask 64512
        %v701 = vsel %vm700, %v692, %v524
        %v702 = vsel %vm700, %v693, %v526
        %v703 = vsel %vm700, %v694, %v528
        %v704 = vsel %vm700, %v695, %v530
        %v705 = vsel %vm700, %v696, %v532
        %v706 = vsel %vm700, %v697, %v534
        %v707 = vsel %vm700, %v698, %v536
        %v708 = vsel %vm700, %v699, %v538
        %vm709 = vcmask 97280
        %v710 = vsel %vm709, %v701, %v548
        %v711 = vsel %vm709, %v702, %v550
        %v712 = vsel %vm709, %v703, %v552
        %v713 = vsel %vm709, %v704, %v554
        %v714 = vsel %vm709, %v705, %v556
        %v715 = vsel %vm709, %v706, %v558
        %v716 = vsel %vm709, %v707, %v560
        %v717 = vsel %vm709, %v708, %v562
        %vm718 = vcmask 130048
        %v719 = vsel %vm718, %v710, %v572
        %v720 = vsel %vm718, %v711, %v574
        %v721 = vsel %vm718, %v712, %v576
        %v722 = vsel %vm718, %v713, %v578
        %v723 = vsel %vm718, %v714, %v580
        %v724 = vsel %vm718, %v715, %v582
        %v725 = vsel %vm718, %v716, %v584
        %v726 = vsel %vm718, %v717, %v586
        %vm727 = vcmask 162816
        %v728 = vsel %vm727, %v719, %v596
        %v729 = vsel %vm727, %v720, %v598
        %v730 = vsel %vm727, %v721, %v600
        %v731 = vsel %vm727, %v722, %v602
        %v732 = vsel %vm727, %v723, %v604
        %v733 = vsel %vm727, %v724, %v606
        %v734 = vsel %vm727, %v725, %v608
        %v735 = vsel %vm727, %v726, %v610
        %vm736 = vcmask 195584
        %v737 = vsel %vm736, %v728, %v620
        %v738 = vsel %vm736, %v729, %v622
        %v739 = vsel %vm736, %v730, %v624
        %v740 = vsel %vm736, %v731, %v626
        %v741 = vsel %vm736, %v732, %v628
        %v742 = vsel %vm736, %v733, %v630
        %v743 = vsel %vm736, %v734, %v632
        %v744 = vsel %vm736, %v735, %v634
        %vm745 = vcmask 228352
        %v746 = vsel %vm745, %v737, %v644
        %v747 = vsel %vm745, %v738, %v646
        %v748 = vsel %vm745, %v739, %v648
        %v749 = vsel %vm745, %v740, %v650
        %v750 = vsel %vm745, %v741, %v652
        %v751 = vsel %vm745, %v742, %v654
        %v752 = vsel %vm745, %v743, %v656
        %v753 = vsel %vm745, %v744, %v658
        %vm754 = vcmask 261120
        %v755 = vsel %vm754, %v746, %v668
        %v756 = vsel %vm754, %v747, %v670
        %v757 = vsel %vm754, %v748, %v672
        %v758 = vsel %vm754, %v749, %v674
        %v759 = vsel %vm754, %v750, %v676
        %v760 = vsel %vm754, %v751, %v678
        %v761 = vsel %vm754, %v752, %v680
        %v762 = vsel %vm754, %v753, %v682
        %v763 = vpack.c.bf16 %v756, %v755
        %v764 = vpack.c.bf16 %v758, %v757
        %v765 = vpack.c.bf16 %v760, %v759
        %v766 = vpack.c.bf16 %v762, %v761
        %v767 = vunpack.c.l.bf16 %v336
        %v768 = vunpack.c.l.bf16 %v337
        %v769 = vunpack.c.l.bf16 %v338
        %v770 = vunpack.c.l.bf16 %v339
        %v771 = vunpack.c.l.bf16 %v340
        %v772 = vunpack.c.l.bf16 %v341
        %v773 = vunpack.c.l.bf16 %v342
        %v774 = vunpack.c.l.bf16 %v343
        %v775 = vunpack.c.l.bf16 %v344
        %v776 = vunpack.c.l.bf16 %v345
        %v777 = vunpack.c.l.bf16 %v346
        %v778 = vunpack.c.l.bf16 %v347
        %v779 = vunpack.c.l.bf16 %v348
        %v780 = vunpack.c.l.bf16 %v349
        %v781 = vunpack.c.l.bf16 %v350
        %v782 = vunpack.c.l.bf16 %v351
        %v783 = vunpack.c.l.bf16 %v352
        %v784 = vunpack.c.l.bf16 %v353
        %v785 = vunpack.c.l.bf16 %v354
        %v786 = vunpack.c.l.bf16 %v355
        %v803 = vrot.slane %v767, 1
        %v804 = vrot.slane %v768, 1
        %v805 = vsel %vm433, %v803, %v804
        %v806 = vrot.slane %v769, 1
        %v807 = vrot.slane %v770, 1
        %v808 = vsel %vm433, %v806, %v807
        %v809 = vrot.slane %v771, 1
        %v810 = vrot.slane %v772, 1
        %v811 = vsel %vm433, %v809, %v810
        %v812 = vrot.slane %v773, 1
        %v813 = vrot.slane %v774, 1
        %v814 = vsel %vm433, %v812, %v813
        %v815 = vrot.slane %v775, 1
        %v816 = vrot.slane %v776, 1
        %v817 = vsel %vm433, %v815, %v816
        %v818 = vrot.slane %v777, 1
        %v819 = vrot.slane %v778, 1
        %v820 = vsel %vm433, %v818, %v819
        %v821 = vrot.slane %v779, 1
        %v822 = vrot.slane %v780, 1
        %v823 = vsel %vm433, %v821, %v822
        %v824 = vrot.slane %v781, 1
        %v825 = vrot.slane %v782, 1
        %v826 = vsel %vm433, %v824, %v825
        %v827 = vrot.slane %v767, 2
        %v828 = vrot.slane %v768, 2
        %v829 = vsel %vm458, %v827, %v828
        %v830 = vrot.slane %v769, 2
        %v831 = vrot.slane %v770, 2
        %v832 = vsel %vm458, %v830, %v831
        %v833 = vrot.slane %v771, 2
        %v834 = vrot.slane %v772, 2
        %v835 = vsel %vm458, %v833, %v834
        %v836 = vrot.slane %v773, 2
        %v837 = vrot.slane %v774, 2
        %v838 = vsel %vm458, %v836, %v837
        %v839 = vrot.slane %v775, 2
        %v840 = vrot.slane %v776, 2
        %v841 = vsel %vm458, %v839, %v840
        %v842 = vrot.slane %v777, 2
        %v843 = vrot.slane %v778, 2
        %v844 = vsel %vm458, %v842, %v843
        %v845 = vrot.slane %v779, 2
        %v846 = vrot.slane %v780, 2
        %v847 = vsel %vm458, %v845, %v846
        %v848 = vrot.slane %v781, 2
        %v849 = vrot.slane %v782, 2
        %v850 = vsel %vm458, %v848, %v849
        %v853 = vrot.slane %v783, 1
        %v854 = vrot.slane %v784, 1
        %v855 = vsel %vm433, %v853, %v854
        %v856 = vrot.slane %v783, 2
        %v857 = vrot.slane %v784, 2
        %v858 = vsel %vm458, %v856, %v857
        %v861 = vrot.slane %v785, 1
        %v862 = vrot.slane %v786, 1
        %v863 = vsel %vm433, %v861, %v862
        %v864 = vrot.slane %v785, 2
        %v865 = vrot.slane %v786, 2
        %v866 = vsel %vm458, %v864, %v865
        %867 = vrot.lane.b32.xlu0 %v805, 4
        %v868 = vpop.permute.xlu0 %867
        %869 = vrot.lane.b32.xlu0 %v808, 4
        %v870 = vpop.permute.xlu0 %869
        %871 = vrot.lane.b32.xlu0 %v811, 4
        %v872 = vpop.permute.xlu0 %871
        %873 = vrot.lane.b32.xlu0 %v814, 4
        %v874 = vpop.permute.xlu0 %873
        %875 = vrot.lane.b32.xlu0 %v817, 4
        %v876 = vpop.permute.xlu0 %875
        %877 = vrot.lane.b32.xlu0 %v820, 4
        %v878 = vpop.permute.xlu0 %877
        %879 = vrot.lane.b32.xlu0 %v823, 4
        %v880 = vpop.permute.xlu0 %879
        %881 = vrot.lane.b32.xlu0 %v826, 4
        %v882 = vpop.permute.xlu0 %881
        %891 = vrot.lane.b32.xlu0 %v829, 8
        %v892 = vpop.permute.xlu0 %891
        %893 = vrot.lane.b32.xlu0 %v832, 8
        %v894 = vpop.permute.xlu0 %893
        %895 = vrot.lane.b32.xlu0 %v835, 8
        %v896 = vpop.permute.xlu0 %895
        %897 = vrot.lane.b32.xlu0 %v838, 8
        %v898 = vpop.permute.xlu0 %897
        %899 = vrot.lane.b32.xlu0 %v841, 8
        %v900 = vpop.permute.xlu0 %899
        %901 = vrot.lane.b32.xlu0 %v844, 8
        %v902 = vpop.permute.xlu0 %901
        %903 = vrot.lane.b32.xlu0 %v847, 8
        %v904 = vpop.permute.xlu0 %903
        %905 = vrot.lane.b32.xlu0 %v850, 8
        %v906 = vpop.permute.xlu0 %905
        %915 = vrot.lane.b32.xlu0 %v769, 12
        %v916 = vpop.permute.xlu0 %915
        %917 = vrot.lane.b32.xlu0 %v771, 12
        %v918 = vpop.permute.xlu0 %917
        %919 = vrot.lane.b32.xlu0 %v773, 12
        %v920 = vpop.permute.xlu0 %919
        %921 = vrot.lane.b32.xlu0 %v775, 12
        %v922 = vpop.permute.xlu0 %921
        %923 = vrot.lane.b32.xlu0 %v777, 12
        %v924 = vpop.permute.xlu0 %923
        %925 = vrot.lane.b32.xlu0 %v779, 12
        %v926 = vpop.permute.xlu0 %925
        %927 = vrot.lane.b32.xlu0 %v781, 12
        %v928 = vpop.permute.xlu0 %927
        %929 = vrot.lane.b32.xlu0 %v783, 12
        %v930 = vpop.permute.xlu0 %929
        %939 = vrot.lane.b32.xlu0 %v808, 16
        %v940 = vpop.permute.xlu0 %939
        %941 = vrot.lane.b32.xlu0 %v811, 16
        %v942 = vpop.permute.xlu0 %941
        %943 = vrot.lane.b32.xlu0 %v814, 16
        %v944 = vpop.permute.xlu0 %943
        %945 = vrot.lane.b32.xlu0 %v817, 16
        %v946 = vpop.permute.xlu0 %945
        %947 = vrot.lane.b32.xlu0 %v820, 16
        %v948 = vpop.permute.xlu0 %947
        %949 = vrot.lane.b32.xlu0 %v823, 16
        %v950 = vpop.permute.xlu0 %949
        %951 = vrot.lane.b32.xlu0 %v826, 16
        %v952 = vpop.permute.xlu0 %951
        %953 = vrot.lane.b32.xlu0 %v855, 16
        %v954 = vpop.permute.xlu0 %953
        %963 = vrot.lane.b32.xlu0 %v832, 20
        %v964 = vpop.permute.xlu0 %963
        %965 = vrot.lane.b32.xlu0 %v835, 20
        %v966 = vpop.permute.xlu0 %965
        %967 = vrot.lane.b32.xlu0 %v838, 20
        %v968 = vpop.permute.xlu0 %967
        %969 = vrot.lane.b32.xlu0 %v841, 20
        %v970 = vpop.permute.xlu0 %969
        %971 = vrot.lane.b32.xlu0 %v844, 20
        %v972 = vpop.permute.xlu0 %971
        %973 = vrot.lane.b32.xlu0 %v847, 20
        %v974 = vpop.permute.xlu0 %973
        %975 = vrot.lane.b32.xlu0 %v850, 20
        %v976 = vpop.permute.xlu0 %975
        %977 = vrot.lane.b32.xlu0 %v858, 20
        %v978 = vpop.permute.xlu0 %977
        %987 = vrot.lane.b32.xlu0 %v771, 24
        %v988 = vpop.permute.xlu0 %987
        %989 = vrot.lane.b32.xlu0 %v773, 24
        %v990 = vpop.permute.xlu0 %989
        %991 = vrot.lane.b32.xlu0 %v775, 24
        %v992 = vpop.permute.xlu0 %991
        %993 = vrot.lane.b32.xlu0 %v777, 24
        %v994 = vpop.permute.xlu0 %993
        %995 = vrot.lane.b32.xlu0 %v779, 24
        %v996 = vpop.permute.xlu0 %995
        %997 = vrot.lane.b32.xlu0 %v781, 24
        %v998 = vpop.permute.xlu0 %997
        %999 = vrot.lane.b32.xlu0 %v783, 24
        %v1000 = vpop.permute.xlu0 %999
        %1001 = vrot.lane.b32.xlu0 %v785, 24
        %v1002 = vpop.permute.xlu0 %1001
        %1011 = vrot.lane.b32.xlu0 %v811, 28
        %v1012 = vpop.permute.xlu0 %1011
        %1013 = vrot.lane.b32.xlu0 %v814, 28
        %v1014 = vpop.permute.xlu0 %1013
        %1015 = vrot.lane.b32.xlu0 %v817, 28
        %v1016 = vpop.permute.xlu0 %1015
        %1017 = vrot.lane.b32.xlu0 %v820, 28
        %v1018 = vpop.permute.xlu0 %1017
        %1019 = vrot.lane.b32.xlu0 %v823, 28
        %v1020 = vpop.permute.xlu0 %1019
        %1021 = vrot.lane.b32.xlu0 %v826, 28
        %v1022 = vpop.permute.xlu0 %1021
        %1023 = vrot.lane.b32.xlu0 %v855, 28
        %v1024 = vpop.permute.xlu0 %1023
        %1025 = vrot.lane.b32.xlu0 %v863, 28
        %v1026 = vpop.permute.xlu0 %1025
        %1035 = vrot.lane.b32.xlu0 %v835, 32
        %v1036 = vpop.permute.xlu0 %1035
        %1037 = vrot.lane.b32.xlu0 %v838, 32
        %v1038 = vpop.permute.xlu0 %1037
        %1039 = vrot.lane.b32.xlu0 %v841, 32
        %v1040 = vpop.permute.xlu0 %1039
        %1041 = vrot.lane.b32.xlu0 %v844, 32
        %v1042 = vpop.permute.xlu0 %1041
        %1043 = vrot.lane.b32.xlu0 %v847, 32
        %v1044 = vpop.permute.xlu0 %1043
        %1045 = vrot.lane.b32.xlu0 %v850, 32
        %v1046 = vpop.permute.xlu0 %1045
        %1047 = vrot.lane.b32.xlu0 %v858, 32
        %v1048 = vpop.permute.xlu0 %1047
        %1049 = vrot.lane.b32.xlu0 %v866, 32
        %v1050 = vpop.permute.xlu0 %1049
        %v1059 = vsel %vm691, %v767, %v868
        %v1060 = vsel %vm691, %v769, %v870
        %v1061 = vsel %vm691, %v771, %v872
        %v1062 = vsel %vm691, %v773, %v874
        %v1063 = vsel %vm691, %v775, %v876
        %v1064 = vsel %vm691, %v777, %v878
        %v1065 = vsel %vm691, %v779, %v880
        %v1066 = vsel %vm691, %v781, %v882
        %v1067 = vsel %vm700, %v1059, %v892
        %v1068 = vsel %vm700, %v1060, %v894
        %v1069 = vsel %vm700, %v1061, %v896
        %v1070 = vsel %vm700, %v1062, %v898
        %v1071 = vsel %vm700, %v1063, %v900
        %v1072 = vsel %vm700, %v1064, %v902
        %v1073 = vsel %vm700, %v1065, %v904
        %v1074 = vsel %vm700, %v1066, %v906
        %v1075 = vsel %vm709, %v1067, %v916
        %v1076 = vsel %vm709, %v1068, %v918
        %v1077 = vsel %vm709, %v1069, %v920
        %v1078 = vsel %vm709, %v1070, %v922
        %v1079 = vsel %vm709, %v1071, %v924
        %v1080 = vsel %vm709, %v1072, %v926
        %v1081 = vsel %vm709, %v1073, %v928
        %v1082 = vsel %vm709, %v1074, %v930
        %v1083 = vsel %vm718, %v1075, %v940
        %v1084 = vsel %vm718, %v1076, %v942
        %v1085 = vsel %vm718, %v1077, %v944
        %v1086 = vsel %vm718, %v1078, %v946
        %v1087 = vsel %vm718, %v1079, %v948
        %v1088 = vsel %vm718, %v1080, %v950
        %v1089 = vsel %vm718, %v1081, %v952
        %v1090 = vsel %vm718, %v1082, %v954
        %v1091 = vsel %vm727, %v1083, %v964
        %v1092 = vsel %vm727, %v1084, %v966
        %v1093 = vsel %vm727, %v1085, %v968
        %v1094 = vsel %vm727, %v1086, %v970
        %v1095 = vsel %vm727, %v1087, %v972
        %v1096 = vsel %vm727, %v1088, %v974
        %v1097 = vsel %vm727, %v1089, %v976
        %v1098 = vsel %vm727, %v1090, %v978
        %v1099 = vsel %vm736, %v1091, %v988
        %v1100 = vsel %vm736, %v1092, %v990
        %v1101 = vsel %vm736, %v1093, %v992
        %v1102 = vsel %vm736, %v1094, %v994
        %v1103 = vsel %vm736, %v1095, %v996
        %v1104 = vsel %vm736, %v1096, %v998
        %v1105 = vsel %vm736, %v1097, %v1000
        %v1106 = vsel %vm736, %v1098, %v1002
        %v1107 = vsel %vm745, %v1099, %v1012
        %v1108 = vsel %vm745, %v1100, %v1014
        %v1109 = vsel %vm745, %v1101, %v1016
        %v1110 = vsel %vm745, %v1102, %v1018
        %v1111 = vsel %vm745, %v1103, %v1020
        %v1112 = vsel %vm745, %v1104, %v1022
        %v1113 = vsel %vm745, %v1105, %v1024
        %v1114 = vsel %vm745, %v1106, %v1026
        %v1115 = vsel %vm754, %v1107, %v1036
        %v1116 = vsel %vm754, %v1108, %v1038
        %v1117 = vsel %vm754, %v1109, %v1040
        %v1118 = vsel %vm754, %v1110, %v1042
        %v1119 = vsel %vm754, %v1111, %v1044
        %v1120 = vsel %vm754, %v1112, %v1046
        %v1121 = vsel %vm754, %v1113, %v1048
        %v1122 = vsel %vm754, %v1114, %v1050
        %v1123 = vpack.c.bf16 %v1116, %v1115
        %v1124 = vpack.c.bf16 %v1118, %v1117
        %v1125 = vpack.c.bf16 %v1120, %v1119
        %v1126 = vpack.c.bf16 %v1122, %v1121
        %v1127 = vunpack.c.l.bf16 %v356
        %v1128 = vunpack.c.l.bf16 %v357
        %v1129 = vunpack.c.l.bf16 %v358
        %v1130 = vunpack.c.l.bf16 %v359
        %v1131 = vunpack.c.l.bf16 %v360
        %v1132 = vunpack.c.l.bf16 %v361
        %v1133 = vunpack.c.l.bf16 %v362
        %v1134 = vunpack.c.l.bf16 %v363
        %v1135 = vunpack.c.l.bf16 %v364
        %v1136 = vunpack.c.l.bf16 %v365
        %v1137 = vunpack.c.l.bf16 %v366
        %v1138 = vunpack.c.l.bf16 %v367
        %v1139 = vunpack.c.l.bf16 %v368
        %v1140 = vunpack.c.l.bf16 %v369
        %v1141 = vunpack.c.l.bf16 %v370
        %v1142 = vunpack.c.l.bf16 %v371
        %v1143 = vunpack.c.l.bf16 %v372
        %v1144 = vunpack.c.l.bf16 %v373
        %v1145 = vunpack.c.l.bf16 %v374
        %v1146 = vunpack.c.l.bf16 %v375
        %v1163 = vrot.slane %v1127, 1
        %v1164 = vrot.slane %v1128, 1
        %v1165 = vsel %vm433, %v1163, %v1164
        %v1166 = vrot.slane %v1129, 1
        %v1167 = vrot.slane %v1130, 1
        %v1168 = vsel %vm433, %v1166, %v1167
        %v1169 = vrot.slane %v1131, 1
        %v1170 = vrot.slane %v1132, 1
        %v1171 = vsel %vm433, %v1169, %v1170
        %v1172 = vrot.slane %v1133, 1
        %v1173 = vrot.slane %v1134, 1
        %v1174 = vsel %vm433, %v1172, %v1173
        %v1175 = vrot.slane %v1135, 1
        %v1176 = vrot.slane %v1136, 1
        %v1177 = vsel %vm433, %v1175, %v1176
        %v1178 = vrot.slane %v1137, 1
        %v1179 = vrot.slane %v1138, 1
        %v1180 = vsel %vm433, %v1178, %v1179
        %v1181 = vrot.slane %v1139, 1
        %v1182 = vrot.slane %v1140, 1
        %v1183 = vsel %vm433, %v1181, %v1182
        %v1184 = vrot.slane %v1141, 1
        %v1185 = vrot.slane %v1142, 1
        %v1186 = vsel %vm433, %v1184, %v1185
        %v1187 = vrot.slane %v1127, 2
        %v1188 = vrot.slane %v1128, 2
        %v1189 = vsel %vm458, %v1187, %v1188
        %v1190 = vrot.slane %v1129, 2
        %v1191 = vrot.slane %v1130, 2
        %v1192 = vsel %vm458, %v1190, %v1191
        %v1193 = vrot.slane %v1131, 2
        %v1194 = vrot.slane %v1132, 2
        %v1195 = vsel %vm458, %v1193, %v1194
        %v1196 = vrot.slane %v1133, 2
        %v1197 = vrot.slane %v1134, 2
        %v1198 = vsel %vm458, %v1196, %v1197
        %v1199 = vrot.slane %v1135, 2
        %v1200 = vrot.slane %v1136, 2
        %v1201 = vsel %vm458, %v1199, %v1200
        %v1202 = vrot.slane %v1137, 2
        %v1203 = vrot.slane %v1138, 2
        %v1204 = vsel %vm458, %v1202, %v1203
        %v1205 = vrot.slane %v1139, 2
        %v1206 = vrot.slane %v1140, 2
        %v1207 = vsel %vm458, %v1205, %v1206
        %v1208 = vrot.slane %v1141, 2
        %v1209 = vrot.slane %v1142, 2
        %v1210 = vsel %vm458, %v1208, %v1209
        %v1213 = vrot.slane %v1143, 1
        %v1214 = vrot.slane %v1144, 1
        %v1215 = vsel %vm433, %v1213, %v1214
        %v1216 = vrot.slane %v1143, 2
        %v1217 = vrot.slane %v1144, 2
        %v1218 = vsel %vm458, %v1216, %v1217
        %v1221 = vrot.slane %v1145, 1
        %v1222 = vrot.slane %v1146, 1
        %v1223 = vsel %vm433, %v1221, %v1222
        %v1224 = vrot.slane %v1145, 2
        %v1225 = vrot.slane %v1146, 2
        %v1226 = vsel %vm458, %v1224, %v1225
        %1227 = vrot.lane.b32.xlu0 %v1165, 4
        %v1228 = vpop.permute.xlu0 %1227
        %1229 = vrot.lane.b32.xlu0 %v1168, 4
        %v1230 = vpop.permute.xlu0 %1229
        %1231 = vrot.lane.b32.xlu0 %v1171, 4
        %v1232 = vpop.permute.xlu0 %1231
        %1233 = vrot.lane.b32.xlu0 %v1174, 4
        %v1234 = vpop.permute.xlu0 %1233
        %1235 = vrot.lane.b32.xlu0 %v1177, 4
        %v1236 = vpop.permute.xlu0 %1235
        %1237 = vrot.lane.b32.xlu0 %v1180, 4
        %v1238 = vpop.permute.xlu0 %1237
        %1239 = vrot.lane.b32.xlu0 %v1183, 4
        %v1240 = vpop.permute.xlu0 %1239
        %1241 = vrot.lane.b32.xlu0 %v1186, 4
        %v1242 = vpop.permute.xlu0 %1241
        %1251 = vrot.lane.b32.xlu0 %v1189, 8
        %v1252 = vpop.permute.xlu0 %1251
        %1253 = vrot.lane.b32.xlu0 %v1192, 8
        %v1254 = vpop.permute.xlu0 %1253
        %1255 = vrot.lane.b32.xlu0 %v1195, 8
        %v1256 = vpop.permute.xlu0 %1255
        %1257 = vrot.lane.b32.xlu0 %v1198, 8
        %v1258 = vpop.permute.xlu0 %1257
        %1259 = vrot.lane.b32.xlu0 %v1201, 8
        %v1260 = vpop.permute.xlu0 %1259
        %1261 = vrot.lane.b32.xlu0 %v1204, 8
        %v1262 = vpop.permute.xlu0 %1261
        %1263 = vrot.lane.b32.xlu0 %v1207, 8
        %v1264 = vpop.permute.xlu0 %1263
        %1265 = vrot.lane.b32.xlu0 %v1210, 8
        %v1266 = vpop.permute.xlu0 %1265
        %1275 = vrot.lane.b32.xlu0 %v1129, 12
        %v1276 = vpop.permute.xlu0 %1275
        %1277 = vrot.lane.b32.xlu0 %v1131, 12
        %v1278 = vpop.permute.xlu0 %1277
        %1279 = vrot.lane.b32.xlu0 %v1133, 12
        %v1280 = vpop.permute.xlu0 %1279
        %1281 = vrot.lane.b32.xlu0 %v1135, 12
        %v1282 = vpop.permute.xlu0 %1281
        %1283 = vrot.lane.b32.xlu0 %v1137, 12
        %v1284 = vpop.permute.xlu0 %1283
        %1285 = vrot.lane.b32.xlu0 %v1139, 12
        %v1286 = vpop.permute.xlu0 %1285
        %1287 = vrot.lane.b32.xlu0 %v1141, 12
        %v1288 = vpop.permute.xlu0 %1287
        %1289 = vrot.lane.b32.xlu0 %v1143, 12
        %v1290 = vpop.permute.xlu0 %1289
        %1299 = vrot.lane.b32.xlu0 %v1168, 16
        %v1300 = vpop.permute.xlu0 %1299
        %1301 = vrot.lane.b32.xlu0 %v1171, 16
        %v1302 = vpop.permute.xlu0 %1301
        %1303 = vrot.lane.b32.xlu0 %v1174, 16
        %v1304 = vpop.permute.xlu0 %1303
        %1305 = vrot.lane.b32.xlu0 %v1177, 16
        %v1306 = vpop.permute.xlu0 %1305
        %1307 = vrot.lane.b32.xlu0 %v1180, 16
        %v1308 = vpop.permute.xlu0 %1307
        %1309 = vrot.lane.b32.xlu0 %v1183, 16
        %v1310 = vpop.permute.xlu0 %1309
        %1311 = vrot.lane.b32.xlu0 %v1186, 16
        %v1312 = vpop.permute.xlu0 %1311
        %1313 = vrot.lane.b32.xlu0 %v1215, 16
        %v1314 = vpop.permute.xlu0 %1313
        %1323 = vrot.lane.b32.xlu0 %v1192, 20
        %v1324 = vpop.permute.xlu0 %1323
        %1325 = vrot.lane.b32.xlu0 %v1195, 20
        %v1326 = vpop.permute.xlu0 %1325
        %1327 = vrot.lane.b32.xlu0 %v1198, 20
        %v1328 = vpop.permute.xlu0 %1327
        %1329 = vrot.lane.b32.xlu0 %v1201, 20
        %v1330 = vpop.permute.xlu0 %1329
        %1331 = vrot.lane.b32.xlu0 %v1204, 20
        %v1332 = vpop.permute.xlu0 %1331
        %1333 = vrot.lane.b32.xlu0 %v1207, 20
        %v1334 = vpop.permute.xlu0 %1333
        %1335 = vrot.lane.b32.xlu0 %v1210, 20
        %v1336 = vpop.permute.xlu0 %1335
        %1337 = vrot.lane.b32.xlu0 %v1218, 20
        %v1338 = vpop.permute.xlu0 %1337
        %1347 = vrot.lane.b32.xlu0 %v1131, 24
        %v1348 = vpop.permute.xlu0 %1347
        %1349 = vrot.lane.b32.xlu0 %v1133, 24
        %v1350 = vpop.permute.xlu0 %1349
        %1351 = vrot.lane.b32.xlu0 %v1135, 24
        %v1352 = vpop.permute.xlu0 %1351
        %1353 = vrot.lane.b32.xlu0 %v1137, 24
        %v1354 = vpop.permute.xlu0 %1353
        %1355 = vrot.lane.b32.xlu0 %v1139, 24
        %v1356 = vpop.permute.xlu0 %1355
        %1357 = vrot.lane.b32.xlu0 %v1141, 24
        %v1358 = vpop.permute.xlu0 %1357
        %1359 = vrot.lane.b32.xlu0 %v1143, 24
        %v1360 = vpop.permute.xlu0 %1359
        %1361 = vrot.lane.b32.xlu0 %v1145, 24
        %v1362 = vpop.permute.xlu0 %1361
        %1371 = vrot.lane.b32.xlu0 %v1171, 28
        %v1372 = vpop.permute.xlu0 %1371
        %1373 = vrot.lane.b32.xlu0 %v1174, 28
        %v1374 = vpop.permute.xlu0 %1373
        %1375 = vrot.lane.b32.xlu0 %v1177, 28
        %v1376 = vpop.permute.xlu0 %1375
        %1377 = vrot.lane.b32.xlu0 %v1180, 28
        %v1378 = vpop.permute.xlu0 %1377
        %1379 = vrot.lane.b32.xlu0 %v1183, 28
        %v1380 = vpop.permute.xlu0 %1379
        %1381 = vrot.lane.b32.xlu0 %v1186, 28
        %v1382 = vpop.permute.xlu0 %1381
        %1383 = vrot.lane.b32.xlu0 %v1215, 28
        %v1384 = vpop.permute.xlu0 %1383
        %1385 = vrot.lane.b32.xlu0 %v1223, 28
        %v1386 = vpop.permute.xlu0 %1385
        %1395 = vrot.lane.b32.xlu0 %v1195, 32
        %v1396 = vpop.permute.xlu0 %1395
        %1397 = vrot.lane.b32.xlu0 %v1198, 32
        %v1398 = vpop.permute.xlu0 %1397
        %1399 = vrot.lane.b32.xlu0 %v1201, 32
        %v1400 = vpop.permute.xlu0 %1399
        %1401 = vrot.lane.b32.xlu0 %v1204, 32
        %v1402 = vpop.permute.xlu0 %1401
        %1403 = vrot.lane.b32.xlu0 %v1207, 32
        %v1404 = vpop.permute.xlu0 %1403
        %1405 = vrot.lane.b32.xlu0 %v1210, 32
        %v1406 = vpop.permute.xlu0 %1405
        %1407 = vrot.lane.b32.xlu0 %v1218, 32
        %v1408 = vpop.permute.xlu0 %1407
        %1409 = vrot.lane.b32.xlu0 %v1226, 32
        %v1410 = vpop.permute.xlu0 %1409
        %v1419 = vsel %vm691, %v1127, %v1228
        %v1420 = vsel %vm691, %v1129, %v1230
        %v1421 = vsel %vm691, %v1131, %v1232
        %v1422 = vsel %vm691, %v1133, %v1234
        %v1423 = vsel %vm691, %v1135, %v1236
        %v1424 = vsel %vm691, %v1137, %v1238
        %v1425 = vsel %vm691, %v1139, %v1240
        %v1426 = vsel %vm691, %v1141, %v1242
        %v1427 = vsel %vm700, %v1419, %v1252
        %v1428 = vsel %vm700, %v1420, %v1254
        %v1429 = vsel %vm700, %v1421, %v1256
        %v1430 = vsel %vm700, %v1422, %v1258
        %v1431 = vsel %vm700, %v1423, %v1260
        %v1432 = vsel %vm700, %v1424, %v1262
        %v1433 = vsel %vm700, %v1425, %v1264
        %v1434 = vsel %vm700, %v1426, %v1266
        %v1435 = vsel %vm709, %v1427, %v1276
        %v1436 = vsel %vm709, %v1428, %v1278
        %v1437 = vsel %vm709, %v1429, %v1280
        %v1438 = vsel %vm709, %v1430, %v1282
        %v1439 = vsel %vm709, %v1431, %v1284
        %v1440 = vsel %vm709, %v1432, %v1286
        %v1441 = vsel %vm709, %v1433, %v1288
        %v1442 = vsel %vm709, %v1434, %v1290
        %v1443 = vsel %vm718, %v1435, %v1300
        %v1444 = vsel %vm718, %v1436, %v1302
        %v1445 = vsel %vm718, %v1437, %v1304
        %v1446 = vsel %vm718, %v1438, %v1306
        %v1447 = vsel %vm718, %v1439, %v1308
        %v1448 = vsel %vm718, %v1440, %v1310
        %v1449 = vsel %vm718, %v1441, %v1312
        %v1450 = vsel %vm718, %v1442, %v1314
        %v1451 = vsel %vm727, %v1443, %v1324
        %v1452 = vsel %vm727, %v1444, %v1326
        %v1453 = vsel %vm727, %v1445, %v1328
        %v1454 = vsel %vm727, %v1446, %v1330
        %v1455 = vsel %vm727, %v1447, %v1332
        %v1456 = vsel %vm727, %v1448, %v1334
        %v1457 = vsel %vm727, %v1449, %v1336
        %v1458 = vsel %vm727, %v1450, %v1338
        %v1459 = vsel %vm736, %v1451, %v1348
        %v1460 = vsel %vm736, %v1452, %v1350
        %v1461 = vsel %vm736, %v1453, %v1352
        %v1462 = vsel %vm736, %v1454, %v1354
        %v1463 = vsel %vm736, %v1455, %v1356
        %v1464 = vsel %vm736, %v1456, %v1358
        %v1465 = vsel %vm736, %v1457, %v1360
        %v1466 = vsel %vm736, %v1458, %v1362
        %v1467 = vsel %vm745, %v1459, %v1372
        %v1468 = vsel %vm745, %v1460, %v1374
        %v1469 = vsel %vm745, %v1461, %v1376
        %v1470 = vsel %vm745, %v1462, %v1378
        %v1471 = vsel %vm745, %v1463, %v1380
        %v1472 = vsel %vm745, %v1464, %v1382
        %v1473 = vsel %vm745, %v1465, %v1384
        %v1474 = vsel %vm745, %v1466, %v1386
        %v1475 = vsel %vm754, %v1467, %v1396
        %v1476 = vsel %vm754, %v1468, %v1398
        %v1477 = vsel %vm754, %v1469, %v1400
        %v1478 = vsel %vm754, %v1470, %v1402
        %v1479 = vsel %vm754, %v1471, %v1404
        %v1480 = vsel %vm754, %v1472, %v1406
        %v1481 = vsel %vm754, %v1473, %v1408
        %v1482 = vsel %vm754, %v1474, %v1410
        %v1483 = vpack.c.bf16 %v1476, %v1475
        %v1484 = vpack.c.bf16 %v1478, %v1477
        %v1485 = vpack.c.bf16 %v1480, %v1479
        %v1486 = vpack.c.bf16 %v1482, %v1481
        %v1487 = vunpack.c.l.bf16 %v377
        %v1488 = vunpack.c.l.bf16 %v378
        %v1489 = vunpack.c.l.bf16 %v379
        %v1490 = vunpack.c.l.bf16 %v380
        %v1491 = vunpack.c.l.bf16 %v381
        %v1492 = vunpack.c.l.bf16 %v382
        %v1493 = vunpack.c.l.bf16 %v383
        %v1494 = vunpack.c.l.bf16 %v384
        %v1495 = vunpack.c.l.bf16 %v385
        %v1496 = vunpack.c.l.bf16 %v386
        %v1497 = vunpack.c.l.bf16 %v387
        %v1498 = vunpack.c.l.bf16 %v388
        %v1499 = vunpack.c.l.bf16 %v389
        %v1500 = vunpack.c.l.bf16 %v390
        %v1501 = vunpack.c.l.bf16 %v391
        %v1502 = vunpack.c.l.bf16 %v392
        %v1503 = vunpack.c.l.bf16 %v393
        %v1504 = vunpack.c.l.bf16 %v394
        %v1505 = vunpack.c.l.bf16 %v395
        %v1506 = vunpack.c.l.bf16 %v396
        %v1523 = vrot.slane %v1487, 1
        %v1524 = vrot.slane %v1488, 1
        %v1525 = vsel %vm433, %v1523, %v1524
        %v1526 = vrot.slane %v1489, 1
        %v1527 = vrot.slane %v1490, 1
        %v1528 = vsel %vm433, %v1526, %v1527
        %v1529 = vrot.slane %v1491, 1
        %v1530 = vrot.slane %v1492, 1
        %v1531 = vsel %vm433, %v1529, %v1530
        %v1532 = vrot.slane %v1493, 1
        %v1533 = vrot.slane %v1494, 1
        %v1534 = vsel %vm433, %v1532, %v1533
        %v1535 = vrot.slane %v1495, 1
        %v1536 = vrot.slane %v1496, 1
        %v1537 = vsel %vm433, %v1535, %v1536
        %v1538 = vrot.slane %v1497, 1
        %v1539 = vrot.slane %v1498, 1
        %v1540 = vsel %vm433, %v1538, %v1539
        %v1541 = vrot.slane %v1499, 1
        %v1542 = vrot.slane %v1500, 1
        %v1543 = vsel %vm433, %v1541, %v1542
        %v1544 = vrot.slane %v1501, 1
        %v1545 = vrot.slane %v1502, 1
        %v1546 = vsel %vm433, %v1544, %v1545
        %v1547 = vrot.slane %v1487, 2
        %v1548 = vrot.slane %v1488, 2
        %v1549 = vsel %vm458, %v1547, %v1548
        %v1550 = vrot.slane %v1489, 2
        %v1551 = vrot.slane %v1490, 2
        %v1552 = vsel %vm458, %v1550, %v1551
        %v1553 = vrot.slane %v1491, 2
        %v1554 = vrot.slane %v1492, 2
        %v1555 = vsel %vm458, %v1553, %v1554
        %v1556 = vrot.slane %v1493, 2
        %v1557 = vrot.slane %v1494, 2
        %v1558 = vsel %vm458, %v1556, %v1557
        %v1559 = vrot.slane %v1495, 2
        %v1560 = vrot.slane %v1496, 2
        %v1561 = vsel %vm458, %v1559, %v1560
        %v1562 = vrot.slane %v1497, 2
        %v1563 = vrot.slane %v1498, 2
        %v1564 = vsel %vm458, %v1562, %v1563
        %v1565 = vrot.slane %v1499, 2
        %v1566 = vrot.slane %v1500, 2
        %v1567 = vsel %vm458, %v1565, %v1566
        %v1568 = vrot.slane %v1501, 2
        %v1569 = vrot.slane %v1502, 2
        %v1570 = vsel %vm458, %v1568, %v1569
        %v1573 = vrot.slane %v1503, 1
        %v1574 = vrot.slane %v1504, 1
        %v1575 = vsel %vm433, %v1573, %v1574
        %v1576 = vrot.slane %v1503, 2
        %v1577 = vrot.slane %v1504, 2
        %v1578 = vsel %vm458, %v1576, %v1577
        %v1581 = vrot.slane %v1505, 1
        %v1582 = vrot.slane %v1506, 1
        %v1583 = vsel %vm433, %v1581, %v1582
        %v1584 = vrot.slane %v1505, 2
        %v1585 = vrot.slane %v1506, 2
        %v1586 = vsel %vm458, %v1584, %v1585
        %1587 = vrot.lane.b32.xlu0 %v1525, 4
        %v1588 = vpop.permute.xlu0 %1587
        %1589 = vrot.lane.b32.xlu0 %v1528, 4
        %v1590 = vpop.permute.xlu0 %1589
        %1591 = vrot.lane.b32.xlu0 %v1531, 4
        %v1592 = vpop.permute.xlu0 %1591
        %1593 = vrot.lane.b32.xlu0 %v1534, 4
        %v1594 = vpop.permute.xlu0 %1593
        %1595 = vrot.lane.b32.xlu0 %v1537, 4
        %v1596 = vpop.permute.xlu0 %1595
        %1597 = vrot.lane.b32.xlu0 %v1540, 4
        %v1598 = vpop.permute.xlu0 %1597
        %1599 = vrot.lane.b32.xlu0 %v1543, 4
        %v1600 = vpop.permute.xlu0 %1599
        %1601 = vrot.lane.b32.xlu0 %v1546, 4
        %v1602 = vpop.permute.xlu0 %1601
        %1611 = vrot.lane.b32.xlu0 %v1549, 8
        %v1612 = vpop.permute.xlu0 %1611
        %1613 = vrot.lane.b32.xlu0 %v1552, 8
        %v1614 = vpop.permute.xlu0 %1613
        %1615 = vrot.lane.b32.xlu0 %v1555, 8
        %v1616 = vpop.permute.xlu0 %1615
        %1617 = vrot.lane.b32.xlu0 %v1558, 8
        %v1618 = vpop.permute.xlu0 %1617
        %1619 = vrot.lane.b32.xlu0 %v1561, 8
        %v1620 = vpop.permute.xlu0 %1619
        %1621 = vrot.lane.b32.xlu0 %v1564, 8
        %v1622 = vpop.permute.xlu0 %1621
        %1623 = vrot.lane.b32.xlu0 %v1567, 8
        %v1624 = vpop.permute.xlu0 %1623
        %1625 = vrot.lane.b32.xlu0 %v1570, 8
        %v1626 = vpop.permute.xlu0 %1625
        %1635 = vrot.lane.b32.xlu0 %v1489, 12
        %v1636 = vpop.permute.xlu0 %1635
        %1637 = vrot.lane.b32.xlu0 %v1491, 12
        %v1638 = vpop.permute.xlu0 %1637
        %1639 = vrot.lane.b32.xlu0 %v1493, 12
        %v1640 = vpop.permute.xlu0 %1639
        %1641 = vrot.lane.b32.xlu0 %v1495, 12
        %v1642 = vpop.permute.xlu0 %1641
        %1643 = vrot.lane.b32.xlu0 %v1497, 12
        %v1644 = vpop.permute.xlu0 %1643
        %1645 = vrot.lane.b32.xlu0 %v1499, 12
        %v1646 = vpop.permute.xlu0 %1645
        %1647 = vrot.lane.b32.xlu0 %v1501, 12
        %v1648 = vpop.permute.xlu0 %1647
        %1649 = vrot.lane.b32.xlu0 %v1503, 12
        %v1650 = vpop.permute.xlu0 %1649
        %1659 = vrot.lane.b32.xlu0 %v1528, 16
        %v1660 = vpop.permute.xlu0 %1659
        %1661 = vrot.lane.b32.xlu0 %v1531, 16
        %v1662 = vpop.permute.xlu0 %1661
        %1663 = vrot.lane.b32.xlu0 %v1534, 16
        %v1664 = vpop.permute.xlu0 %1663
        %1665 = vrot.lane.b32.xlu0 %v1537, 16
        %v1666 = vpop.permute.xlu0 %1665
        %1667 = vrot.lane.b32.xlu0 %v1540, 16
        %v1668 = vpop.permute.xlu0 %1667
        %1669 = vrot.lane.b32.xlu0 %v1543, 16
        %v1670 = vpop.permute.xlu0 %1669
        %1671 = vrot.lane.b32.xlu0 %v1546, 16
        %v1672 = vpop.permute.xlu0 %1671
        %1673 = vrot.lane.b32.xlu0 %v1575, 16
        %v1674 = vpop.permute.xlu0 %1673
        %1683 = vrot.lane.b32.xlu0 %v1552, 20
        %v1684 = vpop.permute.xlu0 %1683
        %1685 = vrot.lane.b32.xlu0 %v1555, 20
        %v1686 = vpop.permute.xlu0 %1685
        %1687 = vrot.lane.b32.xlu0 %v1558, 20
        %v1688 = vpop.permute.xlu0 %1687
        %1689 = vrot.lane.b32.xlu0 %v1561, 20
        %v1690 = vpop.permute.xlu0 %1689
        %1691 = vrot.lane.b32.xlu0 %v1564, 20
        %v1692 = vpop.permute.xlu0 %1691
        %1693 = vrot.lane.b32.xlu0 %v1567, 20
        %v1694 = vpop.permute.xlu0 %1693
        %1695 = vrot.lane.b32.xlu0 %v1570, 20
        %v1696 = vpop.permute.xlu0 %1695
        %1697 = vrot.lane.b32.xlu0 %v1578, 20
        %v1698 = vpop.permute.xlu0 %1697
        %1707 = vrot.lane.b32.xlu0 %v1491, 24
        %v1708 = vpop.permute.xlu0 %1707
        %1709 = vrot.lane.b32.xlu0 %v1493, 24
        %v1710 = vpop.permute.xlu0 %1709
        %1711 = vrot.lane.b32.xlu0 %v1495, 24
        %v1712 = vpop.permute.xlu0 %1711
        %1713 = vrot.lane.b32.xlu0 %v1497, 24
        %v1714 = vpop.permute.xlu0 %1713
        %1715 = vrot.lane.b32.xlu0 %v1499, 24
        %v1716 = vpop.permute.xlu0 %1715
        %1717 = vrot.lane.b32.xlu0 %v1501, 24
        %v1718 = vpop.permute.xlu0 %1717
        %1719 = vrot.lane.b32.xlu0 %v1503, 24
        %v1720 = vpop.permute.xlu0 %1719
        %1721 = vrot.lane.b32.xlu0 %v1505, 24
        %v1722 = vpop.permute.xlu0 %1721
        %1731 = vrot.lane.b32.xlu0 %v1531, 28
        %v1732 = vpop.permute.xlu0 %1731
        %1733 = vrot.lane.b32.xlu0 %v1534, 28
        %v1734 = vpop.permute.xlu0 %1733
        %1735 = vrot.lane.b32.xlu0 %v1537, 28
        %v1736 = vpop.permute.xlu0 %1735
        %1737 = vrot.lane.b32.xlu0 %v1540, 28
        %v1738 = vpop.permute.xlu0 %1737
        %1739 = vrot.lane.b32.xlu0 %v1543, 28
        %v1740 = vpop.permute.xlu0 %1739
        %1741 = vrot.lane.b32.xlu0 %v1546, 28
        %v1742 = vpop.permute.xlu0 %1741
        %1743 = vrot.lane.b32.xlu0 %v1575, 28
        %v1744 = vpop.permute.xlu0 %1743
        %1745 = vrot.lane.b32.xlu0 %v1583, 28
        %v1746 = vpop.permute.xlu0 %1745
        %1755 = vrot.lane.b32.xlu0 %v1555, 32
        %v1756 = vpop.permute.xlu0 %1755
        %1757 = vrot.lane.b32.xlu0 %v1558, 32
        %v1758 = vpop.permute.xlu0 %1757
        %1759 = vrot.lane.b32.xlu0 %v1561, 32
        %v1760 = vpop.permute.xlu0 %1759
        %1761 = vrot.lane.b32.xlu0 %v1564, 32
        %v1762 = vpop.permute.xlu0 %1761
        %1763 = vrot.lane.b32.xlu0 %v1567, 32
        %v1764 = vpop.permute.xlu0 %1763
        %1765 = vrot.lane.b32.xlu0 %v1570, 32
        %v1766 = vpop.permute.xlu0 %1765
        %1767 = vrot.lane.b32.xlu0 %v1578, 32
        %v1768 = vpop.permute.xlu0 %1767
        %1769 = vrot.lane.b32.xlu0 %v1586, 32
        %v1770 = vpop.permute.xlu0 %1769
        %v1779 = vsel %vm691, %v1487, %v1588
        %v1780 = vsel %vm691, %v1489, %v1590
        %v1781 = vsel %vm691, %v1491, %v1592
        %v1782 = vsel %vm691, %v1493, %v1594
        %v1783 = vsel %vm691, %v1495, %v1596
        %v1784 = vsel %vm691, %v1497, %v1598
        %v1785 = vsel %vm691, %v1499, %v1600
        %v1786 = vsel %vm691, %v1501, %v1602
        %v1787 = vsel %vm700, %v1779, %v1612
        %v1788 = vsel %vm700, %v1780, %v1614
        %v1789 = vsel %vm700, %v1781, %v1616
        %v1790 = vsel %vm700, %v1782, %v1618
        %v1791 = vsel %vm700, %v1783, %v1620
        %v1792 = vsel %vm700, %v1784, %v1622
        %v1793 = vsel %vm700, %v1785, %v1624
        %v1794 = vsel %vm700, %v1786, %v1626
        %v1795 = vsel %vm709, %v1787, %v1636
        %v1796 = vsel %vm709, %v1788, %v1638
        %v1797 = vsel %vm709, %v1789, %v1640
        %v1798 = vsel %vm709, %v1790, %v1642
        %v1799 = vsel %vm709, %v1791, %v1644
        %v1800 = vsel %vm709, %v1792, %v1646
        %v1801 = vsel %vm709, %v1793, %v1648
        %v1802 = vsel %vm709, %v1794, %v1650
        %v1803 = vsel %vm718, %v1795, %v1660
        %v1804 = vsel %vm718, %v1796, %v1662
        %v1805 = vsel %vm718, %v1797, %v1664
        %v1806 = vsel %vm718, %v1798, %v1666
        %v1807 = vsel %vm718, %v1799, %v1668
        %v1808 = vsel %vm718, %v1800, %v1670
        %v1809 = vsel %vm718, %v1801, %v1672
        %v1810 = vsel %vm718, %v1802, %v1674
        %v1811 = vsel %vm727, %v1803, %v1684
        %v1812 = vsel %vm727, %v1804, %v1686
        %v1813 = vsel %vm727, %v1805, %v1688
        %v1814 = vsel %vm727, %v1806, %v1690
        %v1815 = vsel %vm727, %v1807, %v1692
        %v1816 = vsel %vm727, %v1808, %v1694
        %v1817 = vsel %vm727, %v1809, %v1696
        %v1818 = vsel %vm727, %v1810, %v1698
        %v1819 = vsel %vm736, %v1811, %v1708
        %v1820 = vsel %vm736, %v1812, %v1710
        %v1821 = vsel %vm736, %v1813, %v1712
        %v1822 = vsel %vm736, %v1814, %v1714
        %v1823 = vsel %vm736, %v1815, %v1716
        %v1824 = vsel %vm736, %v1816, %v1718
        %v1825 = vsel %vm736, %v1817, %v1720
        %v1826 = vsel %vm736, %v1818, %v1722
        %v1827 = vsel %vm745, %v1819, %v1732
        %v1828 = vsel %vm745, %v1820, %v1734
        %v1829 = vsel %vm745, %v1821, %v1736
        %v1830 = vsel %vm745, %v1822, %v1738
        %v1831 = vsel %vm745, %v1823, %v1740
        %v1832 = vsel %vm745, %v1824, %v1742
        %v1833 = vsel %vm745, %v1825, %v1744
        %v1834 = vsel %vm745, %v1826, %v1746
        %v1835 = vsel %vm754, %v1827, %v1756
        %v1836 = vsel %vm754, %v1828, %v1758
        %v1837 = vsel %vm754, %v1829, %v1760
        %v1838 = vsel %vm754, %v1830, %v1762
        %v1839 = vsel %vm754, %v1831, %v1764
        %v1840 = vsel %vm754, %v1832, %v1766
        %v1841 = vsel %vm754, %v1833, %v1768
        %v1842 = vsel %vm754, %v1834, %v1770
        %v1843 = vpack.c.bf16 %v1836, %v1835
        %v1844 = vpack.c.bf16 %v1838, %v1837
        %v1845 = vpack.c.bf16 %v1840, %v1839
        %v1846 = vpack.c.bf16 %v1842, %v1841
        %v1847 = vld [vmem:[#allocation7] sm:$0xf]
        %v1848 = vld [vmem:[#allocation7 + $0x4] sm:$0xf]
        %v1849 = vld [vmem:[#allocation7 + $0x8] sm:$0xf]
        %v1850 = vld [vmem:[#allocation7 + $0xc] sm:$0xf]
        %v1851 = vld [vmem:[#allocation7 + $0x10] sm:$0x3]
        %s1852 = scalar_lea.vmem [#allocation7], 20
        %v1853 = vld [vmem:[%s1852] sm:$0xf]
        %v1854 = vld [vmem:[%s1852 + $0x4] sm:$0xf]
        %v1855 = vld [vmem:[%s1852 + $0x8] sm:$0xf]
        %v1856 = vld [vmem:[%s1852 + $0xc] sm:$0xf]
        %v1857 = vld [vmem:[%s1852 + $0x10] sm:$0x3]
        %v1863 = vunpack.c.l.b16 %v1853
        %v1864 = vunpack.c.l.b16 %v1854
        %v1865 = vunpack.c.l.b16 %v1855
        %v1866 = vunpack.c.l.b16 %v1856
        %v1867 = vunpack.c.l.b16 %v1857
        %v1868 = vpack.c.b16 %v1864, %v1863
        %v1869 = vpack.c.b16 %v1866, %v1865
        %v1870 = vpack.c.b16 %v1867, %v1867
        %vm1873 = vcmask 293888
        %v1875 = vsel %vm1873, %v1123, 0
        %v1878 = vsel %vm1873, %v1124, 0
        %v1881 = vsel %vm1873, %v1125, 0
        %v1884 = vsel %vm1873, %v1126, 0
        %v1887 = vsel %vm1873, %v1483, 0
        %v1890 = vsel %vm1873, %v1484, 0
        %v1893 = vsel %vm1873, %v1485, 0
        %v1896 = vsel %vm1873, %v1486, 0
        %vm1898 = vcmask 1041408
        %v1900 = vsel %vm1898, %v1870, 0
        %1902 = vmatprep.subr.bf16.mxu0 0
        %1903 = vmatpush1.bf16.msra.mxu0 %v1868
        %1904 = vmatprep.subr.bf16.mxu0 0
        %1905 = vmatpush1.bf16.msra.mxu0 %v1869
        %1906 = vmatprep.subr.bf16.mxu0 0
        %1907 = vmatpush1.bf16.msra.mxu0 %v1900
        %1908 = vmatprep.subr.bf16.mxu0 0
        %1909 = vmatpush1.bf16.msra.mxu0 0
        %1910 = vmatprep.subr.bf16.mxu0 0
        %1911 = vmatpush1.bf16.msra.mxu0 0
        %1912 = vmatprep.subr.bf16.mxu0 0
        %1913 = vmatpush1.bf16.msra.mxu0 0
        %1914 = vmatprep.subr.bf16.mxu0 0
        %1915 = vmatpush1.bf16.msra.mxu0 0
        %1916 = vmatprep.subr.bf16.mxu0 0
        %1917 = vmatpush1.bf16.msra.mxu0 0
        %1918 = vmatprep.subr.bf16.mxu0 0
        %1919 = vmatpush1.bf16.msra.mxu0 0
        %1920 = vmatprep.subr.bf16.mxu0 0
        %1921 = vmatpush1.bf16.msra.mxu0 0
        %1922 = vmatprep.subr.bf16.mxu0 0
        %1923 = vmatpush1.bf16.msra.mxu0 0
        %1924 = vmatprep.subr.bf16.mxu0 0
        %1925 = vmatpush1.bf16.msra.mxu0 0
        %1926 = vmatprep.subr.bf16.mxu0 0
        %1927 = vmatpush1.bf16.msra.mxu0 0
        %1928 = vmatprep.subr.bf16.mxu0 0
        %1929 = vmatpush1.bf16.msra.mxu0 0
        %1930 = vmatprep.subr.bf16.mxu0 0
        %1931 = vmatpush1.bf16.msra.mxu0 0
        %1932 = vmatprep.subr.bf16.mxu0 0
        %1933 = vmatpush1.bf16.msra.mxu0 0
        %1934 = vmatprep.mubr.bf16.mxu0 0
        %1935 = vmatmul.mubr.bf16.gmra.mrb[0].mxu0 %v1875
        %v1936 = vpop.f32.mrb[0].mxu0
        %v1937 = vadd.f32 0.0, %v1936
        %v1938 = vpop.f32.mrb[0].mxu0
        %v1939 = vpop.f32.mrb[0].mxu0
        %v1940 = vadd.f32 0.0, %v1939
        %v1941 = vpop.f32.mrb[0].mxu0
        %1942 = vmatprep.mubr.bf16.mxu0 0
        %1943 = vmatmul.mubr.bf16.gmra.mrb[0].mxu0 %v1878
        %v1944 = vpop.f32.mrb[0].mxu0
        %v1945 = vadd.f32 0.0, %v1944
        %v1946 = vpop.f32.mrb[0].mxu0
        %v1947 = vpop.f32.mrb[0].mxu0
        %v1948 = vadd.f32 0.0, %v1947
        %v1949 = vpop.f32.mrb[0].mxu0
        %1950 = vmatprep.mubr.bf16.mxu0 0
        %1951 = vmatmul.mubr.bf16.gmra.mrb[0].mxu0 %v1881
        %v1952 = vpop.f32.mrb[0].mxu0
        %v1953 = vadd.f32 0.0, %v1952
        %v1954 = vpop.f32.mrb[0].mxu0
        %v1955 = vpop.f32.mrb[0].mxu0
        %v1956 = vadd.f32 0.0, %v1955
        %v1957 = vpop.f32.mrb[0].mxu0
        %1958 = vmatprep.mubr.bf16.mxu0 0
        %1959 = vmatmul.mubr.bf16.gmra.mrb[0].mxu0 %v1884
        %v1960 = vpop.f32.mrb[0].mxu0
        %v1961 = vadd.f32 0.0, %v1960
        %v1962 = vpop.f32.mrb[0].mxu0
        %v1963 = vpop.f32.mrb[0].mxu0
        %v1964 = vadd.f32 0.0, %v1963
        %v1965 = vpop.f32.mrb[0].mxu0
        %1966 = vmatprep.mubr.bf16.mxu0 0
        %1967 = vmatmul.mubr.bf16.gmra.mrb[0].mxu0 %v1887
        %v1968 = vpop.f32.mrb[0].mxu0
        %v1969 = vadd.f32 0.0, %v1968
        %v1970 = vpop.f32.mrb[0].mxu0
        %v1971 = vpop.f32.mrb[0].mxu0
        %v1972 = vadd.f32 0.0, %v1971
        %v1973 = vpop.f32.mrb[0].mxu0
        %1974 = vmatprep.mubr.bf16.mxu0 0
        %1975 = vmatmul.mubr.bf16.gmra.mrb[0].mxu0 %v1890
        %v1976 = vpop.f32.mrb[0].mxu0
        %v1977 = vadd.f32 0.0, %v1976
        %v1978 = vpop.f32.mrb[0].mxu0
        %v1979 = vpop.f32.mrb[0].mxu0
        %v1980 = vadd.f32 0.0, %v1979
        %v1981 = vpop.f32.mrb[0].mxu0
        %1982 = vmatprep.mubr.bf16.mxu0 0
        %1983 = vmatmul.mubr.bf16.gmra.mrb[0].mxu0 %v1893
        %v1984 = vpop.f32.mrb[0].mxu0
        %v1985 = vadd.f32 0.0, %v1984
        %v1986 = vpop.f32.mrb[0].mxu0
        %v1987 = vpop.f32.mrb[0].mxu0
        %v1988 = vadd.f32 0.0, %v1987
        %v1989 = vpop.f32.mrb[0].mxu0
        %1990 = vmatprep.mubr.bf16.mxu0 0
        %1991 = vmatmul.mubr.bf16.gmra.mrb[0].mxu0 %v1896
        %v1992 = vpop.f32.mrb[0].mxu0
        %v1993 = vadd.f32 0.0, %v1992
        %v1994 = vpop.f32.mrb[0].mxu0
        %v1995 = vpop.f32.mrb[0].mxu0
        %v1996 = vadd.f32 0.0, %v1995
        %v1997 = vpop.f32.mrb[0].mxu0
        %1998 = vdwg.mxu0
        %v2004 = vunpack.c.l.b16 %v1847
        %v2005 = vunpack.c.l.b16 %v1848
        %v2006 = vunpack.c.l.b16 %v1849
        %v2007 = vunpack.c.l.b16 %v1850
        %v2008 = vunpack.c.l.b16 %v1851
        %v2009 = vpack.c.b16 %v2005, %v2004
        %v2010 = vpack.c.b16 %v2007, %v2006
        %v2011 = vpack.c.b16 %v2008, %v2008
        %v2015 = vsel %vm1873, %v763, 0
        %v2018 = vsel %vm1873, %v764, 0
        %v2021 = vsel %vm1873, %v765, 0
        %v2024 = vsel %vm1873, %v766, 0
        %v2027 = vsel %vm1898, %v2011, 0
        %2029 = vmatprep.subr.bf16.mxu0 0
        %2030 = vmatpush1.bf16.msra.mxu0 %v2009
        %2031 = vmatprep.subr.bf16.mxu0 0
        %2032 = vmatpush1.bf16.msra.mxu0 %v2010
        %2033 = vmatprep.subr.bf16.mxu0 0
        %2034 = vmatpush1.bf16.msra.mxu0 %v2027
        %2035 = vmatprep.subr.bf16.mxu0 0
        %2036 = vmatpush1.bf16.msra.mxu0 0
        %2037 = vmatprep.subr.bf16.mxu0 0
        %2038 = vmatpush1.bf16.msra.mxu0 0
        %2039 = vmatprep.subr.bf16.mxu0 0
        %2040 = vmatpush1.bf16.msra.mxu0 0
        %2041 = vmatprep.subr.bf16.mxu0 0
        %2042 = vmatpush1.bf16.msra.mxu0 0
        %2043 = vmatprep.subr.bf16.mxu0 0
        %2044 = vmatpush1.bf16.msra.mxu0 0
        %2045 = vmatprep.subr.bf16.mxu0 0
        %2046 = vmatpush1.bf16.msra.mxu0 0
        %2047 = vmatprep.subr.bf16.mxu0 0
        %2048 = vmatpush1.bf16.msra.mxu0 0
        %2049 = vmatprep.subr.bf16.mxu0 0
        %2050 = vmatpush1.bf16.msra.mxu0 0
        %2051 = vmatprep.subr.bf16.mxu0 0
        %2052 = vmatpush1.bf16.msra.mxu0 0
        %2053 = vmatprep.subr.bf16.mxu0 0
        %2054 = vmatpush1.bf16.msra.mxu0 0
        %2055 = vmatprep.subr.bf16.mxu0 0
        %2056 = vmatpush1.bf16.msra.mxu0 0
        %2057 = vmatprep.subr.bf16.mxu0 0
        %2058 = vmatpush1.bf16.msra.mxu0 0
        %2059 = vmatprep.subr.bf16.mxu0 0
        %2060 = vmatpush1.bf16.msra.mxu0 0
        %2061 = vmatprep.mubr.bf16.mxu0 0
        %2062 = vmatmul.mubr.bf16.gmra.mrb[0].mxu0 %v2015
        %v2063 = vpop.f32.mrb[0].mxu0
        %v2064 = vadd.f32 %v1937, %v2063
        %v2065 = vpop.f32.mrb[0].mxu0
        %v2066 = vpop.f32.mrb[0].mxu0
        %v2067 = vadd.f32 %v1940, %v2066
        %v2068 = vpop.f32.mrb[0].mxu0
        %2069 = vmatprep.mubr.bf16.mxu0 0
        %2070 = vmatmul.mubr.bf16.gmra.mrb[0].mxu0 %v2018
        %v2071 = vpop.f32.mrb[0].mxu0
        %v2072 = vadd.f32 %v1945, %v2071
        %v2073 = vpop.f32.mrb[0].mxu0
        %v2074 = vpop.f32.mrb[0].mxu0
        %v2075 = vadd.f32 %v1948, %v2074
        %v2076 = vpop.f32.mrb[0].mxu0
        %2077 = vmatprep.mubr.bf16.mxu0 0
        %2078 = vmatmul.mubr.bf16.gmra.mrb[0].mxu0 %v2021
        %v2079 = vpop.f32.mrb[0].mxu0
        %v2080 = vadd.f32 %v1953, %v2079
        %v2081 = vpop.f32.mrb[0].mxu0
        %v2082 = vpop.f32.mrb[0].mxu0
        %v2083 = vadd.f32 %v1956, %v2082
        %v2084 = vpop.f32.mrb[0].mxu0
        %2085 = vmatprep.mubr.bf16.mxu0 0
        %2086 = vmatmul.mubr.bf16.gmra.mrb[0].mxu0 %v2024
        %v2087 = vpop.f32.mrb[0].mxu0
        %v2088 = vadd.f32 %v1961, %v2087
        %v2089 = vpop.f32.mrb[0].mxu0
        %v2090 = vpop.f32.mrb[0].mxu0
        %v2091 = vadd.f32 %v1964, %v2090
        %v2092 = vpop.f32.mrb[0].mxu0
        %2093 = vmatprep.mubr.bf16.mxu0 0
        %2094 = vmatmul.mubr.bf16.gmra.mrb[0].mxu0 %v1875
        %v2095 = vpop.f32.mrb[0].mxu0
        %v2096 = vadd.f32 %v1969, %v2095
        %v2097 = vpop.f32.mrb[0].mxu0
        %v2098 = vpop.f32.mrb[0].mxu0
        %v2099 = vadd.f32 %v1972, %v2098
        %v2100 = vpop.f32.mrb[0].mxu0
        %2101 = vmatprep.mubr.bf16.mxu0 0
        %2102 = vmatmul.mubr.bf16.gmra.mrb[0].mxu0 %v1878
        %v2103 = vpop.f32.mrb[0].mxu0
        %v2104 = vadd.f32 %v1977, %v2103
        %v2105 = vpop.f32.mrb[0].mxu0
        %v2106 = vpop.f32.mrb[0].mxu0
        %v2107 = vadd.f32 %v1980, %v2106
        %v2108 = vpop.f32.mrb[0].mxu0
        %2109 = vmatprep.mubr.bf16.mxu0 0
        %2110 = vmatmul.mubr.bf16.gmra.mrb[0].mxu0 %v1881
        %v2111 = vpop.f32.mrb[0].mxu0
        %v2112 = vadd.f32 %v1985, %v2111
        %v2113 = vpop.f32.mrb[0].mxu0
        %v2114 = vpop.f32.mrb[0].mxu0
        %v2115 = vadd.f32 %v1988, %v2114
        %v2116 = vpop.f32.mrb[0].mxu0
        %2117 = vmatprep.mubr.bf16.mxu0 0
        %2118 = vmatmul.mubr.bf16.gmra.mrb[0].mxu0 %v1884
        %v2119 = vpop.f32.mrb[0].mxu0
        %v2120 = vadd.f32 %v1993, %v2119
        %v2121 = vpop.f32.mrb[0].mxu0
        %v2122 = vpop.f32.mrb[0].mxu0
        %v2123 = vadd.f32 %v1996, %v2122
        %v2124 = vpop.f32.mrb[0].mxu0
        %2125 = vdwg.mxu0
        %s2126 = scalar_lea.vmem [#allocation7], 40
        %v2127 = vld [vmem:[%s2126] sm:$0xf]
        %v2128 = vld [vmem:[%s2126 + $0x4] sm:$0xf]
        %v2129 = vld [vmem:[%s2126 + $0x8] sm:$0xf]
        %v2130 = vld [vmem:[%s2126 + $0xc] sm:$0xf]
        %v2131 = vld [vmem:[%s2126 + $0x10] sm:$0x3]
        %v2137 = vunpack.c.l.b16 %v2127
        %v2138 = vunpack.c.l.b16 %v2128
        %v2139 = vunpack.c.l.b16 %v2129
        %v2140 = vunpack.c.l.b16 %v2130
        %v2141 = vunpack.c.l.b16 %v2131
        %v2142 = vpack.c.b16 %v2138, %v2137
        %v2143 = vpack.c.b16 %v2140, %v2139
        %v2144 = vpack.c.b16 %v2141, %v2141
        %v2148 = vsel %vm1873, %v1843, 0
        %v2151 = vsel %vm1873, %v1844, 0
        %v2154 = vsel %vm1873, %v1845, 0
        %v2157 = vsel %vm1873, %v1846, 0
        %v2160 = vsel %vm1898, %v2144, 0
        %2162 = vmatprep.subr.bf16.mxu0 0
        %2163 = vmatpush1.bf16.msra.mxu0 %v2142
        %2164 = vmatprep.subr.bf16.mxu0 0
        %2165 = vmatpush1.bf16.msra.mxu0 %v2143
        %2166 = vmatprep.subr.bf16.mxu0 0
        %2167 = vmatpush1.bf16.msra.mxu0 %v2160
        %2168 = vmatprep.subr.bf16.mxu0 0
        %2169 = vmatpush1.bf16.msra.mxu0 0
        %2170 = vmatprep.subr.bf16.mxu0 0
        %2171 = vmatpush1.bf16.msra.mxu0 0
        %2172 = vmatprep.subr.bf16.mxu0 0
        %2173 = vmatpush1.bf16.msra.mxu0 0
        %2174 = vmatprep.subr.bf16.mxu0 0
        %2175 = vmatpush1.bf16.msra.mxu0 0
        %2176 = vmatprep.subr.bf16.mxu0 0
        %2177 = vmatpush1.bf16.msra.mxu0 0
        %2178 = vmatprep.subr.bf16.mxu0 0
        %2179 = vmatpush1.bf16.msra.mxu0 0
        %2180 = vmatprep.subr.bf16.mxu0 0
        %2181 = vmatpush1.bf16.msra.mxu0 0
        %2182 = vmatprep.subr.bf16.mxu0 0
        %2183 = vmatpush1.bf16.msra.mxu0 0
        %2184 = vmatprep.subr.bf16.mxu0 0
        %2185 = vmatpush1.bf16.msra.mxu0 0
        %2186 = vmatprep.subr.bf16.mxu0 0
        %2187 = vmatpush1.bf16.msra.mxu0 0
        %2188 = vmatprep.subr.bf16.mxu0 0
        %2189 = vmatpush1.bf16.msra.mxu0 0
        %2190 = vmatprep.subr.bf16.mxu0 0
        %2191 = vmatpush1.bf16.msra.mxu0 0
        %2192 = vmatprep.subr.bf16.mxu0 0
        %2193 = vmatpush1.bf16.msra.mxu0 0
        %2194 = vmatprep.mubr.bf16.mxu0 0
        %2195 = vmatmul.mubr.bf16.gmra.mrb[0].mxu0 %v1887
        %v2196 = vpop.f32.mrb[0].mxu0
        %v2197 = vadd.f32 0.0, %v2196
        %v2198 = vpop.f32.mrb[0].mxu0
        %v2199 = vpop.f32.mrb[0].mxu0
        %v2200 = vadd.f32 0.0, %v2199
        %v2201 = vpop.f32.mrb[0].mxu0
        %2202 = vmatprep.mubr.bf16.mxu0 0
        %2203 = vmatmul.mubr.bf16.gmra.mrb[0].mxu0 %v1890
        %v2204 = vpop.f32.mrb[0].mxu0
        %v2205 = vadd.f32 0.0, %v2204
        %v2206 = vpop.f32.mrb[0].mxu0
        %v2207 = vpop.f32.mrb[0].mxu0
        %v2208 = vadd.f32 0.0, %v2207
        %v2209 = vpop.f32.mrb[0].mxu0
        %2210 = vmatprep.mubr.bf16.mxu0 0
        %2211 = vmatmul.mubr.bf16.gmra.mrb[0].mxu0 %v1893
        %v2212 = vpop.f32.mrb[0].mxu0
        %v2213 = vadd.f32 0.0, %v2212
        %v2214 = vpop.f32.mrb[0].mxu0
        %v2215 = vpop.f32.mrb[0].mxu0
        %v2216 = vadd.f32 0.0, %v2215
        %v2217 = vpop.f32.mrb[0].mxu0
        %2218 = vmatprep.mubr.bf16.mxu0 0
        %2219 = vmatmul.mubr.bf16.gmra.mrb[0].mxu0 %v1896
        %v2220 = vpop.f32.mrb[0].mxu0
        %v2221 = vadd.f32 0.0, %v2220
        %v2222 = vpop.f32.mrb[0].mxu0
        %v2223 = vpop.f32.mrb[0].mxu0
        %v2224 = vadd.f32 0.0, %v2223
        %v2225 = vpop.f32.mrb[0].mxu0
        %2226 = vmatprep.mubr.bf16.mxu0 0
        %2227 = vmatmul.mubr.bf16.gmra.mrb[0].mxu0 %v2148
        %v2228 = vpop.f32.mrb[0].mxu0
        %v2229 = vadd.f32 0.0, %v2228
        %v2230 = vpop.f32.mrb[0].mxu0
        %v2231 = vpop.f32.mrb[0].mxu0
        %v2232 = vadd.f32 0.0, %v2231
        %v2233 = vpop.f32.mrb[0].mxu0
        %2234 = vmatprep.mubr.bf16.mxu0 0
        %2235 = vmatmul.mubr.bf16.gmra.mrb[0].mxu0 %v2151
        %v2236 = vpop.f32.mrb[0].mxu0
        %v2237 = vadd.f32 0.0, %v2236
        %v2238 = vpop.f32.mrb[0].mxu0
        %v2239 = vpop.f32.mrb[0].mxu0
        %v2240 = vadd.f32 0.0, %v2239
        %v2241 = vpop.f32.mrb[0].mxu0
        %2242 = vmatprep.mubr.bf16.mxu0 0
        %2243 = vmatmul.mubr.bf16.gmra.mrb[0].mxu0 %v2154
        %v2244 = vpop.f32.mrb[0].mxu0
        %v2245 = vadd.f32 0.0, %v2244
        %v2246 = vpop.f32.mrb[0].mxu0
        %v2247 = vpop.f32.mrb[0].mxu0
        %v2248 = vadd.f32 0.0, %v2247
        %v2249 = vpop.f32.mrb[0].mxu0
        %2250 = vmatprep.mubr.bf16.mxu0 0
        %2251 = vmatmul.mubr.bf16.gmra.mrb[0].mxu0 %v2157
        %v2252 = vpop.f32.mrb[0].mxu0
        %v2253 = vadd.f32 0.0, %v2252
        %v2254 = vpop.f32.mrb[0].mxu0
        %v2255 = vpop.f32.mrb[0].mxu0
        %v2256 = vadd.f32 0.0, %v2255
        %v2257 = vpop.f32.mrb[0].mxu0
        %2258 = vdwg.mxu0
        %v2259 = vadd.f32 %v2064, %v2197
        %v2260 = vadd.f32 %v2067, %v2200
        %v2261 = vadd.f32 %v2072, %v2205
        %v2262 = vadd.f32 %v2075, %v2208
        %v2263 = vadd.f32 %v2080, %v2213
        %v2264 = vadd.f32 %v2083, %v2216
        %v2265 = vadd.f32 %v2088, %v2221
        %v2266 = vadd.f32 %v2091, %v2224
        %v2267 = vadd.f32 %v2096, %v2229
        %v2268 = vadd.f32 %v2099, %v2232
        %v2269 = vadd.f32 %v2104, %v2237
        %v2270 = vadd.f32 %v2107, %v2240
        %v2271 = vadd.f32 %v2112, %v2245
        %v2272 = vadd.f32 %v2115, %v2248
        %v2273 = vadd.f32 %v2120, %v2253
        %v2274 = vadd.f32 %v2123, %v2256
        %v2275 = vpack.c.bf16 %v2259, %v2259
        %v2276 = vpack.c.bf16 %v2260, %v2260
        %v2277 = vpack.c.bf16 %v2261, %v2261
        %v2278 = vpack.c.bf16 %v2262, %v2262
        %v2279 = vpack.c.bf16 %v2263, %v2263
        %v2280 = vpack.c.bf16 %v2264, %v2264
        %v2281 = vpack.c.bf16 %v2265, %v2265
        %v2282 = vpack.c.bf16 %v2266, %v2266
        %v2283 = vpack.c.bf16 %v2267, %v2267
        %v2284 = vpack.c.bf16 %v2268, %v2268
        %v2285 = vpack.c.bf16 %v2269, %v2269
        %v2286 = vpack.c.bf16 %v2270, %v2270
        %v2287 = vpack.c.bf16 %v2271, %v2271
        %v2288 = vpack.c.bf16 %v2272, %v2272
        %v2289 = vpack.c.bf16 %v2273, %v2273
        %v2290 = vpack.c.bf16 %v2274, %v2274
        %2291 = vst [vmem:[%s302] sm:$0xf] %v2275
        %2292 = vst [vmem:[%s302 + $0x4] sm:$0xf] %v2276
        %2293 = vst [vmem:[%s302 + $0x8] sm:$0xf] %v2277
        %2294 = vst [vmem:[%s302 + $0xc] sm:$0xf] %v2278
        %2295 = vst [vmem:[%s302 + $0x10] sm:$0xf] %v2279
        %2296 = vst [vmem:[%s302 + $0x14] sm:$0xf] %v2280
        %2297 = vst [vmem:[%s302 + $0x18] sm:$0xf] %v2281
        %2298 = vst [vmem:[%s302 + $0x1c] sm:$0xf] %v2282
        %2299 = vst [vmem:[%s302 + $0x20] sm:$0xf] %v2283
        %2300 = vst [vmem:[%s302 + $0x24] sm:$0xf] %v2284
        %2301 = vst [vmem:[%s302 + $0x28] sm:$0xf] %v2285
        %2302 = vst [vmem:[%s302 + $0x2c] sm:$0xf] %v2286
        %2303 = vst [vmem:[%s302 + $0x30] sm:$0xf] %v2287
        %2304 = vst [vmem:[%s302 + $0x34] sm:$0xf] %v2288
        %2305 = vst [vmem:[%s302 + $0x38] sm:$0xf] %v2289
        %2306 = vst [vmem:[%s302 + $0x3c] sm:$0xf] %v2290
        %v2307 = vadd.f32 %v2259, %v2260
        %v2308 = vadd.f32 %v2307, %v2261
        %v2309 = vadd.f32 %v2308, %v2262
        %v2310 = vadd.f32 %v2309, %v2263
        %v2311 = vadd.f32 %v2310, %v2264
        %v2312 = vadd.f32 %v2311, %v2265
        %v2313 = vadd.f32 %v2312, %v2266
        %v2314 = vadd.f32 %v2313, %v2267
        %v2315 = vadd.f32 %v2314, %v2268
        %v2316 = vadd.f32 %v2315, %v2269
        %v2317 = vadd.f32 %v2316, %v2270
        %v2318 = vadd.f32 %v2317, %v2271
        %v2319 = vadd.f32 %v2318, %v2272
        %v2320 = vadd.f32 %v2319, %v2273
        %v2321 = vadd.f32 %v2320, %v2274
        %v2322 = vrot.slane %v2321, 4
        %v2323 = vadd.f32 %v2321, %v2322
        %v2324 = vrot.slane %v2323, 2
        %v2325 = vadd.f32 %v2323, %v2324
        %v2326 = vrot.slane %v2325, 1
        %v2327 = vadd.f32 %v2325, %v2326
        %2328 = vst [vmem:[%s309] sm:$0x1] %v2327
        %v2329 = vmul.f32 %v2259, %v2259
        %v2330 = vmul.f32 %v2260, %v2260
        %v2331 = vmul.f32 %v2261, %v2261
        %v2332 = vmul.f32 %v2262, %v2262
        %v2333 = vmul.f32 %v2263, %v2263
        %v2334 = vmul.f32 %v2264, %v2264
        %v2335 = vmul.f32 %v2265, %v2265
        %v2336 = vmul.f32 %v2266, %v2266
        %v2337 = vmul.f32 %v2267, %v2267
        %v2338 = vmul.f32 %v2268, %v2268
        %v2339 = vmul.f32 %v2269, %v2269
        %v2340 = vmul.f32 %v2270, %v2270
        %v2341 = vmul.f32 %v2271, %v2271
        %v2342 = vmul.f32 %v2272, %v2272
        %v2343 = vmul.f32 %v2273, %v2273
        %v2344 = vmul.f32 %v2274, %v2274
        %v2345 = vadd.f32 %v2329, %v2330
        %v2346 = vadd.f32 %v2345, %v2331
        %v2347 = vadd.f32 %v2346, %v2332
        %v2348 = vadd.f32 %v2347, %v2333
        %v2349 = vadd.f32 %v2348, %v2334
        %v2350 = vadd.f32 %v2349, %v2335
        %v2351 = vadd.f32 %v2350, %v2336
        %v2352 = vadd.f32 %v2351, %v2337
        %v2353 = vadd.f32 %v2352, %v2338
        %v2354 = vadd.f32 %v2353, %v2339
        %v2355 = vadd.f32 %v2354, %v2340
        %v2356 = vadd.f32 %v2355, %v2341
        %v2357 = vadd.f32 %v2356, %v2342
        %v2358 = vadd.f32 %v2357, %v2343
        %v2359 = vadd.f32 %v2358, %v2344
        %v2360 = vrot.slane %v2359, 4
        %v2361 = vadd.f32 %v2359, %v2360
        %v2362 = vrot.slane %v2361, 2
        %v2363 = vadd.f32 %v2361, %v2362
        %v2364 = vrot.slane %v2363, 1
        %v2365 = vadd.f32 %v2363, %v2364
        %2366 = vst [vmem:[%s309 + $0x1] sm:$0x1] %v2365
        %s2367 = sand.u32 %s129, 1
        %s2368 = scalar_lea.sflag [#allocation4], %s2367
        %s2369 = sand.u32 %s129, 1
        %s2370 = smul.addr %s2369, 64
        %s2371 = scalar_lea.vmem [#allocation8], %s2370
        %s2372 = sand.u32 %s157, 1
        %s2373 = scalar_lea.sflag [#allocation10], %s2372
        %s2374 = sand.u32 %s157, 1
        %s2375 = smul.addr %s2374, 2
        %s2376 = scalar_lea.vmem [#allocation9], %s2375
        // Predicated region
        $region45: #{conv3d_block_forward.4} parent=31 // pred_check
          %p2377 = pneg %p139
        $region46: #{conv3d_block_forward.4} parent=31 // pred_check_branch
          %2379 = sbr.rel (%p2377) target = $region48
        $region47: #{conv3d_block_forward.4} parent=31 // pred_region
          %s2380 = smul.u32 2, %s33
          %s2382 = ssub.s32 1024, 1024
          %2383 = vsyncadd %s2368, %s2382
          %s2384 = smul.addr %s2380, 8
          %s2385 = smul.addr %s32, 64
          %s2386 = sadd.s32 %s2384, %s2385
          %s2387 = smul.addr %s2386, 64
          %s2388 = scalar_lea.hbm %s3, %s2387
          %s2389 = sshll.u32 %s2371, 4
          %s2390 = int_to_ptr.vmem [resolvable:$true] %s2389
          %2395 = dma.vmem_to_hbm [thread:$0]  %s2390, 1024, %s2388, %s2368, 64, 64, 4
        $region48: #{conv3d_block_forward.4} parent=31 // pred_fallthru
          _
        // Predicated region
        $region49: #{conv3d_block_forward.4} parent=31 // pred_check
          %p2396 = pneg %p167
        $region50: #{conv3d_block_forward.4} parent=31 // pred_check_branch
          %2398 = sbr.rel (%p2396) target = $region52
        $region51: #{conv3d_block_forward.4} parent=31 // pred_region
          %s2400 = ssub.s32 32, 32
          %2401 = vsyncadd %s2373, %s2400
          %s2402 = smul.addr %s32, 4
          %s2403 = sadd.s32 %s33, %s2402
          %s2404 = smul.addr %s2403, 32
          %s2405 = scalar_lea.hbm %s4, %s2404
          %s2407 = sshll.u32 %s2376, 4
          %s2408 = int_to_ptr.vmem [resolvable:$true] %s2407
          %2410 = dma.vmem_to_hbm [thread:$0]  %s2408, 32, %s2405, %s2373
        $region52: #{conv3d_block_forward.4} parent=31 // pred_fallthru
          _
      $region32: #{conv3d_block_forward.4} parent=5 // pred_fallthru
        _
      %p2411 = scmp.le.s32.totalorder 2, %s23
      // Predicated region
      $region53: #{conv3d_block_forward.4} parent=5 // pred_check
        %p2412 = pneg %p2411
      $region54: #{conv3d_block_forward.4} parent=5 // pred_check_branch
        %2414 = sbr.rel (%p2412) target = $region56
      $region55: #{conv3d_block_forward.4} parent=5 // pred_region
        %s2415 = ssub.s32 %s23, 2
        // Predicated region
        $region57: #{conv3d_block_forward.4} parent=55 // pred_check
          %p2416 = pneg %p145
        $region58: #{conv3d_block_forward.4} parent=55 // pred_check_branch
          %2418 = sbr.rel (%p2416) target = $region60
        $region59: #{conv3d_block_forward.4} parent=55 // pred_region
          %s2419 = sand.u32 %s130, 1
          %s2420 = scalar_lea.sflag [#allocation4], %s2419
          %s2421 = sand.u32 %s130, 1
          %s2422 = smul.addr %s2421, 64
          %s2423 = scalar_lea.vmem [#allocation8], %s2422
          %2424 = dma.done %s2420, 1024
        $region60: #{conv3d_block_forward.4} parent=55 // pred_fallthru
          _
        // Predicated region
        $region61: #{conv3d_block_forward.4} parent=55 // pred_check
          %p2425 = pneg %p173
        $region62: #{conv3d_block_forward.4} parent=55 // pred_check_branch
          %2427 = sbr.rel (%p2425) target = $region64
        $region63: #{conv3d_block_forward.4} parent=55 // pred_region
          %s2428 = sand.u32 %s158, 1
          %s2429 = scalar_lea.sflag [#allocation10], %s2428
          %s2430 = sand.u32 %s158, 1
          %s2431 = smul.addr %s2430, 2
          %s2432 = scalar_lea.vmem [#allocation9], %s2431
          %2433 = dma.done %s2429, 32
        $region64: #{conv3d_block_forward.4} parent=55 // pred_fallthru
          _
      $region56: #{conv3d_block_forward.4} parent=5 // pred_fallthru
        _
    $region6: #{conv3d_block_forward.4} parent=1 // loop_footer
      %s27 = sadd.s32 1, %s23
    $region7: #{conv3d_block_forward.4} parent=1 // loop_footer_branch
      %22 = sbr.rel target = $region3
    $region8: #{conv3d_block_forward.4} parent=1 // loop_exit
      _
    %2434 = vsyncpa [#allocation3], 1
    %s2435 = scalar_lea.sflag [#allocation3], 1
    %2436 = vsyncpa %s2435, 1
    %2437 = vsyncpa [#allocation6], 1
    %s2438 = scalar_lea.sflag [#allocation6], 1
    %2439 = vsyncpa %s2438, 1
    %2440 = vsyncpa [#allocation4], 1
    %s2441 = scalar_lea.sflag [#allocation4], 1
    %2442 = vsyncpa %s2441, 1
    %2443 = vsyncpa [#allocation10], 1
    %s2444 = scalar_lea.sflag [#allocation10], 1
    %2445 = vsyncpa %s2444, 1

// kernel: conv3d_block_forward.7
$region0: #{conv3d_block_forward.7}
  #allocation0 [shape = 'u32[]', space=smem, size = 0x4, offset = 0x4, fixed_abs, tag = 'smem constant byte address 0x4 - core index']
  #allocation1 [shape = 'u32[144,128]{1,0:T(1,128)}', space=vmem, size = 0x12000, scoped, tag = 'internal scratch']
  #allocation2 [shape = 'f32[4,8,128]{2,1,0:T(8,128)}', space=vmem, size = 0x4000, scoped, tag = 'scratch operand']
  %s0 = inlined_call_operand.hbm [shape: bf16[2,8,8,8,128], index: 0, kind: input, shape index: {}]
  %s1 = inlined_call_operand.hbm [shape: f32[1,128], index: 1, kind: input, shape index: {}]
  %s2 = inlined_call_operand.hbm [shape: f32[1,128], index: 2, kind: input, shape index: {}]
  %s3 = inlined_call_operand.hbm [shape: f32[2,8,8,8,128], index: 3, kind: output, shape index: {0}]
  %s4 = inlined_call_operand.hbm [shape: f32[2,4,4,4,128], index: 4, kind: output, shape index: {1}]
  %5 = xla_tuple %s3, %s4
  %s6 = sld [smem:[#allocation0]]
  $region65: #{conv3d_block_forward.7} parent=0
    _
  %s8 = ssub.s32 1, %s6
  %s9 = scalar_select 0, %s8, %s6
  $region1: #{conv3d_block_forward.7} parent=0
    #allocation3 [shape = 'u8[65536]{0}', space=vmem, size = 0x10000, scoped, tag = 'input window, operand 0']
    #allocation4 [shape = 's32[2]{0}', space=sflag, size = 0x8, scoped, tag = 'scoped memory for conv3d_block_forward.7']
    #allocation5 [shape = 's32[2]{0}', space=sflag, size = 0x8, scoped, tag = 'scoped memory for conv3d_block_forward.7']
    #allocation6 [shape = 'u8[512]{0}', space=vmem, size = 0x400, scoped, tag = 'input window, operand 1, single buffered']
    #allocation7 [shape = 's32[1]{0}', space=sflag, size = 0x4, scoped, tag = 'scoped memory for conv3d_block_forward.7']
    #allocation8 [shape = 'u8[512]{0}', space=vmem, size = 0x400, scoped, tag = 'input window, operand 2, single buffered']
    #allocation9 [shape = 'u8[131072]{0}', space=vmem, size = 0x20000, scoped, tag = 'output window, operand 0']
    #allocation10 [shape = 'u8[16384]{0}', space=vmem, size = 0x4000, scoped, tag = 'output window, operand 1']
    #allocation11 [shape = 's32[2]{0}', space=sflag, size = 0x8, scoped, tag = 'scoped memory for conv3d_block_forward.7']
    %10 = vsyncpa [#allocation4], 0
    %s11 = scalar_lea.sflag [#allocation4], 1
    %12 = vsyncpa %s11, 0
    %13 = vsyncpa [#allocation7], 0
    %14 = vsyncpa [#allocation5], 0
    %s15 = scalar_lea.sflag [#allocation5], 1
    %16 = vsyncpa %s15, 0
    %17 = vsyncpa [#allocation11], 0
    %s18 = scalar_lea.sflag [#allocation11], 1
    %19 = vsyncpa %s18, 0
    loop: start=0, step=1, limit=10
    $region2: #{conv3d_block_forward.7} parent=1 // loop_pre_header
      _
    $region3: #{conv3d_block_forward.7} parent=1 // loop_header
      %s21 = sphi 0, %s25
      %p22 = scmp.ge.s32.totalorder %s21, 10
      %s28 = sphi 0, %s40
      %s29 = sphi 0, %s36
      %s30 = sphi 0, %s28
      %s31 = sphi 0, %s29
      %s32 = sphi 0, %s30
      %s33 = sphi 0, %s31
      %s45 = sphi 0, %s47
      %s48 = sphi 0, %s45
      %s49 = sphi 0, %s48
      %s65 = sphi 0, %s49
      %s69 = sphi 0, %s69
      %s71 = sphi 0, %s69
      %s72 = sphi 0, %s71
      %s86 = sphi 0, %s72
      %s90 = sphi 0, %s90
      %s92 = sphi 0, %s90
      %s93 = sphi 0, %s92
      %s107 = sphi 0, %s93
      %s115 = sphi 0, %s117
      %s118 = sphi 0, %s115
      %s119 = sphi 0, %s118
      %s135 = sphi 0, %s119
      %s143 = sphi 0, %s145
      %s146 = sphi 0, %s143
      %s147 = sphi 0, %s146
      %s163 = sphi 0, %s147
    $region4: #{conv3d_block_forward.7} parent=1 // loop_header_branch
      %24 = sbr.rel (%p22) target = $region8
    $region5: #{conv3d_block_forward.7} parent=1 // loop_body
      %s26 = ssub.s32 %s21, 1
      %s27 = ssub.s32 %s21, 2
      %s34 = sadd.s32 1, %s29
      %p35 = scmp.ge.s32.totalorder %s34, 4
      %s36 = scalar_select %p35, 0, %s34
      %s37 = sadd.s32 1, %s28
      %s38 = scalar_select %p35, %s37, %s28
      %p39 = scmp.ge.s32.totalorder %s38, 2
      %s40 = scalar_select %p39, 0, %s38
      %s41 = ssub.s32 %s28, %s40
      %s42 = ssub.s32 %s29, %s36
      %s43 = sor.u32 %s41, %s42
      %p44 = scmp.eq.s32.totalorder %s43, 0
      %s46 = sadd.s32 %s45, 1
      %s47 = scalar_select %p44, %s45, %s46
      %p50 = pneg %p44
      %p51 = scmp.eq.s32.totalorder %s21, 7
      %p52 = por %p50, %p51
      %p53 = scmp.ne.s32.totalorder %s45, %s48
      %p54 = scmp.eq.s32.totalorder %s21, 0
      %p55 = por %p53, %p54
      %p56 = scmp.ne.s32.totalorder %s45, %s48
      %p57 = scmp.eq.s32.totalorder %s26, 7
      %p58 = por %p56, %p57
      %p59 = scmp.ne.s32.totalorder %s48, %s49
      %p60 = scmp.eq.s32.totalorder %s26, 0
      %p61 = por %p59, %p60
      %p62 = scmp.ne.s32.totalorder %s48, %s49
      %p63 = scmp.eq.s32.totalorder %s27, 7
      %p64 = por %p62, %p63
      %p66 = scmp.ne.s32.totalorder %s49, %s65
      %p67 = scmp.eq.s32.totalorder %s27, 0
      %p68 = por %p66, %p67
      %s70 = sadd.s32 %s69, 1
      %p73 = scmp.eq.s32.totalorder %s21, 7
      %p74 = scmp.ne.s32.totalorder %s69, %s71
      %p75 = scmp.eq.s32.totalorder %s21, 0
      %p76 = por %p74, %p75
      %p77 = scmp.ne.s32.totalorder %s69, %s71
      %p78 = scmp.eq.s32.totalorder %s26, 7
      %p79 = por %p77, %p78
      %p80 = scmp.ne.s32.totalorder %s71, %s72
      %p81 = scmp.eq.s32.totalorder %s26, 0
      %p82 = por %p80, %p81
      %p83 = scmp.ne.s32.totalorder %s71, %s72
      %p84 = scmp.eq.s32.totalorder %s27, 7
      %p85 = por %p83, %p84
      %p87 = scmp.ne.s32.totalorder %s72, %s86
      %p88 = scmp.eq.s32.totalorder %s27, 0
      %p89 = por %p87, %p88
      %s91 = sadd.s32 %s90, 1
      %p94 = scmp.eq.s32.totalorder %s21, 7
      %p95 = scmp.ne.s32.totalorder %s90, %s92
      %p96 = scmp.eq.s32.totalorder %s21, 0
      %p97 = por %p95, %p96
      %p98 = scmp.ne.s32.totalorder %s90, %s92
      %p99 = scmp.eq.s32.totalorder %s26, 7
      %p100 = por %p98, %p99
      %p101 = scmp.ne.s32.totalorder %s92, %s93
      %p102 = scmp.eq.s32.totalorder %s26, 0
      %p103 = por %p101, %p102
      %p104 = scmp.ne.s32.totalorder %s92, %s93
      %p105 = scmp.eq.s32.totalorder %s27, 7
      %p106 = por %p104, %p105
      %p108 = scmp.ne.s32.totalorder %s93, %s107
      %p109 = scmp.eq.s32.totalorder %s27, 0
      %p110 = por %p108, %p109
      %s111 = ssub.s32 %s28, %s40
      %s112 = ssub.s32 %s29, %s36
      %s113 = sor.u32 %s111, %s112
      %p114 = scmp.eq.s32.totalorder %s113, 0
      %s116 = sadd.s32 %s115, 1
      %s117 = scalar_select %p114, %s115, %s116
      %p120 = pneg %p114
      %p121 = scmp.eq.s32.totalorder %s21, 7
      %p122 = por %p120, %p121
      %p123 = scmp.ne.s32.totalorder %s115, %s118
      %p124 = scmp.eq.s32.totalorder %s21, 0
      %p125 = por %p123, %p124
      %p126 = scmp.ne.s32.totalorder %s115, %s118
      %p127 = scmp.eq.s32.totalorder %s26, 7
      %p128 = por %p126, %p127
      %p129 = scmp.ne.s32.totalorder %s118, %s119
      %p130 = scmp.eq.s32.totalorder %s26, 0
      %p131 = por %p129, %p130
      %p132 = scmp.ne.s32.totalorder %s118, %s119
      %p133 = scmp.eq.s32.totalorder %s27, 7
      %p134 = por %p132, %p133
      %p136 = scmp.ne.s32.totalorder %s119, %s135
      %p137 = scmp.eq.s32.totalorder %s27, 0
      %p138 = por %p136, %p137
      %s139 = ssub.s32 %s28, %s40
      %s140 = ssub.s32 %s29, %s36
      %s141 = sor.u32 %s139, %s140
      %p142 = scmp.eq.s32.totalorder %s141, 0
      %s144 = sadd.s32 %s143, 1
      %s145 = scalar_select %p142, %s143, %s144
      %p148 = pneg %p142
      %p149 = scmp.eq.s32.totalorder %s21, 7
      %p150 = por %p148, %p149
      %p151 = scmp.ne.s32.totalorder %s143, %s146
      %p152 = scmp.eq.s32.totalorder %s21, 0
      %p153 = por %p151, %p152
      %p154 = scmp.ne.s32.totalorder %s143, %s146
      %p155 = scmp.eq.s32.totalorder %s26, 7
      %p156 = por %p154, %p155
      %p157 = scmp.ne.s32.totalorder %s146, %s147
      %p158 = scmp.eq.s32.totalorder %s26, 0
      %p159 = por %p157, %p158
      %p160 = scmp.ne.s32.totalorder %s146, %s147
      %p161 = scmp.eq.s32.totalorder %s27, 7
      %p162 = por %p160, %p161
      %p164 = scmp.ne.s32.totalorder %s147, %s163
      %p165 = scmp.eq.s32.totalorder %s27, 0
      %p166 = por %p164, %p165
      %p167 = scmp.le.s32.totalorder 1, %s21
      %p168 = scmp.lt.s32.totalorder %s21, 9
      %p169 = pnand %p167, %p168
      %p170 = pneg %p169
      // Predicated region
      $region9: #{conv3d_block_forward.7} parent=5 // pred_check
        _
      $region10: #{conv3d_block_forward.7} parent=5 // pred_check_branch
        %172 = sbr.rel (%p169) target = $region12
      $region11: #{conv3d_block_forward.7} parent=5 // pred_region
        %s173 = ssub.s32 %s21, 1
        // Predicated region
        $region13: #{conv3d_block_forward.7} parent=11 // pred_check
          %p174 = pneg %p82
        $region14: #{conv3d_block_forward.7} parent=11 // pred_check_branch
          %176 = sbr.rel (%p174) target = $region16
        $region15: #{conv3d_block_forward.7} parent=11 // pred_region
          %s178 = ssub.s32 16, 16
          %179 = vsyncadd [#allocation7], %s178
          %s181 = sshll.u32 [#allocation6], 4
          %s182 = int_to_ptr.vmem [resolvable:$true] %s181
          %184 = dma.hbm_to_vmem [thread:$0]  %s1, 16, %s182, [#allocation7]
        $region16: #{conv3d_block_forward.7} parent=11 // pred_fallthru
          _
        // Predicated region
        $region17: #{conv3d_block_forward.7} parent=11 // pred_check
          %p185 = pneg %p103
        $region18: #{conv3d_block_forward.7} parent=11 // pred_check_branch
          %187 = sbr.rel (%p185) target = $region20
        $region19: #{conv3d_block_forward.7} parent=11 // pred_region
          %s189 = ssub.s32 16, 16
          %190 = vsyncadd [#allocation7], %s189
          %s192 = sshll.u32 [#allocation8], 4
          %s193 = int_to_ptr.vmem [resolvable:$true] %s192
          %195 = dma.hbm_to_vmem [thread:$0]  %s2, 16, %s193, [#allocation7]
        $region20: #{conv3d_block_forward.7} parent=11 // pred_fallthru
          _
      $region12: #{conv3d_block_forward.7} parent=5 // pred_fallthru
        _
      %p196 = scmp.lt.s32.totalorder %s21, 8
      // Predicated region
      $region21: #{conv3d_block_forward.7} parent=5 // pred_check
        %p197 = pneg %p196
      $region22: #{conv3d_block_forward.7} parent=5 // pred_check_branch
        %199 = sbr.rel (%p197) target = $region24
      $region23: #{conv3d_block_forward.7} parent=5 // pred_region
        // Predicated region
        $region25: #{conv3d_block_forward.7} parent=23 // pred_check
          %p200 = pneg %p55
        $region26: #{conv3d_block_forward.7} parent=23 // pred_check_branch
          %202 = sbr.rel (%p200) target = $region28
        $region27: #{conv3d_block_forward.7} parent=23 // pred_region
          %s203 = sand.u32 %s45, 1
          %s204 = scalar_lea.sflag [#allocation4], %s203
          %s205 = sand.u32 %s45, 1
          %s206 = smul.addr %s205, 64
          %s207 = scalar_lea.vmem [#allocation3], %s206
          %s208 = smul.u32 2, %s29
          %s210 = ssub.s32 1024, 1024
          %211 = vsyncadd %s204, %s210
          %s212 = smul.addr %s208, 8
          %s213 = smul.addr %s28, 64
          %s214 = sadd.s32 %s212, %s213
          %s215 = smul.addr %s214, 64
          %s216 = scalar_lea.hbm %s0, %s215
          %s217 = sshll.u32 %s207, 4
          %s218 = int_to_ptr.vmem [resolvable:$true] %s217
          %223 = dma.hbm_to_vmem [thread:$0]  %s216, 1024, %s218, %s204, 64, 64, 4
        $region28: #{conv3d_block_forward.7} parent=23 // pred_fallthru
          _
      $region24: #{conv3d_block_forward.7} parent=5 // pred_fallthru
        _
      %p224 = scmp.le.s32.totalorder 1, %s21
      %p225 = scmp.lt.s32.totalorder %s21, 9
      %p226 = pnand %p224, %p225
      %p227 = pneg %p226
      // Predicated region
      $region29: #{conv3d_block_forward.7} parent=5 // pred_check
        _
      $region30: #{conv3d_block_forward.7} parent=5 // pred_check_branch
        %229 = sbr.rel (%p226) target = $region32
      $region31: #{conv3d_block_forward.7} parent=5 // pred_region
        %s230 = ssub.s32 %s21, 1
        %s231 = sand.u32 %s48, 1
        %s232 = scalar_lea.sflag [#allocation4], %s231
        %s233 = sand.u32 %s48, 1
        %s234 = smul.addr %s233, 64
        %s235 = scalar_lea.vmem [#allocation3], %s234
        // Predicated region
        $region33: #{conv3d_block_forward.7} parent=31 // pred_check
          %p236 = pneg %p61
        $region34: #{conv3d_block_forward.7} parent=31 // pred_check_branch
          %238 = sbr.rel (%p236) target = $region36
        $region35: #{conv3d_block_forward.7} parent=31 // pred_region
          %239 = dma.done %s232, 1024
        $region36: #{conv3d_block_forward.7} parent=31 // pred_fallthru
          _
        // Predicated region
        $region37: #{conv3d_block_forward.7} parent=31 // pred_check
          %p240 = pneg %p82
        $region38: #{conv3d_block_forward.7} parent=31 // pred_check_branch
          %242 = sbr.rel (%p240) target = $region40
        $region39: #{conv3d_block_forward.7} parent=31 // pred_region
          %243 = dma.done [#allocation7], 16
        $region40: #{conv3d_block_forward.7} parent=31 // pred_fallthru
          _
        // Predicated region
        $region41: #{conv3d_block_forward.7} parent=31 // pred_check
          %p244 = pneg %p103
        $region42: #{conv3d_block_forward.7} parent=31 // pred_check_branch
          %246 = sbr.rel (%p244) target = $region44
        $region43: #{conv3d_block_forward.7} parent=31 // pred_region
          %247 = dma.done [#allocation7], 16
        $region44: #{conv3d_block_forward.7} parent=31 // pred_fallthru
          _
        %s248 = sand.u32 %s48, 1
        %s249 = scalar_lea.sflag [#allocation4], %s248
        %s250 = sand.u32 %s48, 1
        %s251 = smul.addr %s250, 64
        %s252 = scalar_lea.vmem [#allocation3], %s251
        %p253 = pneg %p61
        %p254 = pneg %p58
        %p255 = pneg %p82
        %p256 = pneg %p79
        %p257 = pneg %p103
        %p258 = pneg %p100
        %p259 = pneg %p131
        %p260 = pneg %p128
        %s261 = sand.u32 %s118, 1
        %s262 = scalar_lea.sflag [#allocation5], %s261
        %s263 = sand.u32 %s118, 1
        %s264 = smul.addr %s263, 128
        %s265 = scalar_lea.vmem [#allocation9], %s264
        %p266 = pneg %p159
        %p267 = pneg %p156
        %s268 = sand.u32 %s146, 1
        %s269 = scalar_lea.sflag [#allocation11], %s268
        %s270 = sand.u32 %s146, 1
        %s271 = smul.addr %s270, 16
        %s272 = scalar_lea.vmem [#allocation10], %s271
        %s273 = smul.u32 2, %s31
        %s274 = smul.u32 2, %s31
        %v275 = vld [vmem:[%s235] sm:$0xf]
        %v276 = vld [vmem:[%s235 + $0x4] sm:$0xf]
        %v277 = vld [vmem:[%s235 + $0x8] sm:$0xf]
        %v278 = vld [vmem:[%s235 + $0xc] sm:$0xf]
        %v279 = vld [vmem:[%s235 + $0x10] sm:$0xf]
        %v280 = vld [vmem:[%s235 + $0x14] sm:$0xf]
        %v281 = vld [vmem:[%s235 + $0x18] sm:$0xf]
        %v282 = vld [vmem:[%s235 + $0x1c] sm:$0xf]
        %v283 = vld [vmem:[%s235 + $0x20] sm:$0xf]
        %v284 = vld [vmem:[%s235 + $0x24] sm:$0xf]
        %v285 = vld [vmem:[%s235 + $0x28] sm:$0xf]
        %v286 = vld [vmem:[%s235 + $0x2c] sm:$0xf]
        %v287 = vld [vmem:[%s235 + $0x30] sm:$0xf]
        %v288 = vld [vmem:[%s235 + $0x34] sm:$0xf]
        %v289 = vld [vmem:[%s235 + $0x38] sm:$0xf]
        %v290 = vld [vmem:[%s235 + $0x3c] sm:$0xf]
        %v291 = vunpack.c.l.bf16 %v275
        %v292 = vunpack.c.l.bf16 %v276
        %v293 = vunpack.c.l.bf16 %v277
        %v294 = vunpack.c.l.bf16 %v278
        %v295 = vunpack.c.l.bf16 %v279
        %v296 = vunpack.c.l.bf16 %v280
        %v297 = vunpack.c.l.bf16 %v281
        %v298 = vunpack.c.l.bf16 %v282
        %v299 = vunpack.c.l.bf16 %v283
        %v300 = vunpack.c.l.bf16 %v284
        %v301 = vunpack.c.l.bf16 %v285
        %v302 = vunpack.c.l.bf16 %v286
        %v303 = vunpack.c.l.bf16 %v287
        %v304 = vunpack.c.l.bf16 %v288
        %v305 = vunpack.c.l.bf16 %v289
        %v306 = vunpack.c.l.bf16 %v290
        %v307 = vld [vmem:[#allocation6] sm:$0x1]
        %v309 = vlaneseq
        %v310 = vshrl.u32 %v309, 7
        %v311 = vsub.s32 0, %v310
        %v312 = vrot.slane %v307, %v311
        %v314 = vmul.f32 %v291, %v312
        %v315 = vmul.f32 %v292, %v312
        %v316 = vmul.f32 %v293, %v312
        %v317 = vmul.f32 %v294, %v312
        %v318 = vmul.f32 %v295, %v312
        %v319 = vmul.f32 %v296, %v312
        %v320 = vmul.f32 %v297, %v312
        %v321 = vmul.f32 %v298, %v312
        %v322 = vmul.f32 %v299, %v312
        %v323 = vmul.f32 %v300, %v312
        %v324 = vmul.f32 %v301, %v312
        %v325 = vmul.f32 %v302, %v312
        %v326 = vmul.f32 %v303, %v312
        %v327 = vmul.f32 %v304, %v312
        %v328 = vmul.f32 %v305, %v312
        %v329 = vmul.f32 %v306, %v312
        %v330 = vld [vmem:[#allocation8] sm:$0x1]
        %v332 = vlaneseq
        %v333 = vshrl.u32 %v332, 7
        %v334 = vsub.s32 0, %v333
        %v335 = vrot.slane %v330, %v334
        %v337 = vadd.f32 %v314, %v335
        %v338 = vadd.f32 %v315, %v335
        %v339 = vadd.f32 %v316, %v335
        %v340 = vadd.f32 %v317, %v335
        %v341 = vadd.f32 %v318, %v335
        %v342 = vadd.f32 %v319, %v335
        %v343 = vadd.f32 %v320, %v335
        %v344 = vadd.f32 %v321, %v335
        %v345 = vadd.f32 %v322, %v335
        %v346 = vadd.f32 %v323, %v335
        %v347 = vadd.f32 %v324, %v335
        %v348 = vadd.f32 %v325, %v335
        %v349 = vadd.f32 %v326, %v335
        %v350 = vadd.f32 %v327, %v335
        %v351 = vadd.f32 %v328, %v335
        %v352 = vadd.f32 %v329, %v335
        %v353 = vmax.f32 %v337, 0.0
        %v354 = vmax.f32 %v338, 0.0
        %v355 = vmax.f32 %v339, 0.0
        %v356 = vmax.f32 %v340, 0.0
        %v357 = vmax.f32 %v341, 0.0
        %v358 = vmax.f32 %v342, 0.0
        %v359 = vmax.f32 %v343, 0.0
        %v360 = vmax.f32 %v344, 0.0
        %v361 = vmax.f32 %v345, 0.0
        %v362 = vmax.f32 %v346, 0.0
        %v363 = vmax.f32 %v347, 0.0
        %v364 = vmax.f32 %v348, 0.0
        %v365 = vmax.f32 %v349, 0.0
        %v366 = vmax.f32 %v350, 0.0
        %v367 = vmax.f32 %v351, 0.0
        %v368 = vmax.f32 %v352, 0.0
        %369 = vst [vmem:[%s265] sm:$0xff] %v353
        %370 = vst [vmem:[%s265 + $0x8] sm:$0xff] %v354
        %371 = vst [vmem:[%s265 + $0x10] sm:$0xff] %v355
        %372 = vst [vmem:[%s265 + $0x18] sm:$0xff] %v356
        %373 = vst [vmem:[%s265 + $0x20] sm:$0xff] %v357
        %374 = vst [vmem:[%s265 + $0x28] sm:$0xff] %v358
        %375 = vst [vmem:[%s265 + $0x30] sm:$0xff] %v359
        %376 = vst [vmem:[%s265 + $0x38] sm:$0xff] %v360
        %377 = vst [vmem:[%s265 + $0x40] sm:$0xff] %v361
        %378 = vst [vmem:[%s265 + $0x48] sm:$0xff] %v362
        %379 = vst [vmem:[%s265 + $0x50] sm:$0xff] %v363
        %380 = vst [vmem:[%s265 + $0x58] sm:$0xff] %v364
        %381 = vst [vmem:[%s265 + $0x60] sm:$0xff] %v365
        %382 = vst [vmem:[%s265 + $0x68] sm:$0xff] %v366
        %383 = vst [vmem:[%s265 + $0x70] sm:$0xff] %v367
        %384 = vst [vmem:[%s265 + $0x78] sm:$0xff] %v368
        %v385 = vmax.f32 %v353, %v361
        %v386 = vmax.f32 %v354, %v362
        %v387 = vmax.f32 %v355, %v363
        %v388 = vmax.f32 %v356, %v364
        %v389 = vmax.f32 %v357, %v365
        %v390 = vmax.f32 %v358, %v366
        %v391 = vmax.f32 %v359, %v367
        %v392 = vmax.f32 %v360, %v368
        %v393 = vmax.f32 %v385, %v386
        %v394 = vmax.f32 %v387, %v388
        %v395 = vmax.f32 %v389, %v390
        %v396 = vmax.f32 %v391, %v392
        %397 = vst [vmem:[#allocation2] sm:$0xff] %v393
        %398 = vst [vmem:[#allocation2 + $0x8] sm:$0xff] %v394
        %399 = vst [vmem:[#allocation2 + $0x10] sm:$0xff] %v395
        %400 = vst [vmem:[#allocation2 + $0x18] sm:$0xff] %v396
        %v401 = vld [vmem:[#allocation2] ss:$2 sm:$0xf]
        %s402 = scalar_lea.vmem [#allocation2], 8
        %v403 = vld [vmem:[%s402] ss:$2 sm:$0xf]
        %s404 = scalar_lea.vmem [#allocation2], 16
        %v405 = vld [vmem:[%s404] ss:$2 sm:$0xf]
        %s406 = scalar_lea.vmem [#allocation2], 24
        %v407 = vld [vmem:[%s406] ss:$2 sm:$0xf]
        %s408 = scalar_lea.vmem [#allocation2], 1
        %v409 = vld [vmem:[%s408] ss:$2 sm:$0xf]
        %s410 = scalar_lea.vmem [#allocation2], 9
        %v411 = vld [vmem:[%s410] ss:$2 sm:$0xf]
        %s412 = scalar_lea.vmem [#allocation2], 17
        %v413 = vld [vmem:[%s412] ss:$2 sm:$0xf]
        %s414 = scalar_lea.vmem [#allocation2], 25
        %v415 = vld [vmem:[%s414] ss:$2 sm:$0xf]
        %v416 = vmax.f32 %v401, %v409
        %v417 = vmax.f32 %v403, %v411
        %v418 = vmax.f32 %v405, %v413
        %v419 = vmax.f32 %v407, %v415
        %420 = vst [vmem:[%s272] sm:$0xf] %v416
        %421 = vst [vmem:[%s272 + $0x4] sm:$0xf] %v417
        %422 = vst [vmem:[%s272 + $0x8] sm:$0xf] %v418
        %423 = vst [vmem:[%s272 + $0xc] sm:$0xf] %v419
        %s424 = sand.u32 %s118, 1
        %s425 = scalar_lea.sflag [#allocation5], %s424
        %s426 = sand.u32 %s118, 1
        %s427 = smul.addr %s426, 128
        %s428 = scalar_lea.vmem [#allocation9], %s427
        %s429 = sand.u32 %s146, 1
        %s430 = scalar_lea.sflag [#allocation11], %s429
        %s431 = sand.u32 %s146, 1
        %s432 = smul.addr %s431, 16
        %s433 = scalar_lea.vmem [#allocation10], %s432
        // Predicated region
        $region45: #{conv3d_block_forward.7} parent=31 // pred_check
          %p434 = pneg %p128
        $region46: #{conv3d_block_forward.7} parent=31 // pred_check_branch
          %436 = sbr.rel (%p434) target = $region48
        $region47: #{conv3d_block_forward.7} parent=31 // pred_region
          %s437 = smul.u32 2, %s31
          %s439 = ssub.s32 2048, 2048
          %440 = vsyncadd %s425, %s439
          %s441 = smul.addr %s437, 8
          %s442 = smul.addr %s30, 64
          %s443 = sadd.s32 %s441, %s442
          %s444 = smul.addr %s443, 128
          %s445 = scalar_lea.hbm %s3, %s444
          %s446 = sshll.u32 %s428, 4
          %s447 = int_to_ptr.vmem [resolvable:$true] %s446
          %452 = dma.vmem_to_hbm [thread:$0]  %s447, 2048, %s445, %s425, 128, 128, 8
        $region48: #{conv3d_block_forward.7} parent=31 // pred_fallthru
          _
        // Predicated region
        $region49: #{conv3d_block_forward.7} parent=31 // pred_check
          %p453 = pneg %p156
        $region50: #{conv3d_block_forward.7} parent=31 // pred_check_branch
          %455 = sbr.rel (%p453) target = $region52
        $region51: #{conv3d_block_forward.7} parent=31 // pred_region
          %s457 = ssub.s32 256, 256
          %458 = vsyncadd %s430, %s457
          %s459 = smul.addr %s31, 4
          %s460 = smul.addr %s30, 16
          %s461 = sadd.s32 %s459, %s460
          %s462 = smul.addr %s461, 64
          %s463 = scalar_lea.hbm %s4, %s462
          %s464 = sshll.u32 %s433, 4
          %s465 = int_to_ptr.vmem [resolvable:$true] %s464
          %470 = dma.vmem_to_hbm [thread:$0]  %s465, 256, %s463, %s430, 64, 64, 4
        $region52: #{conv3d_block_forward.7} parent=31 // pred_fallthru
          _
      $region32: #{conv3d_block_forward.7} parent=5 // pred_fallthru
        _
      %p471 = scmp.le.s32.totalorder 2, %s21
      // Predicated region
      $region53: #{conv3d_block_forward.7} parent=5 // pred_check
        %p472 = pneg %p471
      $region54: #{conv3d_block_forward.7} parent=5 // pred_check_branch
        %474 = sbr.rel (%p472) target = $region56
      $region55: #{conv3d_block_forward.7} parent=5 // pred_region
        %s475 = ssub.s32 %s21, 2
        // Predicated region
        $region57: #{conv3d_block_forward.7} parent=55 // pred_check
          %p476 = pneg %p134
        $region58: #{conv3d_block_forward.7} parent=55 // pred_check_branch
          %478 = sbr.rel (%p476) target = $region60
        $region59: #{conv3d_block_forward.7} parent=55 // pred_region
          %s479 = sand.u32 %s119, 1
          %s480 = scalar_lea.sflag [#allocation5], %s479
          %s481 = sand.u32 %s119, 1
          %s482 = smul.addr %s481, 128
          %s483 = scalar_lea.vmem [#allocation9], %s482
          %484 = dma.done %s480, 2048
        $region60: #{conv3d_block_forward.7} parent=55 // pred_fallthru
          _
        // Predicated region
        $region61: #{conv3d_block_forward.7} parent=55 // pred_check
          %p485 = pneg %p162
        $region62: #{conv3d_block_forward.7} parent=55 // pred_check_branch
          %487 = sbr.rel (%p485) target = $region64
        $region63: #{conv3d_block_forward.7} parent=55 // pred_region
          %s488 = sand.u32 %s147, 1
          %s489 = scalar_lea.sflag [#allocation11], %s488
          %s490 = sand.u32 %s147, 1
          %s491 = smul.addr %s490, 16
          %s492 = scalar_lea.vmem [#allocation10], %s491
          %493 = dma.done %s489, 256
        $region64: #{conv3d_block_forward.7} parent=55 // pred_fallthru
          _
      $region56: #{conv3d_block_forward.7} parent=5 // pred_fallthru
        _
    $region6: #{conv3d_block_forward.7} parent=1 // loop_footer
      %s25 = sadd.s32 1, %s21
    $region7: #{conv3d_block_forward.7} parent=1 // loop_footer_branch
      %20 = sbr.rel target = $region3
    $region8: #{conv3d_block_forward.7} parent=1 // loop_exit
      _
    %494 = vsyncpa [#allocation4], 1
    %s495 = scalar_lea.sflag [#allocation4], 1
    %496 = vsyncpa %s495, 1
    %497 = vsyncpa [#allocation7], 1
    %498 = vsyncpa [#allocation5], 1
    %s499 = scalar_lea.sflag [#allocation5], 1
    %500 = vsyncpa %s499, 1
    %501 = vsyncpa [#allocation11], 1
    %s502 = scalar_lea.sflag [#allocation11], 1
    %503 = vsyncpa %s502, 1

// kernel: conv3d_block_forward.6
$region0: #{conv3d_block_forward.6}
  #allocation0 [shape = 'u32[]', space=smem, size = 0x4, offset = 0x4, fixed_abs, tag = 'smem constant byte address 0x4 - core index']
  #allocation1 [shape = 'u32[144,128]{1,0:T(1,128)}', space=vmem, size = 0x12000, scoped, tag = 'internal scratch']
  %s0 = inlined_call_operand.hbm [shape: bf16[2,10,10,10,128], index: 0, kind: input, shape index: {}, may-alias: {0,1}]
  %s1 = inlined_call_operand.hbm [shape: bf16[2,10,10,10,128], index: 1, kind: input, shape index: {}, may-alias: {0,1}]
  %s2 = inlined_call_operand.hbm [shape: bf16[3,1152,128], index: 2, kind: input, shape index: {}]
  %s3 = inlined_call_operand.hbm [shape: bf16[2,8,8,8,128], index: 3, kind: output, shape index: {0}]
  %s4 = inlined_call_operand.hbm [shape: f32[2,4,2,128], index: 4, kind: output, shape index: {1}]
  %5 = xla_tuple %s3, %s4
  %s6 = sld [smem:[#allocation0]]
  $region65: #{conv3d_block_forward.6} parent=0
    _
  %s8 = ssub.s32 1, %s6
  %s9 = scalar_select 0, %s8, %s6
  $region1: #{conv3d_block_forward.6} parent=0
    #allocation2 [shape = 'u8[163840]{0}', space=vmem, size = 0x28000, scoped, tag = 'input window, operand 0']
    #allocation3 [shape = 's32[2]{0}', space=sflag, size = 0x8, scoped, tag = 'scoped memory for conv3d_block_forward.6']
    #allocation4 [shape = 's32[2]{0}', space=sflag, size = 0x8, scoped, tag = 'scoped memory for conv3d_block_forward.6']
    #allocation5 [shape = 'u8[163840]{0}', space=vmem, size = 0x28000, scoped, tag = 'input window, operand 1']
    #allocation6 [shape = 's32[2]{0}', space=sflag, size = 0x8, scoped, tag = 'scoped memory for conv3d_block_forward.6']
    #allocation7 [shape = 'u8[884736]{0}', space=vmem, size = 0xd8000, scoped, tag = 'input window, operand 2, single buffered']
    #allocation8 [shape = 'u8[65536]{0}', space=vmem, size = 0x10000, scoped, tag = 'output window, operand 0']
    #allocation9 [shape = 'u8[2048]{0}', space=vmem, size = 0x800, scoped, tag = 'output window, operand 1']
    #allocation10 [shape = 's32[2]{0}', space=sflag, size = 0x8, scoped, tag = 'scoped memory for conv3d_block_forward.6']
    %10 = vsyncpa [#allocation3], 0
    %s11 = scalar_lea.sflag [#allocation3], 1
    %12 = vsyncpa %s11, 0
    %13 = vsyncpa [#allocation6], 0
    %s14 = scalar_lea.sflag [#allocation6], 1
    %15 = vsyncpa %s14, 0
    %16 = vsyncpa [#allocation4], 0
    %s17 = scalar_lea.sflag [#allocation4], 1
    %18 = vsyncpa %s17, 0
    %19 = vsyncpa [#allocation10], 0
    %s20 = scalar_lea.sflag [#allocation10], 1
    %21 = vsyncpa %s20, 0
    loop: start=0, step=1, limit=10
    $region2: #{conv3d_block_forward.6} parent=1 // loop_pre_header
      _
    $region3: #{conv3d_block_forward.6} parent=1 // loop_header
      %s23 = sphi 0, %s27
      %p24 = scmp.ge.s32.totalorder %s23, 10
      %s30 = sphi 0, %s42
      %s31 = sphi 0, %s38
      %s32 = sphi 0, %s30
      %s33 = sphi 0, %s31
      %s34 = sphi 0, %s32
      %s35 = sphi 0, %s33
      %s47 = sphi 0, %s49
      %s50 = sphi 0, %s47
      %s51 = sphi 0, %s50
      %s67 = sphi 0, %s51
      %s77 = sphi 0, %s79
      %s80 = sphi 0, %s77
      %s81 = sphi 0, %s80
      %s97 = sphi 0, %s81
      %s101 = sphi 0, %s101
      %s103 = sphi 0, %s101
      %s104 = sphi 0, %s103
      %s118 = sphi 0, %s104
      %s126 = sphi 0, %s128
      %s129 = sphi 0, %s126
      %s130 = sphi 0, %s129
      %s146 = sphi 0, %s130
      %s154 = sphi 0, %s156
      %s157 = sphi 0, %s154
      %s158 = sphi 0, %s157
      %s174 = sphi 0, %s158
    $region4: #{conv3d_block_forward.6} parent=1 // loop_header_branch
      %26 = sbr.rel (%p24) target = $region8
    $region5: #{conv3d_block_forward.6} parent=1 // loop_body
      %s28 = ssub.s32 %s23, 1
      %s29 = ssub.s32 %s23, 2
      %s36 = sadd.s32 1, %s31
      %p37 = scmp.ge.s32.totalorder %s36, 4
      %s38 = scalar_select %p37, 0, %s36
      %s39 = sadd.s32 1, %s30
      %s40 = scalar_select %p37, %s39, %s30
      %p41 = scmp.ge.s32.totalorder %s40, 2
      %s42 = scalar_select %p41, 0, %s40
      %s43 = ssub.s32 %s30, %s42
      %s44 = ssub.s32 %s31, %s38
      %s45 = sor.u32 %s43, %s44
      %p46 = scmp.eq.s32.totalorder %s45, 0
      %s48 = sadd.s32 %s47, 1
      %s49 = scalar_select %p46, %s47, %s48
      %p52 = pneg %p46
      %p53 = scmp.eq.s32.totalorder %s23, 7
      %p54 = por %p52, %p53
      %p55 = scmp.ne.s32.totalorder %s47, %s50
      %p56 = scmp.eq.s32.totalorder %s23, 0
      %p57 = por %p55, %p56
      %p58 = scmp.ne.s32.totalorder %s47, %s50
      %p59 = scmp.eq.s32.totalorder %s28, 7
      %p60 = por %p58, %p59
      %p61 = scmp.ne.s32.totalorder %s50, %s51
      %p62 = scmp.eq.s32.totalorder %s28, 0
      %p63 = por %p61, %p62
      %p64 = scmp.ne.s32.totalorder %s50, %s51
      %p65 = scmp.eq.s32.totalorder %s29, 7
      %p66 = por %p64, %p65
      %p68 = scmp.ne.s32.totalorder %s51, %s67
      %p69 = scmp.eq.s32.totalorder %s29, 0
      %p70 = por %p68, %p69
      %s71 = sadd.s32 %s31, 1
      %s72 = sadd.s32 %s38, 1
      %s73 = ssub.s32 %s30, %s42
      %s74 = ssub.s32 %s71, %s72
      %s75 = sor.u32 %s73, %s74
      %p76 = scmp.eq.s32.totalorder %s75, 0
      %s78 = sadd.s32 %s77, 1
      %s79 = scalar_select %p76, %s77, %s78
      %p82 = pneg %p76
      %p83 = scmp.eq.s32.totalorder %s23, 7
      %p84 = por %p82, %p83
      %p85 = scmp.ne.s32.totalorder %s77, %s80
      %p86 = scmp.eq.s32.totalorder %s23, 0
      %p87 = por %p85, %p86
      %p88 = scmp.ne.s32.totalorder %s77, %s80
      %p89 = scmp.eq.s32.totalorder %s28, 7
      %p90 = por %p88, %p89
      %p91 = scmp.ne.s32.totalorder %s80, %s81
      %p92 = scmp.eq.s32.totalorder %s28, 0
      %p93 = por %p91, %p92
      %p94 = scmp.ne.s32.totalorder %s80, %s81
      %p95 = scmp.eq.s32.totalorder %s29, 7
      %p96 = por %p94, %p95
      %p98 = scmp.ne.s32.totalorder %s81, %s97
      %p99 = scmp.eq.s32.totalorder %s29, 0
      %p100 = por %p98, %p99
      %s102 = sadd.s32 %s101, 1
      %p105 = scmp.eq.s32.totalorder %s23, 7
      %p106 = scmp.ne.s32.totalorder %s101, %s103
      %p107 = scmp.eq.s32.totalorder %s23, 0
      %p108 = por %p106, %p107
      %p109 = scmp.ne.s32.totalorder %s101, %s103
      %p110 = scmp.eq.s32.totalorder %s28, 7
      %p111 = por %p109, %p110
      %p112 = scmp.ne.s32.totalorder %s103, %s104
      %p113 = scmp.eq.s32.totalorder %s28, 0
      %p114 = por %p112, %p113
      %p115 = scmp.ne.s32.totalorder %s103, %s104
      %p116 = scmp.eq.s32.totalorder %s29, 7
      %p117 = por %p115, %p116
      %p119 = scmp.ne.s32.totalorder %s104, %s118
      %p120 = scmp.eq.s32.totalorder %s29, 0
      %p121 = por %p119, %p120
      %s122 = ssub.s32 %s30, %s42
      %s123 = ssub.s32 %s31, %s38
      %s124 = sor.u32 %s122, %s123
      %p125 = scmp.eq.s32.totalorder %s124, 0
      %s127 = sadd.s32 %s126, 1
      %s128 = scalar_select %p125, %s126, %s127
      %p131 = pneg %p125
      %p132 = scmp.eq.s32.totalorder %s23, 7
      %p133 = por %p131, %p132
      %p134 = scmp.ne.s32.totalorder %s126, %s129
      %p135 = scmp.eq.s32.totalorder %s23, 0
      %p136 = por %p134, %p135
      %p137 = scmp.ne.s32.totalorder %s126, %s129
      %p138 = scmp.eq.s32.totalorder %s28, 7
      %p139 = por %p137, %p138
      %p140 = scmp.ne.s32.totalorder %s129, %s130
      %p141 = scmp.eq.s32.totalorder %s28, 0
      %p142 = por %p140, %p141
      %p143 = scmp.ne.s32.totalorder %s129, %s130
      %p144 = scmp.eq.s32.totalorder %s29, 7
      %p145 = por %p143, %p144
      %p147 = scmp.ne.s32.totalorder %s130, %s146
      %p148 = scmp.eq.s32.totalorder %s29, 0
      %p149 = por %p147, %p148
      %s150 = ssub.s32 %s30, %s42
      %s151 = ssub.s32 %s31, %s38
      %s152 = sor.u32 %s150, %s151
      %p153 = scmp.eq.s32.totalorder %s152, 0
      %s155 = sadd.s32 %s154, 1
      %s156 = scalar_select %p153, %s154, %s155
      %p159 = pneg %p153
      %p160 = scmp.eq.s32.totalorder %s23, 7
      %p161 = por %p159, %p160
      %p162 = scmp.ne.s32.totalorder %s154, %s157
      %p163 = scmp.eq.s32.totalorder %s23, 0
      %p164 = por %p162, %p163
      %p165 = scmp.ne.s32.totalorder %s154, %s157
      %p166 = scmp.eq.s32.totalorder %s28, 7
      %p167 = por %p165, %p166
      %p168 = scmp.ne.s32.totalorder %s157, %s158
      %p169 = scmp.eq.s32.totalorder %s28, 0
      %p170 = por %p168, %p169
      %p171 = scmp.ne.s32.totalorder %s157, %s158
      %p172 = scmp.eq.s32.totalorder %s29, 7
      %p173 = por %p171, %p172
      %p175 = scmp.ne.s32.totalorder %s158, %s174
      %p176 = scmp.eq.s32.totalorder %s29, 0
      %p177 = por %p175, %p176
      %p178 = scmp.le.s32.totalorder 1, %s23
      %p179 = scmp.lt.s32.totalorder %s23, 9
      %p180 = pnand %p178, %p179
      %p181 = pneg %p180
      // Predicated region
      $region9: #{conv3d_block_forward.6} parent=5 // pred_check
        _
      $region10: #{conv3d_block_forward.6} parent=5 // pred_check_branch
        %183 = sbr.rel (%p180) target = $region12
      $region11: #{conv3d_block_forward.6} parent=5 // pred_region
        %s184 = ssub.s32 %s23, 1
        // Predicated region
        $region13: #{conv3d_block_forward.6} parent=11 // pred_check
          %p185 = pneg %p114
        $region14: #{conv3d_block_forward.6} parent=11 // pred_check_branch
          %187 = sbr.rel (%p185) target = $region16
        $region15: #{conv3d_block_forward.6} parent=11 // pred_region
          %s189 = ssub.s32 27648, 27648
          %190 = vsyncadd [#allocation6], %s189
          %s191 = sshll.u32 [#allocation7], 4
          %s192 = int_to_ptr.vmem [resolvable:$true] %s191
          %197 = dma.hbm_to_vmem [thread:$0]  %s2, 27648, %s192, [#allocation6], 64, 64, 4
        $region16: #{conv3d_block_forward.6} parent=11 // pred_fallthru
          _
      $region12: #{conv3d_block_forward.6} parent=5 // pred_fallthru
        _
      %p198 = scmp.lt.s32.totalorder %s23, 8
      // Predicated region
      $region17: #{conv3d_block_forward.6} parent=5 // pred_check
        %p199 = pneg %p198
      $region18: #{conv3d_block_forward.6} parent=5 // pred_check_branch
        %201 = sbr.rel (%p199) target = $region20
      $region19: #{conv3d_block_forward.6} parent=5 // pred_region
        // Predicated region
        $region21: #{conv3d_block_forward.6} parent=19 // pred_check
          %p202 = pneg %p57
        $region22: #{conv3d_block_forward.6} parent=19 // pred_check_branch
          %204 = sbr.rel (%p202) target = $region24
        $region23: #{conv3d_block_forward.6} parent=19 // pred_region
          %s205 = sand.u32 %s47, 1
          %s206 = scalar_lea.sflag [#allocation3], %s205
          %s207 = sand.u32 %s47, 1
          %s208 = smul.addr %s207, 160
          %s209 = scalar_lea.vmem [#allocation2], %s208
          %s210 = smul.u32 2, %s31
          %s212 = ssub.s32 2560, 2560
          %213 = vsyncadd %s206, %s212
          %s214 = smul.addr %s210, 20
          %s215 = smul.addr %s30, 200
          %s216 = sadd.s32 %s214, %s215
          %s217 = smul.addr %s216, 64
          %s218 = scalar_lea.hbm %s0, %s217
          %s219 = sshll.u32 %s209, 4
          %s220 = int_to_ptr.vmem [resolvable:$true] %s219
          %225 = dma.hbm_to_vmem [thread:$0]  %s218, 2560, %s220, %s206, 64, 64, 4
        $region24: #{conv3d_block_forward.6} parent=19 // pred_fallthru
          _
        // Predicated region
        $region25: #{conv3d_block_forward.6} parent=19 // pred_check
          %p226 = pneg %p87
        $region26: #{conv3d_block_forward.6} parent=19 // pred_check_branch
          %228 = sbr.rel (%p226) target = $region28
        $region27: #{conv3d_block_forward.6} parent=19 // pred_region
          %s229 = sand.u32 %s23, 1
          %s230 = scalar_lea.sflag [#allocation6], %s229
          %s231 = sand.u32 %s77, 1
          %s232 = smul.addr %s231, 160
          %s233 = scalar_lea.vmem [#allocation5], %s232
          %s234 = sadd.s32 %s31, 1
          %s235 = smul.u32 2, %s234
          %s237 = ssub.s32 2560, 2560
          %238 = vsyncadd %s230, %s237
          %s239 = smul.addr %s235, 20
          %s240 = smul.addr %s30, 200
          %s241 = sadd.s32 %s239, %s240
          %s242 = smul.addr %s241, 64
          %s243 = scalar_lea.hbm %s1, %s242
          %s244 = sshll.u32 %s233, 4
          %s245 = int_to_ptr.vmem [resolvable:$true] %s244
          %250 = dma.hbm_to_vmem [thread:$0]  %s243, 2560, %s245, %s230, 64, 64, 4
        $region28: #{conv3d_block_forward.6} parent=19 // pred_fallthru
          _
      $region20: #{conv3d_block_forward.6} parent=5 // pred_fallthru
        _
      %p251 = scmp.le.s32.totalorder 1, %s23
      %p252 = scmp.lt.s32.totalorder %s23, 9
      %p253 = pnand %p251, %p252
      %p254 = pneg %p253
      // Predicated region
      $region29: #{conv3d_block_forward.6} parent=5 // pred_check
        _
      $region30: #{conv3d_block_forward.6} parent=5 // pred_check_branch
        %256 = sbr.rel (%p253) target = $region32
      $region31: #{conv3d_block_forward.6} parent=5 // pred_region
        %s257 = ssub.s32 %s23, 1
        %s258 = sand.u32 %s50, 1
        %s259 = scalar_lea.sflag [#allocation3], %s258
        %s260 = sand.u32 %s50, 1
        %s261 = smul.addr %s260, 160
        %s262 = scalar_lea.vmem [#allocation2], %s261
        // Predicated region
        $region33: #{conv3d_block_forward.6} parent=31 // pred_check
          %p263 = pneg %p63
        $region34: #{conv3d_block_forward.6} parent=31 // pred_check_branch
          %265 = sbr.rel (%p263) target = $region36
        $region35: #{conv3d_block_forward.6} parent=31 // pred_region
          %266 = dma.done %s259, 2560
        $region36: #{conv3d_block_forward.6} parent=31 // pred_fallthru
          _
        %s267 = sand.u32 %s28, 1
        %s268 = scalar_lea.sflag [#allocation6], %s267
        %s269 = sand.u32 %s80, 1
        %s270 = smul.addr %s269, 160
        %s271 = scalar_lea.vmem [#allocation5], %s270
        // Predicated region
        $region37: #{conv3d_block_forward.6} parent=31 // pred_check
          %p272 = pneg %p93
        $region38: #{conv3d_block_forward.6} parent=31 // pred_check_branch
          %274 = sbr.rel (%p272) target = $region40
        $region39: #{conv3d_block_forward.6} parent=31 // pred_region
          %275 = dma.done %s268, 2560
        $region40: #{conv3d_block_forward.6} parent=31 // pred_fallthru
          _
        // Predicated region
        $region41: #{conv3d_block_forward.6} parent=31 // pred_check
          %p276 = pneg %p114
        $region42: #{conv3d_block_forward.6} parent=31 // pred_check_branch
          %278 = sbr.rel (%p276) target = $region44
        $region43: #{conv3d_block_forward.6} parent=31 // pred_region
          %279 = dma.done [#allocation6], 27648
        $region44: #{conv3d_block_forward.6} parent=31 // pred_fallthru
          _
        %s280 = sand.u32 %s50, 1
        %s281 = scalar_lea.sflag [#allocation3], %s280
        %s282 = sand.u32 %s50, 1
        %s283 = smul.addr %s282, 160
        %s284 = scalar_lea.vmem [#allocation2], %s283
        %p285 = pneg %p63
        %p286 = pneg %p60
        %s287 = sand.u32 %s28, 1
        %s288 = scalar_lea.sflag [#allocation6], %s287
        %s289 = sand.u32 %s80, 1
        %s290 = smul.addr %s289, 160
        %s291 = scalar_lea.vmem [#allocation5], %s290
        %p292 = pneg %p93
        %p293 = pneg %p90
        %p294 = pneg %p114
        %p295 = pneg %p111
        %p296 = pneg %p142
        %p297 = pneg %p139
        %s298 = sand.u32 %s129, 1
        %s299 = scalar_lea.sflag [#allocation4], %s298
        %s300 = sand.u32 %s129, 1
        %s301 = smul.addr %s300, 64
        %s302 = scalar_lea.vmem [#allocation8], %s301
        %p303 = pneg %p170
        %p304 = pneg %p167
        %s305 = sand.u32 %s157, 1
        %s306 = scalar_lea.sflag [#allocation10], %s305
        %s307 = sand.u32 %s157, 1
        %s308 = smul.addr %s307, 2
        %s309 = scalar_lea.vmem [#allocation9], %s308
        %s310 = smul.u32 2, %s33
        %s311 = sadd.s32 %s33, 1
        %s312 = smul.u32 2, %s311
        %s313 = smul.u32 2, %s33
        %v315 = vld [vmem:[%s262] sm:$0xf]
        %v316 = vld [vmem:[%s262 + $0x4] sm:$0x1]
        %v317 = vld [vmem:[%s262 + $0x8] sm:$0xf]
        %v318 = vld [vmem:[%s262 + $0xc] sm:$0x1]
        %v319 = vld [vmem:[%s262 + $0x10] sm:$0xf]
        %v320 = vld [vmem:[%s262 + $0x14] sm:$0x1]
        %v321 = vld [vmem:[%s262 + $0x18] sm:$0xf]
        %v322 = vld [vmem:[%s262 + $0x1c] sm:$0x1]
        %v323 = vld [vmem:[%s262 + $0x20] sm:$0xf]
        %v324 = vld [vmem:[%s262 + $0x24] sm:$0x1]
        %v325 = vld [vmem:[%s262 + $0x28] sm:$0xf]
        %v326 = vld [vmem:[%s262 + $0x2c] sm:$0x1]
        %v327 = vld [vmem:[%s262 + $0x30] sm:$0xf]
        %v328 = vld [vmem:[%s262 + $0x34] sm:$0x1]
        %v329 = vld [vmem:[%s262 + $0x38] sm:$0xf]
        %v330 = vld [vmem:[%s262 + $0x3c] sm:$0x1]
        %v331 = vld [vmem:[%s262 + $0x40] sm:$0xf]
        %v332 = vld [vmem:[%s262 + $0x44] sm:$0x1]
        %v333 = vld [vmem:[%s262 + $0x48] sm:$0xf]
        %v334 = vld [vmem:[%s262 + $0x4c] sm:$0x1]
        %s335 = scalar_lea.vmem %s262, 80 [#allocation2]
        %v336 = vld [vmem:[%s335] sm:$0xf]
        %v337 = vld [vmem:[%s335 + $0x4] sm:$0x1]
        %v338 = vld [vmem:[%s335 + $0x8] sm:$0xf]
        %v339 = vld [vmem:[%s335 + $0xc] sm:$0x1]
        %v340 = vld [vmem:[%s335 + $0x10] sm:$0xf]
        %v341 = vld [vmem:[%s335 + $0x14] sm:$0x1]
        %v342 = vld [vmem:[%s335 + $0x18] sm:$0xf]
        %v343 = vld [vmem:[%s335 + $0x1c] sm:$0x1]
        %v344 = vld [vmem:[%s335 + $0x20] sm:$0xf]
        %v345 = vld [vmem:[%s335 + $0x24] sm:$0x1]
        %v346 = vld [vmem:[%s335 + $0x28] sm:$0xf]
        %v347 = vld [vmem:[%s335 + $0x2c] sm:$0x1]
        %v348 = vld [vmem:[%s335 + $0x30] sm:$0xf]
        %v349 = vld [vmem:[%s335 + $0x34] sm:$0x1]
        %v350 = vld [vmem:[%s335 + $0x38] sm:$0xf]
        %v351 = vld [vmem:[%s335 + $0x3c] sm:$0x1]
        %v352 = vld [vmem:[%s335 + $0x40] sm:$0xf]
        %v353 = vld [vmem:[%s335 + $0x44] sm:$0x1]
        %v354 = vld [vmem:[%s335 + $0x48] sm:$0xf]
        %v355 = vld [vmem:[%s335 + $0x4c] sm:$0x1]
        %v356 = vld [vmem:[%s271] sm:$0xf]
        %v357 = vld [vmem:[%s271 + $0x4] sm:$0x1]
        %v358 = vld [vmem:[%s271 + $0x8] sm:$0xf]
        %v359 = vld [vmem:[%s271 + $0xc] sm:$0x1]
        %v360 = vld [vmem:[%s271 + $0x10] sm:$0xf]
        %v361 = vld [vmem:[%s271 + $0x14] sm:$0x1]
        %v362 = vld [vmem:[%s271 + $0x18] sm:$0xf]
        %v363 = vld [vmem:[%s271 + $0x1c] sm:$0x1]
        %v364 = vld [vmem:[%s271 + $0x20] sm:$0xf]
        %v365 = vld [vmem:[%s271 + $0x24] sm:$0x1]
        %v366 = vld [vmem:[%s271 + $0x28] sm:$0xf]
        %v367 = vld [vmem:[%s271 + $0x2c] sm:$0x1]
        %v368 = vld [vmem:[%s271 + $0x30] sm:$0xf]
        %v369 = vld [vmem:[%s271 + $0x34] sm:$0x1]
        %v370 = vld [vmem:[%s271 + $0x38] sm:$0xf]
        %v371 = vld [vmem:[%s271 + $0x3c] sm:$0x1]
        %v372 = vld [vmem:[%s271 + $0x40] sm:$0xf]
        %v373 = vld [vmem:[%s271 + $0x44] sm:$0x1]
        %v374 = vld [vmem:[%s271 + $0x48] sm:$0xf]
        %v375 = vld [vmem:[%s271 + $0x4c] sm:$0x1]
        %s376 = scalar_lea.vmem %s271, 80 [#allocation5]
        %v377 = vld [vmem:[%s376] sm:$0xf]
        %v378 = vld [vmem:[%s376 + $0x4] sm:$0x1]
        %v379 = vld [vmem:[%s376 + $0x8] sm:$0xf]
        %v380 = vld [vmem:[%s376 + $0xc] sm:$0x1]
        %v381 = vld [vmem:[%s376 + $0x10] sm:$0xf]
        %v382 = vld [vmem:[%s376 + $0x14] sm:$0x1]
        %v383 = vld [vmem:[%s376 + $0x18] sm:$0xf]
        %v384 = vld [vmem:[%s376 + $0x1c] sm:$0x1]
        %v385 = vld [vmem:[%s376 + $0x20] sm:$0xf]
        %v386 = vld [vmem:[%s376 + $0x24] sm:$0x1]
        %v387 = vld [vmem:[%s376 + $0x28] sm:$0xf]
        %v388 = vld [vmem:[%s376 + $0x2c] sm:$0x1]
        %v389 = vld [vmem:[%s376 + $0x30] sm:$0xf]
        %v390 = vld [vmem:[%s376 + $0x34] sm:$0x1]
        %v391 = vld [vmem:[%s376 + $0x38] sm:$0xf]
        %v392 = vld [vmem:[%s376 + $0x3c] sm:$0x1]
        %v393 = vld [vmem:[%s376 + $0x40] sm:$0xf]
        %v394 = vld [vmem:[%s376 + $0x44] sm:$0x1]
        %v395 = vld [vmem:[%s376 + $0x48] sm:$0xf]
        %v396 = vld [vmem:[%s376 + $0x4c] sm:$0x1]
        %v397 = vunpack.c.l.bf16 %v315
        %v398 = vunpack.c.l.bf16 %v316
        %v399 = vunpack.c.l.bf16 %v317
        %v400 = vunpack.c.l.bf16 %v318
        %v401 = vunpack.c.l.bf16 %v319
        %v402 = vunpack.c.l.bf16 %v320
        %v403 = vunpack.c.l.bf16 %v321
        %v404 = vunpack.c.l.bf16 %v322
        %v405 = vunpack.c.l.bf16 %v323
        %v406 = vunpack.c.l.bf16 %v324
        %v407 = vunpack.c.l.bf16 %v325
        %v408 = vunpack.c.l.bf16 %v326
        %v409 = vunpack.c.l.bf16 %v327
        %v410 = vunpack.c.l.bf16 %v328
        %v411 = vunpack.c.l.bf16 %v329
        %v412 = vunpack.c.l.bf16 %v330
        %v413 = vunpack.c.l.bf16 %v331
        %v414 = vunpack.c.l.bf16 %v332
        %v415 = vunpack.c.l.bf16 %v333
        %v416 = vunpack.c.l.bf16 %v334
        %vm433 = vcmask 1046528
        %v434 = vrot.slane %v397, 1
        %v435 = vrot.slane %v398, 1
        %v436 = vsel %vm433, %v434, %v435
        %v437 = vrot.slane %v399, 1
        %v438 = vrot.slane %v400, 1
        %v439 = vsel %vm433, %v437, %v438
        %v440 = vrot.slane %v401, 1
        %v441 = vrot.slane %v402, 1
        %v442 = vsel %vm433, %v440, %v441
        %v443 = vrot.slane %v403, 1
        %v444 = vrot.slane %v404, 1
        %v445 = vsel %vm433, %v443, %v444
        %v446 = vrot.slane %v405, 1
        %v447 = vrot.slane %v406, 1
        %v448 = vsel %vm433, %v446, %v447
        %v449 = vrot.slane %v407, 1
        %v450 = vrot.slane %v408, 1
        %v451 = vsel %vm433, %v449, %v450
        %v452 = vrot.slane %v409, 1
        %v453 = vrot.slane %v410, 1
        %v454 = vsel %vm433, %v452, %v453
        %v455 = vrot.slane %v411, 1
        %v456 = vrot.slane %v412, 1
        %v457 = vsel %vm433, %v455, %v456
        %vm466 = vcmask 1045504
        %v467 = vrot.slane %v397, 2
        %v468 = vrot.slane %v398, 2
        %v469 = vsel %vm466, %v467, %v468
        %v470 = vrot.slane %v399, 2
        %v471 = vrot.slane %v400, 2
        %v472 = vsel %vm466, %v470, %v471
        %v473 = vrot.slane %v401, 2
        %v474 = vrot.slane %v402, 2
        %v475 = vsel %vm466, %v473, %v474
        %v476 = vrot.slane %v403, 2
        %v477 = vrot.slane %v404, 2
        %v478 = vsel %vm466, %v476, %v477
        %v479 = vrot.slane %v405, 2
        %v480 = vrot.slane %v406, 2
        %v481 = vsel %vm466, %v479, %v480
        %v482 = vrot.slane %v407, 2
        %v483 = vrot.slane %v408, 2
        %v484 = vsel %vm466, %v482, %v483
        %v485 = vrot.slane %v409, 2
        %v486 = vrot.slane %v410, 2
        %v487 = vsel %vm466, %v485, %v486
        %v488 = vrot.slane %v411, 2
        %v489 = vrot.slane %v412, 2
        %v490 = vsel %vm466, %v488, %v489
        %v501 = vrot.slane %v413, 1
        %v502 = vrot.slane %v414, 1
        %v503 = vsel %vm433, %v501, %v502
        %v505 = vrot.slane %v413, 2
        %v506 = vrot.slane %v414, 2
        %v507 = vsel %vm466, %v505, %v506
        %v511 = vrot.slane %v415, 1
        %v512 = vrot.slane %v416, 1
        %v513 = vsel %vm433, %v511, %v512
        %v515 = vrot.slane %v415, 2
        %v516 = vrot.slane %v416, 2
        %v517 = vsel %vm466, %v515, %v516
        %v519 = vpack.c.bf16 %v399, %v397
        %v520 = vpack.c.bf16 %v439, %v436
        %v521 = vpack.c.bf16 %v472, %v469
        %v522 = vpack.c.bf16 %v401, %v399
        %v523 = vpack.c.bf16 %v442, %v439
        %v524 = vpack.c.bf16 %v475, %v472
        %v525 = vpack.c.bf16 %v403, %v401
        %v526 = vpack.c.bf16 %v445, %v442
        %v527 = vpack.c.bf16 %v478, %v475
        %v528 = vpack.c.bf16 %v405, %v403
        %v529 = vpack.c.bf16 %v448, %v445
        %v530 = vpack.c.bf16 %v481, %v478
        %v531 = vpack.c.bf16 %v407, %v405
        %v532 = vpack.c.bf16 %v451, %v448
        %v533 = vpack.c.bf16 %v484, %v481
        %v534 = vpack.c.bf16 %v409, %v407
        %v535 = vpack.c.bf16 %v454, %v451
        %v536 = vpack.c.bf16 %v487, %v484
        %v537 = vpack.c.bf16 %v411, %v409
        %v538 = vpack.c.bf16 %v457, %v454
        %v539 = vpack.c.bf16 %v490, %v487
        %v540 = vpack.c.bf16 %v413, %v411
        %v541 = vpack.c.bf16 %v503, %v457
        %v542 = vpack.c.bf16 %v507, %v490
        %v543 = vpack.c.bf16 %v415, %v413
        %v544 = vpack.c.bf16 %v513, %v503
        %v545 = vpack.c.bf16 %v517, %v507
        %v546 = vunpack.c.l.bf16 %v336
        %v547 = vunpack.c.l.bf16 %v337
        %v548 = vunpack.c.l.bf16 %v338
        %v549 = vunpack.c.l.bf16 %v339
        %v550 = vunpack.c.l.bf16 %v340
        %v551 = vunpack.c.l.bf16 %v341
        %v552 = vunpack.c.l.bf16 %v342
        %v553 = vunpack.c.l.bf16 %v343
        %v554 = vunpack.c.l.bf16 %v344
        %v555 = vunpack.c.l.bf16 %v345
        %v556 = vunpack.c.l.bf16 %v346
        %v557 = vunpack.c.l.bf16 %v347
        %v558 = vunpack.c.l.bf16 %v348
        %v559 = vunpack.c.l.bf16 %v349
        %v560 = vunpack.c.l.bf16 %v350
        %v561 = vunpack.c.l.bf16 %v351
        %v562 = vunpack.c.l.bf16 %v352
        %v563 = vunpack.c.l.bf16 %v353
        %v564 = vunpack.c.l.bf16 %v354
        %v565 = vunpack.c.l.bf16 %v355
        %v582 = vrot.slane %v546, 1
        %v583 = vrot.slane %v547, 1
        %v584 = vsel %vm433, %v582, %v583
        %v585 = vrot.slane %v548, 1
        %v586 = vrot.slane %v549, 1
        %v587 = vsel %vm433, %v585, %v586
        %v588 = vrot.slane %v550, 1
        %v589 = vrot.slane %v551, 1
        %v590 = vsel %vm433, %v588, %v589
        %v591 = vrot.slane %v552, 1
        %v592 = vrot.slane %v553, 1
        %v593 = vsel %vm433, %v591, %v592
        %v594 = vrot.slane %v554, 1
        %v595 = vrot.slane %v555, 1
        %v596 = vsel %vm433, %v594, %v595
        %v597 = vrot.slane %v556, 1
        %v598 = vrot.slane %v557, 1
        %v599 = vsel %vm433, %v597, %v598
        %v600 = vrot.slane %v558, 1
        %v601 = vrot.slane %v559, 1
        %v602 = vsel %vm433, %v600, %v601
        %v603 = vrot.slane %v560, 1
        %v604 = vrot.slane %v561, 1
        %v605 = vsel %vm433, %v603, %v604
        %v614 = vrot.slane %v546, 2
        %v615 = vrot.slane %v547, 2
        %v616 = vsel %vm466, %v614, %v615
        %v617 = vrot.slane %v548, 2
        %v618 = vrot.slane %v549, 2
        %v619 = vsel %vm466, %v617, %v618
        %v620 = vrot.slane %v550, 2
        %v621 = vrot.slane %v551, 2
        %v622 = vsel %vm466, %v620, %v621
        %v623 = vrot.slane %v552, 2
        %v624 = vrot.slane %v553, 2
        %v625 = vsel %vm466, %v623, %v624
        %v626 = vrot.slane %v554, 2
        %v627 = vrot.slane %v555, 2
        %v628 = vsel %vm466, %v626, %v627
        %v629 = vrot.slane %v556, 2
        %v630 = vrot.slane %v557, 2
        %v631 = vsel %vm466, %v629, %v630
        %v632 = vrot.slane %v558, 2
        %v633 = vrot.slane %v559, 2
        %v634 = vsel %vm466, %v632, %v633
        %v635 = vrot.slane %v560, 2
        %v636 = vrot.slane %v561, 2
        %v637 = vsel %vm466, %v635, %v636
        %v648 = vrot.slane %v562, 1
        %v649 = vrot.slane %v563, 1
        %v650 = vsel %vm433, %v648, %v649
        %v652 = vrot.slane %v562, 2
        %v653 = vrot.slane %v563, 2
        %v654 = vsel %vm466, %v652, %v653
        %v658 = vrot.slane %v564, 1
        %v659 = vrot.slane %v565, 1
        %v660 = vsel %vm433, %v658, %v659
        %v662 = vrot.slane %v564, 2
        %v663 = vrot.slane %v565, 2
        %v664 = vsel %vm466, %v662, %v663
        %v666 = vpack.c.bf16 %v548, %v546
        %v667 = vpack.c.bf16 %v587, %v584
        %v668 = vpack.c.bf16 %v619, %v616
        %v669 = vpack.c.bf16 %v550, %v548
        %v670 = vpack.c.bf16 %v590, %v587
        %v671 = vpack.c.bf16 %v622, %v619
        %v672 = vpack.c.bf16 %v552, %v550
        %v673 = vpack.c.bf16 %v593, %v590
        %v674 = vpack.c.bf16 %v625, %v622
        %v675 = vpack.c.bf16 %v554, %v552
        %v676 = vpack.c.bf16 %v596, %v593
        %v677 = vpack.c.bf16 %v628, %v625
        %v678 = vpack.c.bf16 %v556, %v554
        %v679 = vpack.c.bf16 %v599, %v596
        %v680 = vpack.c.bf16 %v631, %v628
        %v681 = vpack.c.bf16 %v558, %v556
        %v682 = vpack.c.bf16 %v602, %v599
        %v683 = vpack.c.bf16 %v634, %v631
        %v684 = vpack.c.bf16 %v560, %v558
        %v685 = vpack.c.bf16 %v605, %v602
        %v686 = vpack.c.bf16 %v637, %v634
        %v687 = vpack.c.bf16 %v562, %v560
        %v688 = vpack.c.bf16 %v650, %v605
        %v689 = vpack.c.bf16 %v654, %v637
        %v690 = vpack.c.bf16 %v564, %v562
        %v691 = vpack.c.bf16 %v660, %v650
        %v692 = vpack.c.bf16 %v664, %v654
        %v693 = vunpack.c.l.bf16 %v356
        %v694 = vunpack.c.l.bf16 %v357
        %v695 = vunpack.c.l.bf16 %v358
        %v696 = vunpack.c.l.bf16 %v359
        %v697 = vunpack.c.l.bf16 %v360
        %v698 = vunpack.c.l.bf16 %v361
        %v699 = vunpack.c.l.bf16 %v362
        %v700 = vunpack.c.l.bf16 %v363
        %v701 = vunpack.c.l.bf16 %v364
        %v702 = vunpack.c.l.bf16 %v365
        %v703 = vunpack.c.l.bf16 %v366
        %v704 = vunpack.c.l.bf16 %v367
        %v705 = vunpack.c.l.bf16 %v368
        %v706 = vunpack.c.l.bf16 %v369
        %v707 = vunpack.c.l.bf16 %v370
        %v708 = vunpack.c.l.bf16 %v371
        %v709 = vunpack.c.l.bf16 %v372
        %v710 = vunpack.c.l.bf16 %v373
        %v711 = vunpack.c.l.bf16 %v374
        %v712 = vunpack.c.l.bf16 %v375
        %v729 = vrot.slane %v693, 1
        %v730 = vrot.slane %v694, 1
        %v731 = vsel %vm433, %v729, %v730
        %v732 = vrot.slane %v695, 1
        %v733 = vrot.slane %v696, 1
        %v734 = vsel %vm433, %v732, %v733
        %v735 = vrot.slane %v697, 1
        %v736 = vrot.slane %v698, 1
        %v737 = vsel %vm433, %v735, %v736
        %v738 = vrot.slane %v699, 1
        %v739 = vrot.slane %v700, 1
        %v740 = vsel %vm433, %v738, %v739
        %v741 = vrot.slane %v701, 1
        %v742 = vrot.slane %v702, 1
        %v743 = vsel %vm433, %v741, %v742
        %v744 = vrot.slane %v703, 1
        %v745 = vrot.slane %v704, 1
        %v746 = vsel %vm433, %v744, %v745
        %v747 = vrot.slane %v705, 1
        %v748 = vrot.slane %v706, 1
        %v749 = vsel %vm433, %v747, %v748
        %v750 = vrot.slane %v707, 1
        %v751 = vrot.slane %v708, 1
        %v752 = vsel %vm433, %v750, %v751
        %v761 = vrot.slane %v693, 2
        %v762 = vrot.slane %v694, 2
        %v763 = vsel %vm466, %v761, %v762
        %v764 = vrot.slane %v695, 2
        %v765 = vrot.slane %v696, 2
        %v766 = vsel %vm466, %v764, %v765
        %v767 = vrot.slane %v697, 2
        %v768 = vrot.slane %v698, 2
        %v769 = vsel %vm466, %v767, %v768
        %v770 = vrot.slane %v699, 2
        %v771 = vrot.slane %v700, 2
        %v772 = vsel %vm466, %v770, %v771
        %v773 = vrot.slane %v701, 2
        %v774 = vrot.slane %v702, 2
        %v775 = vsel %vm466, %v773, %v774
        %v776 = vrot.slane %v703, 2
        %v777 = vrot.slane %v704, 2
        %v778 = vsel %vm466, %v776, %v777
        %v779 = vrot.slane %v705, 2
        %v780 = vrot.slane %v706, 2
        %v781 = vsel %vm466, %v779, %v780
        %v782 = vrot.slane %v707, 2
        %v783 = vrot.slane %v708, 2
        %v784 = vsel %vm466, %v782, %v783
        %v795 = vrot.slane %v709, 1
        %v796 = vrot.slane %v710, 1
        %v797 = vsel %vm433, %v795, %v796
        %v799 = vrot.slane %v709, 2
        %v800 = vrot.slane %v710, 2
        %v801 = vsel %vm466, %v799, %v800
        %v805 = vrot.slane %v711, 1
        %v806 = vrot.slane %v712, 1
        %v807 = vsel %vm433, %v805, %v806
        %v809 = vrot.slane %v711, 2
        %v810 = vrot.slane %v712, 2
        %v811 = vsel %vm466, %v809, %v810
        %v813 = vpack.c.bf16 %v695, %v693
        %v814 = vpack.c.bf16 %v734, %v731
        %v815 = vpack.c.bf16 %v766, %v763
        %v816 = vpack.c.bf16 %v697, %v695
        %v817 = vpack.c.bf16 %v737, %v734
        %v818 = vpack.c.bf16 %v769, %v766
        %v819 = vpack.c.bf16 %v699, %v697
        %v820 = vpack.c.bf16 %v740, %v737
        %v821 = vpack.c.bf16 %v772, %v769
        %v822 = vpack.c.bf16 %v701, %v699
        %v823 = vpack.c.bf16 %v743, %v740
        %v824 = vpack.c.bf16 %v775, %v772
        %v825 = vpack.c.bf16 %v703, %v701
        %v826 = vpack.c.bf16 %v746, %v743
        %v827 = vpack.c.bf16 %v778, %v775
        %v828 = vpack.c.bf16 %v705, %v703
        %v829 = vpack.c.bf16 %v749, %v746
        %v830 = vpack.c.bf16 %v781, %v778
        %v831 = vpack.c.bf16 %v707, %v705
        %v832 = vpack.c.bf16 %v752, %v749
        %v833 = vpack.c.bf16 %v784, %v781
        %v834 = vpack.c.bf16 %v709, %v707
        %v835 = vpack.c.bf16 %v797, %v752
        %v836 = vpack.c.bf16 %v801, %v784
        %v837 = vpack.c.bf16 %v711, %v709
        %v838 = vpack.c.bf16 %v807, %v797
        %v839 = vpack.c.bf16 %v811, %v801
        %v840 = vunpack.c.l.bf16 %v377
        %v841 = vunpack.c.l.bf16 %v378
        %v842 = vunpack.c.l.bf16 %v379
        %v843 = vunpack.c.l.bf16 %v380
        %v844 = vunpack.c.l.bf16 %v381
        %v845 = vunpack.c.l.bf16 %v382
        %v846 = vunpack.c.l.bf16 %v383
        %v847 = vunpack.c.l.bf16 %v384
        %v848 = vunpack.c.l.bf16 %v385
        %v849 = vunpack.c.l.bf16 %v386
        %v850 = vunpack.c.l.bf16 %v387
        %v851 = vunpack.c.l.bf16 %v388
        %v852 = vunpack.c.l.bf16 %v389
        %v853 = vunpack.c.l.bf16 %v390
        %v854 = vunpack.c.l.bf16 %v391
        %v855 = vunpack.c.l.bf16 %v392
        %v856 = vunpack.c.l.bf16 %v393
        %v857 = vunpack.c.l.bf16 %v394
        %v858 = vunpack.c.l.bf16 %v395
        %v859 = vunpack.c.l.bf16 %v396
        %v876 = vrot.slane %v840, 1
        %v877 = vrot.slane %v841, 1
        %v878 = vsel %vm433, %v876, %v877
        %v879 = vrot.slane %v842, 1
        %v880 = vrot.slane %v843, 1
        %v881 = vsel %vm433, %v879, %v880
        %v882 = vrot.slane %v844, 1
        %v883 = vrot.slane %v845, 1
        %v884 = vsel %vm433, %v882, %v883
        %v885 = vrot.slane %v846, 1
        %v886 = vrot.slane %v847, 1
        %v887 = vsel %vm433, %v885, %v886
        %v888 = vrot.slane %v848, 1
        %v889 = vrot.slane %v849, 1
        %v890 = vsel %vm433, %v888, %v889
        %v891 = vrot.slane %v850, 1
        %v892 = vrot.slane %v851, 1
        %v893 = vsel %vm433, %v891, %v892
        %v894 = vrot.slane %v852, 1
        %v895 = vrot.slane %v853, 1
        %v896 = vsel %vm433, %v894, %v895
        %v897 = vrot.slane %v854, 1
        %v898 = vrot.slane %v855, 1
        %v899 = vsel %vm433, %v897, %v898
        %v908 = vrot.slane %v840, 2
        %v909 = vrot.slane %v841, 2
        %v910 = vsel %vm466, %v908, %v909
        %v911 = vrot.slane %v842, 2
        %v912 = vrot.slane %v843, 2
        %v913 = vsel %vm466, %v911, %v912
        %v914 = vrot.slane %v844, 2
        %v915 = vrot.slane %v845, 2
        %v916 = vsel %vm466, %v914, %v915
        %v917 = vrot.slane %v846, 2
        %v918 = vrot.slane %v847, 2
        %v919 = vsel %vm466, %v917, %v918
        %v920 = vrot.slane %v848, 2
        %v921 = vrot.slane %v849, 2
        %v922 = vsel %vm466, %v920, %v921
        %v923 = vrot.slane %v850, 2
        %v924 = vrot.slane %v851, 2
        %v925 = vsel %vm466, %v923, %v924
        %v926 = vrot.slane %v852, 2
        %v927 = vrot.slane %v853, 2
        %v928 = vsel %vm466, %v926, %v927
        %v929 = vrot.slane %v854, 2
        %v930 = vrot.slane %v855, 2
        %v931 = vsel %vm466, %v929, %v930
        %v942 = vrot.slane %v856, 1
        %v943 = vrot.slane %v857, 1
        %v944 = vsel %vm433, %v942, %v943
        %v946 = vrot.slane %v856, 2
        %v947 = vrot.slane %v857, 2
        %v948 = vsel %vm466, %v946, %v947
        %v952 = vrot.slane %v858, 1
        %v953 = vrot.slane %v859, 1
        %v954 = vsel %vm433, %v952, %v953
        %v956 = vrot.slane %v858, 2
        %v957 = vrot.slane %v859, 2
        %v958 = vsel %vm466, %v956, %v957
        %v960 = vpack.c.bf16 %v842, %v840
        %v961 = vpack.c.bf16 %v881, %v878
        %v962 = vpack.c.bf16 %v913, %v910
        %v963 = vpack.c.bf16 %v844, %v842
        %v964 = vpack.c.bf16 %v884, %v881
        %v965 = vpack.c.bf16 %v916, %v913
        %v966 = vpack.c.bf16 %v846, %v844
        %v967 = vpack.c.bf16 %v887, %v884
        %v968 = vpack.c.bf16 %v919, %v916
        %v969 = vpack.c.bf16 %v848, %v846
        %v970 = vpack.c.bf16 %v890, %v887
        %v971 = vpack.c.bf16 %v922, %v919
        %v972 = vpack.c.bf16 %v850, %v848
        %v973 = vpack.c.bf16 %v893, %v890
        %v974 = vpack.c.bf16 %v925, %v922
        %v975 = vpack.c.bf16 %v852, %v850
        %v976 = vpack.c.bf16 %v896, %v893
        %v977 = vpack.c.bf16 %v928, %v925
        %v978 = vpack.c.bf16 %v854, %v852
        %v979 = vpack.c.bf16 %v899, %v896
        %v980 = vpack.c.bf16 %v931, %v928
        %v981 = vpack.c.bf16 %v856, %v854
        %v982 = vpack.c.bf16 %v944, %v899
        %v983 = vpack.c.bf16 %v948, %v931
        %v984 = vpack.c.bf16 %v858, %v856
        %v985 = vpack.c.bf16 %v954, %v944
        %v986 = vpack.c.bf16 %v958, %v948
        %v987 = vld [vmem:[#allocation7] sm:$0xf]
        %v988 = vld [vmem:[#allocation7 + $0x4] sm:$0xf]
        %v989 = vld [vmem:[#allocation7 + $0x8] sm:$0xf]
        %v990 = vld [vmem:[#allocation7 + $0xc] sm:$0xf]
        %v991 = vld [vmem:[#allocation7 + $0x10] sm:$0xf]
        %v992 = vld [vmem:[#allocation7 + $0x14] sm:$0xf]
        %v993 = vld [vmem:[#allocation7 + $0x18] sm:$0xf]
        %v994 = vld [vmem:[#allocation7 + $0x1c] sm:$0xf]
        %v995 = vld [vmem:[#allocation7 + $0x20] sm:$0xf]
        %v996 = vld [vmem:[#allocation7 + $0x24] sm:$0xf]
        %v997 = vld [vmem:[#allocation7 + $0x28] sm:$0xf]
        %v998 = vld [vmem:[#allocation7 + $0x2c] sm:$0xf]
        %v999 = vld [vmem:[#allocation7 + $0x30] sm:$0xf]
        %v1000 = vld [vmem:[#allocation7 + $0x34] sm:$0xf]
        %v1001 = vld [vmem:[#allocation7 + $0x38] sm:$0xf]
        %v1002 = vld [vmem:[#allocation7 + $0x3c] sm:$0xf]
        %v1003 = vld [vmem:[#allocation7 + $0x40] sm:$0xf]
        %v1004 = vld [vmem:[#allocation7 + $0x44] sm:$0xf]
        %v1005 = vld [vmem:[#allocation7 + $0x48] sm:$0xf]
        %v1006 = vld [vmem:[#allocation7 + $0x4c] sm:$0xf]
        %v1007 = vld [vmem:[#allocation7 + $0x50] sm:$0xf]
        %v1008 = vld [vmem:[#allocation7 + $0x54] sm:$0xf]
        %v1009 = vld [vmem:[#allocation7 + $0x58] sm:$0xf]
        %v1010 = vld [vmem:[#allocation7 + $0x5c] sm:$0xf]
        %v1011 = vld [vmem:[#allocation7 + $0x60] sm:$0xf]
        %v1012 = vld [vmem:[#allocation7 + $0x64] sm:$0xf]
        %v1013 = vld [vmem:[#allocation7 + $0x68] sm:$0xf]
        %v1014 = vld [vmem:[#allocation7 + $0x6c] sm:$0xf]
        %v1015 = vld [vmem:[#allocation7 + $0x70] sm:$0xf]
        %v1016 = vld [vmem:[#allocation7 + $0x74] sm:$0xf]
        %v1017 = vld [vmem:[#allocation7 + $0x78] sm:$0xf]
        %v1018 = vld [vmem:[#allocation7 + $0x7c] sm:$0xf]
        %v1019 = vld [vmem:[#allocation7 + $0x80] sm:$0xf]
        %v1020 = vld [vmem:[#allocation7 + $0x84] sm:$0xf]
        %v1021 = vld [vmem:[#allocation7 + $0x88] sm:$0xf]
        %v1022 = vld [vmem:[#allocation7 + $0x8c] sm:$0xf]
        %v1023 = vld [vmem:[#allocation7 + $0x90] sm:$0xf]
        %v1024 = vld [vmem:[#allocation7 + $0x94] sm:$0xf]
        %v1025 = vld [vmem:[#allocation7 + $0x98] sm:$0xf]
        %v1026 = vld [vmem:[#allocation7 + $0x9c] sm:$0xf]
        %v1027 = vld [vmem:[#allocation7 + $0xa0] sm:$0xf]
        %v1028 = vld [vmem:[#allocation7 + $0xa4] sm:$0xf]
        %v1029 = vld [vmem:[#allocation7 + $0xa8] sm:$0xf]
        %v1030 = vld [vmem:[#allocation7 + $0xac] sm:$0xf]
        %v1031 = vld [vmem:[#allocation7 + $0xb0] sm:$0xf]
        %v1032 = vld [vmem:[#allocation7 + $0xb4] sm:$0xf]
        %v1033 = vld [vmem:[#allocation7 + $0xb8] sm:$0xf]
        %v1034 = vld [vmem:[#allocation7 + $0xbc] sm:$0xf]
        %v1035 = vld [vmem:[#allocation7 + $0xc0] sm:$0xf]
        %v1036 = vld [vmem:[#allocation7 + $0xc4] sm:$0xf]
        %v1037 = vld [vmem:[#allocation7 + $0xc8] sm:$0xf]
        %v1038 = vld [vmem:[#allocation7 + $0xcc] sm:$0xf]
        %v1039 = vld [vmem:[#allocation7 + $0xd0] sm:$0xf]
        %v1040 = vld [vmem:[#allocation7 + $0xd4] sm:$0xf]
        %v1041 = vld [vmem:[#allocation7 + $0xd8] sm:$0xf]
        %v1042 = vld [vmem:[#allocation7 + $0xdc] sm:$0xf]
        %v1043 = vld [vmem:[#allocation7 + $0xe0] sm:$0xf]
        %v1044 = vld [vmem:[#allocation7 + $0xe4] sm:$0xf]
        %v1045 = vld [vmem:[#allocation7 + $0xe8] sm:$0xf]
        %v1046 = vld [vmem:[#allocation7 + $0xec] sm:$0xf]
        %v1047 = vld [vmem:[#allocation7 + $0xf0] sm:$0xf]
        %v1048 = vld [vmem:[#allocation7 + $0xf4] sm:$0xf]
        %v1049 = vld [vmem:[#allocation7 + $0xf8] sm:$0xf]
        %v1050 = vld [vmem:[#allocation7 + $0xfc] sm:$0xf]
        %v1051 = vld [vmem:[#allocation7 + $0x100] sm:$0xf]
        %v1052 = vld [vmem:[#allocation7 + $0x104] sm:$0xf]
        %v1053 = vld [vmem:[#allocation7 + $0x108] sm:$0xf]
        %v1054 = vld [vmem:[#allocation7 + $0x10c] sm:$0xf]
        %v1055 = vld [vmem:[#allocation7 + $0x110] sm:$0xf]
        %v1056 = vld [vmem:[#allocation7 + $0x114] sm:$0xf]
        %v1057 = vld [vmem:[#allocation7 + $0x118] sm:$0xf]
        %v1058 = vld [vmem:[#allocation7 + $0x11c] sm:$0xf]
        %v1059 = vld [vmem:[#allocation7 + $0x120] sm:$0xf]
        %v1060 = vld [vmem:[#allocation7 + $0x124] sm:$0xf]
        %v1061 = vld [vmem:[#allocation7 + $0x128] sm:$0xf]
        %v1062 = vld [vmem:[#allocation7 + $0x12c] sm:$0xf]
        %v1063 = vld [vmem:[#allocation7 + $0x130] sm:$0xf]
        %v1064 = vld [vmem:[#allocation7 + $0x134] sm:$0xf]
        %v1065 = vld [vmem:[#allocation7 + $0x138] sm:$0xf]
        %v1066 = vld [vmem:[#allocation7 + $0x13c] sm:$0xf]
        %v1067 = vld [vmem:[#allocation7 + $0x140] sm:$0xf]
        %v1068 = vld [vmem:[#allocation7 + $0x144] sm:$0xf]
        %v1069 = vld [vmem:[#allocation7 + $0x148] sm:$0xf]
        %v1070 = vld [vmem:[#allocation7 + $0x14c] sm:$0xf]
        %v1071 = vld [vmem:[#allocation7 + $0x150] sm:$0xf]
        %v1072 = vld [vmem:[#allocation7 + $0x154] sm:$0xf]
        %v1073 = vld [vmem:[#allocation7 + $0x158] sm:$0xf]
        %v1074 = vld [vmem:[#allocation7 + $0x15c] sm:$0xf]
        %v1075 = vld [vmem:[#allocation7 + $0x160] sm:$0xf]
        %v1076 = vld [vmem:[#allocation7 + $0x164] sm:$0xf]
        %v1077 = vld [vmem:[#allocation7 + $0x168] sm:$0xf]
        %v1078 = vld [vmem:[#allocation7 + $0x16c] sm:$0xf]
        %v1079 = vld [vmem:[#allocation7 + $0x170] sm:$0xf]
        %v1080 = vld [vmem:[#allocation7 + $0x174] sm:$0xf]
        %v1081 = vld [vmem:[#allocation7 + $0x178] sm:$0xf]
        %v1082 = vld [vmem:[#allocation7 + $0x17c] sm:$0xf]
        %v1083 = vld [vmem:[#allocation7 + $0x180] sm:$0xf]
        %v1084 = vld [vmem:[#allocation7 + $0x184] sm:$0xf]
        %v1085 = vld [vmem:[#allocation7 + $0x188] sm:$0xf]
        %v1086 = vld [vmem:[#allocation7 + $0x18c] sm:$0xf]
        %v1087 = vld [vmem:[#allocation7 + $0x190] sm:$0xf]
        %v1088 = vld [vmem:[#allocation7 + $0x194] sm:$0xf]
        %v1089 = vld [vmem:[#allocation7 + $0x198] sm:$0xf]
        %v1090 = vld [vmem:[#allocation7 + $0x19c] sm:$0xf]
        %v1091 = vld [vmem:[#allocation7 + $0x1a0] sm:$0xf]
        %v1092 = vld [vmem:[#allocation7 + $0x1a4] sm:$0xf]
        %v1093 = vld [vmem:[#allocation7 + $0x1a8] sm:$0xf]
        %v1094 = vld [vmem:[#allocation7 + $0x1ac] sm:$0xf]
        %v1095 = vld [vmem:[#allocation7 + $0x1b0] sm:$0xf]
        %v1096 = vld [vmem:[#allocation7 + $0x1b4] sm:$0xf]
        %v1097 = vld [vmem:[#allocation7 + $0x1b8] sm:$0xf]
        %v1098 = vld [vmem:[#allocation7 + $0x1bc] sm:$0xf]
        %v1099 = vld [vmem:[#allocation7 + $0x1c0] sm:$0xf]
        %v1100 = vld [vmem:[#allocation7 + $0x1c4] sm:$0xf]
        %v1101 = vld [vmem:[#allocation7 + $0x1c8] sm:$0xf]
        %v1102 = vld [vmem:[#allocation7 + $0x1cc] sm:$0xf]
        %v1103 = vld [vmem:[#allocation7 + $0x1d0] sm:$0xf]
        %v1104 = vld [vmem:[#allocation7 + $0x1d4] sm:$0xf]
        %v1105 = vld [vmem:[#allocation7 + $0x1d8] sm:$0xf]
        %v1106 = vld [vmem:[#allocation7 + $0x1dc] sm:$0xf]
        %v1107 = vld [vmem:[#allocation7 + $0x1e0] sm:$0xf]
        %v1108 = vld [vmem:[#allocation7 + $0x1e4] sm:$0xf]
        %v1109 = vld [vmem:[#allocation7 + $0x1e8] sm:$0xf]
        %v1110 = vld [vmem:[#allocation7 + $0x1ec] sm:$0xf]
        %v1111 = vld [vmem:[#allocation7 + $0x1f0] sm:$0xf]
        %v1112 = vld [vmem:[#allocation7 + $0x1f4] sm:$0xf]
        %v1113 = vld [vmem:[#allocation7 + $0x1f8] sm:$0xf]
        %v1114 = vld [vmem:[#allocation7 + $0x1fc] sm:$0xf]
        %v1115 = vld [vmem:[#allocation7 + $0x200] sm:$0xf]
        %v1116 = vld [vmem:[#allocation7 + $0x204] sm:$0xf]
        %v1117 = vld [vmem:[#allocation7 + $0x208] sm:$0xf]
        %v1118 = vld [vmem:[#allocation7 + $0x20c] sm:$0xf]
        %v1119 = vld [vmem:[#allocation7 + $0x210] sm:$0xf]
        %v1120 = vld [vmem:[#allocation7 + $0x214] sm:$0xf]
        %v1121 = vld [vmem:[#allocation7 + $0x218] sm:$0xf]
        %v1122 = vld [vmem:[#allocation7 + $0x21c] sm:$0xf]
        %v1123 = vld [vmem:[#allocation7 + $0x220] sm:$0xf]
        %v1124 = vld [vmem:[#allocation7 + $0x224] sm:$0xf]
        %v1125 = vld [vmem:[#allocation7 + $0x228] sm:$0xf]
        %v1126 = vld [vmem:[#allocation7 + $0x22c] sm:$0xf]
        %v1127 = vld [vmem:[#allocation7 + $0x230] sm:$0xf]
        %v1128 = vld [vmem:[#allocation7 + $0x234] sm:$0xf]
        %v1129 = vld [vmem:[#allocation7 + $0x238] sm:$0xf]
        %v1130 = vld [vmem:[#allocation7 + $0x23c] sm:$0xf]
        %s1131 = scalar_lea.vmem [#allocation7], 576
        %v1132 = vld [vmem:[%s1131] sm:$0xf]
        %v1133 = vld [vmem:[%s1131 + $0x4] sm:$0xf]
        %v1134 = vld [vmem:[%s1131 + $0x8] sm:$0xf]
        %v1135 = vld [vmem:[%s1131 + $0xc] sm:$0xf]
        %v1136 = vld [vmem:[%s1131 + $0x10] sm:$0xf]
        %v1137 = vld [vmem:[%s1131 + $0x14] sm:$0xf]
        %v1138 = vld [vmem:[%s1131 + $0x18] sm:$0xf]
        %v1139 = vld [vmem:[%s1131 + $0x1c] sm:$0xf]
        %v1140 = vld [vmem:[%s1131 + $0x20] sm:$0xf]
        %v1141 = vld [vmem:[%s1131 + $0x24] sm:$0xf]
        %v1142 = vld [vmem:[%s1131 + $0x28] sm:$0xf]
        %v1143 = vld [vmem:[%s1131 + $0x2c] sm:$0xf]
        %v1144 = vld [vmem:[%s1131 + $0x30] sm:$0xf]
        %v1145 = vld [vmem:[%s1131 + $0x34] sm:$0xf]
        %v1146 = vld [vmem:[%s1131 + $0x38] sm:$0xf]
        %v1147 = vld [vmem:[%s1131 + $0x3c] sm:$0xf]
        %v1148 = vld [vmem:[%s1131 + $0x40] sm:$0xf]
        %v1149 = vld [vmem:[%s1131 + $0x44] sm:$0xf]
        %v1150 = vld [vmem:[%s1131 + $0x48] sm:$0xf]
        %v1151 = vld [vmem:[%s1131 + $0x4c] sm:$0xf]
        %v1152 = vld [vmem:[%s1131 + $0x50] sm:$0xf]
        %v1153 = vld [vmem:[%s1131 + $0x54] sm:$0xf]
        %v1154 = vld [vmem:[%s1131 + $0x58] sm:$0xf]
        %v1155 = vld [vmem:[%s1131 + $0x5c] sm:$0xf]
        %v1156 = vld [vmem:[%s1131 + $0x60] sm:$0xf]
        %v1157 = vld [vmem:[%s1131 + $0x64] sm:$0xf]
        %v1158 = vld [vmem:[%s1131 + $0x68] sm:$0xf]
        %v1159 = vld [vmem:[%s1131 + $0x6c] sm:$0xf]
        %v1160 = vld [vmem:[%s1131 + $0x70] sm:$0xf]
        %v1161 = vld [vmem:[%s1131 + $0x74] sm:$0xf]
        %v1162 = vld [vmem:[%s1131 + $0x78] sm:$0xf]
        %v1163 = vld [vmem:[%s1131 + $0x7c] sm:$0xf]
        %v1164 = vld [vmem:[%s1131 + $0x80] sm:$0xf]
        %v1165 = vld [vmem:[%s1131 + $0x84] sm:$0xf]
        %v1166 = vld [vmem:[%s1131 + $0x88] sm:$0xf]
        %v1167 = vld [vmem:[%s1131 + $0x8c] sm:$0xf]
        %v1168 = vld [vmem:[%s1131 + $0x90] sm:$0xf]
        %v1169 = vld [vmem:[%s1131 + $0x94] sm:$0xf]
        %v1170 = vld [vmem:[%s1131 + $0x98] sm:$0xf]
        %v1171 = vld [vmem:[%s1131 + $0x9c] sm:$0xf]
        %v1172 = vld [vmem:[%s1131 + $0xa0] sm:$0xf]
        %v1173 = vld [vmem:[%s1131 + $0xa4] sm:$0xf]
        %v1174 = vld [vmem:[%s1131 + $0xa8] sm:$0xf]
        %v1175 = vld [vmem:[%s1131 + $0xac] sm:$0xf]
        %v1176 = vld [vmem:[%s1131 + $0xb0] sm:$0xf]
        %v1177 = vld [vmem:[%s1131 + $0xb4] sm:$0xf]
        %v1178 = vld [vmem:[%s1131 + $0xb8] sm:$0xf]
        %v1179 = vld [vmem:[%s1131 + $0xbc] sm:$0xf]
        %v1180 = vld [vmem:[%s1131 + $0xc0] sm:$0xf]
        %v1181 = vld [vmem:[%s1131 + $0xc4] sm:$0xf]
        %v1182 = vld [vmem:[%s1131 + $0xc8] sm:$0xf]
        %v1183 = vld [vmem:[%s1131 + $0xcc] sm:$0xf]
        %v1184 = vld [vmem:[%s1131 + $0xd0] sm:$0xf]
        %v1185 = vld [vmem:[%s1131 + $0xd4] sm:$0xf]
        %v1186 = vld [vmem:[%s1131 + $0xd8] sm:$0xf]
        %v1187 = vld [vmem:[%s1131 + $0xdc] sm:$0xf]
        %v1188 = vld [vmem:[%s1131 + $0xe0] sm:$0xf]
        %v1189 = vld [vmem:[%s1131 + $0xe4] sm:$0xf]
        %v1190 = vld [vmem:[%s1131 + $0xe8] sm:$0xf]
        %v1191 = vld [vmem:[%s1131 + $0xec] sm:$0xf]
        %v1192 = vld [vmem:[%s1131 + $0xf0] sm:$0xf]
        %v1193 = vld [vmem:[%s1131 + $0xf4] sm:$0xf]
        %v1194 = vld [vmem:[%s1131 + $0xf8] sm:$0xf]
        %v1195 = vld [vmem:[%s1131 + $0xfc] sm:$0xf]
        %v1196 = vld [vmem:[%s1131 + $0x100] sm:$0xf]
        %v1197 = vld [vmem:[%s1131 + $0x104] sm:$0xf]
        %v1198 = vld [vmem:[%s1131 + $0x108] sm:$0xf]
        %v1199 = vld [vmem:[%s1131 + $0x10c] sm:$0xf]
        %v1200 = vld [vmem:[%s1131 + $0x110] sm:$0xf]
        %v1201 = vld [vmem:[%s1131 + $0x114] sm:$0xf]
        %v1202 = vld [vmem:[%s1131 + $0x118] sm:$0xf]
        %v1203 = vld [vmem:[%s1131 + $0x11c] sm:$0xf]
        %v1204 = vld [vmem:[%s1131 + $0x120] sm:$0xf]
        %v1205 = vld [vmem:[%s1131 + $0x124] sm:$0xf]
        %v1206 = vld [vmem:[%s1131 + $0x128] sm:$0xf]
        %v1207 = vld [vmem:[%s1131 + $0x12c] sm:$0xf]
        %v1208 = vld [vmem:[%s1131 + $0x130] sm:$0xf]
        %v1209 = vld [vmem:[%s1131 + $0x134] sm:$0xf]
        %v1210 = vld [vmem:[%s1131 + $0x138] sm:$0xf]
        %v1211 = vld [vmem:[%s1131 + $0x13c] sm:$0xf]
        %v1212 = vld [vmem:[%s1131 + $0x140] sm:$0xf]
        %v1213 = vld [vmem:[%s1131 + $0x144] sm:$0xf]
        %v1214 = vld [vmem:[%s1131 + $0x148] sm:$0xf]
        %v1215 = vld [vmem:[%s1131 + $0x14c] sm:$0xf]
        %v1216 = vld [vmem:[%s1131 + $0x150] sm:$0xf]
        %v1217 = vld [vmem:[%s1131 + $0x154] sm:$0xf]
        %v1218 = vld [vmem:[%s1131 + $0x158] sm:$0xf]
        %v1219 = vld [vmem:[%s1131 + $0x15c] sm:$0xf]
        %v1220 = vld [vmem:[%s1131 + $0x160] sm:$0xf]
        %v1221 = vld [vmem:[%s1131 + $0x164] sm:$0xf]
        %v1222 = vld [vmem:[%s1131 + $0x168] sm:$0xf]
        %v1223 = vld [vmem:[%s1131 + $0x16c] sm:$0xf]
        %v1224 = vld [vmem:[%s1131 + $0x170] sm:$0xf]
        %v1225 = vld [vmem:[%s1131 + $0x174] sm:$0xf]
        %v1226 = vld [vmem:[%s1131 + $0x178] sm:$0xf]
        %v1227 = vld [vmem:[%s1131 + $0x17c] sm:$0xf]
        %v1228 = vld [vmem:[%s1131 + $0x180] sm:$0xf]
        %v1229 = vld [vmem:[%s1131 + $0x184] sm:$0xf]
        %v1230 = vld [vmem:[%s1131 + $0x188] sm:$0xf]
        %v1231 = vld [vmem:[%s1131 + $0x18c] sm:$0xf]
        %v1232 = vld [vmem:[%s1131 + $0x190] sm:$0xf]
        %v1233 = vld [vmem:[%s1131 + $0x194] sm:$0xf]
        %v1234 = vld [vmem:[%s1131 + $0x198] sm:$0xf]
        %v1235 = vld [vmem:[%s1131 + $0x19c] sm:$0xf]
        %v1236 = vld [vmem:[%s1131 + $0x1a0] sm:$0xf]
        %v1237 = vld [vmem:[%s1131 + $0x1a4] sm:$0xf]
        %v1238 = vld [vmem:[%s1131 + $0x1a8] sm:$0xf]
        %v1239 = vld [vmem:[%s1131 + $0x1ac] sm:$0xf]
        %v1240 = vld [vmem:[%s1131 + $0x1b0] sm:$0xf]
        %v1241 = vld [vmem:[%s1131 + $0x1b4] sm:$0xf]
        %v1242 = vld [vmem:[%s1131 + $0x1b8] sm:$0xf]
        %v1243 = vld [vmem:[%s1131 + $0x1bc] sm:$0xf]
        %v1244 = vld [vmem:[%s1131 + $0x1c0] sm:$0xf]
        %v1245 = vld [vmem:[%s1131 + $0x1c4] sm:$0xf]
        %v1246 = vld [vmem:[%s1131 + $0x1c8] sm:$0xf]
        %v1247 = vld [vmem:[%s1131 + $0x1cc] sm:$0xf]
        %v1248 = vld [vmem:[%s1131 + $0x1d0] sm:$0xf]
        %v1249 = vld [vmem:[%s1131 + $0x1d4] sm:$0xf]
        %v1250 = vld [vmem:[%s1131 + $0x1d8] sm:$0xf]
        %v1251 = vld [vmem:[%s1131 + $0x1dc] sm:$0xf]
        %v1252 = vld [vmem:[%s1131 + $0x1e0] sm:$0xf]
        %v1253 = vld [vmem:[%s1131 + $0x1e4] sm:$0xf]
        %v1254 = vld [vmem:[%s1131 + $0x1e8] sm:$0xf]
        %v1255 = vld [vmem:[%s1131 + $0x1ec] sm:$0xf]
        %v1256 = vld [vmem:[%s1131 + $0x1f0] sm:$0xf]
        %v1257 = vld [vmem:[%s1131 + $0x1f4] sm:$0xf]
        %v1258 = vld [vmem:[%s1131 + $0x1f8] sm:$0xf]
        %v1259 = vld [vmem:[%s1131 + $0x1fc] sm:$0xf]
        %v1260 = vld [vmem:[%s1131 + $0x200] sm:$0xf]
        %v1261 = vld [vmem:[%s1131 + $0x204] sm:$0xf]
        %v1262 = vld [vmem:[%s1131 + $0x208] sm:$0xf]
        %v1263 = vld [vmem:[%s1131 + $0x20c] sm:$0xf]
        %v1264 = vld [vmem:[%s1131 + $0x210] sm:$0xf]
        %v1265 = vld [vmem:[%s1131 + $0x214] sm:$0xf]
        %v1266 = vld [vmem:[%s1131 + $0x218] sm:$0xf]
        %v1267 = vld [vmem:[%s1131 + $0x21c] sm:$0xf]
        %v1268 = vld [vmem:[%s1131 + $0x220] sm:$0xf]
        %v1269 = vld [vmem:[%s1131 + $0x224] sm:$0xf]
        %v1270 = vld [vmem:[%s1131 + $0x228] sm:$0xf]
        %v1271 = vld [vmem:[%s1131 + $0x22c] sm:$0xf]
        %v1272 = vld [vmem:[%s1131 + $0x230] sm:$0xf]
        %v1273 = vld [vmem:[%s1131 + $0x234] sm:$0xf]
        %v1274 = vld [vmem:[%s1131 + $0x238] sm:$0xf]
        %v1275 = vld [vmem:[%s1131 + $0x23c] sm:$0xf]
        %v1420 = vunpack.c.l.b16 %v1132
        %v1421 = vunpack.c.l.b16 %v1133
        %v1422 = vunpack.c.l.b16 %v1134
        %v1423 = vunpack.c.l.b16 %v1135
        %v1424 = vunpack.c.l.b16 %v1136
        %v1425 = vunpack.c.l.b16 %v1137
        %v1426 = vunpack.c.l.b16 %v1138
        %v1427 = vunpack.c.l.b16 %v1139
        %v1428 = vunpack.c.l.b16 %v1140
        %v1429 = vunpack.c.l.b16 %v1141
        %v1430 = vunpack.c.l.b16 %v1142
        %v1431 = vunpack.c.l.b16 %v1143
        %v1432 = vunpack.c.l.b16 %v1144
        %v1433 = vunpack.c.l.b16 %v1145
        %v1434 = vunpack.c.l.b16 %v1146
        %v1435 = vunpack.c.l.b16 %v1147
        %v1436 = vunpack.c.l.b16 %v1148
        %v1437 = vunpack.c.l.b16 %v1149
        %v1438 = vunpack.c.l.b16 %v1150
        %v1439 = vunpack.c.l.b16 %v1151
        %v1440 = vunpack.c.l.b16 %v1152
        %v1441 = vunpack.c.l.b16 %v1153
        %v1442 = vunpack.c.l.b16 %v1154
        %v1443 = vunpack.c.l.b16 %v1155
        %v1444 = vunpack.c.l.b16 %v1156
        %v1445 = vunpack.c.l.b16 %v1157
        %v1446 = vunpack.c.l.b16 %v1158
        %v1447 = vunpack.c.l.b16 %v1159
        %v1448 = vunpack.c.l.b16 %v1160
        %v1449 = vunpack.c.l.b16 %v1161
        %v1450 = vunpack.c.l.b16 %v1162
        %v1451 = vunpack.c.l.b16 %v1163
        %v1452 = vunpack.c.l.b16 %v1164
        %v1453 = vunpack.c.l.b16 %v1165
        %v1454 = vunpack.c.l.b16 %v1166
        %v1455 = vunpack.c.l.b16 %v1167
        %v1456 = vunpack.c.l.b16 %v1168
        %v1457 = vunpack.c.l.b16 %v1169
        %v1458 = vunpack.c.l.b16 %v1170
        %v1459 = vunpack.c.l.b16 %v1171
        %v1460 = vunpack.c.l.b16 %v1172
        %v1461 = vunpack.c.l.b16 %v1173
        %v1462 = vunpack.c.l.b16 %v1174
        %v1463 = vunpack.c.l.b16 %v1175
        %v1464 = vunpack.c.l.b16 %v1176
        %v1465 = vunpack.c.l.b16 %v1177
        %v1466 = vunpack.c.l.b16 %v1178
        %v1467 = vunpack.c.l.b16 %v1179
        %v1468 = vunpack.c.l.b16 %v1180
        %v1469 = vunpack.c.l.b16 %v1181
        %v1470 = vunpack.c.l.b16 %v1182
        %v1471 = vunpack.c.l.b16 %v1183
        %v1472 = vunpack.c.l.b16 %v1184
        %v1473 = vunpack.c.l.b16 %v1185
        %v1474 = vunpack.c.l.b16 %v1186
        %v1475 = vunpack.c.l.b16 %v1187
        %v1476 = vunpack.c.l.b16 %v1188
        %v1477 = vunpack.c.l.b16 %v1189
        %v1478 = vunpack.c.l.b16 %v1190
        %v1479 = vunpack.c.l.b16 %v1191
        %v1480 = vunpack.c.l.b16 %v1192
        %v1481 = vunpack.c.l.b16 %v1193
        %v1482 = vunpack.c.l.b16 %v1194
        %v1483 = vunpack.c.l.b16 %v1195
        %v1484 = vunpack.c.l.b16 %v1196
        %v1485 = vunpack.c.l.b16 %v1197
        %v1486 = vunpack.c.l.b16 %v1198
        %v1487 = vunpack.c.l.b16 %v1199
        %v1488 = vunpack.c.l.b16 %v1200
        %v1489 = vunpack.c.l.b16 %v1201
        %v1490 = vunpack.c.l.b16 %v1202
        %v1491 = vunpack.c.l.b16 %v1203
        %v1492 = vunpack.c.l.b16 %v1204
        %v1493 = vunpack.c.l.b16 %v1205
        %v1494 = vunpack.c.l.b16 %v1206
        %v1495 = vunpack.c.l.b16 %v1207
        %v1496 = vunpack.c.l.b16 %v1208
        %v1497 = vunpack.c.l.b16 %v1209
        %v1498 = vunpack.c.l.b16 %v1210
        %v1499 = vunpack.c.l.b16 %v1211
        %v1500 = vunpack.c.l.b16 %v1212
        %v1501 = vunpack.c.l.b16 %v1213
        %v1502 = vunpack.c.l.b16 %v1214
        %v1503 = vunpack.c.l.b16 %v1215
        %v1504 = vunpack.c.l.b16 %v1216
        %v1505 = vunpack.c.l.b16 %v1217
        %v1506 = vunpack.c.l.b16 %v1218
        %v1507 = vunpack.c.l.b16 %v1219
        %v1508 = vunpack.c.l.b16 %v1220
        %v1509 = vunpack.c.l.b16 %v1221
        %v1510 = vunpack.c.l.b16 %v1222
        %v1511 = vunpack.c.l.b16 %v1223
        %v1512 = vunpack.c.l.b16 %v1224
        %v1513 = vunpack.c.l.b16 %v1225
        %v1514 = vunpack.c.l.b16 %v1226
        %v1515 = vunpack.c.l.b16 %v1227
        %v1516 = vunpack.c.l.b16 %v1228
        %v1517 = vunpack.c.l.b16 %v1229
        %v1518 = vunpack.c.l.b16 %v1230
        %v1519 = vunpack.c.l.b16 %v1231
        %v1520 = vunpack.c.l.b16 %v1232
        %v1521 = vunpack.c.l.b16 %v1233
        %v1522 = vunpack.c.l.b16 %v1234
        %v1523 = vunpack.c.l.b16 %v1235
        %v1524 = vunpack.c.l.b16 %v1236
        %v1525 = vunpack.c.l.b16 %v1237
        %v1526 = vunpack.c.l.b16 %v1238
        %v1527 = vunpack.c.l.b16 %v1239
        %v1528 = vunpack.c.l.b16 %v1240
        %v1529 = vunpack.c.l.b16 %v1241
        %v1530 = vunpack.c.l.b16 %v1242
        %v1531 = vunpack.c.l.b16 %v1243
        %v1532 = vunpack.c.l.b16 %v1244
        %v1533 = vunpack.c.l.b16 %v1245
        %v1534 = vunpack.c.l.b16 %v1246
        %v1535 = vunpack.c.l.b16 %v1247
        %v1536 = vunpack.c.l.b16 %v1248
        %v1537 = vunpack.c.l.b16 %v1249
        %v1538 = vunpack.c.l.b16 %v1250
        %v1539 = vunpack.c.l.b16 %v1251
        %v1540 = vunpack.c.l.b16 %v1252
        %v1541 = vunpack.c.l.b16 %v1253
        %v1542 = vunpack.c.l.b16 %v1254
        %v1543 = vunpack.c.l.b16 %v1255
        %v1544 = vunpack.c.l.b16 %v1256
        %v1545 = vunpack.c.l.b16 %v1257
        %v1546 = vunpack.c.l.b16 %v1258
        %v1547 = vunpack.c.l.b16 %v1259
        %v1548 = vunpack.c.l.b16 %v1260
        %v1549 = vunpack.c.l.b16 %v1261
        %v1550 = vunpack.c.l.b16 %v1262
        %v1551 = vunpack.c.l.b16 %v1263
        %v1552 = vunpack.c.l.b16 %v1264
        %v1553 = vunpack.c.l.b16 %v1265
        %v1554 = vunpack.c.l.b16 %v1266
        %v1555 = vunpack.c.l.b16 %v1267
        %v1556 = vunpack.c.l.b16 %v1268
        %v1557 = vunpack.c.l.b16 %v1269
        %v1558 = vunpack.c.l.b16 %v1270
        %v1559 = vunpack.c.l.b16 %v1271
        %v1560 = vunpack.c.l.b16 %v1272
        %v1561 = vunpack.c.l.b16 %v1273
        %v1562 = vunpack.c.l.b16 %v1274
        %v1563 = vunpack.c.l.b16 %v1275
        %v1564 = vpack.c.b16 %v1421, %v1420
        %v1565 = vpack.c.b16 %v1423, %v1422
        %v1566 = vpack.c.b16 %v1425, %v1424
        %v1567 = vpack.c.b16 %v1427, %v1426
        %v1568 = vpack.c.b16 %v1429, %v1428
        %v1569 = vpack.c.b16 %v1431, %v1430
        %v1570 = vpack.c.b16 %v1433, %v1432
        %v1571 = vpack.c.b16 %v1435, %v1434
        %v1572 = vpack.c.b16 %v1437, %v1436
        %v1573 = vpack.c.b16 %v1439, %v1438
        %v1574 = vpack.c.b16 %v1441, %v1440
        %v1575 = vpack.c.b16 %v1443, %v1442
        %v1576 = vpack.c.b16 %v1445, %v1444
        %v1577 = vpack.c.b16 %v1447, %v1446
        %v1578 = vpack.c.b16 %v1449, %v1448
        %v1579 = vpack.c.b16 %v1451, %v1450
        %v1580 = vpack.c.b16 %v1453, %v1452
        %v1581 = vpack.c.b16 %v1455, %v1454
        %v1582 = vpack.c.b16 %v1457, %v1456
        %v1583 = vpack.c.b16 %v1459, %v1458
        %v1584 = vpack.c.b16 %v1461, %v1460
        %v1585 = vpack.c.b16 %v1463, %v1462
        %v1586 = vpack.c.b16 %v1465, %v1464
        %v1587 = vpack.c.b16 %v1467, %v1466
        %v1588 = vpack.c.b16 %v1469, %v1468
        %v1589 = vpack.c.b16 %v1471, %v1470
        %v1590 = vpack.c.b16 %v1473, %v1472
        %v1591 = vpack.c.b16 %v1475, %v1474
        %v1592 = vpack.c.b16 %v1477, %v1476
        %v1593 = vpack.c.b16 %v1479, %v1478
        %v1594 = vpack.c.b16 %v1481, %v1480
        %v1595 = vpack.c.b16 %v1483, %v1482
        %v1596 = vpack.c.b16 %v1485, %v1484
        %v1597 = vpack.c.b16 %v1487, %v1486
        %v1598 = vpack.c.b16 %v1489, %v1488
        %v1599 = vpack.c.b16 %v1491, %v1490
        %v1600 = vpack.c.b16 %v1493, %v1492
        %v1601 = vpack.c.b16 %v1495, %v1494
        %v1602 = vpack.c.b16 %v1497, %v1496
        %v1603 = vpack.c.b16 %v1499, %v1498
        %v1604 = vpack.c.b16 %v1501, %v1500
        %v1605 = vpack.c.b16 %v1503, %v1502
        %v1606 = vpack.c.b16 %v1505, %v1504
        %v1607 = vpack.c.b16 %v1507, %v1506
        %v1608 = vpack.c.b16 %v1509, %v1508
        %v1609 = vpack.c.b16 %v1511, %v1510
        %v1610 = vpack.c.b16 %v1513, %v1512
        %v1611 = vpack.c.b16 %v1515, %v1514
        %v1612 = vpack.c.b16 %v1517, %v1516
        %v1613 = vpack.c.b16 %v1519, %v1518
        %v1614 = vpack.c.b16 %v1521, %v1520
        %v1615 = vpack.c.b16 %v1523, %v1522
        %v1616 = vpack.c.b16 %v1525, %v1524
        %v1617 = vpack.c.b16 %v1527, %v1526
        %v1618 = vpack.c.b16 %v1529, %v1528
        %v1619 = vpack.c.b16 %v1531, %v1530
        %v1620 = vpack.c.b16 %v1533, %v1532
        %v1621 = vpack.c.b16 %v1535, %v1534
        %v1622 = vpack.c.b16 %v1537, %v1536
        %v1623 = vpack.c.b16 %v1539, %v1538
        %v1624 = vpack.c.b16 %v1541, %v1540
        %v1625 = vpack.c.b16 %v1543, %v1542
        %v1626 = vpack.c.b16 %v1545, %v1544
        %v1627 = vpack.c.b16 %v1547, %v1546
        %v1628 = vpack.c.b16 %v1549, %v1548
        %v1629 = vpack.c.b16 %v1551, %v1550
        %v1630 = vpack.c.b16 %v1553, %v1552
        %v1631 = vpack.c.b16 %v1555, %v1554
        %v1632 = vpack.c.b16 %v1557, %v1556
        %v1633 = vpack.c.b16 %v1559, %v1558
        %v1634 = vpack.c.b16 %v1561, %v1560
        %v1635 = vpack.c.b16 %v1563, %v1562
        %1708 = vmatprep.subr.bf16.mxu0 0
        %1709 = vmatpush1.bf16.msra.mxu0 %v1564
        %1710 = vmatprep.subr.bf16.mxu0 0
        %1711 = vmatpush1.bf16.msra.mxu0 %v1565
        %1712 = vmatprep.subr.bf16.mxu0 0
        %1713 = vmatpush1.bf16.msra.mxu0 %v1566
        %1714 = vmatprep.subr.bf16.mxu0 0
        %1715 = vmatpush1.bf16.msra.mxu0 %v1567
        %1716 = vmatprep.subr.bf16.mxu0 0
        %1717 = vmatpush1.bf16.msra.mxu0 %v1568
        %1718 = vmatprep.subr.bf16.mxu0 0
        %1719 = vmatpush1.bf16.msra.mxu0 %v1569
        %1720 = vmatprep.subr.bf16.mxu0 0
        %1721 = vmatpush1.bf16.msra.mxu0 %v1570
        %1722 = vmatprep.subr.bf16.mxu0 0
        %1723 = vmatpush1.bf16.msra.mxu0 %v1571
        %1724 = vmatprep.subr.bf16.mxu0 0
        %1725 = vmatpush1.bf16.msra.mxu0 %v1572
        %1726 = vmatprep.subr.bf16.mxu0 0
        %1727 = vmatpush1.bf16.msra.mxu0 %v1573
        %1728 = vmatprep.subr.bf16.mxu0 0
        %1729 = vmatpush1.bf16.msra.mxu0 %v1574
        %1730 = vmatprep.subr.bf16.mxu0 0
        %1731 = vmatpush1.bf16.msra.mxu0 %v1575
        %1732 = vmatprep.subr.bf16.mxu0 0
        %1733 = vmatpush1.bf16.msra.mxu0 %v1576
        %1734 = vmatprep.subr.bf16.mxu0 0
        %1735 = vmatpush1.bf16.msra.mxu0 %v1577
        %1736 = vmatprep.subr.bf16.mxu0 0
        %1737 = vmatpush1.bf16.msra.mxu0 %v1578
        %1738 = vmatprep.subr.bf16.mxu0 0
        %1739 = vmatpush1.bf16.msra.mxu0 %v1579
        %1740 = vmatprep.mubr.bf16.mxu0 %v667
        %1741 = vmatmul.mubr.bf16.gmra.mrb[0].mxu0 %v666
        %v1742 = vpop.f32.mrb[0].mxu0
        %v1743 = vadd.f32 0.0, %v1742
        %v1744 = vpop.f32.mrb[0].mxu0
        %v1745 = vpop.f32.mrb[0].mxu0
        %v1746 = vadd.f32 0.0, %v1745
        %v1747 = vpop.f32.mrb[0].mxu0
        %1748 = vmatprep.mubr.bf16.mxu0 %v673
        %1749 = vmatmul.mubr.bf16.gmra.mrb[0].mxu0 %v672
        %v1750 = vpop.f32.mrb[0].mxu0
        %v1751 = vadd.f32 0.0, %v1750
        %v1752 = vpop.f32.mrb[0].mxu0
        %v1753 = vpop.f32.mrb[0].mxu0
        %v1754 = vadd.f32 0.0, %v1753
        %v1755 = vpop.f32.mrb[0].mxu0
        %1756 = vmatprep.mubr.bf16.mxu0 %v679
        %1757 = vmatmul.mubr.bf16.gmra.mrb[0].mxu0 %v678
        %v1758 = vpop.f32.mrb[0].mxu0
        %v1759 = vadd.f32 0.0, %v1758
        %v1760 = vpop.f32.mrb[0].mxu0
        %v1761 = vpop.f32.mrb[0].mxu0
        %v1762 = vadd.f32 0.0, %v1761
        %v1763 = vpop.f32.mrb[0].mxu0
        %1764 = vmatprep.mubr.bf16.mxu0 %v685
        %1765 = vmatmul.mubr.bf16.gmra.mrb[0].mxu0 %v684
        %v1766 = vpop.f32.mrb[0].mxu0
        %v1767 = vadd.f32 0.0, %v1766
        %v1768 = vpop.f32.mrb[0].mxu0
        %v1769 = vpop.f32.mrb[0].mxu0
        %v1770 = vadd.f32 0.0, %v1769
        %v1771 = vpop.f32.mrb[0].mxu0
        %1772 = vmatprep.mubr.bf16.mxu0 %v814
        %1773 = vmatmul.mubr.bf16.gmra.mrb[0].mxu0 %v813
        %v1774 = vpop.f32.mrb[0].mxu0
        %v1775 = vadd.f32 0.0, %v1774
        %v1776 = vpop.f32.mrb[0].mxu0
        %v1777 = vpop.f32.mrb[0].mxu0
        %v1778 = vadd.f32 0.0, %v1777
        %v1779 = vpop.f32.mrb[0].mxu0
        %1780 = vmatprep.mubr.bf16.mxu0 %v820
        %1781 = vmatmul.mubr.bf16.gmra.mrb[0].mxu0 %v819
        %v1782 = vpop.f32.mrb[0].mxu0
        %v1783 = vadd.f32 0.0, %v1782
        %v1784 = vpop.f32.mrb[0].mxu0
        %v1785 = vpop.f32.mrb[0].mxu0
        %v1786 = vadd.f32 0.0, %v1785
        %v1787 = vpop.f32.mrb[0].mxu0
        %1788 = vmatprep.mubr.bf16.mxu0 %v826
        %1789 = vmatmul.mubr.bf16.gmra.mrb[0].mxu0 %v825
        %v1790 = vpop.f32.mrb[0].mxu0
        %v1791 = vadd.f32 0.0, %v1790
        %v1792 = vpop.f32.mrb[0].mxu0
        %v1793 = vpop.f32.mrb[0].mxu0
        %v1794 = vadd.f32 0.0, %v1793
        %v1795 = vpop.f32.mrb[0].mxu0
        %1796 = vmatprep.mubr.bf16.mxu0 %v832
        %1797 = vmatmul.mubr.bf16.gmra.mrb[0].mxu0 %v831
        %v1798 = vpop.f32.mrb[0].mxu0
        %v1799 = vadd.f32 0.0, %v1798
        %v1800 = vpop.f32.mrb[0].mxu0
        %v1801 = vpop.f32.mrb[0].mxu0
        %v1802 = vadd.f32 0.0, %v1801
        %v1803 = vpop.f32.mrb[0].mxu0
        %1804 = vdwg.mxu0
        %1805 = vmatprep.subr.bf16.mxu0 0
        %1806 = vmatpush1.bf16.msra.mxu0 %v1580
        %1807 = vmatprep.subr.bf16.mxu0 0
        %1808 = vmatpush1.bf16.msra.mxu0 %v1581
        %1809 = vmatprep.subr.bf16.mxu0 0
        %1810 = vmatpush1.bf16.msra.mxu0 %v1582
        %1811 = vmatprep.subr.bf16.mxu0 0
        %1812 = vmatpush1.bf16.msra.mxu0 %v1583
        %1813 = vmatprep.subr.bf16.mxu0 0
        %1814 = vmatpush1.bf16.msra.mxu0 %v1584
        %1815 = vmatprep.subr.bf16.mxu0 0
        %1816 = vmatpush1.bf16.msra.mxu0 %v1585
        %1817 = vmatprep.subr.bf16.mxu0 0
        %1818 = vmatpush1.bf16.msra.mxu0 %v1586
        %1819 = vmatprep.subr.bf16.mxu0 0
        %1820 = vmatpush1.bf16.msra.mxu0 %v1587
        %1821 = vmatprep.subr.bf16.mxu0 0
        %1822 = vmatpush1.bf16.msra.mxu0 %v1588
        %1823 = vmatprep.subr.bf16.mxu0 0
        %1824 = vmatpush1.bf16.msra.mxu0 %v1589
        %1825 = vmatprep.subr.bf16.mxu0 0
        %1826 = vmatpush1.bf16.msra.mxu0 %v1590
        %1827 = vmatprep.subr.bf16.mxu0 0
        %1828 = vmatpush1.bf16.msra.mxu0 %v1591
        %1829 = vmatprep.subr.bf16.mxu0 0
        %1830 = vmatpush1.bf16.msra.mxu0 %v1592
        %1831 = vmatprep.subr.bf16.mxu0 0
        %1832 = vmatpush1.bf16.msra.mxu0 %v1593
        %1833 = vmatprep.subr.bf16.mxu0 0
        %1834 = vmatpush1.bf16.msra.mxu0 %v1594
        %1835 = vmatprep.subr.bf16.mxu0 0
        %1836 = vmatpush1.bf16.msra.mxu0 %v1595
        %1837 = vmatprep.mubr.bf16.mxu0 %v669
        %1838 = vmatmul.mubr.bf16.gmra.mrb[0].mxu0 %v668
        %v1839 = vpop.f32.mrb[0].mxu0
        %v1840 = vadd.f32 %v1743, %v1839
        %v1841 = vpop.f32.mrb[0].mxu0
        %v1842 = vpop.f32.mrb[0].mxu0
        %v1843 = vadd.f32 %v1746, %v1842
        %v1844 = vpop.f32.mrb[0].mxu0
        %1845 = vmatprep.mubr.bf16.mxu0 %v675
        %1846 = vmatmul.mubr.bf16.gmra.mrb[0].mxu0 %v674
        %v1847 = vpop.f32.mrb[0].mxu0
        %v1848 = vadd.f32 %v1751, %v1847
        %v1849 = vpop.f32.mrb[0].mxu0
        %v1850 = vpop.f32.mrb[0].mxu0
        %v1851 = vadd.f32 %v1754, %v1850
        %v1852 = vpop.f32.mrb[0].mxu0
        %1853 = vmatprep.mubr.bf16.mxu0 %v681
        %1854 = vmatmul.mubr.bf16.gmra.mrb[0].mxu0 %v680
        %v1855 = vpop.f32.mrb[0].mxu0
        %v1856 = vadd.f32 %v1759, %v1855
        %v1857 = vpop.f32.mrb[0].mxu0
        %v1858 = vpop.f32.mrb[0].mxu0
        %v1859 = vadd.f32 %v1762, %v1858
        %v1860 = vpop.f32.mrb[0].mxu0
        %1861 = vmatprep.mubr.bf16.mxu0 %v687
        %1862 = vmatmul.mubr.bf16.gmra.mrb[0].mxu0 %v686
        %v1863 = vpop.f32.mrb[0].mxu0
        %v1864 = vadd.f32 %v1767, %v1863
        %v1865 = vpop.f32.mrb[0].mxu0
        %v1866 = vpop.f32.mrb[0].mxu0
        %v1867 = vadd.f32 %v1770, %v1866
        %v1868 = vpop.f32.mrb[0].mxu0
        %1869 = vmatprep.mubr.bf16.mxu0 %v816
        %1870 = vmatmul.mubr.bf16.gmra.mrb[0].mxu0 %v815
        %v1871 = vpop.f32.mrb[0].mxu0
        %v1872 = vadd.f32 %v1775, %v1871
        %v1873 = vpop.f32.mrb[0].mxu0
        %v1874 = vpop.f32.mrb[0].mxu0
        %v1875 = vadd.f32 %v1778, %v1874
        %v1876 = vpop.f32.mrb[0].mxu0
        %1877 = vmatprep.mubr.bf16.mxu0 %v822
        %1878 = vmatmul.mubr.bf16.gmra.mrb[0].mxu0 %v821
        %v1879 = vpop.f32.mrb[0].mxu0
        %v1880 = vadd.f32 %v1783, %v1879
        %v1881 = vpop.f32.mrb[0].mxu0
        %v1882 = vpop.f32.mrb[0].mxu0
        %v1883 = vadd.f32 %v1786, %v1882
        %v1884 = vpop.f32.mrb[0].mxu0
        %1885 = vmatprep.mubr.bf16.mxu0 %v828
        %1886 = vmatmul.mubr.bf16.gmra.mrb[0].mxu0 %v827
        %v1887 = vpop.f32.mrb[0].mxu0
        %v1888 = vadd.f32 %v1791, %v1887
        %v1889 = vpop.f32.mrb[0].mxu0
        %v1890 = vpop.f32.mrb[0].mxu0
        %v1891 = vadd.f32 %v1794, %v1890
        %v1892 = vpop.f32.mrb[0].mxu0
        %1893 = vmatprep.mubr.bf16.mxu0 %v834
        %1894 = vmatmul.mubr.bf16.gmra.mrb[0].mxu0 %v833
        %v1895 = vpop.f32.mrb[0].mxu0
        %v1896 = vadd.f32 %v1799, %v1895
        %v1897 = vpop.f32.mrb[0].mxu0
        %v1898 = vpop.f32.mrb[0].mxu0
        %v1899 = vadd.f32 %v1802, %v1898
        %v1900 = vpop.f32.mrb[0].mxu0
        %1901 = vdwg.mxu0
        %1902 = vmatprep.subr.bf16.mxu0 0
        %1903 = vmatpush1.bf16.msra.mxu0 %v1596
        %1904 = vmatprep.subr.bf16.mxu0 0
        %1905 = vmatpush1.bf16.msra.mxu0 %v1597
        %1906 = vmatprep.subr.bf16.mxu0 0
        %1907 = vmatpush1.bf16.msra.mxu0 %v1598
        %1908 = vmatprep.subr.bf16.mxu0 0
        %1909 = vmatpush1.bf16.msra.mxu0 %v1599
        %1910 = vmatprep.subr.bf16.mxu0 0
        %1911 = vmatpush1.bf16.msra.mxu0 %v1600
        %1912 = vmatprep.subr.bf16.mxu0 0
        %1913 = vmatpush1.bf16.msra.mxu0 %v1601
        %1914 = vmatprep.subr.bf16.mxu0 0
        %1915 = vmatpush1.bf16.msra.mxu0 %v1602
        %1916 = vmatprep.subr.bf16.mxu0 0
        %1917 = vmatpush1.bf16.msra.mxu0 %v1603
        %1918 = vmatprep.subr.bf16.mxu0 0
        %1919 = vmatpush1.bf16.msra.mxu0 %v1604
        %1920 = vmatprep.subr.bf16.mxu0 0
        %1921 = vmatpush1.bf16.msra.mxu0 %v1605
        %1922 = vmatprep.subr.bf16.mxu0 0
        %1923 = vmatpush1.bf16.msra.mxu0 %v1606
        %1924 = vmatprep.subr.bf16.mxu0 0
        %1925 = vmatpush1.bf16.msra.mxu0 %v1607
        %1926 = vmatprep.subr.bf16.mxu0 0
        %1927 = vmatpush1.bf16.msra.mxu0 %v1608
        %1928 = vmatprep.subr.bf16.mxu0 0
        %1929 = vmatpush1.bf16.msra.mxu0 %v1609
        %1930 = vmatprep.subr.bf16.mxu0 0
        %1931 = vmatpush1.bf16.msra.mxu0 %v1610
        %1932 = vmatprep.subr.bf16.mxu0 0
        %1933 = vmatpush1.bf16.msra.mxu0 %v1611
        %1934 = vmatprep.mubr.bf16.mxu0 %v671
        %1935 = vmatmul.mubr.bf16.gmra.mrb[0].mxu0 %v670
        %v1936 = vpop.f32.mrb[0].mxu0
        %v1937 = vadd.f32 %v1840, %v1936
        %v1938 = vpop.f32.mrb[0].mxu0
        %v1939 = vpop.f32.mrb[0].mxu0
        %v1940 = vadd.f32 %v1843, %v1939
        %v1941 = vpop.f32.mrb[0].mxu0
        %1942 = vmatprep.mubr.bf16.mxu0 %v677
        %1943 = vmatmul.mubr.bf16.gmra.mrb[0].mxu0 %v676
        %v1944 = vpop.f32.mrb[0].mxu0
        %v1945 = vadd.f32 %v1848, %v1944
        %v1946 = vpop.f32.mrb[0].mxu0
        %v1947 = vpop.f32.mrb[0].mxu0
        %v1948 = vadd.f32 %v1851, %v1947
        %v1949 = vpop.f32.mrb[0].mxu0
        %1950 = vmatprep.mubr.bf16.mxu0 %v683
        %1951 = vmatmul.mubr.bf16.gmra.mrb[0].mxu0 %v682
        %v1952 = vpop.f32.mrb[0].mxu0
        %v1953 = vadd.f32 %v1856, %v1952
        %v1954 = vpop.f32.mrb[0].mxu0
        %v1955 = vpop.f32.mrb[0].mxu0
        %v1956 = vadd.f32 %v1859, %v1955
        %v1957 = vpop.f32.mrb[0].mxu0
        %1958 = vmatprep.mubr.bf16.mxu0 %v689
        %1959 = vmatmul.mubr.bf16.gmra.mrb[0].mxu0 %v688
        %v1960 = vpop.f32.mrb[0].mxu0
        %v1961 = vadd.f32 %v1864, %v1960
        %v1962 = vpop.f32.mrb[0].mxu0
        %v1963 = vpop.f32.mrb[0].mxu0
        %v1964 = vadd.f32 %v1867, %v1963
        %v1965 = vpop.f32.mrb[0].mxu0
        %1966 = vmatprep.mubr.bf16.mxu0 %v818
        %1967 = vmatmul.mubr.bf16.gmra.mrb[0].mxu0 %v817
        %v1968 = vpop.f32.mrb[0].mxu0
        %v1969 = vadd.f32 %v1872, %v1968
        %v1970 = vpop.f32.mrb[0].mxu0
        %v1971 = vpop.f32.mrb[0].mxu0
        %v1972 = vadd.f32 %v1875, %v1971
        %v1973 = vpop.f32.mrb[0].mxu0
        %1974 = vmatprep.mubr.bf16.mxu0 %v824
        %1975 = vmatmul.mubr.bf16.gmra.mrb[0].mxu0 %v823
        %v1976 = vpop.f32.mrb[0].mxu0
        %v1977 = vadd.f32 %v1880, %v1976
        %v1978 = vpop.f32.mrb[0].mxu0
        %v1979 = vpop.f32.mrb[0].mxu0
        %v1980 = vadd.f32 %v1883, %v1979
        %v1981 = vpop.f32.mrb[0].mxu0
        %1982 = vmatprep.mubr.bf16.mxu0 %v830
        %1983 = vmatmul.mubr.bf16.gmra.mrb[0].mxu0 %v829
        %v1984 = vpop.f32.mrb[0].mxu0
        %v1985 = vadd.f32 %v1888, %v1984
        %v1986 = vpop.f32.mrb[0].mxu0
        %v1987 = vpop.f32.mrb[0].mxu0
        %v1988 = vadd.f32 %v1891, %v1987
        %v1989 = vpop.f32.mrb[0].mxu0
        %1990 = vmatprep.mubr.bf16.mxu0 %v836
        %1991 = vmatmul.mubr.bf16.gmra.mrb[0].mxu0 %v835
        %v1992 = vpop.f32.mrb[0].mxu0
        %v1993 = vadd.f32 %v1896, %v1992
        %v1994 = vpop.f32.mrb[0].mxu0
        %v1995 = vpop.f32.mrb[0].mxu0
        %v1996 = vadd.f32 %v1899, %v1995
        %v1997 = vpop.f32.mrb[0].mxu0
        %1998 = vdwg.mxu0
        %1999 = vmatprep.subr.bf16.mxu0 0
        %2000 = vmatpush1.bf16.msra.mxu0 %v1612
        %2001 = vmatprep.subr.bf16.mxu0 0
        %2002 = vmatpush1.bf16.msra.mxu0 %v1613
        %2003 = vmatprep.subr.bf16.mxu0 0
        %2004 = vmatpush1.bf16.msra.mxu0 %v1614
        %2005 = vmatprep.subr.bf16.mxu0 0
        %2006 = vmatpush1.bf16.msra.mxu0 %v1615
        %2007 = vmatprep.subr.bf16.mxu0 0
        %2008 = vmatpush1.bf16.msra.mxu0 %v1616
        %2009 = vmatprep.subr.bf16.mxu0 0
        %2010 = vmatpush1.bf16.msra.mxu0 %v1617
        %2011 = vmatprep.subr.bf16.mxu0 0
        %2012 = vmatpush1.bf16.msra.mxu0 %v1618
        %2013 = vmatprep.subr.bf16.mxu0 0
        %2014 = vmatpush1.bf16.msra.mxu0 %v1619
        %2015 = vmatprep.subr.bf16.mxu0 0
        %2016 = vmatpush1.bf16.msra.mxu0 %v1620
        %2017 = vmatprep.subr.bf16.mxu0 0
        %2018 = vmatpush1.bf16.msra.mxu0 %v1621
        %2019 = vmatprep.subr.bf16.mxu0 0
        %2020 = vmatpush1.bf16.msra.mxu0 %v1622
        %2021 = vmatprep.subr.bf16.mxu0 0
        %2022 = vmatpush1.bf16.msra.mxu0 %v1623
        %2023 = vmatprep.subr.bf16.mxu0 0
        %2024 = vmatpush1.bf16.msra.mxu0 %v1624
        %2025 = vmatprep.subr.bf16.mxu0 0
        %2026 = vmatpush1.bf16.msra.mxu0 %v1625
        %2027 = vmatprep.subr.bf16.mxu0 0
        %2028 = vmatpush1.bf16.msra.mxu0 %v1626
        %2029 = vmatprep.subr.bf16.mxu0 0
        %2030 = vmatpush1.bf16.msra.mxu0 %v1627
        %2031 = vmatprep.mubr.bf16.mxu0 %v673
        %2032 = vmatmul.mubr.bf16.gmra.mrb[0].mxu0 %v672
        %v2033 = vpop.f32.mrb[0].mxu0
        %v2034 = vadd.f32 %v1937, %v2033
        %v2035 = vpop.f32.mrb[0].mxu0
        %v2036 = vpop.f32.mrb[0].mxu0
        %v2037 = vadd.f32 %v1940, %v2036
        %v2038 = vpop.f32.mrb[0].mxu0
        %2039 = vmatprep.mubr.bf16.mxu0 %v679
        %2040 = vmatmul.mubr.bf16.gmra.mrb[0].mxu0 %v678
        %v2041 = vpop.f32.mrb[0].mxu0
        %v2042 = vadd.f32 %v1945, %v2041
        %v2043 = vpop.f32.mrb[0].mxu0
        %v2044 = vpop.f32.mrb[0].mxu0
        %v2045 = vadd.f32 %v1948, %v2044
        %v2046 = vpop.f32.mrb[0].mxu0
        %2047 = vmatprep.mubr.bf16.mxu0 %v685
        %2048 = vmatmul.mubr.bf16.gmra.mrb[0].mxu0 %v684
        %v2049 = vpop.f32.mrb[0].mxu0
        %v2050 = vadd.f32 %v1953, %v2049
        %v2051 = vpop.f32.mrb[0].mxu0
        %v2052 = vpop.f32.mrb[0].mxu0
        %v2053 = vadd.f32 %v1956, %v2052
        %v2054 = vpop.f32.mrb[0].mxu0
        %2055 = vmatprep.mubr.bf16.mxu0 %v691
        %2056 = vmatmul.mubr.bf16.gmra.mrb[0].mxu0 %v690
        %v2057 = vpop.f32.mrb[0].mxu0
        %v2058 = vadd.f32 %v1961, %v2057
        %v2059 = vpop.f32.mrb[0].mxu0
        %v2060 = vpop.f32.mrb[0].mxu0
        %v2061 = vadd.f32 %v1964, %v2060
        %v2062 = vpop.f32.mrb[0].mxu0
        %2063 = vmatprep.mubr.bf16.mxu0 %v820
        %2064 = vmatmul.mubr.bf16.gmra.mrb[0].mxu0 %v819
        %v2065 = vpop.f32.mrb[0].mxu0
        %v2066 = vadd.f32 %v1969, %v2065
        %v2067 = vpop.f32.mrb[0].mxu0
        %v2068 = vpop.f32.mrb[0].mxu0
        %v2069 = vadd.f32 %v1972, %v2068
        %v2070 = vpop.f32.mrb[0].mxu0
        %2071 = vmatprep.mubr.bf16.mxu0 %v826
        %2072 = vmatmul.mubr.bf16.gmra.mrb[0].mxu0 %v825
        %v2073 = vpop.f32.mrb[0].mxu0
        %v2074 = vadd.f32 %v1977, %v2073
        %v2075 = vpop.f32.mrb[0].mxu0
        %v2076 = vpop.f32.mrb[0].mxu0
        %v2077 = vadd.f32 %v1980, %v2076
        %v2078 = vpop.f32.mrb[0].mxu0
        %2079 = vmatprep.mubr.bf16.mxu0 %v832
        %2080 = vmatmul.mubr.bf16.gmra.mrb[0].mxu0 %v831
        %v2081 = vpop.f32.mrb[0].mxu0
        %v2082 = vadd.f32 %v1985, %v2081
        %v2083 = vpop.f32.mrb[0].mxu0
        %v2084 = vpop.f32.mrb[0].mxu0
        %v2085 = vadd.f32 %v1988, %v2084
        %v2086 = vpop.f32.mrb[0].mxu0
        %2087 = vmatprep.mubr.bf16.mxu0 %v838
        %2088 = vmatmul.mubr.bf16.gmra.mrb[0].mxu0 %v837
        %v2089 = vpop.f32.mrb[0].mxu0
        %v2090 = vadd.f32 %v1993, %v2089
        %v2091 = vpop.f32.mrb[0].mxu0
        %v2092 = vpop.f32.mrb[0].mxu0
        %v2093 = vadd.f32 %v1996, %v2092
        %v2094 = vpop.f32.mrb[0].mxu0
        %2095 = vdwg.mxu0
        %2096 = vmatprep.subr.bf16.mxu0 0
        %2097 = vmatpush1.bf16.msra.mxu0 %v1628
        %2098 = vmatprep.subr.bf16.mxu0 0
        %2099 = vmatpush1.bf16.msra.mxu0 %v1629
        %2100 = vmatprep.subr.bf16.mxu0 0
        %2101 = vmatpush1.bf16.msra.mxu0 %v1630
        %2102 = vmatprep.subr.bf16.mxu0 0
        %2103 = vmatpush1.bf16.msra.mxu0 %v1631
        %2104 = vmatprep.subr.bf16.mxu0 0
        %2105 = vmatpush1.bf16.msra.mxu0 %v1632
        %2106 = vmatprep.subr.bf16.mxu0 0
        %2107 = vmatpush1.bf16.msra.mxu0 %v1633
        %2108 = vmatprep.subr.bf16.mxu0 0
        %2109 = vmatpush1.bf16.msra.mxu0 %v1634
        %2110 = vmatprep.subr.bf16.mxu0 0
        %2111 = vmatpush1.bf16.msra.mxu0 %v1635
        %2112 = vmatprep.subr.bf16.mxu0 0
        %2113 = vmatpush1.bf16.msra.mxu0 0
        %2114 = vmatprep.subr.bf16.mxu0 0
        %2115 = vmatpush1.bf16.msra.mxu0 0
        %2116 = vmatprep.subr.bf16.mxu0 0
        %2117 = vmatpush1.bf16.msra.mxu0 0
        %2118 = vmatprep.subr.bf16.mxu0 0
        %2119 = vmatpush1.bf16.msra.mxu0 0
        %2120 = vmatprep.subr.bf16.mxu0 0
        %2121 = vmatpush1.bf16.msra.mxu0 0
        %2122 = vmatprep.subr.bf16.mxu0 0
        %2123 = vmatpush1.bf16.msra.mxu0 0
        %2124 = vmatprep.subr.bf16.mxu0 0
        %2125 = vmatpush1.bf16.msra.mxu0 0
        %2126 = vmatprep.subr.bf16.mxu0 0
        %2127 = vmatpush1.bf16.msra.mxu0 0
        %2128 = vmatprep.mubr.bf16.mxu0 0
        %2129 = vmatmul.mubr.bf16.gmra.mrb[0].mxu0 %v674
        %v2130 = vpop.f32.mrb[0].mxu0
        %v2131 = vadd.f32 %v2034, %v2130
        %v2132 = vpop.f32.mrb[0].mxu0
        %v2133 = vpop.f32.mrb[0].mxu0
        %v2134 = vadd.f32 %v2037, %v2133
        %v2135 = vpop.f32.mrb[0].mxu0
        %2136 = vmatprep.mubr.bf16.mxu0 0
        %2137 = vmatmul.mubr.bf16.gmra.mrb[0].mxu0 %v680
        %v2138 = vpop.f32.mrb[0].mxu0
        %v2139 = vadd.f32 %v2042, %v2138
        %v2140 = vpop.f32.mrb[0].mxu0
        %v2141 = vpop.f32.mrb[0].mxu0
        %v2142 = vadd.f32 %v2045, %v2141
        %v2143 = vpop.f32.mrb[0].mxu0
        %2144 = vmatprep.mubr.bf16.mxu0 0
        %2145 = vmatmul.mubr.bf16.gmra.mrb[0].mxu0 %v686
        %v2146 = vpop.f32.mrb[0].mxu0
        %v2147 = vadd.f32 %v2050, %v2146
        %v2148 = vpop.f32.mrb[0].mxu0
        %v2149 = vpop.f32.mrb[0].mxu0
        %v2150 = vadd.f32 %v2053, %v2149
        %v2151 = vpop.f32.mrb[0].mxu0
        %2152 = vmatprep.mubr.bf16.mxu0 0
        %2153 = vmatmul.mubr.bf16.gmra.mrb[0].mxu0 %v692
        %v2154 = vpop.f32.mrb[0].mxu0
        %v2155 = vadd.f32 %v2058, %v2154
        %v2156 = vpop.f32.mrb[0].mxu0
        %v2157 = vpop.f32.mrb[0].mxu0
        %v2158 = vadd.f32 %v2061, %v2157
        %v2159 = vpop.f32.mrb[0].mxu0
        %2160 = vmatprep.mubr.bf16.mxu0 0
        %2161 = vmatmul.mubr.bf16.gmra.mrb[0].mxu0 %v821
        %v2162 = vpop.f32.mrb[0].mxu0
        %v2163 = vadd.f32 %v2066, %v2162
        %v2164 = vpop.f32.mrb[0].mxu0
        %v2165 = vpop.f32.mrb[0].mxu0
        %v2166 = vadd.f32 %v2069, %v2165
        %v2167 = vpop.f32.mrb[0].mxu0
        %2168 = vmatprep.mubr.bf16.mxu0 0
        %2169 = vmatmul.mubr.bf16.gmra.mrb[0].mxu0 %v827
        %v2170 = vpop.f32.mrb[0].mxu0
        %v2171 = vadd.f32 %v2074, %v2170
        %v2172 = vpop.f32.mrb[0].mxu0
        %v2173 = vpop.f32.mrb[0].mxu0
        %v2174 = vadd.f32 %v2077, %v2173
        %v2175 = vpop.f32.mrb[0].mxu0
        %2176 = vmatprep.mubr.bf16.mxu0 0
        %2177 = vmatmul.mubr.bf16.gmra.mrb[0].mxu0 %v833
        %v2178 = vpop.f32.mrb[0].mxu0
        %v2179 = vadd.f32 %v2082, %v2178
        %v2180 = vpop.f32.mrb[0].mxu0
        %v2181 = vpop.f32.mrb[0].mxu0
        %v2182 = vadd.f32 %v2085, %v2181
        %v2183 = vpop.f32.mrb[0].mxu0
        %2184 = vmatprep.mubr.bf16.mxu0 0
        %2185 = vmatmul.mubr.bf16.gmra.mrb[0].mxu0 %v839
        %v2186 = vpop.f32.mrb[0].mxu0
        %v2187 = vadd.f32 %v2090, %v2186
        %v2188 = vpop.f32.mrb[0].mxu0
        %v2189 = vpop.f32.mrb[0].mxu0
        %v2190 = vadd.f32 %v2093, %v2189
        %v2191 = vpop.f32.mrb[0].mxu0
        %2192 = vdwg.mxu0
        %v2337 = vunpack.c.l.b16 %v987
        %v2338 = vunpack.c.l.b16 %v988
        %v2339 = vunpack.c.l.b16 %v989
        %v2340 = vunpack.c.l.b16 %v990
        %v2341 = vunpack.c.l.b16 %v991
        %v2342 = vunpack.c.l.b16 %v992
        %v2343 = vunpack.c.l.b16 %v993
        %v2344 = vunpack.c.l.b16 %v994
        %v2345 = vunpack.c.l.b16 %v995
        %v2346 = vunpack.c.l.b16 %v996
        %v2347 = vunpack.c.l.b16 %v997
        %v2348 = vunpack.c.l.b16 %v998
        %v2349 = vunpack.c.l.b16 %v999
        %v2350 = vunpack.c.l.b16 %v1000
        %v2351 = vunpack.c.l.b16 %v1001
        %v2352 = vunpack.c.l.b16 %v1002
        %v2353 = vunpack.c.l.b16 %v1003
        %v2354 = vunpack.c.l.b16 %v1004
        %v2355 = vunpack.c.l.b16 %v1005
        %v2356 = vunpack.c.l.b16 %v1006
        %v2357 = vunpack.c.l.b16 %v1007
        %v2358 = vunpack.c.l.b16 %v1008
        %v2359 = vunpack.c.l.b16 %v1009
        %v2360 = vunpack.c.l.b16 %v1010
        %v2361 = vunpack.c.l.b16 %v1011
        %v2362 = vunpack.c.l.b16 %v1012
        %v2363 = vunpack.c.l.b16 %v1013
        %v2364 = vunpack.c.l.b16 %v1014
        %v2365 = vunpack.c.l.b16 %v1015
        %v2366 = vunpack.c.l.b16 %v1016
        %v2367 = vunpack.c.l.b16 %v1017
        %v2368 = vunpack.c.l.b16 %v1018
        %v2369 = vunpack.c.l.b16 %v1019
        %v2370 = vunpack.c.l.b16 %v1020
        %v2371 = vunpack.c.l.b16 %v1021
        %v2372 = vunpack.c.l.b16 %v1022
        %v2373 = vunpack.c.l.b16 %v1023
        %v2374 = vunpack.c.l.b16 %v1024
        %v2375 = vunpack.c.l.b16 %v1025
        %v2376 = vunpack.c.l.b16 %v1026
        %v2377 = vunpack.c.l.b16 %v1027
        %v2378 = vunpack.c.l.b16 %v1028
        %v2379 = vunpack.c.l.b16 %v1029
        %v2380 = vunpack.c.l.b16 %v1030
        %v2381 = vunpack.c.l.b16 %v1031
        %v2382 = vunpack.c.l.b16 %v1032
        %v2383 = vunpack.c.l.b16 %v1033
        %v2384 = vunpack.c.l.b16 %v1034
        %v2385 = vunpack.c.l.b16 %v1035
        %v2386 = vunpack.c.l.b16 %v1036
        %v2387 = vunpack.c.l.b16 %v1037
        %v2388 = vunpack.c.l.b16 %v1038
        %v2389 = vunpack.c.l.b16 %v1039
        %v2390 = vunpack.c.l.b16 %v1040
        %v2391 = vunpack.c.l.b16 %v1041
        %v2392 = vunpack.c.l.b16 %v1042
        %v2393 = vunpack.c.l.b16 %v1043
        %v2394 = vunpack.c.l.b16 %v1044
        %v2395 = vunpack.c.l.b16 %v1045
        %v2396 = vunpack.c.l.b16 %v1046
        %v2397 = vunpack.c.l.b16 %v1047
        %v2398 = vunpack.c.l.b16 %v1048
        %v2399 = vunpack.c.l.b16 %v1049
        %v2400 = vunpack.c.l.b16 %v1050
        %v2401 = vunpack.c.l.b16 %v1051
        %v2402 = vunpack.c.l.b16 %v1052
        %v2403 = vunpack.c.l.b16 %v1053
        %v2404 = vunpack.c.l.b16 %v1054
        %v2405 = vunpack.c.l.b16 %v1055
        %v2406 = vunpack.c.l.b16 %v1056
        %v2407 = vunpack.c.l.b16 %v1057
        %v2408 = vunpack.c.l.b16 %v1058
        %v2409 = vunpack.c.l.b16 %v1059
        %v2410 = vunpack.c.l.b16 %v1060
        %v2411 = vunpack.c.l.b16 %v1061
        %v2412 = vunpack.c.l.b16 %v1062
        %v2413 = vunpack.c.l.b16 %v1063
        %v2414 = vunpack.c.l.b16 %v1064
        %v2415 = vunpack.c.l.b16 %v1065
        %v2416 = vunpack.c.l.b16 %v1066
        %v2417 = vunpack.c.l.b16 %v1067
        %v2418 = vunpack.c.l.b16 %v1068
        %v2419 = vunpack.c.l.b16 %v1069
        %v2420 = vunpack.c.l.b16 %v1070
        %v2421 = vunpack.c.l.b16 %v1071
        %v2422 = vunpack.c.l.b16 %v1072
        %v2423 = vunpack.c.l.b16 %v1073
        %v2424 = vunpack.c.l.b16 %v1074
        %v2425 = vunpack.c.l.b16 %v1075
        %v2426 = vunpack.c.l.b16 %v1076
        %v2427 = vunpack.c.l.b16 %v1077
        %v2428 = vunpack.c.l.b16 %v1078
        %v2429 = vunpack.c.l.b16 %v1079
        %v2430 = vunpack.c.l.b16 %v1080
        %v2431 = vunpack.c.l.b16 %v1081
        %v2432 = vunpack.c.l.b16 %v1082
        %v2433 = vunpack.c.l.b16 %v1083
        %v2434 = vunpack.c.l.b16 %v1084
        %v2435 = vunpack.c.l.b16 %v1085
        %v2436 = vunpack.c.l.b16 %v1086
        %v2437 = vunpack.c.l.b16 %v1087
        %v2438 = vunpack.c.l.b16 %v1088
        %v2439 = vunpack.c.l.b16 %v1089
        %v2440 = vunpack.c.l.b16 %v1090
        %v2441 = vunpack.c.l.b16 %v1091
        %v2442 = vunpack.c.l.b16 %v1092
        %v2443 = vunpack.c.l.b16 %v1093
        %v2444 = vunpack.c.l.b16 %v1094
        %v2445 = vunpack.c.l.b16 %v1095
        %v2446 = vunpack.c.l.b16 %v1096
        %v2447 = vunpack.c.l.b16 %v1097
        %v2448 = vunpack.c.l.b16 %v1098
        %v2449 = vunpack.c.l.b16 %v1099
        %v2450 = vunpack.c.l.b16 %v1100
        %v2451 = vunpack.c.l.b16 %v1101
        %v2452 = vunpack.c.l.b16 %v1102
        %v2453 = vunpack.c.l.b16 %v1103
        %v2454 = vunpack.c.l.b16 %v1104
        %v2455 = vunpack.c.l.b16 %v1105
        %v2456 = vunpack.c.l.b16 %v1106
        %v2457 = vunpack.c.l.b16 %v1107
        %v2458 = vunpack.c.l.b16 %v1108
        %v2459 = vunpack.c.l.b16 %v1109
        %v2460 = vunpack.c.l.b16 %v1110
        %v2461 = vunpack.c.l.b16 %v1111
        %v2462 = vunpack.c.l.b16 %v1112
        %v2463 = vunpack.c.l.b16 %v1113
        %v2464 = vunpack.c.l.b16 %v1114
        %v2465 = vunpack.c.l.b16 %v1115
        %v2466 = vunpack.c.l.b16 %v1116
        %v2467 = vunpack.c.l.b16 %v1117
        %v2468 = vunpack.c.l.b16 %v1118
        %v2469 = vunpack.c.l.b16 %v1119
        %v2470 = vunpack.c.l.b16 %v1120
        %v2471 = vunpack.c.l.b16 %v1121
        %v2472 = vunpack.c.l.b16 %v1122
        %v2473 = vunpack.c.l.b16 %v1123
        %v2474 = vunpack.c.l.b16 %v1124
        %v2475 = vunpack.c.l.b16 %v1125
        %v2476 = vunpack.c.l.b16 %v1126
        %v2477 = vunpack.c.l.b16 %v1127
        %v2478 = vunpack.c.l.b16 %v1128
        %v2479 = vunpack.c.l.b16 %v1129
        %v2480 = vunpack.c.l.b16 %v1130
        %v2481 = vpack.c.b16 %v2338, %v2337
        %v2482 = vpack.c.b16 %v2340, %v2339
        %v2483 = vpack.c.b16 %v2342, %v2341
        %v2484 = vpack.c.b16 %v2344, %v2343
        %v2485 = vpack.c.b16 %v2346, %v2345
        %v2486 = vpack.c.b16 %v2348, %v2347
        %v2487 = vpack.c.b16 %v2350, %v2349
        %v2488 = vpack.c.b16 %v2352, %v2351
        %v2489 = vpack.c.b16 %v2354, %v2353
        %v2490 = vpack.c.b16 %v2356, %v2355
        %v2491 = vpack.c.b16 %v2358, %v2357
        %v2492 = vpack.c.b16 %v2360, %v2359
        %v2493 = vpack.c.b16 %v2362, %v2361
        %v2494 = vpack.c.b16 %v2364, %v2363
        %v2495 = vpack.c.b16 %v2366, %v2365
        %v2496 = vpack.c.b16 %v2368, %v2367
        %v2497 = vpack.c.b16 %v2370, %v2369
        %v2498 = vpack.c.b16 %v2372, %v2371
        %v2499 = vpack.c.b16 %v2374, %v2373
        %v2500 = vpack.c.b16 %v2376, %v2375
        %v2501 = vpack.c.b16 %v2378, %v2377
        %v2502 = vpack.c.b16 %v2380, %v2379
        %v2503 = vpack.c.b16 %v2382, %v2381
        %v2504 = vpack.c.b16 %v2384, %v2383
        %v2505 = vpack.c.b16 %v2386, %v2385
        %v2506 = vpack.c.b16 %v2388, %v2387
        %v2507 = vpack.c.b16 %v2390, %v2389
        %v2508 = vpack.c.b16 %v2392, %v2391
        %v2509 = vpack.c.b16 %v2394, %v2393
        %v2510 = vpack.c.b16 %v2396, %v2395
        %v2511 = vpack.c.b16 %v2398, %v2397
        %v2512 = vpack.c.b16 %v2400, %v2399
        %v2513 = vpack.c.b16 %v2402, %v2401
        %v2514 = vpack.c.b16 %v2404, %v2403
        %v2515 = vpack.c.b16 %v2406, %v2405
        %v2516 = vpack.c.b16 %v2408, %v2407
        %v2517 = vpack.c.b16 %v2410, %v2409
        %v2518 = vpack.c.b16 %v2412, %v2411
        %v2519 = vpack.c.b16 %v2414, %v2413
        %v2520 = vpack.c.b16 %v2416, %v2415
        %v2521 = vpack.c.b16 %v2418, %v2417
        %v2522 = vpack.c.b16 %v2420, %v2419
        %v2523 = vpack.c.b16 %v2422, %v2421
        %v2524 = vpack.c.b16 %v2424, %v2423
        %v2525 = vpack.c.b16 %v2426, %v2425
        %v2526 = vpack.c.b16 %v2428, %v2427
        %v2527 = vpack.c.b16 %v2430, %v2429
        %v2528 = vpack.c.b16 %v2432, %v2431
        %v2529 = vpack.c.b16 %v2434, %v2433
        %v2530 = vpack.c.b16 %v2436, %v2435
        %v2531 = vpack.c.b16 %v2438, %v2437
        %v2532 = vpack.c.b16 %v2440, %v2439
        %v2533 = vpack.c.b16 %v2442, %v2441
        %v2534 = vpack.c.b16 %v2444, %v2443
        %v2535 = vpack.c.b16 %v2446, %v2445
        %v2536 = vpack.c.b16 %v2448, %v2447
        %v2537 = vpack.c.b16 %v2450, %v2449
        %v2538 = vpack.c.b16 %v2452, %v2451
        %v2539 = vpack.c.b16 %v2454, %v2453
        %v2540 = vpack.c.b16 %v2456, %v2455
        %v2541 = vpack.c.b16 %v2458, %v2457
        %v2542 = vpack.c.b16 %v2460, %v2459
        %v2543 = vpack.c.b16 %v2462, %v2461
        %v2544 = vpack.c.b16 %v2464, %v2463
        %v2545 = vpack.c.b16 %v2466, %v2465
        %v2546 = vpack.c.b16 %v2468, %v2467
        %v2547 = vpack.c.b16 %v2470, %v2469
        %v2548 = vpack.c.b16 %v2472, %v2471
        %v2549 = vpack.c.b16 %v2474, %v2473
        %v2550 = vpack.c.b16 %v2476, %v2475
        %v2551 = vpack.c.b16 %v2478, %v2477
        %v2552 = vpack.c.b16 %v2480, %v2479
        %2625 = vmatprep.subr.bf16.mxu0 0
        %2626 = vmatpush1.bf16.msra.mxu0 %v2481
        %2627 = vmatprep.subr.bf16.mxu0 0
        %2628 = vmatpush1.bf16.msra.mxu0 %v2482
        %2629 = vmatprep.subr.bf16.mxu0 0
        %2630 = vmatpush1.bf16.msra.mxu0 %v2483
        %2631 = vmatprep.subr.bf16.mxu0 0
        %2632 = vmatpush1.bf16.msra.mxu0 %v2484
        %2633 = vmatprep.subr.bf16.mxu0 0
        %2634 = vmatpush1.bf16.msra.mxu0 %v2485
        %2635 = vmatprep.subr.bf16.mxu0 0
        %2636 = vmatpush1.bf16.msra.mxu0 %v2486
        %2637 = vmatprep.subr.bf16.mxu0 0
        %2638 = vmatpush1.bf16.msra.mxu0 %v2487
        %2639 = vmatprep.subr.bf16.mxu0 0
        %2640 = vmatpush1.bf16.msra.mxu0 %v2488
        %2641 = vmatprep.subr.bf16.mxu0 0
        %2642 = vmatpush1.bf16.msra.mxu0 %v2489
        %2643 = vmatprep.subr.bf16.mxu0 0
        %2644 = vmatpush1.bf16.msra.mxu0 %v2490
        %2645 = vmatprep.subr.bf16.mxu0 0
        %2646 = vmatpush1.bf16.msra.mxu0 %v2491
        %2647 = vmatprep.subr.bf16.mxu0 0
        %2648 = vmatpush1.bf16.msra.mxu0 %v2492
        %2649 = vmatprep.subr.bf16.mxu0 0
        %2650 = vmatpush1.bf16.msra.mxu0 %v2493
        %2651 = vmatprep.subr.bf16.mxu0 0
        %2652 = vmatpush1.bf16.msra.mxu0 %v2494
        %2653 = vmatprep.subr.bf16.mxu0 0
        %2654 = vmatpush1.bf16.msra.mxu0 %v2495
        %2655 = vmatprep.subr.bf16.mxu0 0
        %2656 = vmatpush1.bf16.msra.mxu0 %v2496
        %2657 = vmatprep.mubr.bf16.mxu0 %v520
        %2658 = vmatmul.mubr.bf16.gmra.mrb[0].mxu0 %v519
        %v2659 = vpop.f32.mrb[0].mxu0
        %v2660 = vadd.f32 %v2131, %v2659
        %v2661 = vpop.f32.mrb[0].mxu0
        %v2662 = vpop.f32.mrb[0].mxu0
        %v2663 = vadd.f32 %v2134, %v2662
        %v2664 = vpop.f32.mrb[0].mxu0
        %2665 = vmatprep.mubr.bf16.mxu0 %v526
        %2666 = vmatmul.mubr.bf16.gmra.mrb[0].mxu0 %v525
        %v2667 = vpop.f32.mrb[0].mxu0
        %v2668 = vadd.f32 %v2139, %v2667
        %v2669 = vpop.f32.mrb[0].mxu0
        %v2670 = vpop.f32.mrb[0].mxu0
        %v2671 = vadd.f32 %v2142, %v2670
        %v2672 = vpop.f32.mrb[0].mxu0
        %2673 = vmatprep.mubr.bf16.mxu0 %v532
        %2674 = vmatmul.mubr.bf16.gmra.mrb[0].mxu0 %v531
        %v2675 = vpop.f32.mrb[0].mxu0
        %v2676 = vadd.f32 %v2147, %v2675
        %v2677 = vpop.f32.mrb[0].mxu0
        %v2678 = vpop.f32.mrb[0].mxu0
        %v2679 = vadd.f32 %v2150, %v2678
        %v2680 = vpop.f32.mrb[0].mxu0
        %2681 = vmatprep.mubr.bf16.mxu0 %v538
        %2682 = vmatmul.mubr.bf16.gmra.mrb[0].mxu0 %v537
        %v2683 = vpop.f32.mrb[0].mxu0
        %v2684 = vadd.f32 %v2155, %v2683
        %v2685 = vpop.f32.mrb[0].mxu0
        %v2686 = vpop.f32.mrb[0].mxu0
        %v2687 = vadd.f32 %v2158, %v2686
        %v2688 = vpop.f32.mrb[0].mxu0
        %2689 = vmatprep.mubr.bf16.mxu0 %v667
        %2690 = vmatmul.mubr.bf16.gmra.mrb[0].mxu0 %v666
        %v2691 = vpop.f32.mrb[0].mxu0
        %v2692 = vadd.f32 %v2163, %v2691
        %v2693 = vpop.f32.mrb[0].mxu0
        %v2694 = vpop.f32.mrb[0].mxu0
        %v2695 = vadd.f32 %v2166, %v2694
        %v2696 = vpop.f32.mrb[0].mxu0
        %2697 = vmatprep.mubr.bf16.mxu0 %v673
        %2698 = vmatmul.mubr.bf16.gmra.mrb[0].mxu0 %v672
        %v2699 = vpop.f32.mrb[0].mxu0
        %v2700 = vadd.f32 %v2171, %v2699
        %v2701 = vpop.f32.mrb[0].mxu0
        %v2702 = vpop.f32.mrb[0].mxu0
        %v2703 = vadd.f32 %v2174, %v2702
        %v2704 = vpop.f32.mrb[0].mxu0
        %2705 = vmatprep.mubr.bf16.mxu0 %v679
        %2706 = vmatmul.mubr.bf16.gmra.mrb[0].mxu0 %v678
        %v2707 = vpop.f32.mrb[0].mxu0
        %v2708 = vadd.f32 %v2179, %v2707
        %v2709 = vpop.f32.mrb[0].mxu0
        %v2710 = vpop.f32.mrb[0].mxu0
        %v2711 = vadd.f32 %v2182, %v2710
        %v2712 = vpop.f32.mrb[0].mxu0
        %2713 = vmatprep.mubr.bf16.mxu0 %v685
        %2714 = vmatmul.mubr.bf16.gmra.mrb[0].mxu0 %v684
        %v2715 = vpop.f32.mrb[0].mxu0
        %v2716 = vadd.f32 %v2187, %v2715
        %v2717 = vpop.f32.mrb[0].mxu0
        %v2718 = vpop.f32.mrb[0].mxu0
        %v2719 = vadd.f32 %v2190, %v2718
        %v2720 = vpop.f32.mrb[0].mxu0
        %2721 = vdwg.mxu0
        %2722 = vmatprep.subr.bf16.mxu0 0
        %2723 = vmatpush1.bf16.msra.mxu0 %v2497
        %2724 = vmatprep.subr.bf16.mxu0 0
        %2725 = vmatpush1.bf16.msra.mxu0 %v2498
        %2726 = vmatprep.subr.bf16.mxu0 0
        %2727 = vmatpush1.bf16.msra.mxu0 %v2499
        %2728 = vmatprep.subr.bf16.mxu0 0
        %2729 = vmatpush1.bf16.msra.mxu0 %v2500
        %2730 = vmatprep.subr.bf16.mxu0 0
        %2731 = vmatpush1.bf16.msra.mxu0 %v2501
        %2732 = vmatprep.subr.bf16.mxu0 0
        %2733 = vmatpush1.bf16.msra.mxu0 %v2502
        %2734 = vmatprep.subr.bf16.mxu0 0
        %2735 = vmatpush1.bf16.msra.mxu0 %v2503
        %2736 = vmatprep.subr.bf16.mxu0 0
        %2737 = vmatpush1.bf16.msra.mxu0 %v2504
        %2738 = vmatprep.subr.bf16.mxu0 0
        %2739 = vmatpush1.bf16.msra.mxu0 %v2505
        %2740 = vmatprep.subr.bf16.mxu0 0
        %2741 = vmatpush1.bf16.msra.mxu0 %v2506
        %2742 = vmatprep.subr.bf16.mxu0 0
        %2743 = vmatpush1.bf16.msra.mxu0 %v2507
        %2744 = vmatprep.subr.bf16.mxu0 0
        %2745 = vmatpush1.bf16.msra.mxu0 %v2508
        %2746 = vmatprep.subr.bf16.mxu0 0
        %2747 = vmatpush1.bf16.msra.mxu0 %v2509
        %2748 = vmatprep.subr.bf16.mxu0 0
        %2749 = vmatpush1.bf16.msra.mxu0 %v2510
        %2750 = vmatprep.subr.bf16.mxu0 0
        %2751 = vmatpush1.bf16.msra.mxu0 %v2511
        %2752 = vmatprep.subr.bf16.mxu0 0
        %2753 = vmatpush1.bf16.msra.mxu0 %v2512
        %2754 = vmatprep.mubr.bf16.mxu0 %v522
        %2755 = vmatmul.mubr.bf16.gmra.mrb[0].mxu0 %v521
        %v2756 = vpop.f32.mrb[0].mxu0
        %v2757 = vadd.f32 %v2660, %v2756
        %v2758 = vpop.f32.mrb[0].mxu0
        %v2759 = vpop.f32.mrb[0].mxu0
        %v2760 = vadd.f32 %v2663, %v2759
        %v2761 = vpop.f32.mrb[0].mxu0
        %2762 = vmatprep.mubr.bf16.mxu0 %v528
        %2763 = vmatmul.mubr.bf16.gmra.mrb[0].mxu0 %v527
        %v2764 = vpop.f32.mrb[0].mxu0
        %v2765 = vadd.f32 %v2668, %v2764
        %v2766 = vpop.f32.mrb[0].mxu0
        %v2767 = vpop.f32.mrb[0].mxu0
        %v2768 = vadd.f32 %v2671, %v2767
        %v2769 = vpop.f32.mrb[0].mxu0
        %2770 = vmatprep.mubr.bf16.mxu0 %v534
        %2771 = vmatmul.mubr.bf16.gmra.mrb[0].mxu0 %v533
        %v2772 = vpop.f32.mrb[0].mxu0
        %v2773 = vadd.f32 %v2676, %v2772
        %v2774 = vpop.f32.mrb[0].mxu0
        %v2775 = vpop.f32.mrb[0].mxu0
        %v2776 = vadd.f32 %v2679, %v2775
        %v2777 = vpop.f32.mrb[0].mxu0
        %2778 = vmatprep.mubr.bf16.mxu0 %v540
        %2779 = vmatmul.mubr.bf16.gmra.mrb[0].mxu0 %v539
        %v2780 = vpop.f32.mrb[0].mxu0
        %v2781 = vadd.f32 %v2684, %v2780
        %v2782 = vpop.f32.mrb[0].mxu0
        %v2783 = vpop.f32.mrb[0].mxu0
        %v2784 = vadd.f32 %v2687, %v2783
        %v2785 = vpop.f32.mrb[0].mxu0
        %2786 = vmatprep.mubr.bf16.mxu0 %v669
        %2787 = vmatmul.mubr.bf16.gmra.mrb[0].mxu0 %v668
        %v2788 = vpop.f32.mrb[0].mxu0
        %v2789 = vadd.f32 %v2692, %v2788
        %v2790 = vpop.f32.mrb[0].mxu0
        %v2791 = vpop.f32.mrb[0].mxu0
        %v2792 = vadd.f32 %v2695, %v2791
        %v2793 = vpop.f32.mrb[0].mxu0
        %2794 = vmatprep.mubr.bf16.mxu0 %v675
        %2795 = vmatmul.mubr.bf16.gmra.mrb[0].mxu0 %v674
        %v2796 = vpop.f32.mrb[0].mxu0
        %v2797 = vadd.f32 %v2700, %v2796
        %v2798 = vpop.f32.mrb[0].mxu0
        %v2799 = vpop.f32.mrb[0].mxu0
        %v2800 = vadd.f32 %v2703, %v2799
        %v2801 = vpop.f32.mrb[0].mxu0
        %2802 = vmatprep.mubr.bf16.mxu0 %v681
        %2803 = vmatmul.mubr.bf16.gmra.mrb[0].mxu0 %v680
        %v2804 = vpop.f32.mrb[0].mxu0
        %v2805 = vadd.f32 %v2708, %v2804
        %v2806 = vpop.f32.mrb[0].mxu0
        %v2807 = vpop.f32.mrb[0].mxu0
        %v2808 = vadd.f32 %v2711, %v2807
        %v2809 = vpop.f32.mrb[0].mxu0
        %2810 = vmatprep.mubr.bf16.mxu0 %v687
        %2811 = vmatmul.mubr.bf16.gmra.mrb[0].mxu0 %v686
        %v2812 = vpop.f32.mrb[0].mxu0
        %v2813 = vadd.f32 %v2716, %v2812
        %v2814 = vpop.f32.mrb[0].mxu0
        %v2815 = vpop.f32.mrb[0].mxu0
        %v2816 = vadd.f32 %v2719, %v2815
        %v2817 = vpop.f32.mrb[0].mxu0
        %2818 = vdwg.mxu0
        %2819 = vmatprep.subr.bf16.mxu0 0
        %2820 = vmatpush1.bf16.msra.mxu0 %v2513
        %2821 = vmatprep.subr.bf16.mxu0 0
        %2822 = vmatpush1.bf16.msra.mxu0 %v2514
        %2823 = vmatprep.subr.bf16.mxu0 0
        %2824 = vmatpush1.bf16.msra.mxu0 %v2515
        %2825 = vmatprep.subr.bf16.mxu0 0
        %2826 = vmatpush1.bf16.msra.mxu0 %v2516
        %2827 = vmatprep.subr.bf16.mxu0 0
        %2828 = vmatpush1.bf16.msra.mxu0 %v2517
        %2829 = vmatprep.subr.bf16.mxu0 0
        %2830 = vmatpush1.bf16.msra.mxu0 %v2518
        %2831 = vmatprep.subr.bf16.mxu0 0
        %2832 = vmatpush1.bf16.msra.mxu0 %v2519
        %2833 = vmatprep.subr.bf16.mxu0 0
        %2834 = vmatpush1.bf16.msra.mxu0 %v2520
        %2835 = vmatprep.subr.bf16.mxu0 0
        %2836 = vmatpush1.bf16.msra.mxu0 %v2521
        %2837 = vmatprep.subr.bf16.mxu0 0
        %2838 = vmatpush1.bf16.msra.mxu0 %v2522
        %2839 = vmatprep.subr.bf16.mxu0 0
        %2840 = vmatpush1.bf16.msra.mxu0 %v2523
        %2841 = vmatprep.subr.bf16.mxu0 0
        %2842 = vmatpush1.bf16.msra.mxu0 %v2524
        %2843 = vmatprep.subr.bf16.mxu0 0
        %2844 = vmatpush1.bf16.msra.mxu0 %v2525
        %2845 = vmatprep.subr.bf16.mxu0 0
        %2846 = vmatpush1.bf16.msra.mxu0 %v2526
        %2847 = vmatprep.subr.bf16.mxu0 0
        %2848 = vmatpush1.bf16.msra.mxu0 %v2527
        %2849 = vmatprep.subr.bf16.mxu0 0
        %2850 = vmatpush1.bf16.msra.mxu0 %v2528
        %2851 = vmatprep.mubr.bf16.mxu0 %v524
        %2852 = vmatmul.mubr.bf16.gmra.mrb[0].mxu0 %v523
        %v2853 = vpop.f32.mrb[0].mxu0
        %v2854 = vadd.f32 %v2757, %v2853
        %v2855 = vpop.f32.mrb[0].mxu0
        %v2856 = vpop.f32.mrb[0].mxu0
        %v2857 = vadd.f32 %v2760, %v2856
        %v2858 = vpop.f32.mrb[0].mxu0
        %2859 = vmatprep.mubr.bf16.mxu0 %v530
        %2860 = vmatmul.mubr.bf16.gmra.mrb[0].mxu0 %v529
        %v2861 = vpop.f32.mrb[0].mxu0
        %v2862 = vadd.f32 %v2765, %v2861
        %v2863 = vpop.f32.mrb[0].mxu0
        %v2864 = vpop.f32.mrb[0].mxu0
        %v2865 = vadd.f32 %v2768, %v2864
        %v2866 = vpop.f32.mrb[0].mxu0
        %2867 = vmatprep.mubr.bf16.mxu0 %v536
        %2868 = vmatmul.mubr.bf16.gmra.mrb[0].mxu0 %v535
        %v2869 = vpop.f32.mrb[0].mxu0
        %v2870 = vadd.f32 %v2773, %v2869
        %v2871 = vpop.f32.mrb[0].mxu0
        %v2872 = vpop.f32.mrb[0].mxu0
        %v2873 = vadd.f32 %v2776, %v2872
        %v2874 = vpop.f32.mrb[0].mxu0
        %2875 = vmatprep.mubr.bf16.mxu0 %v542
        %2876 = vmatmul.mubr.bf16.gmra.mrb[0].mxu0 %v541
        %v2877 = vpop.f32.mrb[0].mxu0
        %v2878 = vadd.f32 %v2781, %v2877
        %v2879 = vpop.f32.mrb[0].mxu0
        %v2880 = vpop.f32.mrb[0].mxu0
        %v2881 = vadd.f32 %v2784, %v2880
        %v2882 = vpop.f32.mrb[0].mxu0
        %2883 = vmatprep.mubr.bf16.mxu0 %v671
        %2884 = vmatmul.mubr.bf16.gmra.mrb[0].mxu0 %v670
        %v2885 = vpop.f32.mrb[0].mxu0
        %v2886 = vadd.f32 %v2789, %v2885
        %v2887 = vpop.f32.mrb[0].mxu0
        %v2888 = vpop.f32.mrb[0].mxu0
        %v2889 = vadd.f32 %v2792, %v2888
        %v2890 = vpop.f32.mrb[0].mxu0
        %2891 = vmatprep.mubr.bf16.mxu0 %v677
        %2892 = vmatmul.mubr.bf16.gmra.mrb[0].mxu0 %v676
        %v2893 = vpop.f32.mrb[0].mxu0
        %v2894 = vadd.f32 %v2797, %v2893
        %v2895 = vpop.f32.mrb[0].mxu0
        %v2896 = vpop.f32.mrb[0].mxu0
        %v2897 = vadd.f32 %v2800, %v2896
        %v2898 = vpop.f32.mrb[0].mxu0
        %2899 = vmatprep.mubr.bf16.mxu0 %v683
        %2900 = vmatmul.mubr.bf16.gmra.mrb[0].mxu0 %v682
        %v2901 = vpop.f32.mrb[0].mxu0
        %v2902 = vadd.f32 %v2805, %v2901
        %v2903 = vpop.f32.mrb[0].mxu0
        %v2904 = vpop.f32.mrb[0].mxu0
        %v2905 = vadd.f32 %v2808, %v2904
        %v2906 = vpop.f32.mrb[0].mxu0
        %2907 = vmatprep.mubr.bf16.mxu0 %v689
        %2908 = vmatmul.mubr.bf16.gmra.mrb[0].mxu0 %v688
        %v2909 = vpop.f32.mrb[0].mxu0
        %v2910 = vadd.f32 %v2813, %v2909
        %v2911 = vpop.f32.mrb[0].mxu0
        %v2912 = vpop.f32.mrb[0].mxu0
        %v2913 = vadd.f32 %v2816, %v2912
        %v2914 = vpop.f32.mrb[0].mxu0
        %2915 = vdwg.mxu0
        %2916 = vmatprep.subr.bf16.mxu0 0
        %2917 = vmatpush1.bf16.msra.mxu0 %v2529
        %2918 = vmatprep.subr.bf16.mxu0 0
        %2919 = vmatpush1.bf16.msra.mxu0 %v2530
        %2920 = vmatprep.subr.bf16.mxu0 0
        %2921 = vmatpush1.bf16.msra.mxu0 %v2531
        %2922 = vmatprep.subr.bf16.mxu0 0
        %2923 = vmatpush1.bf16.msra.mxu0 %v2532
        %2924 = vmatprep.subr.bf16.mxu0 0
        %2925 = vmatpush1.bf16.msra.mxu0 %v2533
        %2926 = vmatprep.subr.bf16.mxu0 0
        %2927 = vmatpush1.bf16.msra.mxu0 %v2534
        %2928 = vmatprep.subr.bf16.mxu0 0
        %2929 = vmatpush1.bf16.msra.mxu0 %v2535
        %2930 = vmatprep.subr.bf16.mxu0 0
        %2931 = vmatpush1.bf16.msra.mxu0 %v2536
        %2932 = vmatprep.subr.bf16.mxu0 0
        %2933 = vmatpush1.bf16.msra.mxu0 %v2537
        %2934 = vmatprep.subr.bf16.mxu0 0
        %2935 = vmatpush1.bf16.msra.mxu0 %v2538
        %2936 = vmatprep.subr.bf16.mxu0 0
        %2937 = vmatpush1.bf16.msra.mxu0 %v2539
        %2938 = vmatprep.subr.bf16.mxu0 0
        %2939 = vmatpush1.bf16.msra.mxu0 %v2540
        %2940 = vmatprep.subr.bf16.mxu0 0
        %2941 = vmatpush1.bf16.msra.mxu0 %v2541
        %2942 = vmatprep.subr.bf16.mxu0 0
        %2943 = vmatpush1.bf16.msra.mxu0 %v2542
        %2944 = vmatprep.subr.bf16.mxu0 0
        %2945 = vmatpush1.bf16.msra.mxu0 %v2543
        %2946 = vmatprep.subr.bf16.mxu0 0
        %2947 = vmatpush1.bf16.msra.mxu0 %v2544
        %2948 = vmatprep.mubr.bf16.mxu0 %v526
        %2949 = vmatmul.mubr.bf16.gmra.mrb[0].mxu0 %v525
        %v2950 = vpop.f32.mrb[0].mxu0
        %v2951 = vadd.f32 %v2854, %v2950
        %v2952 = vpop.f32.mrb[0].mxu0
        %v2953 = vpop.f32.mrb[0].mxu0
        %v2954 = vadd.f32 %v2857, %v2953
        %v2955 = vpop.f32.mrb[0].mxu0
        %2956 = vmatprep.mubr.bf16.mxu0 %v532
        %2957 = vmatmul.mubr.bf16.gmra.mrb[0].mxu0 %v531
        %v2958 = vpop.f32.mrb[0].mxu0
        %v2959 = vadd.f32 %v2862, %v2958
        %v2960 = vpop.f32.mrb[0].mxu0
        %v2961 = vpop.f32.mrb[0].mxu0
        %v2962 = vadd.f32 %v2865, %v2961
        %v2963 = vpop.f32.mrb[0].mxu0
        %2964 = vmatprep.mubr.bf16.mxu0 %v538
        %2965 = vmatmul.mubr.bf16.gmra.mrb[0].mxu0 %v537
        %v2966 = vpop.f32.mrb[0].mxu0
        %v2967 = vadd.f32 %v2870, %v2966
        %v2968 = vpop.f32.mrb[0].mxu0
        %v2969 = vpop.f32.mrb[0].mxu0
        %v2970 = vadd.f32 %v2873, %v2969
        %v2971 = vpop.f32.mrb[0].mxu0
        %2972 = vmatprep.mubr.bf16.mxu0 %v544
        %2973 = vmatmul.mubr.bf16.gmra.mrb[0].mxu0 %v543
        %v2974 = vpop.f32.mrb[0].mxu0
        %v2975 = vadd.f32 %v2878, %v2974
        %v2976 = vpop.f32.mrb[0].mxu0
        %v2977 = vpop.f32.mrb[0].mxu0
        %v2978 = vadd.f32 %v2881, %v2977
        %v2979 = vpop.f32.mrb[0].mxu0
        %2980 = vmatprep.mubr.bf16.mxu0 %v673
        %2981 = vmatmul.mubr.bf16.gmra.mrb[0].mxu0 %v672
        %v2982 = vpop.f32.mrb[0].mxu0
        %v2983 = vadd.f32 %v2886, %v2982
        %v2984 = vpop.f32.mrb[0].mxu0
        %v2985 = vpop.f32.mrb[0].mxu0
        %v2986 = vadd.f32 %v2889, %v2985
        %v2987 = vpop.f32.mrb[0].mxu0
        %2988 = vmatprep.mubr.bf16.mxu0 %v679
        %2989 = vmatmul.mubr.bf16.gmra.mrb[0].mxu0 %v678
        %v2990 = vpop.f32.mrb[0].mxu0
        %v2991 = vadd.f32 %v2894, %v2990
        %v2992 = vpop.f32.mrb[0].mxu0
        %v2993 = vpop.f32.mrb[0].mxu0
        %v2994 = vadd.f32 %v2897, %v2993
        %v2995 = vpop.f32.mrb[0].mxu0
        %2996 = vmatprep.mubr.bf16.mxu0 %v685
        %2997 = vmatmul.mubr.bf16.gmra.mrb[0].mxu0 %v684
        %v2998 = vpop.f32.mrb[0].mxu0
        %v2999 = vadd.f32 %v2902, %v2998
        %v3000 = vpop.f32.mrb[0].mxu0
        %v3001 = vpop.f32.mrb[0].mxu0
        %v3002 = vadd.f32 %v2905, %v3001
        %v3003 = vpop.f32.mrb[0].mxu0
        %3004 = vmatprep.mubr.bf16.mxu0 %v691
        %3005 = vmatmul.mubr.bf16.gmra.mrb[0].mxu0 %v690
        %v3006 = vpop.f32.mrb[0].mxu0
        %v3007 = vadd.f32 %v2910, %v3006
        %v3008 = vpop.f32.mrb[0].mxu0
        %v3009 = vpop.f32.mrb[0].mxu0
        %v3010 = vadd.f32 %v2913, %v3009
        %v3011 = vpop.f32.mrb[0].mxu0
        %3012 = vdwg.mxu0
        %3013 = vmatprep.subr.bf16.mxu0 0
        %3014 = vmatpush1.bf16.msra.mxu0 %v2545
        %3015 = vmatprep.subr.bf16.mxu0 0
        %3016 = vmatpush1.bf16.msra.mxu0 %v2546
        %3017 = vmatprep.subr.bf16.mxu0 0
        %3018 = vmatpush1.bf16.msra.mxu0 %v2547
        %3019 = vmatprep.subr.bf16.mxu0 0
        %3020 = vmatpush1.bf16.msra.mxu0 %v2548
        %3021 = vmatprep.subr.bf16.mxu0 0
        %3022 = vmatpush1.bf16.msra.mxu0 %v2549
        %3023 = vmatprep.subr.bf16.mxu0 0
        %3024 = vmatpush1.bf16.msra.mxu0 %v2550
        %3025 = vmatprep.subr.bf16.mxu0 0
        %3026 = vmatpush1.bf16.msra.mxu0 %v2551
        %3027 = vmatprep.subr.bf16.mxu0 0
        %3028 = vmatpush1.bf16.msra.mxu0 %v2552
        %3029 = vmatprep.subr.bf16.mxu0 0
        %3030 = vmatpush1.bf16.msra.mxu0 0
        %3031 = vmatprep.subr.bf16.mxu0 0
        %3032 = vmatpush1.bf16.msra.mxu0 0
        %3033 = vmatprep.subr.bf16.mxu0 0
        %3034 = vmatpush1.bf16.msra.mxu0 0
        %3035 = vmatprep.subr.bf16.mxu0 0
        %3036 = vmatpush1.bf16.msra.mxu0 0
        %3037 = vmatprep.subr.bf16.mxu0 0
        %3038 = vmatpush1.bf16.msra.mxu0 0
        %3039 = vmatprep.subr.bf16.mxu0 0
        %3040 = vmatpush1.bf16.msra.mxu0 0
        %3041 = vmatprep.subr.bf16.mxu0 0
        %3042 = vmatpush1.bf16.msra.mxu0 0
        %3043 = vmatprep.subr.bf16.mxu0 0
        %3044 = vmatpush1.bf16.msra.mxu0 0
        %3045 = vmatprep.mubr.bf16.mxu0 0
        %3046 = vmatmul.mubr.bf16.gmra.mrb[0].mxu0 %v527
        %v3047 = vpop.f32.mrb[0].mxu0
        %v3048 = vadd.f32 %v2951, %v3047
        %v3049 = vpop.f32.mrb[0].mxu0
        %v3050 = vpop.f32.mrb[0].mxu0
        %v3051 = vadd.f32 %v2954, %v3050
        %v3052 = vpop.f32.mrb[0].mxu0
        %3053 = vmatprep.mubr.bf16.mxu0 0
        %3054 = vmatmul.mubr.bf16.gmra.mrb[0].mxu0 %v533
        %v3055 = vpop.f32.mrb[0].mxu0
        %v3056 = vadd.f32 %v2959, %v3055
        %v3057 = vpop.f32.mrb[0].mxu0
        %v3058 = vpop.f32.mrb[0].mxu0
        %v3059 = vadd.f32 %v2962, %v3058
        %v3060 = vpop.f32.mrb[0].mxu0
        %3061 = vmatprep.mubr.bf16.mxu0 0
        %3062 = vmatmul.mubr.bf16.gmra.mrb[0].mxu0 %v539
        %v3063 = vpop.f32.mrb[0].mxu0
        %v3064 = vadd.f32 %v2967, %v3063
        %v3065 = vpop.f32.mrb[0].mxu0
        %v3066 = vpop.f32.mrb[0].mxu0
        %v3067 = vadd.f32 %v2970, %v3066
        %v3068 = vpop.f32.mrb[0].mxu0
        %3069 = vmatprep.mubr.bf16.mxu0 0
        %3070 = vmatmul.mubr.bf16.gmra.mrb[0].mxu0 %v545
        %v3071 = vpop.f32.mrb[0].mxu0
        %v3072 = vadd.f32 %v2975, %v3071
        %v3073 = vpop.f32.mrb[0].mxu0
        %v3074 = vpop.f32.mrb[0].mxu0
        %v3075 = vadd.f32 %v2978, %v3074
        %v3076 = vpop.f32.mrb[0].mxu0
        %3077 = vmatprep.mubr.bf16.mxu0 0
        %3078 = vmatmul.mubr.bf16.gmra.mrb[0].mxu0 %v674
        %v3079 = vpop.f32.mrb[0].mxu0
        %v3080 = vadd.f32 %v2983, %v3079
        %v3081 = vpop.f32.mrb[0].mxu0
        %v3082 = vpop.f32.mrb[0].mxu0
        %v3083 = vadd.f32 %v2986, %v3082
        %v3084 = vpop.f32.mrb[0].mxu0
        %3085 = vmatprep.mubr.bf16.mxu0 0
        %3086 = vmatmul.mubr.bf16.gmra.mrb[0].mxu0 %v680
        %v3087 = vpop.f32.mrb[0].mxu0
        %v3088 = vadd.f32 %v2991, %v3087
        %v3089 = vpop.f32.mrb[0].mxu0
        %v3090 = vpop.f32.mrb[0].mxu0
        %v3091 = vadd.f32 %v2994, %v3090
        %v3092 = vpop.f32.mrb[0].mxu0
        %3093 = vmatprep.mubr.bf16.mxu0 0
        %3094 = vmatmul.mubr.bf16.gmra.mrb[0].mxu0 %v686
        %v3095 = vpop.f32.mrb[0].mxu0
        %v3096 = vadd.f32 %v2999, %v3095
        %v3097 = vpop.f32.mrb[0].mxu0
        %v3098 = vpop.f32.mrb[0].mxu0
        %v3099 = vadd.f32 %v3002, %v3098
        %v3100 = vpop.f32.mrb[0].mxu0
        %3101 = vmatprep.mubr.bf16.mxu0 0
        %3102 = vmatmul.mubr.bf16.gmra.mrb[0].mxu0 %v692
        %v3103 = vpop.f32.mrb[0].mxu0
        %v3104 = vadd.f32 %v3007, %v3103
        %v3105 = vpop.f32.mrb[0].mxu0
        %v3106 = vpop.f32.mrb[0].mxu0
        %v3107 = vadd.f32 %v3010, %v3106
        %v3108 = vpop.f32.mrb[0].mxu0
        %3109 = vdwg.mxu0
        %s3110 = scalar_lea.vmem [#allocation7], 1152
        %v3111 = vld [vmem:[%s3110] sm:$0xf]
        %v3112 = vld [vmem:[%s3110 + $0x4] sm:$0xf]
        %v3113 = vld [vmem:[%s3110 + $0x8] sm:$0xf]
        %v3114 = vld [vmem:[%s3110 + $0xc] sm:$0xf]
        %v3115 = vld [vmem:[%s3110 + $0x10] sm:$0xf]
        %v3116 = vld [vmem:[%s3110 + $0x14] sm:$0xf]
        %v3117 = vld [vmem:[%s3110 + $0x18] sm:$0xf]
        %v3118 = vld [vmem:[%s3110 + $0x1c] sm:$0xf]
        %v3119 = vld [vmem:[%s3110 + $0x20] sm:$0xf]
        %v3120 = vld [vmem:[%s3110 + $0x24] sm:$0xf]
        %v3121 = vld [vmem:[%s3110 + $0x28] sm:$0xf]
        %v3122 = vld [vmem:[%s3110 + $0x2c] sm:$0xf]
        %v3123 = vld [vmem:[%s3110 + $0x30] sm:$0xf]
        %v3124 = vld [vmem:[%s3110 + $0x34] sm:$0xf]
        %v3125 = vld [vmem:[%s3110 + $0x38] sm:$0xf]
        %v3126 = vld [vmem:[%s3110 + $0x3c] sm:$0xf]
        %v3127 = vld [vmem:[%s3110 + $0x40] sm:$0xf]
        %v3128 = vld [vmem:[%s3110 + $0x44] sm:$0xf]
        %v3129 = vld [vmem:[%s3110 + $0x48] sm:$0xf]
        %v3130 = vld [vmem:[%s3110 + $0x4c] sm:$0xf]
        %v3131 = vld [vmem:[%s3110 + $0x50] sm:$0xf]
        %v3132 = vld [vmem:[%s3110 + $0x54] sm:$0xf]
        %v3133 = vld [vmem:[%s3110 + $0x58] sm:$0xf]
        %v3134 = vld [vmem:[%s3110 + $0x5c] sm:$0xf]
        %v3135 = vld [vmem:[%s3110 + $0x60] sm:$0xf]
        %v3136 = vld [vmem:[%s3110 + $0x64] sm:$0xf]
        %v3137 = vld [vmem:[%s3110 + $0x68] sm:$0xf]
        %v3138 = vld [vmem:[%s3110 + $0x6c] sm:$0xf]
        %v3139 = vld [vmem:[%s3110 + $0x70] sm:$0xf]
        %v3140 = vld [vmem:[%s3110 + $0x74] sm:$0xf]
        %v3141 = vld [vmem:[%s3110 + $0x78] sm:$0xf]
        %v3142 = vld [vmem:[%s3110 + $0x7c] sm:$0xf]
        %v3143 = vld [vmem:[%s3110 + $0x80] sm:$0xf]
        %v3144 = vld [vmem:[%s3110 + $0x84] sm:$0xf]
        %v3145 = vld [vmem:[%s3110 + $0x88] sm:$0xf]
        %v3146 = vld [vmem:[%s3110 + $0x8c] sm:$0xf]
        %v3147 = vld [vmem:[%s3110 + $0x90] sm:$0xf]
        %v3148 = vld [vmem:[%s3110 + $0x94] sm:$0xf]
        %v3149 = vld [vmem:[%s3110 + $0x98] sm:$0xf]
        %v3150 = vld [vmem:[%s3110 + $0x9c] sm:$0xf]
        %v3151 = vld [vmem:[%s3110 + $0xa0] sm:$0xf]
        %v3152 = vld [vmem:[%s3110 + $0xa4] sm:$0xf]
        %v3153 = vld [vmem:[%s3110 + $0xa8] sm:$0xf]
        %v3154 = vld [vmem:[%s3110 + $0xac] sm:$0xf]
        %v3155 = vld [vmem:[%s3110 + $0xb0] sm:$0xf]
        %v3156 = vld [vmem:[%s3110 + $0xb4] sm:$0xf]
        %v3157 = vld [vmem:[%s3110 + $0xb8] sm:$0xf]
        %v3158 = vld [vmem:[%s3110 + $0xbc] sm:$0xf]
        %v3159 = vld [vmem:[%s3110 + $0xc0] sm:$0xf]
        %v3160 = vld [vmem:[%s3110 + $0xc4] sm:$0xf]
        %v3161 = vld [vmem:[%s3110 + $0xc8] sm:$0xf]
        %v3162 = vld [vmem:[%s3110 + $0xcc] sm:$0xf]
        %v3163 = vld [vmem:[%s3110 + $0xd0] sm:$0xf]
        %v3164 = vld [vmem:[%s3110 + $0xd4] sm:$0xf]
        %v3165 = vld [vmem:[%s3110 + $0xd8] sm:$0xf]
        %v3166 = vld [vmem:[%s3110 + $0xdc] sm:$0xf]
        %v3167 = vld [vmem:[%s3110 + $0xe0] sm:$0xf]
        %v3168 = vld [vmem:[%s3110 + $0xe4] sm:$0xf]
        %v3169 = vld [vmem:[%s3110 + $0xe8] sm:$0xf]
        %v3170 = vld [vmem:[%s3110 + $0xec] sm:$0xf]
        %v3171 = vld [vmem:[%s3110 + $0xf0] sm:$0xf]
        %v3172 = vld [vmem:[%s3110 + $0xf4] sm:$0xf]
        %v3173 = vld [vmem:[%s3110 + $0xf8] sm:$0xf]
        %v3174 = vld [vmem:[%s3110 + $0xfc] sm:$0xf]
        %v3175 = vld [vmem:[%s3110 + $0x100] sm:$0xf]
        %v3176 = vld [vmem:[%s3110 + $0x104] sm:$0xf]
        %v3177 = vld [vmem:[%s3110 + $0x108] sm:$0xf]
        %v3178 = vld [vmem:[%s3110 + $0x10c] sm:$0xf]
        %v3179 = vld [vmem:[%s3110 + $0x110] sm:$0xf]
        %v3180 = vld [vmem:[%s3110 + $0x114] sm:$0xf]
        %v3181 = vld [vmem:[%s3110 + $0x118] sm:$0xf]
        %v3182 = vld [vmem:[%s3110 + $0x11c] sm:$0xf]
        %v3183 = vld [vmem:[%s3110 + $0x120] sm:$0xf]
        %v3184 = vld [vmem:[%s3110 + $0x124] sm:$0xf]
        %v3185 = vld [vmem:[%s3110 + $0x128] sm:$0xf]
        %v3186 = vld [vmem:[%s3110 + $0x12c] sm:$0xf]
        %v3187 = vld [vmem:[%s3110 + $0x130] sm:$0xf]
        %v3188 = vld [vmem:[%s3110 + $0x134] sm:$0xf]
        %v3189 = vld [vmem:[%s3110 + $0x138] sm:$0xf]
        %v3190 = vld [vmem:[%s3110 + $0x13c] sm:$0xf]
        %v3191 = vld [vmem:[%s3110 + $0x140] sm:$0xf]
        %v3192 = vld [vmem:[%s3110 + $0x144] sm:$0xf]
        %v3193 = vld [vmem:[%s3110 + $0x148] sm:$0xf]
        %v3194 = vld [vmem:[%s3110 + $0x14c] sm:$0xf]
        %v3195 = vld [vmem:[%s3110 + $0x150] sm:$0xf]
        %v3196 = vld [vmem:[%s3110 + $0x154] sm:$0xf]
        %v3197 = vld [vmem:[%s3110 + $0x158] sm:$0xf]
        %v3198 = vld [vmem:[%s3110 + $0x15c] sm:$0xf]
        %v3199 = vld [vmem:[%s3110 + $0x160] sm:$0xf]
        %v3200 = vld [vmem:[%s3110 + $0x164] sm:$0xf]
        %v3201 = vld [vmem:[%s3110 + $0x168] sm:$0xf]
        %v3202 = vld [vmem:[%s3110 + $0x16c] sm:$0xf]
        %v3203 = vld [vmem:[%s3110 + $0x170] sm:$0xf]
        %v3204 = vld [vmem:[%s3110 + $0x174] sm:$0xf]
        %v3205 = vld [vmem:[%s3110 + $0x178] sm:$0xf]
        %v3206 = vld [vmem:[%s3110 + $0x17c] sm:$0xf]
        %v3207 = vld [vmem:[%s3110 + $0x180] sm:$0xf]
        %v3208 = vld [vmem:[%s3110 + $0x184] sm:$0xf]
        %v3209 = vld [vmem:[%s3110 + $0x188] sm:$0xf]
        %v3210 = vld [vmem:[%s3110 + $0x18c] sm:$0xf]
        %v3211 = vld [vmem:[%s3110 + $0x190] sm:$0xf]
        %v3212 = vld [vmem:[%s3110 + $0x194] sm:$0xf]
        %v3213 = vld [vmem:[%s3110 + $0x198] sm:$0xf]
        %v3214 = vld [vmem:[%s3110 + $0x19c] sm:$0xf]
        %v3215 = vld [vmem:[%s3110 + $0x1a0] sm:$0xf]
        %v3216 = vld [vmem:[%s3110 + $0x1a4] sm:$0xf]
        %v3217 = vld [vmem:[%s3110 + $0x1a8] sm:$0xf]
        %v3218 = vld [vmem:[%s3110 + $0x1ac] sm:$0xf]
        %v3219 = vld [vmem:[%s3110 + $0x1b0] sm:$0xf]
        %v3220 = vld [vmem:[%s3110 + $0x1b4] sm:$0xf]
        %v3221 = vld [vmem:[%s3110 + $0x1b8] sm:$0xf]
        %v3222 = vld [vmem:[%s3110 + $0x1bc] sm:$0xf]
        %v3223 = vld [vmem:[%s3110 + $0x1c0] sm:$0xf]
        %v3224 = vld [vmem:[%s3110 + $0x1c4] sm:$0xf]
        %v3225 = vld [vmem:[%s3110 + $0x1c8] sm:$0xf]
        %v3226 = vld [vmem:[%s3110 + $0x1cc] sm:$0xf]
        %v3227 = vld [vmem:[%s3110 + $0x1d0] sm:$0xf]
        %v3228 = vld [vmem:[%s3110 + $0x1d4] sm:$0xf]
        %v3229 = vld [vmem:[%s3110 + $0x1d8] sm:$0xf]
        %v3230 = vld [vmem:[%s3110 + $0x1dc] sm:$0xf]
        %v3231 = vld [vmem:[%s3110 + $0x1e0] sm:$0xf]
        %v3232 = vld [vmem:[%s3110 + $0x1e4] sm:$0xf]
        %v3233 = vld [vmem:[%s3110 + $0x1e8] sm:$0xf]
        %v3234 = vld [vmem:[%s3110 + $0x1ec] sm:$0xf]
        %v3235 = vld [vmem:[%s3110 + $0x1f0] sm:$0xf]
        %v3236 = vld [vmem:[%s3110 + $0x1f4] sm:$0xf]
        %v3237 = vld [vmem:[%s3110 + $0x1f8] sm:$0xf]
        %v3238 = vld [vmem:[%s3110 + $0x1fc] sm:$0xf]
        %v3239 = vld [vmem:[%s3110 + $0x200] sm:$0xf]
        %v3240 = vld [vmem:[%s3110 + $0x204] sm:$0xf]
        %v3241 = vld [vmem:[%s3110 + $0x208] sm:$0xf]
        %v3242 = vld [vmem:[%s3110 + $0x20c] sm:$0xf]
        %v3243 = vld [vmem:[%s3110 + $0x210] sm:$0xf]
        %v3244 = vld [vmem:[%s3110 + $0x214] sm:$0xf]
        %v3245 = vld [vmem:[%s3110 + $0x218] sm:$0xf]
        %v3246 = vld [vmem:[%s3110 + $0x21c] sm:$0xf]
        %v3247 = vld [vmem:[%s3110 + $0x220] sm:$0xf]
        %v3248 = vld [vmem:[%s3110 + $0x224] sm:$0xf]
        %v3249 = vld [vmem:[%s3110 + $0x228] sm:$0xf]
        %v3250 = vld [vmem:[%s3110 + $0x22c] sm:$0xf]
        %v3251 = vld [vmem:[%s3110 + $0x230] sm:$0xf]
        %v3252 = vld [vmem:[%s3110 + $0x234] sm:$0xf]
        %v3253 = vld [vmem:[%s3110 + $0x238] sm:$0xf]
        %v3254 = vld [vmem:[%s3110 + $0x23c] sm:$0xf]
        %v3399 = vunpack.c.l.b16 %v3111
        %v3400 = vunpack.c.l.b16 %v3112
        %v3401 = vunpack.c.l.b16 %v3113
        %v3402 = vunpack.c.l.b16 %v3114
        %v3403 = vunpack.c.l.b16 %v3115
        %v3404 = vunpack.c.l.b16 %v3116
        %v3405 = vunpack.c.l.b16 %v3117
        %v3406 = vunpack.c.l.b16 %v3118
        %v3407 = vunpack.c.l.b16 %v3119
        %v3408 = vunpack.c.l.b16 %v3120
        %v3409 = vunpack.c.l.b16 %v3121
        %v3410 = vunpack.c.l.b16 %v3122
        %v3411 = vunpack.c.l.b16 %v3123
        %v3412 = vunpack.c.l.b16 %v3124
        %v3413 = vunpack.c.l.b16 %v3125
        %v3414 = vunpack.c.l.b16 %v3126
        %v3415 = vunpack.c.l.b16 %v3127
        %v3416 = vunpack.c.l.b16 %v3128
        %v3417 = vunpack.c.l.b16 %v3129
        %v3418 = vunpack.c.l.b16 %v3130
        %v3419 = vunpack.c.l.b16 %v3131
        %v3420 = vunpack.c.l.b16 %v3132
        %v3421 = vunpack.c.l.b16 %v3133
        %v3422 = vunpack.c.l.b16 %v3134
        %v3423 = vunpack.c.l.b16 %v3135
        %v3424 = vunpack.c.l.b16 %v3136
        %v3425 = vunpack.c.l.b16 %v3137
        %v3426 = vunpack.c.l.b16 %v3138
        %v3427 = vunpack.c.l.b16 %v3139
        %v3428 = vunpack.c.l.b16 %v3140
        %v3429 = vunpack.c.l.b16 %v3141
        %v3430 = vunpack.c.l.b16 %v3142
        %v3431 = vunpack.c.l.b16 %v3143
        %v3432 = vunpack.c.l.b16 %v3144
        %v3433 = vunpack.c.l.b16 %v3145
        %v3434 = vunpack.c.l.b16 %v3146
        %v3435 = vunpack.c.l.b16 %v3147
        %v3436 = vunpack.c.l.b16 %v3148
        %v3437 = vunpack.c.l.b16 %v3149
        %v3438 = vunpack.c.l.b16 %v3150
        %v3439 = vunpack.c.l.b16 %v3151
        %v3440 = vunpack.c.l.b16 %v3152
        %v3441 = vunpack.c.l.b16 %v3153
        %v3442 = vunpack.c.l.b16 %v3154
        %v3443 = vunpack.c.l.b16 %v3155
        %v3444 = vunpack.c.l.b16 %v3156
        %v3445 = vunpack.c.l.b16 %v3157
        %v3446 = vunpack.c.l.b16 %v3158
        %v3447 = vunpack.c.l.b16 %v3159
        %v3448 = vunpack.c.l.b16 %v3160
        %v3449 = vunpack.c.l.b16 %v3161
        %v3450 = vunpack.c.l.b16 %v3162
        %v3451 = vunpack.c.l.b16 %v3163
        %v3452 = vunpack.c.l.b16 %v3164
        %v3453 = vunpack.c.l.b16 %v3165
        %v3454 = vunpack.c.l.b16 %v3166
        %v3455 = vunpack.c.l.b16 %v3167
        %v3456 = vunpack.c.l.b16 %v3168
        %v3457 = vunpack.c.l.b16 %v3169
        %v3458 = vunpack.c.l.b16 %v3170
        %v3459 = vunpack.c.l.b16 %v3171
        %v3460 = vunpack.c.l.b16 %v3172
        %v3461 = vunpack.c.l.b16 %v3173
        %v3462 = vunpack.c.l.b16 %v3174
        %v3463 = vunpack.c.l.b16 %v3175
        %v3464 = vunpack.c.l.b16 %v3176
        %v3465 = vunpack.c.l.b16 %v3177
        %v3466 = vunpack.c.l.b16 %v3178
        %v3467 = vunpack.c.l.b16 %v3179
        %v3468 = vunpack.c.l.b16 %v3180
        %v3469 = vunpack.c.l.b16 %v3181
        %v3470 = vunpack.c.l.b16 %v3182
        %v3471 = vunpack.c.l.b16 %v3183
        %v3472 = vunpack.c.l.b16 %v3184
        %v3473 = vunpack.c.l.b16 %v3185
        %v3474 = vunpack.c.l.b16 %v3186
        %v3475 = vunpack.c.l.b16 %v3187
        %v3476 = vunpack.c.l.b16 %v3188
        %v3477 = vunpack.c.l.b16 %v3189
        %v3478 = vunpack.c.l.b16 %v3190
        %v3479 = vunpack.c.l.b16 %v3191
        %v3480 = vunpack.c.l.b16 %v3192
        %v3481 = vunpack.c.l.b16 %v3193
        %v3482 = vunpack.c.l.b16 %v3194
        %v3483 = vunpack.c.l.b16 %v3195
        %v3484 = vunpack.c.l.b16 %v3196
        %v3485 = vunpack.c.l.b16 %v3197
        %v3486 = vunpack.c.l.b16 %v3198
        %v3487 = vunpack.c.l.b16 %v3199
        %v3488 = vunpack.c.l.b16 %v3200
        %v3489 = vunpack.c.l.b16 %v3201
        %v3490 = vunpack.c.l.b16 %v3202
        %v3491 = vunpack.c.l.b16 %v3203
        %v3492 = vunpack.c.l.b16 %v3204
        %v3493 = vunpack.c.l.b16 %v3205
        %v3494 = vunpack.c.l.b16 %v3206
        %v3495 = vunpack.c.l.b16 %v3207
        %v3496 = vunpack.c.l.b16 %v3208
        %v3497 = vunpack.c.l.b16 %v3209
        %v3498 = vunpack.c.l.b16 %v3210
        %v3499 = vunpack.c.l.b16 %v3211
        %v3500 = vunpack.c.l.b16 %v3212
        %v3501 = vunpack.c.l.b16 %v3213
        %v3502 = vunpack.c.l.b16 %v3214
        %v3503 = vunpack.c.l.b16 %v3215
        %v3504 = vunpack.c.l.b16 %v3216
        %v3505 = vunpack.c.l.b16 %v3217
        %v3506 = vunpack.c.l.b16 %v3218
        %v3507 = vunpack.c.l.b16 %v3219
        %v3508 = vunpack.c.l.b16 %v3220
        %v3509 = vunpack.c.l.b16 %v3221
        %v3510 = vunpack.c.l.b16 %v3222
        %v3511 = vunpack.c.l.b16 %v3223
        %v3512 = vunpack.c.l.b16 %v3224
        %v3513 = vunpack.c.l.b16 %v3225
        %v3514 = vunpack.c.l.b16 %v3226
        %v3515 = vunpack.c.l.b16 %v3227
        %v3516 = vunpack.c.l.b16 %v3228
        %v3517 = vunpack.c.l.b16 %v3229
        %v3518 = vunpack.c.l.b16 %v3230
        %v3519 = vunpack.c.l.b16 %v3231
        %v3520 = vunpack.c.l.b16 %v3232
        %v3521 = vunpack.c.l.b16 %v3233
        %v3522 = vunpack.c.l.b16 %v3234
        %v3523 = vunpack.c.l.b16 %v3235
        %v3524 = vunpack.c.l.b16 %v3236
        %v3525 = vunpack.c.l.b16 %v3237
        %v3526 = vunpack.c.l.b16 %v3238
        %v3527 = vunpack.c.l.b16 %v3239
        %v3528 = vunpack.c.l.b16 %v3240
        %v3529 = vunpack.c.l.b16 %v3241
        %v3530 = vunpack.c.l.b16 %v3242
        %v3531 = vunpack.c.l.b16 %v3243
        %v3532 = vunpack.c.l.b16 %v3244
        %v3533 = vunpack.c.l.b16 %v3245
        %v3534 = vunpack.c.l.b16 %v3246
        %v3535 = vunpack.c.l.b16 %v3247
        %v3536 = vunpack.c.l.b16 %v3248
        %v3537 = vunpack.c.l.b16 %v3249
        %v3538 = vunpack.c.l.b16 %v3250
        %v3539 = vunpack.c.l.b16 %v3251
        %v3540 = vunpack.c.l.b16 %v3252
        %v3541 = vunpack.c.l.b16 %v3253
        %v3542 = vunpack.c.l.b16 %v3254
        %v3543 = vpack.c.b16 %v3400, %v3399
        %v3544 = vpack.c.b16 %v3402, %v3401
        %v3545 = vpack.c.b16 %v3404, %v3403
        %v3546 = vpack.c.b16 %v3406, %v3405
        %v3547 = vpack.c.b16 %v3408, %v3407
        %v3548 = vpack.c.b16 %v3410, %v3409
        %v3549 = vpack.c.b16 %v3412, %v3411
        %v3550 = vpack.c.b16 %v3414, %v3413
        %v3551 = vpack.c.b16 %v3416, %v3415
        %v3552 = vpack.c.b16 %v3418, %v3417
        %v3553 = vpack.c.b16 %v3420, %v3419
        %v3554 = vpack.c.b16 %v3422, %v3421
        %v3555 = vpack.c.b16 %v3424, %v3423
        %v3556 = vpack.c.b16 %v3426, %v3425
        %v3557 = vpack.c.b16 %v3428, %v3427
        %v3558 = vpack.c.b16 %v3430, %v3429
        %v3559 = vpack.c.b16 %v3432, %v3431
        %v3560 = vpack.c.b16 %v3434, %v3433
        %v3561 = vpack.c.b16 %v3436, %v3435
        %v3562 = vpack.c.b16 %v3438, %v3437
        %v3563 = vpack.c.b16 %v3440, %v3439
        %v3564 = vpack.c.b16 %v3442, %v3441
        %v3565 = vpack.c.b16 %v3444, %v3443
        %v3566 = vpack.c.b16 %v3446, %v3445
        %v3567 = vpack.c.b16 %v3448, %v3447
        %v3568 = vpack.c.b16 %v3450, %v3449
        %v3569 = vpack.c.b16 %v3452, %v3451
        %v3570 = vpack.c.b16 %v3454, %v3453
        %v3571 = vpack.c.b16 %v3456, %v3455
        %v3572 = vpack.c.b16 %v3458, %v3457
        %v3573 = vpack.c.b16 %v3460, %v3459
        %v3574 = vpack.c.b16 %v3462, %v3461
        %v3575 = vpack.c.b16 %v3464, %v3463
        %v3576 = vpack.c.b16 %v3466, %v3465
        %v3577 = vpack.c.b16 %v3468, %v3467
        %v3578 = vpack.c.b16 %v3470, %v3469
        %v3579 = vpack.c.b16 %v3472, %v3471
        %v3580 = vpack.c.b16 %v3474, %v3473
        %v3581 = vpack.c.b16 %v3476, %v3475
        %v3582 = vpack.c.b16 %v3478, %v3477
        %v3583 = vpack.c.b16 %v3480, %v3479
        %v3584 = vpack.c.b16 %v3482, %v3481
        %v3585 = vpack.c.b16 %v3484, %v3483
        %v3586 = vpack.c.b16 %v3486, %v3485
        %v3587 = vpack.c.b16 %v3488, %v3487
        %v3588 = vpack.c.b16 %v3490, %v3489
        %v3589 = vpack.c.b16 %v3492, %v3491
        %v3590 = vpack.c.b16 %v3494, %v3493
        %v3591 = vpack.c.b16 %v3496, %v3495
        %v3592 = vpack.c.b16 %v3498, %v3497
        %v3593 = vpack.c.b16 %v3500, %v3499
        %v3594 = vpack.c.b16 %v3502, %v3501
        %v3595 = vpack.c.b16 %v3504, %v3503
        %v3596 = vpack.c.b16 %v3506, %v3505
        %v3597 = vpack.c.b16 %v3508, %v3507
        %v3598 = vpack.c.b16 %v3510, %v3509
        %v3599 = vpack.c.b16 %v3512, %v3511
        %v3600 = vpack.c.b16 %v3514, %v3513
        %v3601 = vpack.c.b16 %v3516, %v3515
        %v3602 = vpack.c.b16 %v3518, %v3517
        %v3603 = vpack.c.b16 %v3520, %v3519
        %v3604 = vpack.c.b16 %v3522, %v3521
        %v3605 = vpack.c.b16 %v3524, %v3523
        %v3606 = vpack.c.b16 %v3526, %v3525
        %v3607 = vpack.c.b16 %v3528, %v3527
        %v3608 = vpack.c.b16 %v3530, %v3529
        %v3609 = vpack.c.b16 %v3532, %v3531
        %v3610 = vpack.c.b16 %v3534, %v3533
        %v3611 = vpack.c.b16 %v3536, %v3535
        %v3612 = vpack.c.b16 %v3538, %v3537
        %v3613 = vpack.c.b16 %v3540, %v3539
        %v3614 = vpack.c.b16 %v3542, %v3541
        %3687 = vmatprep.subr.bf16.mxu0 0
        %3688 = vmatpush1.bf16.msra.mxu0 %v3543
        %3689 = vmatprep.subr.bf16.mxu0 0
        %3690 = vmatpush1.bf16.msra.mxu0 %v3544
        %3691 = vmatprep.subr.bf16.mxu0 0
        %3692 = vmatpush1.bf16.msra.mxu0 %v3545
        %3693 = vmatprep.subr.bf16.mxu0 0
        %3694 = vmatpush1.bf16.msra.mxu0 %v3546
        %3695 = vmatprep.subr.bf16.mxu0 0
        %3696 = vmatpush1.bf16.msra.mxu0 %v3547
        %3697 = vmatprep.subr.bf16.mxu0 0
        %3698 = vmatpush1.bf16.msra.mxu0 %v3548
        %3699 = vmatprep.subr.bf16.mxu0 0
        %3700 = vmatpush1.bf16.msra.mxu0 %v3549
        %3701 = vmatprep.subr.bf16.mxu0 0
        %3702 = vmatpush1.bf16.msra.mxu0 %v3550
        %3703 = vmatprep.subr.bf16.mxu0 0
        %3704 = vmatpush1.bf16.msra.mxu0 %v3551
        %3705 = vmatprep.subr.bf16.mxu0 0
        %3706 = vmatpush1.bf16.msra.mxu0 %v3552
        %3707 = vmatprep.subr.bf16.mxu0 0
        %3708 = vmatpush1.bf16.msra.mxu0 %v3553
        %3709 = vmatprep.subr.bf16.mxu0 0
        %3710 = vmatpush1.bf16.msra.mxu0 %v3554
        %3711 = vmatprep.subr.bf16.mxu0 0
        %3712 = vmatpush1.bf16.msra.mxu0 %v3555
        %3713 = vmatprep.subr.bf16.mxu0 0
        %3714 = vmatpush1.bf16.msra.mxu0 %v3556
        %3715 = vmatprep.subr.bf16.mxu0 0
        %3716 = vmatpush1.bf16.msra.mxu0 %v3557
        %3717 = vmatprep.subr.bf16.mxu0 0
        %3718 = vmatpush1.bf16.msra.mxu0 %v3558
        %3719 = vmatprep.mubr.bf16.mxu0 %v814
        %3720 = vmatmul.mubr.bf16.gmra.mrb[0].mxu0 %v813
        %v3721 = vpop.f32.mrb[0].mxu0
        %v3722 = vadd.f32 0.0, %v3721
        %v3723 = vpop.f32.mrb[0].mxu0
        %v3724 = vpop.f32.mrb[0].mxu0
        %v3725 = vadd.f32 0.0, %v3724
        %v3726 = vpop.f32.mrb[0].mxu0
        %3727 = vmatprep.mubr.bf16.mxu0 %v820
        %3728 = vmatmul.mubr.bf16.gmra.mrb[0].mxu0 %v819
        %v3729 = vpop.f32.mrb[0].mxu0
        %v3730 = vadd.f32 0.0, %v3729
        %v3731 = vpop.f32.mrb[0].mxu0
        %v3732 = vpop.f32.mrb[0].mxu0
        %v3733 = vadd.f32 0.0, %v3732
        %v3734 = vpop.f32.mrb[0].mxu0
        %3735 = vmatprep.mubr.bf16.mxu0 %v826
        %3736 = vmatmul.mubr.bf16.gmra.mrb[0].mxu0 %v825
        %v3737 = vpop.f32.mrb[0].mxu0
        %v3738 = vadd.f32 0.0, %v3737
        %v3739 = vpop.f32.mrb[0].mxu0
        %v3740 = vpop.f32.mrb[0].mxu0
        %v3741 = vadd.f32 0.0, %v3740
        %v3742 = vpop.f32.mrb[0].mxu0
        %3743 = vmatprep.mubr.bf16.mxu0 %v832
        %3744 = vmatmul.mubr.bf16.gmra.mrb[0].mxu0 %v831
        %v3745 = vpop.f32.mrb[0].mxu0
        %v3746 = vadd.f32 0.0, %v3745
        %v3747 = vpop.f32.mrb[0].mxu0
        %v3748 = vpop.f32.mrb[0].mxu0
        %v3749 = vadd.f32 0.0, %v3748
        %v3750 = vpop.f32.mrb[0].mxu0
        %3751 = vmatprep.mubr.bf16.mxu0 %v961
        %3752 = vmatmul.mubr.bf16.gmra.mrb[0].mxu0 %v960
        %v3753 = vpop.f32.mrb[0].mxu0
        %v3754 = vadd.f32 0.0, %v3753
        %v3755 = vpop.f32.mrb[0].mxu0
        %v3756 = vpop.f32.mrb[0].mxu0
        %v3757 = vadd.f32 0.0, %v3756
        %v3758 = vpop.f32.mrb[0].mxu0
        %3759 = vmatprep.mubr.bf16.mxu0 %v967
        %3760 = vmatmul.mubr.bf16.gmra.mrb[0].mxu0 %v966
        %v3761 = vpop.f32.mrb[0].mxu0
        %v3762 = vadd.f32 0.0, %v3761
        %v3763 = vpop.f32.mrb[0].mxu0
        %v3764 = vpop.f32.mrb[0].mxu0
        %v3765 = vadd.f32 0.0, %v3764
        %v3766 = vpop.f32.mrb[0].mxu0
        %3767 = vmatprep.mubr.bf16.mxu0 %v973
        %3768 = vmatmul.mubr.bf16.gmra.mrb[0].mxu0 %v972
        %v3769 = vpop.f32.mrb[0].mxu0
        %v3770 = vadd.f32 0.0, %v3769
        %v3771 = vpop.f32.mrb[0].mxu0
        %v3772 = vpop.f32.mrb[0].mxu0
        %v3773 = vadd.f32 0.0, %v3772
        %v3774 = vpop.f32.mrb[0].mxu0
        %3775 = vmatprep.mubr.bf16.mxu0 %v979
        %3776 = vmatmul.mubr.bf16.gmra.mrb[0].mxu0 %v978
        %v3777 = vpop.f32.mrb[0].mxu0
        %v3778 = vadd.f32 0.0, %v3777
        %v3779 = vpop.f32.mrb[0].mxu0
        %v3780 = vpop.f32.mrb[0].mxu0
        %v3781 = vadd.f32 0.0, %v3780
        %v3782 = vpop.f32.mrb[0].mxu0
        %3783 = vdwg.mxu0
        %3784 = vmatprep.subr.bf16.mxu0 0
        %3785 = vmatpush1.bf16.msra.mxu0 %v3559
        %3786 = vmatprep.subr.bf16.mxu0 0
        %3787 = vmatpush1.bf16.msra.mxu0 %v3560
        %3788 = vmatprep.subr.bf16.mxu0 0
        %3789 = vmatpush1.bf16.msra.mxu0 %v3561
        %3790 = vmatprep.subr.bf16.mxu0 0
        %3791 = vmatpush1.bf16.msra.mxu0 %v3562
        %3792 = vmatprep.subr.bf16.mxu0 0
        %3793 = vmatpush1.bf16.msra.mxu0 %v3563
        %3794 = vmatprep.subr.bf16.mxu0 0
        %3795 = vmatpush1.bf16.msra.mxu0 %v3564
        %3796 = vmatprep.subr.bf16.mxu0 0
        %3797 = vmatpush1.bf16.msra.mxu0 %v3565
        %3798 = vmatprep.subr.bf16.mxu0 0
        %3799 = vmatpush1.bf16.msra.mxu0 %v3566
        %3800 = vmatprep.subr.bf16.mxu0 0
        %3801 = vmatpush1.bf16.msra.mxu0 %v3567
        %3802 = vmatprep.subr.bf16.mxu0 0
        %3803 = vmatpush1.bf16.msra.mxu0 %v3568
        %3804 = vmatprep.subr.bf16.mxu0 0
        %3805 = vmatpush1.bf16.msra.mxu0 %v3569
        %3806 = vmatprep.subr.bf16.mxu0 0
        %3807 = vmatpush1.bf16.msra.mxu0 %v3570
        %3808 = vmatprep.subr.bf16.mxu0 0
        %3809 = vmatpush1.bf16.msra.mxu0 %v3571
        %3810 = vmatprep.subr.bf16.mxu0 0
        %3811 = vmatpush1.bf16.msra.mxu0 %v3572
        %3812 = vmatprep.subr.bf16.mxu0 0
        %3813 = vmatpush1.bf16.msra.mxu0 %v3573
        %3814 = vmatprep.subr.bf16.mxu0 0
        %3815 = vmatpush1.bf16.msra.mxu0 %v3574
        %3816 = vmatprep.mubr.bf16.mxu0 %v816
        %3817 = vmatmul.mubr.bf16.gmra.mrb[0].mxu0 %v815
        %v3818 = vpop.f32.mrb[0].mxu0
        %v3819 = vadd.f32 %v3722, %v3818
        %v3820 = vpop.f32.mrb[0].mxu0
        %v3821 = vpop.f32.mrb[0].mxu0
        %v3822 = vadd.f32 %v3725, %v3821
        %v3823 = vpop.f32.mrb[0].mxu0
        %3824 = vmatprep.mubr.bf16.mxu0 %v822
        %3825 = vmatmul.mubr.bf16.gmra.mrb[0].mxu0 %v821
        %v3826 = vpop.f32.mrb[0].mxu0
        %v3827 = vadd.f32 %v3730, %v3826
        %v3828 = vpop.f32.mrb[0].mxu0
        %v3829 = vpop.f32.mrb[0].mxu0
        %v3830 = vadd.f32 %v3733, %v3829
        %v3831 = vpop.f32.mrb[0].mxu0
        %3832 = vmatprep.mubr.bf16.mxu0 %v828
        %3833 = vmatmul.mubr.bf16.gmra.mrb[0].mxu0 %v827
        %v3834 = vpop.f32.mrb[0].mxu0
        %v3835 = vadd.f32 %v3738, %v3834
        %v3836 = vpop.f32.mrb[0].mxu0
        %v3837 = vpop.f32.mrb[0].mxu0
        %v3838 = vadd.f32 %v3741, %v3837
        %v3839 = vpop.f32.mrb[0].mxu0
        %3840 = vmatprep.mubr.bf16.mxu0 %v834
        %3841 = vmatmul.mubr.bf16.gmra.mrb[0].mxu0 %v833
        %v3842 = vpop.f32.mrb[0].mxu0
        %v3843 = vadd.f32 %v3746, %v3842
        %v3844 = vpop.f32.mrb[0].mxu0
        %v3845 = vpop.f32.mrb[0].mxu0
        %v3846 = vadd.f32 %v3749, %v3845
        %v3847 = vpop.f32.mrb[0].mxu0
        %3848 = vmatprep.mubr.bf16.mxu0 %v963
        %3849 = vmatmul.mubr.bf16.gmra.mrb[0].mxu0 %v962
        %v3850 = vpop.f32.mrb[0].mxu0
        %v3851 = vadd.f32 %v3754, %v3850
        %v3852 = vpop.f32.mrb[0].mxu0
        %v3853 = vpop.f32.mrb[0].mxu0
        %v3854 = vadd.f32 %v3757, %v3853
        %v3855 = vpop.f32.mrb[0].mxu0
        %3856 = vmatprep.mubr.bf16.mxu0 %v969
        %3857 = vmatmul.mubr.bf16.gmra.mrb[0].mxu0 %v968
        %v3858 = vpop.f32.mrb[0].mxu0
        %v3859 = vadd.f32 %v3762, %v3858
        %v3860 = vpop.f32.mrb[0].mxu0
        %v3861 = vpop.f32.mrb[0].mxu0
        %v3862 = vadd.f32 %v3765, %v3861
        %v3863 = vpop.f32.mrb[0].mxu0
        %3864 = vmatprep.mubr.bf16.mxu0 %v975
        %3865 = vmatmul.mubr.bf16.gmra.mrb[0].mxu0 %v974
        %v3866 = vpop.f32.mrb[0].mxu0
        %v3867 = vadd.f32 %v3770, %v3866
        %v3868 = vpop.f32.mrb[0].mxu0
        %v3869 = vpop.f32.mrb[0].mxu0
        %v3870 = vadd.f32 %v3773, %v3869
        %v3871 = vpop.f32.mrb[0].mxu0
        %3872 = vmatprep.mubr.bf16.mxu0 %v981
        %3873 = vmatmul.mubr.bf16.gmra.mrb[0].mxu0 %v980
        %v3874 = vpop.f32.mrb[0].mxu0
        %v3875 = vadd.f32 %v3778, %v3874
        %v3876 = vpop.f32.mrb[0].mxu0
        %v3877 = vpop.f32.mrb[0].mxu0
        %v3878 = vadd.f32 %v3781, %v3877
        %v3879 = vpop.f32.mrb[0].mxu0
        %3880 = vdwg.mxu0
        %3881 = vmatprep.subr.bf16.mxu0 0
        %3882 = vmatpush1.bf16.msra.mxu0 %v3575
        %3883 = vmatprep.subr.bf16.mxu0 0
        %3884 = vmatpush1.bf16.msra.mxu0 %v3576
        %3885 = vmatprep.subr.bf16.mxu0 0
        %3886 = vmatpush1.bf16.msra.mxu0 %v3577
        %3887 = vmatprep.subr.bf16.mxu0 0
        %3888 = vmatpush1.bf16.msra.mxu0 %v3578
        %3889 = vmatprep.subr.bf16.mxu0 0
        %3890 = vmatpush1.bf16.msra.mxu0 %v3579
        %3891 = vmatprep.subr.bf16.mxu0 0
        %3892 = vmatpush1.bf16.msra.mxu0 %v3580
        %3893 = vmatprep.subr.bf16.mxu0 0
        %3894 = vmatpush1.bf16.msra.mxu0 %v3581
        %3895 = vmatprep.subr.bf16.mxu0 0
        %3896 = vmatpush1.bf16.msra.mxu0 %v3582
        %3897 = vmatprep.subr.bf16.mxu0 0
        %3898 = vmatpush1.bf16.msra.mxu0 %v3583
        %3899 = vmatprep.subr.bf16.mxu0 0
        %3900 = vmatpush1.bf16.msra.mxu0 %v3584
        %3901 = vmatprep.subr.bf16.mxu0 0
        %3902 = vmatpush1.bf16.msra.mxu0 %v3585
        %3903 = vmatprep.subr.bf16.mxu0 0
        %3904 = vmatpush1.bf16.msra.mxu0 %v3586
        %3905 = vmatprep.subr.bf16.mxu0 0
        %3906 = vmatpush1.bf16.msra.mxu0 %v3587
        %3907 = vmatprep.subr.bf16.mxu0 0
        %3908 = vmatpush1.bf16.msra.mxu0 %v3588
        %3909 = vmatprep.subr.bf16.mxu0 0
        %3910 = vmatpush1.bf16.msra.mxu0 %v3589
        %3911 = vmatprep.subr.bf16.mxu0 0
        %3912 = vmatpush1.bf16.msra.mxu0 %v3590
        %3913 = vmatprep.mubr.bf16.mxu0 %v818
        %3914 = vmatmul.mubr.bf16.gmra.mrb[0].mxu0 %v817
        %v3915 = vpop.f32.mrb[0].mxu0
        %v3916 = vadd.f32 %v3819, %v3915
        %v3917 = vpop.f32.mrb[0].mxu0
        %v3918 = vpop.f32.mrb[0].mxu0
        %v3919 = vadd.f32 %v3822, %v3918
        %v3920 = vpop.f32.mrb[0].mxu0
        %3921 = vmatprep.mubr.bf16.mxu0 %v824
        %3922 = vmatmul.mubr.bf16.gmra.mrb[0].mxu0 %v823
        %v3923 = vpop.f32.mrb[0].mxu0
        %v3924 = vadd.f32 %v3827, %v3923
        %v3925 = vpop.f32.mrb[0].mxu0
        %v3926 = vpop.f32.mrb[0].mxu0
        %v3927 = vadd.f32 %v3830, %v3926
        %v3928 = vpop.f32.mrb[0].mxu0
        %3929 = vmatprep.mubr.bf16.mxu0 %v830
        %3930 = vmatmul.mubr.bf16.gmra.mrb[0].mxu0 %v829
        %v3931 = vpop.f32.mrb[0].mxu0
        %v3932 = vadd.f32 %v3835, %v3931
        %v3933 = vpop.f32.mrb[0].mxu0
        %v3934 = vpop.f32.mrb[0].mxu0
        %v3935 = vadd.f32 %v3838, %v3934
        %v3936 = vpop.f32.mrb[0].mxu0
        %3937 = vmatprep.mubr.bf16.mxu0 %v836
        %3938 = vmatmul.mubr.bf16.gmra.mrb[0].mxu0 %v835
        %v3939 = vpop.f32.mrb[0].mxu0
        %v3940 = vadd.f32 %v3843, %v3939
        %v3941 = vpop.f32.mrb[0].mxu0
        %v3942 = vpop.f32.mrb[0].mxu0
        %v3943 = vadd.f32 %v3846, %v3942
        %v3944 = vpop.f32.mrb[0].mxu0
        %3945 = vmatprep.mubr.bf16.mxu0 %v965
        %3946 = vmatmul.mubr.bf16.gmra.mrb[0].mxu0 %v964
        %v3947 = vpop.f32.mrb[0].mxu0
        %v3948 = vadd.f32 %v3851, %v3947
        %v3949 = vpop.f32.mrb[0].mxu0
        %v3950 = vpop.f32.mrb[0].mxu0
        %v3951 = vadd.f32 %v3854, %v3950
        %v3952 = vpop.f32.mrb[0].mxu0
        %3953 = vmatprep.mubr.bf16.mxu0 %v971
        %3954 = vmatmul.mubr.bf16.gmra.mrb[0].mxu0 %v970
        %v3955 = vpop.f32.mrb[0].mxu0
        %v3956 = vadd.f32 %v3859, %v3955
        %v3957 = vpop.f32.mrb[0].mxu0
        %v3958 = vpop.f32.mrb[0].mxu0
        %v3959 = vadd.f32 %v3862, %v3958
        %v3960 = vpop.f32.mrb[0].mxu0
        %3961 = vmatprep.mubr.bf16.mxu0 %v977
        %3962 = vmatmul.mubr.bf16.gmra.mrb[0].mxu0 %v976
        %v3963 = vpop.f32.mrb[0].mxu0
        %v3964 = vadd.f32 %v3867, %v3963
        %v3965 = vpop.f32.mrb[0].mxu0
        %v3966 = vpop.f32.mrb[0].mxu0
        %v3967 = vadd.f32 %v3870, %v3966
        %v3968 = vpop.f32.mrb[0].mxu0
        %3969 = vmatprep.mubr.bf16.mxu0 %v983
        %3970 = vmatmul.mubr.bf16.gmra.mrb[0].mxu0 %v982
        %v3971 = vpop.f32.mrb[0].mxu0
        %v3972 = vadd.f32 %v3875, %v3971
        %v3973 = vpop.f32.mrb[0].mxu0
        %v3974 = vpop.f32.mrb[0].mxu0
        %v3975 = vadd.f32 %v3878, %v3974
        %v3976 = vpop.f32.mrb[0].mxu0
        %3977 = vdwg.mxu0
        %3978 = vmatprep.subr.bf16.mxu0 0
        %3979 = vmatpush1.bf16.msra.mxu0 %v3591
        %3980 = vmatprep.subr.bf16.mxu0 0
        %3981 = vmatpush1.bf16.msra.mxu0 %v3592
        %3982 = vmatprep.subr.bf16.mxu0 0
        %3983 = vmatpush1.bf16.msra.mxu0 %v3593
        %3984 = vmatprep.subr.bf16.mxu0 0
        %3985 = vmatpush1.bf16.msra.mxu0 %v3594
        %3986 = vmatprep.subr.bf16.mxu0 0
        %3987 = vmatpush1.bf16.msra.mxu0 %v3595
        %3988 = vmatprep.subr.bf16.mxu0 0
        %3989 = vmatpush1.bf16.msra.mxu0 %v3596
        %3990 = vmatprep.subr.bf16.mxu0 0
        %3991 = vmatpush1.bf16.msra.mxu0 %v3597
        %3992 = vmatprep.subr.bf16.mxu0 0
        %3993 = vmatpush1.bf16.msra.mxu0 %v3598
        %3994 = vmatprep.subr.bf16.mxu0 0
        %3995 = vmatpush1.bf16.msra.mxu0 %v3599
        %3996 = vmatprep.subr.bf16.mxu0 0
        %3997 = vmatpush1.bf16.msra.mxu0 %v3600
        %3998 = vmatprep.subr.bf16.mxu0 0
        %3999 = vmatpush1.bf16.msra.mxu0 %v3601
        %4000 = vmatprep.subr.bf16.mxu0 0
        %4001 = vmatpush1.bf16.msra.mxu0 %v3602
        %4002 = vmatprep.subr.bf16.mxu0 0
        %4003 = vmatpush1.bf16.msra.mxu0 %v3603
        %4004 = vmatprep.subr.bf16.mxu0 0
        %4005 = vmatpush1.bf16.msra.mxu0 %v3604
        %4006 = vmatprep.subr.bf16.mxu0 0
        %4007 = vmatpush1.bf16.msra.mxu0 %v3605
        %4008 = vmatprep.subr.bf16.mxu0 0
        %4009 = vmatpush1.bf16.msra.mxu0 %v3606
        %4010 = vmatprep.mubr.bf16.mxu0 %v820
        %4011 = vmatmul.mubr.bf16.gmra.mrb[0].mxu0 %v819
        %v4012 = vpop.f32.mrb[0].mxu0
        %v4013 = vadd.f32 %v3916, %v4012
        %v4014 = vpop.f32.mrb[0].mxu0
        %v4015 = vpop.f32.mrb[0].mxu0
        %v4016 = vadd.f32 %v3919, %v4015
        %v4017 = vpop.f32.mrb[0].mxu0
        %4018 = vmatprep.mubr.bf16.mxu0 %v826
        %4019 = vmatmul.mubr.bf16.gmra.mrb[0].mxu0 %v825
        %v4020 = vpop.f32.mrb[0].mxu0
        %v4021 = vadd.f32 %v3924, %v4020
        %v4022 = vpop.f32.mrb[0].mxu0
        %v4023 = vpop.f32.mrb[0].mxu0
        %v4024 = vadd.f32 %v3927, %v4023
        %v4025 = vpop.f32.mrb[0].mxu0
        %4026 = vmatprep.mubr.bf16.mxu0 %v832
        %4027 = vmatmul.mubr.bf16.gmra.mrb[0].mxu0 %v831
        %v4028 = vpop.f32.mrb[0].mxu0
        %v4029 = vadd.f32 %v3932, %v4028
        %v4030 = vpop.f32.mrb[0].mxu0
        %v4031 = vpop.f32.mrb[0].mxu0
        %v4032 = vadd.f32 %v3935, %v4031
        %v4033 = vpop.f32.mrb[0].mxu0
        %4034 = vmatprep.mubr.bf16.mxu0 %v838
        %4035 = vmatmul.mubr.bf16.gmra.mrb[0].mxu0 %v837
        %v4036 = vpop.f32.mrb[0].mxu0
        %v4037 = vadd.f32 %v3940, %v4036
        %v4038 = vpop.f32.mrb[0].mxu0
        %v4039 = vpop.f32.mrb[0].mxu0
        %v4040 = vadd.f32 %v3943, %v4039
        %v4041 = vpop.f32.mrb[0].mxu0
        %4042 = vmatprep.mubr.bf16.mxu0 %v967
        %4043 = vmatmul.mubr.bf16.gmra.mrb[0].mxu0 %v966
        %v4044 = vpop.f32.mrb[0].mxu0
        %v4045 = vadd.f32 %v3948, %v4044
        %v4046 = vpop.f32.mrb[0].mxu0
        %v4047 = vpop.f32.mrb[0].mxu0
        %v4048 = vadd.f32 %v3951, %v4047
        %v4049 = vpop.f32.mrb[0].mxu0
        %4050 = vmatprep.mubr.bf16.mxu0 %v973
        %4051 = vmatmul.mubr.bf16.gmra.mrb[0].mxu0 %v972
        %v4052 = vpop.f32.mrb[0].mxu0
        %v4053 = vadd.f32 %v3956, %v4052
        %v4054 = vpop.f32.mrb[0].mxu0
        %v4055 = vpop.f32.mrb[0].mxu0
        %v4056 = vadd.f32 %v3959, %v4055
        %v4057 = vpop.f32.mrb[0].mxu0
        %4058 = vmatprep.mubr.bf16.mxu0 %v979
        %4059 = vmatmul.mubr.bf16.gmra.mrb[0].mxu0 %v978
        %v4060 = vpop.f32.mrb[0].mxu0
        %v4061 = vadd.f32 %v3964, %v4060
        %v4062 = vpop.f32.mrb[0].mxu0
        %v4063 = vpop.f32.mrb[0].mxu0
        %v4064 = vadd.f32 %v3967, %v4063
        %v4065 = vpop.f32.mrb[0].mxu0
        %4066 = vmatprep.mubr.bf16.mxu0 %v985
        %4067 = vmatmul.mubr.bf16.gmra.mrb[0].mxu0 %v984
        %v4068 = vpop.f32.mrb[0].mxu0
        %v4069 = vadd.f32 %v3972, %v4068
        %v4070 = vpop.f32.mrb[0].mxu0
        %v4071 = vpop.f32.mrb[0].mxu0
        %v4072 = vadd.f32 %v3975, %v4071
        %v4073 = vpop.f32.mrb[0].mxu0
        %4074 = vdwg.mxu0
        %4075 = vmatprep.subr.bf16.mxu0 0
        %4076 = vmatpush1.bf16.msra.mxu0 %v3607
        %4077 = vmatprep.subr.bf16.mxu0 0
        %4078 = vmatpush1.bf16.msra.mxu0 %v3608
        %4079 = vmatprep.subr.bf16.mxu0 0
        %4080 = vmatpush1.bf16.msra.mxu0 %v3609
        %4081 = vmatprep.subr.bf16.mxu0 0
        %4082 = vmatpush1.bf16.msra.mxu0 %v3610
        %4083 = vmatprep.subr.bf16.mxu0 0
        %4084 = vmatpush1.bf16.msra.mxu0 %v3611
        %4085 = vmatprep.subr.bf16.mxu0 0
        %4086 = vmatpush1.bf16.msra.mxu0 %v3612
        %4087 = vmatprep.subr.bf16.mxu0 0
        %4088 = vmatpush1.bf16.msra.mxu0 %v3613
        %4089 = vmatprep.subr.bf16.mxu0 0
        %4090 = vmatpush1.bf16.msra.mxu0 %v3614
        %4091 = vmatprep.subr.bf16.mxu0 0
        %4092 = vmatpush1.bf16.msra.mxu0 0
        %4093 = vmatprep.subr.bf16.mxu0 0
        %4094 = vmatpush1.bf16.msra.mxu0 0
        %4095 = vmatprep.subr.bf16.mxu0 0
        %4096 = vmatpush1.bf16.msra.mxu0 0
        %4097 = vmatprep.subr.bf16.mxu0 0
        %4098 = vmatpush1.bf16.msra.mxu0 0
        %4099 = vmatprep.subr.bf16.mxu0 0
        %4100 = vmatpush1.bf16.msra.mxu0 0
        %4101 = vmatprep.subr.bf16.mxu0 0
        %4102 = vmatpush1.bf16.msra.mxu0 0
        %4103 = vmatprep.subr.bf16.mxu0 0
        %4104 = vmatpush1.bf16.msra.mxu0 0
        %4105 = vmatprep.subr.bf16.mxu0 0
        %4106 = vmatpush1.bf16.msra.mxu0 0
        %4107 = vmatprep.mubr.bf16.mxu0 0
        %4108 = vmatmul.mubr.bf16.gmra.mrb[0].mxu0 %v821
        %v4109 = vpop.f32.mrb[0].mxu0
        %v4110 = vadd.f32 %v4013, %v4109
        %v4111 = vpop.f32.mrb[0].mxu0
        %v4112 = vpop.f32.mrb[0].mxu0
        %v4113 = vadd.f32 %v4016, %v4112
        %v4114 = vpop.f32.mrb[0].mxu0
        %4115 = vmatprep.mubr.bf16.mxu0 0
        %4116 = vmatmul.mubr.bf16.gmra.mrb[0].mxu0 %v827
        %v4117 = vpop.f32.mrb[0].mxu0
        %v4118 = vadd.f32 %v4021, %v4117
        %v4119 = vpop.f32.mrb[0].mxu0
        %v4120 = vpop.f32.mrb[0].mxu0
        %v4121 = vadd.f32 %v4024, %v4120
        %v4122 = vpop.f32.mrb[0].mxu0
        %4123 = vmatprep.mubr.bf16.mxu0 0
        %4124 = vmatmul.mubr.bf16.gmra.mrb[0].mxu0 %v833
        %v4125 = vpop.f32.mrb[0].mxu0
        %v4126 = vadd.f32 %v4029, %v4125
        %v4127 = vpop.f32.mrb[0].mxu0
        %v4128 = vpop.f32.mrb[0].mxu0
        %v4129 = vadd.f32 %v4032, %v4128
        %v4130 = vpop.f32.mrb[0].mxu0
        %4131 = vmatprep.mubr.bf16.mxu0 0
        %4132 = vmatmul.mubr.bf16.gmra.mrb[0].mxu0 %v839
        %v4133 = vpop.f32.mrb[0].mxu0
        %v4134 = vadd.f32 %v4037, %v4133
        %v4135 = vpop.f32.mrb[0].mxu0
        %v4136 = vpop.f32.mrb[0].mxu0
        %v4137 = vadd.f32 %v4040, %v4136
        %v4138 = vpop.f32.mrb[0].mxu0
        %4139 = vmatprep.mubr.bf16.mxu0 0
        %4140 = vmatmul.mubr.bf16.gmra.mrb[0].mxu0 %v968
        %v4141 = vpop.f32.mrb[0].mxu0
        %v4142 = vadd.f32 %v4045, %v4141
        %v4143 = vpop.f32.mrb[0].mxu0
        %v4144 = vpop.f32.mrb[0].mxu0
        %v4145 = vadd.f32 %v4048, %v4144
        %v4146 = vpop.f32.mrb[0].mxu0
        %4147 = vmatprep.mubr.bf16.mxu0 0
        %4148 = vmatmul.mubr.bf16.gmra.mrb[0].mxu0 %v974
        %v4149 = vpop.f32.mrb[0].mxu0
        %v4150 = vadd.f32 %v4053, %v4149
        %v4151 = vpop.f32.mrb[0].mxu0
        %v4152 = vpop.f32.mrb[0].mxu0
        %v4153 = vadd.f32 %v4056, %v4152
        %v4154 = vpop.f32.mrb[0].mxu0
        %4155 = vmatprep.mubr.bf16.mxu0 0
        %4156 = vmatmul.mubr.bf16.gmra.mrb[0].mxu0 %v980
        %v4157 = vpop.f32.mrb[0].mxu0
        %v4158 = vadd.f32 %v4061, %v4157
        %v4159 = vpop.f32.mrb[0].mxu0
        %v4160 = vpop.f32.mrb[0].mxu0
        %v4161 = vadd.f32 %v4064, %v4160
        %v4162 = vpop.f32.mrb[0].mxu0
        %4163 = vmatprep.mubr.bf16.mxu0 0
        %4164 = vmatmul.mubr.bf16.gmra.mrb[0].mxu0 %v986
        %v4165 = vpop.f32.mrb[0].mxu0
        %v4166 = vadd.f32 %v4069, %v4165
        %v4167 = vpop.f32.mrb[0].mxu0
        %v4168 = vpop.f32.mrb[0].mxu0
        %v4169 = vadd.f32 %v4072, %v4168
        %v4170 = vpop.f32.mrb[0].mxu0
        %4171 = vdwg.mxu0
        %v4172 = vadd.f32 %v3048, %v4110
        %v4173 = vadd.f32 %v3051, %v4113
        %v4174 = vadd.f32 %v3056, %v4118
        %v4175 = vadd.f32 %v3059, %v4121
        %v4176 = vadd.f32 %v3064, %v4126
        %v4177 = vadd.f32 %v3067, %v4129
        %v4178 = vadd.f32 %v3072, %v4134
        %v4179 = vadd.f32 %v3075, %v4137
        %v4180 = vadd.f32 %v3080, %v4142
        %v4181 = vadd.f32 %v3083, %v4145
        %v4182 = vadd.f32 %v3088, %v4150
        %v4183 = vadd.f32 %v3091, %v4153
        %v4184 = vadd.f32 %v3096, %v4158
        %v4185 = vadd.f32 %v3099, %v4161
        %v4186 = vadd.f32 %v3104, %v4166
        %v4187 = vadd.f32 %v3107, %v4169
        %v4188 = vpack.c.bf16 %v4172, %v4172
        %v4189 = vpack.c.bf16 %v4173, %v4173
        %v4190 = vpack.c.bf16 %v4174, %v4174
        %v4191 = vpack.c.bf16 %v4175, %v4175
        %v4192 = vpack.c.bf16 %v4176, %v4176
        %v4193 = vpack.c.bf16 %v4177, %v4177
        %v4194 = vpack.c.bf16 %v4178, %v4178
        %v4195 = vpack.c.bf16 %v4179, %v4179
        %v4196 = vpack.c.bf16 %v4180, %v4180
        %v4197 = vpack.c.bf16 %v4181, %v4181
        %v4198 = vpack.c.bf16 %v4182, %v4182
        %v4199 = vpack.c.bf16 %v4183, %v4183
        %v4200 = vpack.c.bf16 %v4184, %v4184
        %v4201 = vpack.c.bf16 %v4185, %v4185
        %v4202 = vpack.c.bf16 %v4186, %v4186
        %v4203 = vpack.c.bf16 %v4187, %v4187
        %4204 = vst [vmem:[%s302] sm:$0xf] %v4188
        %4205 = vst [vmem:[%s302 + $0x4] sm:$0xf] %v4189
        %4206 = vst [vmem:[%s302 + $0x8] sm:$0xf] %v4190
        %4207 = vst [vmem:[%s302 + $0xc] sm:$0xf] %v4191
        %4208 = vst [vmem:[%s302 + $0x10] sm:$0xf] %v4192
        %4209 = vst [vmem:[%s302 + $0x14] sm:$0xf] %v4193
        %4210 = vst [vmem:[%s302 + $0x18] sm:$0xf] %v4194
        %4211 = vst [vmem:[%s302 + $0x1c] sm:$0xf] %v4195
        %4212 = vst [vmem:[%s302 + $0x20] sm:$0xf] %v4196
        %4213 = vst [vmem:[%s302 + $0x24] sm:$0xf] %v4197
        %4214 = vst [vmem:[%s302 + $0x28] sm:$0xf] %v4198
        %4215 = vst [vmem:[%s302 + $0x2c] sm:$0xf] %v4199
        %4216 = vst [vmem:[%s302 + $0x30] sm:$0xf] %v4200
        %4217 = vst [vmem:[%s302 + $0x34] sm:$0xf] %v4201
        %4218 = vst [vmem:[%s302 + $0x38] sm:$0xf] %v4202
        %4219 = vst [vmem:[%s302 + $0x3c] sm:$0xf] %v4203
        %v4220 = vadd.f32 %v4172, %v4173
        %v4221 = vadd.f32 %v4220, %v4174
        %v4222 = vadd.f32 %v4221, %v4175
        %v4223 = vadd.f32 %v4222, %v4176
        %v4224 = vadd.f32 %v4223, %v4177
        %v4225 = vadd.f32 %v4224, %v4178
        %v4226 = vadd.f32 %v4225, %v4179
        %v4227 = vadd.f32 %v4226, %v4180
        %v4228 = vadd.f32 %v4227, %v4181
        %v4229 = vadd.f32 %v4228, %v4182
        %v4230 = vadd.f32 %v4229, %v4183
        %v4231 = vadd.f32 %v4230, %v4184
        %v4232 = vadd.f32 %v4231, %v4185
        %v4233 = vadd.f32 %v4232, %v4186
        %v4234 = vadd.f32 %v4233, %v4187
        %v4235 = vrot.slane %v4234, 4
        %v4236 = vadd.f32 %v4234, %v4235
        %v4237 = vrot.slane %v4236, 2
        %v4238 = vadd.f32 %v4236, %v4237
        %v4239 = vrot.slane %v4238, 1
        %v4240 = vadd.f32 %v4238, %v4239
        %4241 = vst [vmem:[%s309] sm:$0x1] %v4240
        %v4242 = vmul.f32 %v4172, %v4172
        %v4243 = vmul.f32 %v4173, %v4173
        %v4244 = vmul.f32 %v4174, %v4174
        %v4245 = vmul.f32 %v4175, %v4175
        %v4246 = vmul.f32 %v4176, %v4176
        %v4247 = vmul.f32 %v4177, %v4177
        %v4248 = vmul.f32 %v4178, %v4178
        %v4249 = vmul.f32 %v4179, %v4179
        %v4250 = vmul.f32 %v4180, %v4180
        %v4251 = vmul.f32 %v4181, %v4181
        %v4252 = vmul.f32 %v4182, %v4182
        %v4253 = vmul.f32 %v4183, %v4183
        %v4254 = vmul.f32 %v4184, %v4184
        %v4255 = vmul.f32 %v4185, %v4185
        %v4256 = vmul.f32 %v4186, %v4186
        %v4257 = vmul.f32 %v4187, %v4187
        %v4258 = vadd.f32 %v4242, %v4243
        %v4259 = vadd.f32 %v4258, %v4244
        %v4260 = vadd.f32 %v4259, %v4245
        %v4261 = vadd.f32 %v4260, %v4246
        %v4262 = vadd.f32 %v4261, %v4247
        %v4263 = vadd.f32 %v4262, %v4248
        %v4264 = vadd.f32 %v4263, %v4249
        %v4265 = vadd.f32 %v4264, %v4250
        %v4266 = vadd.f32 %v4265, %v4251
        %v4267 = vadd.f32 %v4266, %v4252
        %v4268 = vadd.f32 %v4267, %v4253
        %v4269 = vadd.f32 %v4268, %v4254
        %v4270 = vadd.f32 %v4269, %v4255
        %v4271 = vadd.f32 %v4270, %v4256
        %v4272 = vadd.f32 %v4271, %v4257
        %v4273 = vrot.slane %v4272, 4
        %v4274 = vadd.f32 %v4272, %v4273
        %v4275 = vrot.slane %v4274, 2
        %v4276 = vadd.f32 %v4274, %v4275
        %v4277 = vrot.slane %v4276, 1
        %v4278 = vadd.f32 %v4276, %v4277
        %4279 = vst [vmem:[%s309 + $0x1] sm:$0x1] %v4278
        %s4280 = sand.u32 %s129, 1
        %s4281 = scalar_lea.sflag [#allocation4], %s4280
        %s4282 = sand.u32 %s129, 1
        %s4283 = smul.addr %s4282, 64
        %s4284 = scalar_lea.vmem [#allocation8], %s4283
        %s4285 = sand.u32 %s157, 1
        %s4286 = scalar_lea.sflag [#allocation10], %s4285
        %s4287 = sand.u32 %s157, 1
        %s4288 = smul.addr %s4287, 2
        %s4289 = scalar_lea.vmem [#allocation9], %s4288
        // Predicated region
        $region45: #{conv3d_block_forward.6} parent=31 // pred_check
          %p4290 = pneg %p139
        $region46: #{conv3d_block_forward.6} parent=31 // pred_check_branch
          %4292 = sbr.rel (%p4290) target = $region48
        $region47: #{conv3d_block_forward.6} parent=31 // pred_region
          %s4293 = smul.u32 2, %s33
          %s4295 = ssub.s32 1024, 1024
          %4296 = vsyncadd %s4281, %s4295
          %s4297 = smul.addr %s4293, 8
          %s4298 = smul.addr %s32, 64
          %s4299 = sadd.s32 %s4297, %s4298
          %s4300 = smul.addr %s4299, 64
          %s4301 = scalar_lea.hbm %s3, %s4300
          %s4302 = sshll.u32 %s4284, 4
          %s4303 = int_to_ptr.vmem [resolvable:$true] %s4302
          %4308 = dma.vmem_to_hbm [thread:$0]  %s4303, 1024, %s4301, %s4281, 64, 64, 4
        $region48: #{conv3d_block_forward.6} parent=31 // pred_fallthru
          _
        // Predicated region
        $region49: #{conv3d_block_forward.6} parent=31 // pred_check
          %p4309 = pneg %p167
        $region50: #{conv3d_block_forward.6} parent=31 // pred_check_branch
          %4311 = sbr.rel (%p4309) target = $region52
        $region51: #{conv3d_block_forward.6} parent=31 // pred_region
          %s4313 = ssub.s32 32, 32
          %4314 = vsyncadd %s4286, %s4313
          %s4315 = smul.addr %s32, 4
          %s4316 = sadd.s32 %s33, %s4315
          %s4317 = smul.addr %s4316, 32
          %s4318 = scalar_lea.hbm %s4, %s4317
          %s4320 = sshll.u32 %s4289, 4
          %s4321 = int_to_ptr.vmem [resolvable:$true] %s4320
          %4323 = dma.vmem_to_hbm [thread:$0]  %s4321, 32, %s4318, %s4286
        $region52: #{conv3d_block_forward.6} parent=31 // pred_fallthru
          _
      $region32: #{conv3d_block_forward.6} parent=5 // pred_fallthru
        _
      %p4324 = scmp.le.s32.totalorder 2, %s23
      // Predicated region
      $region53: #{conv3d_block_forward.6} parent=5 // pred_check
        %p4325 = pneg %p4324
      $region54: #{conv3d_block_forward.6} parent=5 // pred_check_branch
        %4327 = sbr.rel (%p4325) target = $region56
      $region55: #{conv3d_block_forward.6} parent=5 // pred_region
        %s4328 = ssub.s32 %s23, 2
        // Predicated region
        $region57: #{conv3d_block_forward.6} parent=55 // pred_check
          %p4329 = pneg %p145
        $region58: #{conv3d_block_forward.6} parent=55 // pred_check_branch
          %4331 = sbr.rel (%p4329) target = $region60
        $region59: #{conv3d_block_forward.6} parent=55 // pred_region
          %s4332 = sand.u32 %s130, 1
          %s4333 = scalar_lea.sflag [#allocation4], %s4332
          %s4334 = sand.u32 %s130, 1
          %s4335 = smul.addr %s4334, 64
          %s4336 = scalar_lea.vmem [#allocation8], %s4335
          %4337 = dma.done %s4333, 1024
        $region60: #{conv3d_block_forward.6} parent=55 // pred_fallthru
          _
        // Predicated region
        $region61: #{conv3d_block_forward.6} parent=55 // pred_check
          %p4338 = pneg %p173
        $region62: #{conv3d_block_forward.6} parent=55 // pred_check_branch
          %4340 = sbr.rel (%p4338) target = $region64
        $region63: #{conv3d_block_forward.6} parent=55 // pred_region
          %s4341 = sand.u32 %s158, 1
          %s4342 = scalar_lea.sflag [#allocation10], %s4341
          %s4343 = sand.u32 %s158, 1
          %s4344 = smul.addr %s4343, 2
          %s4345 = scalar_lea.vmem [#allocation9], %s4344
          %4346 = dma.done %s4342, 32
        $region64: #{conv3d_block_forward.6} parent=55 // pred_fallthru
          _
      $region56: #{conv3d_block_forward.6} parent=5 // pred_fallthru
        _
    $region6: #{conv3d_block_forward.6} parent=1 // loop_footer
      %s27 = sadd.s32 1, %s23
    $region7: #{conv3d_block_forward.6} parent=1 // loop_footer_branch
      %22 = sbr.rel target = $region3
    $region8: #{conv3d_block_forward.6} parent=1 // loop_exit
      _
    %4347 = vsyncpa [#allocation3], 1
    %s4348 = scalar_lea.sflag [#allocation3], 1
    %4349 = vsyncpa %s4348, 1
    %4350 = vsyncpa [#allocation6], 1
    %s4351 = scalar_lea.sflag [#allocation6], 1
    %4352 = vsyncpa %s4351, 1
    %4353 = vsyncpa [#allocation4], 1
    %s4354 = scalar_lea.sflag [#allocation4], 1
    %4355 = vsyncpa %s4354, 1
    %4356 = vsyncpa [#allocation10], 1
    %s4357 = scalar_lea.sflag [#allocation10], 1
    %4358 = vsyncpa %s4357, 1

</llo_original>
